<compile_context>
chip_gen: v5e
topology: v5e:2x2
jax: 0.10.0
libtpu: 0.0.40
codegen_flags: <defaults>
</compile_context>

<pallas_src>
import jax
import jax.numpy as jnp
from jax.experimental import pallas as pl
from jax.experimental.pallas import tpu as pltpu

LANE = 128                    # TPU lane width; channel dims padded to this
TM = 256                      # pixels per matmul tile -- conservative so the
                              # double-buffered bf16 tiles fit v7x's 64 MiB VMEM
                              # even at real UNet widths; bump to 512-1024 on
                              # v5e/v6e for a bit more DMA efficiency.
NPAR = 2                      # outer 'parallel' grid axis (v7x: 2 TensorCores)
MM_DTYPE = jnp.bfloat16       # MXU operand dtype (f32 accumulate everywhere)
VMEM_LIMIT = 48 * 1024 * 1024
EPS = 1e-5


def _rup(v, m):
    return (v + m - 1) // m * m


def _pad_axis(x, axis, new_size):
    pad = [(0, 0)] * x.ndim
    pad[axis] = (0, new_size - x.shape[axis])
    return jnp.pad(x, pad)


# ---------------------------------------------------------------------------
# Pallas kernels
# ---------------------------------------------------------------------------
def _make_conv_stats_kernel(n_op):
    """Conv-as-matmul pass 1: h = sum_i x_i @ w_i (f32), written per M-tile, plus
    per-channel [sum; sumsq] accumulated into a small reduction output."""

    def kernel(*refs):
        x_refs = refs[:n_op]
        w_refs = refs[n_op:2 * n_op]
        o_ref, s_ref = refs[2 * n_op], refs[2 * n_op + 1]
        i = pl.program_id(1)                       # inner ('arbitrary') axis

        h = jnp.dot(x_refs[0][...], w_refs[0][...],
                    preferred_element_type=jnp.float32)
        for xr, wr in zip(x_refs[1:], w_refs[1:]):
            h = h + jnp.dot(xr[...], wr[...], preferred_element_type=jnp.float32)
        o_ref[...] = h

        # Per-channel sum / sum-of-squares via a ones-row matmul (MXU slot,
        # keeps the XLU free); rows of `ones @ h` are identical -> take row 0.
        ones = jnp.ones((8, h.shape[0]), jnp.float32)
        ssum = jnp.dot(ones, h, preferred_element_type=jnp.float32)[0:1]
        ssq = jnp.dot(ones, h * h, preferred_element_type=jnp.float32)[0:1]
        tile_stats = jnp.concatenate([ssum, ssq], axis=0)[None]   # [1, 2, Np]

        @pl.when(i == 0)
        def _init():
            s_ref[...] = jnp.zeros_like(s_ref)

        s_ref[...] += tile_stats

    return kernel


def _bn_relu_kernel(h_ref, scale_ref, shift_ref, o_ref):
    # Pass 2: y = relu(h * scale + shift); scale/shift fold mean/var/gamma/beta.
    o_ref[...] = jnp.maximum(h_ref[...] * scale_ref[...] + shift_ref[...],
                             0.0).astype(o_ref.dtype)


def _mm_bias_kernel(x_ref, w_ref, b_ref, o_ref):
    acc = jnp.dot(x_ref[...], w_ref[...], preferred_element_type=jnp.float32)
    o_ref[...] = (acc + b_ref[...]).astype(o_ref.dtype)


# ---------------------------------------------------------------------------
# pallas_call wrappers
# ---------------------------------------------------------------------------
def _conv_matmul_stats(patch_list, weight_list, m_true):
    """Pass 1 of conv+BN: returns (h [Mp, Np] f32, mean [Np], var [Np])."""
    n_op = len(patch_list)
    mp = patch_list[0].shape[0]
    np_ = weight_list[0].shape[1]
    assert mp % (NPAR * TM) == 0
    tpc = mp // (NPAR * TM)                        # M-tiles per parallel slice

    def tile_map(c, i):
        return (c * tpc + i, 0)

    in_specs = ([pl.BlockSpec((TM, p.shape[1]), tile_map) for p in patch_list] +
                [pl.BlockSpec(w.shape, lambda c, i: (0, 0)) for w in weight_list])
    out_specs = (pl.BlockSpec((TM, np_), tile_map),
                 pl.BlockSpec((1, 2, np_), lambda c, i: (c, 0, 0)))
    k_total = sum(w.shape[0] for w in weight_list)
    bytes_acc = int(sum(p.size * p.dtype.itemsize for p in patch_list)
                    + sum(w.size * w.dtype.itemsize for w in weight_list)
                    + mp * np_ * 4 + NPAR * 2 * np_ * 4)

    h, stats = pl.pallas_call(
        _make_conv_stats_kernel(n_op),
        grid=(NPAR, tpc),
        in_specs=in_specs,
        out_specs=out_specs,
        out_shape=(jax.ShapeDtypeStruct((mp, np_), jnp.float32),
                   jax.ShapeDtypeStruct((NPAR, 2, np_), jnp.float32)),
        compiler_params=pltpu.CompilerParams(
            dimension_semantics=("parallel", "arbitrary"),
            vmem_limit_bytes=VMEM_LIMIT),
        cost_estimate=pl.CostEstimate(flops=int(2 * mp * np_ * k_total),
                                      transcendentals=0,
                                      bytes_accessed=bytes_acc),
    )(*patch_list, *weight_list)

    s = jnp.sum(stats, axis=0)                     # combine per-core partials
    mean = s[0] / m_true                           # padded rows contribute 0
    var = jnp.maximum(s[1] / m_true - mean * mean, 0.0)
    return h, mean, var


def _bn_relu(h, mean, var, gamma_p, beta_p, out_dtype):
    mp, np_ = h.shape
    inv = jax.lax.rsqrt(var + EPS)
    scale = (gamma_p * inv).reshape(1, np_).astype(jnp.float32)
    shift = (beta_p - mean * gamma_p * inv).reshape(1, np_).astype(jnp.float32)
    return pl.pallas_call(
        _bn_relu_kernel,
        grid=(mp // TM,),
        in_specs=[pl.BlockSpec((TM, np_), lambda i: (i, 0)),
                  pl.BlockSpec((1, np_), lambda i: (0, 0)),
                  pl.BlockSpec((1, np_), lambda i: (0, 0))],
        out_specs=pl.BlockSpec((TM, np_), lambda i: (i, 0)),
        out_shape=jax.ShapeDtypeStruct((mp, np_), out_dtype),
        compiler_params=pltpu.CompilerParams(
            dimension_semantics=("parallel",), vmem_limit_bytes=VMEM_LIMIT),
    )(h, scale, shift)


def _matmul_bias(x, w, b, out_dtype):
    mp, k = x.shape
    np_ = w.shape[1]
    assert mp % TM == 0
    bytes_acc = int(x.size * x.dtype.itemsize + w.size * w.dtype.itemsize
                    + b.size * 4 + mp * np_ * jnp.dtype(out_dtype).itemsize)
    return pl.pallas_call(
        _mm_bias_kernel,
        grid=(mp // TM,),
        in_specs=[pl.BlockSpec((TM, k), lambda i: (i, 0)),
                  pl.BlockSpec((k, np_), lambda i: (0, 0)),
                  pl.BlockSpec((1, np_), lambda i: (0, 0))],
        out_specs=pl.BlockSpec((TM, np_), lambda i: (i, 0)),
        out_shape=jax.ShapeDtypeStruct((mp, np_), out_dtype),
        compiler_params=pltpu.CompilerParams(
            dimension_semantics=("parallel",), vmem_limit_bytes=VMEM_LIMIT),
        cost_estimate=pl.CostEstimate(flops=int(2 * mp * k * np_),
                                      transcendentals=0,
                                      bytes_accessed=bytes_acc),
    )(x, w, b)


# ---------------------------------------------------------------------------
# Plain-JAX layout glue (im2col, pixel-shuffle, pad, weight packing)
# ---------------------------------------------------------------------------
def _im2col_3x3(x_nhwc, m_pad):
    """3x3 / pad=1 patches -> [m_pad, 9*C] (tap-major, channel-minor); rows past
    N*H*W are zero, so they contribute nothing to the BN statistics."""
    n, h, w, c = x_nhwc.shape
    xp = jnp.pad(x_nhwc, ((0, 0), (1, 1), (1, 1), (0, 0)))
    taps = [xp[:, dh:dh + h, dw:dw + w, :] for dh in range(3) for dw in range(3)]
    p = jnp.concatenate(taps, axis=-1).reshape(n * h * w, 9 * c)
    return _pad_axis(p, 0, m_pad)
    # TODO(synk): replace with in-kernel halo-tile tap accumulation (no 9x copy).


def _conv3x3_weight_matrix(w, cin_lo, cin_hi, cin_pad, cout_pad):
    """w: [Cout, Cin_total, 3, 3] (torch). Take input channels [cin_lo, cin_hi),
    return bf16 [9*cin_pad, cout_pad]; K index = (kh*3 + kw)*cin_pad + ci."""
    wsub = w[:, cin_lo:cin_hi]
    cout, csub = wsub.shape[0], wsub.shape[1]
    wm = jnp.zeros((3, 3, cin_pad, cout_pad), jnp.float32)
    wm = wm.at[:, :, :csub, :cout].set(jnp.transpose(wsub, (2, 3, 1, 0)))
    return wm.reshape(9 * cin_pad, cout_pad).astype(MM_DTYPE)


def _quirky_pad(up, hy, wy):
    """Reproduce the reference code's F.pad argument order exactly:
    torch pads W by (y_left, y_right) and H by (x_left, x_right)."""
    hx, wx = up.shape[1], up.shape[2]
    x_left = (wy - wx) // 2
    x_right = wy - wx - x_left
    y_left = (hy - hx) // 2
    y_right = hy - hx - y_left
    return jnp.pad(up, ((0, 0), (x_left, x_right), (y_left, y_right), (0, 0)))


# ---------------------------------------------------------------------------
# UpBlock forward
# ---------------------------------------------------------------------------
def up_block_forward(x_nchw, y_nchw, params):
    nb, cin, h, w = x_nchw.shape
    cup = cin // 2
    csk = y_nchw.shape[1]
    cout = params["c1_w"].shape[0]
    hy, wy = y_nchw.shape[2], y_nchw.shape[3]

    cin_p = _rup(cin, LANE)
    cup_p = _rup(cup, LANE)
    csk_p = _rup(csk, LANE)
    cout_p = _rup(cout, LANE)

    x = jnp.transpose(x_nchw, (0, 2, 3, 1)).astype(jnp.float32)      # NHWC
    skip = jnp.transpose(y_nchw, (0, 2, 3, 1)).astype(jnp.float32)   # NHWC

    # ---- ConvTranspose2d(cin -> cup, k=2, s=2): per-pixel matmul -------------
    # columns laid out as (kh*2 + kw)*cup_p + co  (4*cup_p is lane-dense)
    wt = params["up_w"]                                              # [cin, cup, 2, 2]
    wm = jnp.zeros((cin_p, 2, 2, cup_p), jnp.float32)
    wm = wm.at[:cin, :, :, :cup].set(jnp.transpose(wt, (0, 2, 3, 1)))
    wm = wm.reshape(cin_p, 4 * cup_p).astype(MM_DTYPE)
    bm = jnp.zeros((2, 2, cup_p), jnp.float32)
    bm = bm.at[:, :, :cup].set(params["up_b"])
    bm = bm.reshape(1, 4 * cup_p)

    m0 = nb * h * w
    m0p = _rup(m0, TM)
    x_rows = _pad_axis(_pad_axis(x.reshape(m0, cin), 1, cin_p), 0, m0p)
    up = _matmul_bias(x_rows.astype(MM_DTYPE), wm, bm, MM_DTYPE)     # [m0p, 4*cup_p]
    up = up[:m0].reshape(nb, h, w, 2, 2, cup_p)
    up = jnp.transpose(up, (0, 1, 3, 2, 4, 5)).reshape(nb, 2 * h, 2 * w, cup_p)
    up = _quirky_pad(up, hy, wy)                                     # [nb, hy, wy, cup_p]

    # ---- conv1 (3x3, pad=1) + BN + ReLU; concat fused as a split-K matmul ----
    m1 = nb * hy * wy
    m1p = _rup(m1, NPAR * TM)
    skip_p = _pad_axis(skip, 3, csk_p).astype(MM_DTYPE)
    p_up = _im2col_3x3(up, m1p)                                      # [m1p, 9*cup_p] bf16
    p_sk = _im2col_3x3(skip_p, m1p)                                  # [m1p, 9*csk_p] bf16
    w1_up = _conv3x3_weight_matrix(params["c1_w"], 0, cup, cup_p, cout_p)
    w1_sk = _conv3x3_weight_matrix(params["c1_w"], cup, cup + csk, csk_p, cout_p)
    g1 = _pad_axis(params["bn1_g"], 0, cout_p)
    b1 = _pad_axis(params["bn1_b"], 0, cout_p)
    # NOTE: conv biases are omitted on purpose: training-mode BN subtracts the
    # per-channel batch mean, so a per-channel conv bias cancels exactly.
    h1, mean1, var1 = _conv_matmul_stats([p_up, p_sk], [w1_up, w1_sk], m1)
    a1 = _bn_relu(h1, mean1, var1, g1, b1, MM_DTYPE)                 # [m1p, cout_p]

    # ---- conv2 (3x3, pad=1) + BN + ReLU --------------------------------------
    a1_img = a1[:m1].reshape(nb, hy, wy, cout_p)
    p2 = _im2col_3x3(a1_img, m1p)                                    # [m1p, 9*cout_p]
    w2 = _conv3x3_weight_matrix(params["c2_w"], 0, cout, cout_p, cout_p)
    g2 = _pad_axis(params["bn2_g"], 0, cout_p)
    b2 = _pad_axis(params["bn2_b"], 0, cout_p)
    h2, mean2, var2 = _conv_matmul_stats([p2], [w2], m1)
    a2 = _bn_relu(h2, mean2, var2, g2, b2, jnp.float32)              # final in f32

    out = a2[:m1].reshape(nb, hy, wy, cout_p)[..., :cout]
    return jnp.transpose(out, (0, 3, 1, 2))                          # back to NCHW


# ---------------------------------------------------------------------------
# Params + plain-JAX reference (self-check)
# ---------------------------------------------------------------------------
def init_params(key, in_channels, out_channels):
    cup = in_channels // 2
    ks = jax.random.split(key, 8)
    return {
        # ConvTranspose2d weight: [Cin, Cin//2, 2, 2]
        "up_w": 0.1 * jax.random.normal(ks[0], (in_channels, cup, 2, 2), jnp.float32),
        "up_b": 0.1 * jax.random.normal(ks[1], (cup,), jnp.float32),
        # Conv2d #1: [Cout, Cin, 3, 3] (+bias: cancelled by BN, kept for parity)
        "c1_w": 0.1 * jax.random.normal(ks[2], (out_channels, in_channels, 3, 3), jnp.float32),
        "c1_b": 0.1 * jax.random.normal(ks[3], (out_channels,), jnp.float32),
        "bn1_g": jnp.ones((out_channels,), jnp.float32),
        "bn1_b": jnp.zeros((out_channels,), jnp.float32),
        # Conv2d #2: [Cout, Cout, 3, 3]
        "c2_w": 0.1 * jax.random.normal(ks[4], (out_channels, out_channels, 3, 3), jnp.float32),
        "c2_b": 0.1 * jax.random.normal(ks[5], (out_channels,), jnp.float32),
        "bn2_g": jnp.ones((out_channels,), jnp.float32),
        "bn2_b": jnp.zeros((out_channels,), jnp.float32),
    }


def _reference_forward(x_nchw, y_nchw, params):
    """Independent plain-JAX f32 reference with the same semantics."""
    nb, cin, h, w = x_nchw.shape
    cup = cin // 2
    hy, wy = y_nchw.shape[2], y_nchw.shape[3]
    x = jnp.transpose(x_nchw, (0, 2, 3, 1))
    skip = jnp.transpose(y_nchw, (0, 2, 3, 1))

    up = jnp.einsum("nhwi,iokl->nhwklo", x, params["up_w"]) + params["up_b"]
    up = jnp.transpose(up, (0, 1, 3, 2, 4, 5)).reshape(nb, 2 * h, 2 * w, cup)
    up = _quirky_pad(up, hy, wy)
    cat = jnp.concatenate([up, skip], axis=-1)

    def conv3x3(z, wgt, bias):
        zp = jnp.pad(z, ((0, 0), (1, 1), (1, 1), (0, 0)))
        _, hh, ww, _ = z.shape
        out = jnp.zeros(z.shape[:3] + (wgt.shape[0],), jnp.float32)
        for dh in range(3):
            for dw in range(3):
                out = out + jnp.einsum("nhwc,oc->nhwo",
                                       zp[:, dh:dh + hh, dw:dw + ww, :],
                                       wgt[:, :, dh, dw])
        return out + bias

    def bn_relu(z, g, b):
        mu = jnp.mean(z, axis=(0, 1, 2), keepdims=True)
        var = jnp.mean((z - mu) ** 2, axis=(0, 1, 2), keepdims=True)
        return jnp.maximum((z - mu) * jax.lax.rsqrt(var + EPS) * g + b, 0.0)

    z = bn_relu(conv3x3(cat, params["c1_w"], params["c1_b"]),
                params["bn1_g"], params["bn1_b"])
    z = bn_relu(conv3x3(z, params["c2_w"], params["c2_b"]),
                params["bn2_g"], params["bn2_b"])
    return jnp.transpose(z, (0, 3, 1, 2))


if __name__ == "__main__":
    in_channels, out_channels = 8, 4
    key = jax.random.PRNGKey(0)
    kx, ky, kp = jax.random.split(key, 3)

    # x is the low-res feature map (upsampled 2x); y is the skip connection.
    x = jax.random.normal(kx, (2, in_channels, 8, 8), jnp.float32)          # NCHW
    y = jax.random.normal(ky, (2, in_channels // 2, 16, 16), jnp.float32)   # NCHW
    params = init_params(kp, in_channels, out_channels)

    out = jax.jit(up_block_forward)(x, y, params)
    out = jax.block_until_ready(out)

    assert out.shape == (2, out_channels, 16, 16), out.shape
    assert bool(jnp.all(jnp.isfinite(out)))

    # Self-check vs the f32 reference (loose tolerance: bf16 MXU operands).
    ref = jax.jit(_reference_forward)(x, y, params)
    max_err = float(jnp.max(jnp.abs(out - ref)))
    assert max_err < 0.3, max_err

    print("KERNEL_OK")
</pallas_src>

<mosaic_0001>
module attributes {stable_mosaic.version = 11 : i64} {
  func.func @_mm_bias_kernel(%arg0: i32, %arg1: memref<256x128xbf16, #tpu.memory_space<vmem>>, %arg2: memref<128x512xbf16, #tpu.memory_space<vmem>>, %arg3: memref<1x512xf32, #tpu.memory_space<vmem>>, %arg4: memref<256x512xbf16, #tpu.memory_space<vmem>>) attributes {dimension_semantics = [#tpu.dimension_semantics<parallel>], iteration_bounds = array<i64: 1>, scalar_prefetch = 0 : i64, scratch_operands = 0 : i64, tpu.core_type = #tpu.core_type<tc>, window_params = [{transform_indices = @transform_0, window_bounds = array<i64: 256, 128>}, {pipeline_mode = #tpu.pipeline_mode<synchronous>, transform_indices = @transform_1, window_bounds = array<i64: 128, 512>}, {pipeline_mode = #tpu.pipeline_mode<synchronous>, transform_indices = @transform_2, window_bounds = array<i64: 1, 512>}, {transform_indices = @transform_3, window_bounds = array<i64: 256, 512>}]} {
    %c0 = arith.constant 0 : index
    %c0_0 = arith.constant 0 : index
    %0 = vector.load %arg1[%c0, %c0_0] : memref<256x128xbf16, #tpu.memory_space<vmem>>, vector<256x128xbf16>
    %c0_1 = arith.constant 0 : index
    %c0_2 = arith.constant 0 : index
    %1 = vector.load %arg2[%c0_1, %c0_2] : memref<128x512xbf16, #tpu.memory_space<vmem>>, vector<128x512xbf16>
    %cst = arith.constant dense<0.000000e+00> : vector<256x512xf32>
    %2 = tpu.matmul %0, %1, %cst {dimension_numbers = #tpu.dot_dimension_numbers<[1], [0], [0], [1], [0, 0, 1, 1], [], []>} : vector<256x128xbf16>, vector<128x512xbf16>, vector<256x512xf32> -> vector<256x512xf32>
    %c0_3 = arith.constant 0 : index
    %c0_4 = arith.constant 0 : index
    %3 = vector.load %arg3[%c0_3, %c0_4] : memref<1x512xf32, #tpu.memory_space<vmem>>, vector<1x512xf32>
    %4 = vector.broadcast %3 : vector<1x512xf32> to vector<256x512xf32>
    %5 = arith.addf %2, %4 : vector<256x512xf32>
    %6 = arith.truncf %5 : vector<256x512xf32> to vector<256x512xbf16>
    %c0_5 = arith.constant 0 : index
    %c0_6 = arith.constant 0 : index
    %7 = vector.load %arg4[%c0_5, %c0_6] : memref<256x512xbf16, #tpu.memory_space<vmem>>, vector<256x512xbf16>
    tpu.vector_store %arg4[%c0_5, %c0_6], %6 {strides = array<i32>} : memref<256x512xbf16, #tpu.memory_space<vmem>>, vector<256x512xbf16>,
    return
  }
  func.func @transform_0(%arg0: i32) -> (i32, i32) {
    %c0_i32 = arith.constant 0 : i32
    %c0_i32_0 = arith.constant 0 : i32
    return %arg0, %c0_i32 : i32, i32
  }
  func.func @transform_1(%arg0: i32) -> (i32, i32) {
    %c0_i32 = arith.constant 0 : i32
    %c0_i32_0 = arith.constant 0 : i32
    %c0_i32_1 = arith.constant 0 : i32
    return %c0_i32, %c0_i32_0 : i32, i32
  }
  func.func @transform_2(%arg0: i32) -> (i32, i32) {
    %c0_i32 = arith.constant 0 : i32
    %c0_i32_0 = arith.constant 0 : i32
    %c0_i32_1 = arith.constant 0 : i32
    return %c0_i32, %c0_i32_0 : i32, i32
  }
  func.func @transform_3(%arg0: i32) -> (i32, i32) {
    %c0_i32 = arith.constant 0 : i32
    %c0_i32_0 = arith.constant 0 : i32
    return %arg0, %c0_i32 : i32, i32
  }
}

module attributes {stable_mosaic.version = 11 : i64} {
  func.func @kernel(%arg0: i32, %arg1: i32, %arg2: memref<256x1152xbf16, #tpu.memory_space<vmem>>, %arg3: memref<256x1152xbf16, #tpu.memory_space<vmem>>, %arg4: memref<1152x128xbf16, #tpu.memory_space<vmem>>, %arg5: memref<1152x128xbf16, #tpu.memory_space<vmem>>, %arg6: memref<256x128xf32, #tpu.memory_space<vmem>>, %arg7: memref<1x2x128xf32, #tpu.memory_space<vmem>>) attributes {dimension_semantics = [#tpu.dimension_semantics<parallel>, #tpu.dimension_semantics<arbitrary>], iteration_bounds = array<i64: 2, 1>, scalar_prefetch = 0 : i64, scratch_operands = 0 : i64, tpu.core_type = #tpu.core_type<tc>, window_params = [{transform_indices = @transform_0, window_bounds = array<i64: 256, 1152>}, {transform_indices = @transform_1, window_bounds = array<i64: 256, 1152>}, {pipeline_mode = #tpu.pipeline_mode<synchronous>, transform_indices = @transform_2, window_bounds = array<i64: 1152, 128>}, {pipeline_mode = #tpu.pipeline_mode<synchronous>, transform_indices = @transform_3, window_bounds = array<i64: 1152, 128>}, {transform_indices = @transform_4, window_bounds = array<i64: 256, 128>}, {transform_indices = @transform_5, window_bounds = array<i64: 1, 2, 128>}]} {
    %c0 = arith.constant 0 : index
    %c0_0 = arith.constant 0 : index
    %0 = vector.load %arg2[%c0, %c0_0] : memref<256x1152xbf16, #tpu.memory_space<vmem>>, vector<256x1152xbf16>
    %c0_1 = arith.constant 0 : index
    %c0_2 = arith.constant 0 : index
    %1 = vector.load %arg4[%c0_1, %c0_2] : memref<1152x128xbf16, #tpu.memory_space<vmem>>, vector<1152x128xbf16>
    %cst = arith.constant dense<0.000000e+00> : vector<256x128xf32>
    %2 = tpu.matmul %0, %1, %cst {dimension_numbers = #tpu.dot_dimension_numbers<[1], [0], [0], [1], [0, 0, 1, 1], [], []>} : vector<256x1152xbf16>, vector<1152x128xbf16>, vector<256x128xf32> -> vector<256x128xf32>
    %c0_3 = arith.constant 0 : index
    %c0_4 = arith.constant 0 : index
    %3 = vector.load %arg3[%c0_3, %c0_4] : memref<256x1152xbf16, #tpu.memory_space<vmem>>, vector<256x1152xbf16>
    %c0_5 = arith.constant 0 : index
    %c0_6 = arith.constant 0 : index
    %4 = vector.load %arg5[%c0_5, %c0_6] : memref<1152x128xbf16, #tpu.memory_space<vmem>>, vector<1152x128xbf16>
    %cst_7 = arith.constant dense<0.000000e+00> : vector<256x128xf32>
    %5 = tpu.matmul %3, %4, %cst_7 {dimension_numbers = #tpu.dot_dimension_numbers<[1], [0], [0], [1], [0, 0, 1, 1], [], []>} : vector<256x1152xbf16>, vector<1152x128xbf16>, vector<256x128xf32> -> vector<256x128xf32>
    %6 = arith.addf %2, %5 : vector<256x128xf32>
    %c0_8 = arith.constant 0 : index
    %c0_9 = arith.constant 0 : index
    %7 = vector.load %arg6[%c0_8, %c0_9] : memref<256x128xf32, #tpu.memory_space<vmem>>, vector<256x128xf32>
    tpu.vector_store %arg6[%c0_8, %c0_9], %6 {strides = array<i32>} : memref<256x128xf32, #tpu.memory_space<vmem>>, vector<256x128xf32>,
    %cst_10 = arith.constant 1.000000e+00 : f32
    %8 = vector.broadcast %cst_10 : f32 to vector<8x256xf32>
    %cst_11 = arith.constant dense<0.000000e+00> : vector<8x128xf32>
    %9 = tpu.matmul %8, %6, %cst_11 {dimension_numbers = #tpu.dot_dimension_numbers<[1], [0], [0], [1], [0, 0, 1, 1], [], []>} : vector<8x256xf32>, vector<256x128xf32>, vector<8x128xf32> -> vector<8x128xf32>
    %10 = vector.extract_strided_slice %9 {offsets = [0, 0], sizes = [1, 128], strides = [1, 1]} : vector<8x128xf32> to vector<1x128xf32>
    %11 = arith.mulf %6, %6 : vector<256x128xf32>
    %cst_12 = arith.constant dense<0.000000e+00> : vector<8x128xf32>
    %12 = tpu.matmul %8, %11, %cst_12 {dimension_numbers = #tpu.dot_dimension_numbers<[1], [0], [0], [1], [0, 0, 1, 1], [], []>} : vector<8x256xf32>, vector<256x128xf32>, vector<8x128xf32> -> vector<8x128xf32>
    %13 = vector.extract_strided_slice %12 {offsets = [0, 0], sizes = [1, 128], strides = [1, 1]} : vector<8x128xf32> to vector<1x128xf32>
    %14 = tpu.concatenate %10, %13 in 0 : vector<1x128xf32>, vector<1x128xf32> -> vector<2x128xf32>
    %15 = vector.shape_cast %14 : vector<2x128xf32> to vector<1x2x128xf32>
    %c0_i32 = arith.constant 0 : i32
    %16 = arith.cmpi eq, %arg1, %c0_i32 : i32
    %17 = arith.extui %16 : i1 to i32
    %c0_i32_13 = arith.constant 0 : i32
    %18 = arith.cmpi ne, %17, %c0_i32_13 : i32
    scf.if %18 {
      %cst_20 = arith.constant 0.000000e+00 : f32
      %22 = vector.broadcast %cst_20 : f32 to vector<1x2x128xf32>
      %c0_21 = arith.constant 0 : index
      %c0_22 = arith.constant 0 : index
      %c0_23 = arith.constant 0 : index
      %23 = vector.load %arg7[%c0_21, %c0_22, %c0_23] : memref<1x2x128xf32, #tpu.memory_space<vmem>>, vector<1x2x128xf32>
      tpu.vector_store %arg7[%c0_21, %c0_22, %c0_23], %22 {strides = array<i32>} : memref<1x2x128xf32, #tpu.memory_space<vmem>>, vector<1x2x128xf32>,
    } else {
    }
    %c0_14 = arith.constant 0 : index
    %c0_15 = arith.constant 0 : index
    %c0_16 = arith.constant 0 : index
    %19 = vector.load %arg7[%c0_14, %c0_15, %c0_16] : memref<1x2x128xf32, #tpu.memory_space<vmem>>, vector<1x2x128xf32>
    %20 = arith.addf %19, %15 : vector<1x2x128xf32>
    %c0_17 = arith.constant 0 : index
    %c0_18 = arith.constant 0 : index
    %c0_19 = arith.constant 0 : index
    %21 = vector.load %arg7[%c0_17, %c0_18, %c0_19] : memref<1x2x128xf32, #tpu.memory_space<vmem>>, vector<1x2x128xf32>
    tpu.vector_store %arg7[%c0_17, %c0_18, %c0_19], %20 {strides = array<i32>} : memref<1x2x128xf32, #tpu.memory_space<vmem>>, vector<1x2x128xf32>,
    return
  }
  func.func @transform_0(%arg0: i32, %arg1: i32) -> (i32, i32) {
    %c1_i32 = arith.constant 1 : i32
    %0 = arith.muli %arg0, %c1_i32 : i32
    %1 = arith.addi %0, %arg1 : i32
    %c0_i32 = arith.constant 0 : i32
    %c0_i32_0 = arith.constant 0 : i32
    return %1, %c0_i32 : i32, i32
  }
  func.func @transform_1(%arg0: i32, %arg1: i32) -> (i32, i32) {
    %c1_i32 = arith.constant 1 : i32
    %0 = arith.muli %arg0, %c1_i32 : i32
    %1 = arith.addi %0, %arg1 : i32
    %c0_i32 = arith.constant 0 : i32
    %c0_i32_0 = arith.constant 0 : i32
    return %1, %c0_i32 : i32, i32
  }
  func.func @transform_2(%arg0: i32, %arg1: i32) -> (i32, i32) {
    %c0_i32 = arith.constant 0 : i32
    %c0_i32_0 = arith.constant 0 : i32
    %c0_i32_1 = arith.constant 0 : i32
    return %c0_i32, %c0_i32_0 : i32, i32
  }
  func.func @transform_3(%arg0: i32, %arg1: i32) -> (i32, i32) {
    %c0_i32 = arith.constant 0 : i32
    %c0_i32_0 = arith.constant 0 : i32
    %c0_i32_1 = arith.constant 0 : i32
    return %c0_i32, %c0_i32_0 : i32, i32
  }
  func.func @transform_4(%arg0: i32, %arg1: i32) -> (i32, i32) {
    %c1_i32 = arith.constant 1 : i32
    %0 = arith.muli %arg0, %c1_i32 : i32
    %1 = arith.addi %0, %arg1 : i32
    %c0_i32 = arith.constant 0 : i32
    %c0_i32_0 = arith.constant 0 : i32
    return %1, %c0_i32 : i32, i32
  }
  func.func @transform_5(%arg0: i32, %arg1: i32) -> (i32, i32, i32) {
    %c0_i32 = arith.constant 0 : i32
    %c0_i32_0 = arith.constant 0 : i32
    %c0_i32_1 = arith.constant 0 : i32
    return %arg0, %c0_i32, %c0_i32_0 : i32, i32, i32
  }
}

module attributes {stable_mosaic.version = 11 : i64} {
  func.func @_bn_relu_kernel(%arg0: i32, %arg1: memref<256x128xf32, #tpu.memory_space<vmem>>, %arg2: memref<1x128xf32, #tpu.memory_space<vmem>>, %arg3: memref<1x128xf32, #tpu.memory_space<vmem>>, %arg4: memref<256x128xbf16, #tpu.memory_space<vmem>>) attributes {dimension_semantics = [#tpu.dimension_semantics<parallel>], iteration_bounds = array<i64: 2>, scalar_prefetch = 0 : i64, scratch_operands = 0 : i64, tpu.core_type = #tpu.core_type<tc>, window_params = [{transform_indices = @transform_0, window_bounds = array<i64: 256, 128>}, {pipeline_mode = #tpu.pipeline_mode<synchronous>, transform_indices = @transform_1, window_bounds = array<i64: 1, 128>}, {pipeline_mode = #tpu.pipeline_mode<synchronous>, transform_indices = @transform_2, window_bounds = array<i64: 1, 128>}, {transform_indices = @transform_3, window_bounds = array<i64: 256, 128>}]} {
    %c0 = arith.constant 0 : index
    %c0_0 = arith.constant 0 : index
    %0 = vector.load %arg1[%c0, %c0_0] : memref<256x128xf32, #tpu.memory_space<vmem>>, vector<256x128xf32>
    %c0_1 = arith.constant 0 : index
    %c0_2 = arith.constant 0 : index
    %1 = vector.load %arg2[%c0_1, %c0_2] : memref<1x128xf32, #tpu.memory_space<vmem>>, vector<1x128xf32>
    %2 = vector.broadcast %1 : vector<1x128xf32> to vector<256x128xf32>
    %3 = arith.mulf %0, %2 : vector<256x128xf32>
    %c0_3 = arith.constant 0 : index
    %c0_4 = arith.constant 0 : index
    %4 = vector.load %arg3[%c0_3, %c0_4] : memref<1x128xf32, #tpu.memory_space<vmem>>, vector<1x128xf32>
    %5 = vector.broadcast %4 : vector<1x128xf32> to vector<256x128xf32>
    %6 = arith.addf %3, %5 : vector<256x128xf32>
    %cst = arith.constant 0.000000e+00 : f32
    %7 = vector.broadcast %cst : f32 to vector<256x128xf32>
    %8 = arith.maximumf %6, %7 : vector<256x128xf32>
    %9 = arith.truncf %8 : vector<256x128xf32> to vector<256x128xbf16>
    %c0_5 = arith.constant 0 : index
    %c0_6 = arith.constant 0 : index
    %10 = vector.load %arg4[%c0_5, %c0_6] : memref<256x128xbf16, #tpu.memory_space<vmem>>, vector<256x128xbf16>
    tpu.vector_store %arg4[%c0_5, %c0_6], %9 {strides = array<i32>} : memref<256x128xbf16, #tpu.memory_space<vmem>>, vector<256x128xbf16>,
    return
  }
  func.func @transform_0(%arg0: i32) -> (i32, i32) {
    %c0_i32 = arith.constant 0 : i32
    %c0_i32_0 = arith.constant 0 : i32
    return %arg0, %c0_i32 : i32, i32
  }
  func.func @transform_1(%arg0: i32) -> (i32, i32) {
    %c0_i32 = arith.constant 0 : i32
    %c0_i32_0 = arith.constant 0 : i32
    %c0_i32_1 = arith.constant 0 : i32
    return %c0_i32, %c0_i32_0 : i32, i32
  }
  func.func @transform_2(%arg0: i32) -> (i32, i32) {
    %c0_i32 = arith.constant 0 : i32
    %c0_i32_0 = arith.constant 0 : i32
    %c0_i32_1 = arith.constant 0 : i32
    return %c0_i32, %c0_i32_0 : i32, i32
  }
  func.func @transform_3(%arg0: i32) -> (i32, i32) {
    %c0_i32 = arith.constant 0 : i32
    %c0_i32_0 = arith.constant 0 : i32
    return %arg0, %c0_i32 : i32, i32
  }
}

module attributes {stable_mosaic.version = 11 : i64} {
  func.func @kernel(%arg0: i32, %arg1: i32, %arg2: memref<256x1152xbf16, #tpu.memory_space<vmem>>, %arg3: memref<1152x128xbf16, #tpu.memory_space<vmem>>, %arg4: memref<256x128xf32, #tpu.memory_space<vmem>>, %arg5: memref<1x2x128xf32, #tpu.memory_space<vmem>>) attributes {dimension_semantics = [#tpu.dimension_semantics<parallel>, #tpu.dimension_semantics<arbitrary>], iteration_bounds = array<i64: 2, 1>, scalar_prefetch = 0 : i64, scratch_operands = 0 : i64, tpu.core_type = #tpu.core_type<tc>, window_params = [{transform_indices = @transform_0, window_bounds = array<i64: 256, 1152>}, {pipeline_mode = #tpu.pipeline_mode<synchronous>, transform_indices = @transform_1, window_bounds = array<i64: 1152, 128>}, {transform_indices = @transform_2, window_bounds = array<i64: 256, 128>}, {transform_indices = @transform_3, window_bounds = array<i64: 1, 2, 128>}]} {
    %c0 = arith.constant 0 : index
    %c0_0 = arith.constant 0 : index
    %0 = vector.load %arg2[%c0, %c0_0] : memref<256x1152xbf16, #tpu.memory_space<vmem>>, vector<256x1152xbf16>
    %c0_1 = arith.constant 0 : index
    %c0_2 = arith.constant 0 : index
    %1 = vector.load %arg3[%c0_1, %c0_2] : memref<1152x128xbf16, #tpu.memory_space<vmem>>, vector<1152x128xbf16>
    %cst = arith.constant dense<0.000000e+00> : vector<256x128xf32>
    %2 = tpu.matmul %0, %1, %cst {dimension_numbers = #tpu.dot_dimension_numbers<[1], [0], [0], [1], [0, 0, 1, 1], [], []>} : vector<256x1152xbf16>, vector<1152x128xbf16>, vector<256x128xf32> -> vector<256x128xf32>
    %c0_3 = arith.constant 0 : index
    %c0_4 = arith.constant 0 : index
    %3 = vector.load %arg4[%c0_3, %c0_4] : memref<256x128xf32, #tpu.memory_space<vmem>>, vector<256x128xf32>
    tpu.vector_store %arg4[%c0_3, %c0_4], %2 {strides = array<i32>} : memref<256x128xf32, #tpu.memory_space<vmem>>, vector<256x128xf32>,
    %cst_5 = arith.constant 1.000000e+00 : f32
    %4 = vector.broadcast %cst_5 : f32 to vector<8x256xf32>
    %cst_6 = arith.constant dense<0.000000e+00> : vector<8x128xf32>
    %5 = tpu.matmul %4, %2, %cst_6 {dimension_numbers = #tpu.dot_dimension_numbers<[1], [0], [0], [1], [0, 0, 1, 1], [], []>} : vector<8x256xf32>, vector<256x128xf32>, vector<8x128xf32> -> vector<8x128xf32>
    %6 = vector.extract_strided_slice %5 {offsets = [0, 0], sizes = [1, 128], strides = [1, 1]} : vector<8x128xf32> to vector<1x128xf32>
    %7 = arith.mulf %2, %2 : vector<256x128xf32>
    %cst_7 = arith.constant dense<0.000000e+00> : vector<8x128xf32>
    %8 = tpu.matmul %4, %7, %cst_7 {dimension_numbers = #tpu.dot_dimension_numbers<[1], [0], [0], [1], [0, 0, 1, 1], [], []>} : vector<8x256xf32>, vector<256x128xf32>, vector<8x128xf32> -> vector<8x128xf32>
    %9 = vector.extract_strided_slice %8 {offsets = [0, 0], sizes = [1, 128], strides = [1, 1]} : vector<8x128xf32> to vector<1x128xf32>
    %10 = tpu.concatenate %6, %9 in 0 : vector<1x128xf32>, vector<1x128xf32> -> vector<2x128xf32>
    %11 = vector.shape_cast %10 : vector<2x128xf32> to vector<1x2x128xf32>
    %c0_i32 = arith.constant 0 : i32
    %12 = arith.cmpi eq, %arg1, %c0_i32 : i32
    %13 = arith.extui %12 : i1 to i32
    %c0_i32_8 = arith.constant 0 : i32
    %14 = arith.cmpi ne, %13, %c0_i32_8 : i32
    scf.if %14 {
      %cst_15 = arith.constant 0.000000e+00 : f32
      %18 = vector.broadcast %cst_15 : f32 to vector<1x2x128xf32>
      %c0_16 = arith.constant 0 : index
      %c0_17 = arith.constant 0 : index
      %c0_18 = arith.constant 0 : index
      %19 = vector.load %arg5[%c0_16, %c0_17, %c0_18] : memref<1x2x128xf32, #tpu.memory_space<vmem>>, vector<1x2x128xf32>
      tpu.vector_store %arg5[%c0_16, %c0_17, %c0_18], %18 {strides = array<i32>} : memref<1x2x128xf32, #tpu.memory_space<vmem>>, vector<1x2x128xf32>,
    } else {
    }
    %c0_9 = arith.constant 0 : index
    %c0_10 = arith.constant 0 : index
    %c0_11 = arith.constant 0 : index
    %15 = vector.load %arg5[%c0_9, %c0_10, %c0_11] : memref<1x2x128xf32, #tpu.memory_space<vmem>>, vector<1x2x128xf32>
    %16 = arith.addf %15, %11 : vector<1x2x128xf32>
    %c0_12 = arith.constant 0 : index
    %c0_13 = arith.constant 0 : index
    %c0_14 = arith.constant 0 : index
    %17 = vector.load %arg5[%c0_12, %c0_13, %c0_14] : memref<1x2x128xf32, #tpu.memory_space<vmem>>, vector<1x2x128xf32>
    tpu.vector_store %arg5[%c0_12, %c0_13, %c0_14], %16 {strides = array<i32>} : memref<1x2x128xf32, #tpu.memory_space<vmem>>, vector<1x2x128xf32>,
    return
  }
  func.func @transform_0(%arg0: i32, %arg1: i32) -> (i32, i32) {
    %c1_i32 = arith.constant 1 : i32
    %0 = arith.muli %arg0, %c1_i32 : i32
    %1 = arith.addi %0, %arg1 : i32
    %c0_i32 = arith.constant 0 : i32
    %c0_i32_0 = arith.constant 0 : i32
    return %1, %c0_i32 : i32, i32
  }
  func.func @transform_1(%arg0: i32, %arg1: i32) -> (i32, i32) {
    %c0_i32 = arith.constant 0 : i32
    %c0_i32_0 = arith.constant 0 : i32
    %c0_i32_1 = arith.constant 0 : i32
    return %c0_i32, %c0_i32_0 : i32, i32
  }
  func.func @transform_2(%arg0: i32, %arg1: i32) -> (i32, i32) {
    %c1_i32 = arith.constant 1 : i32
    %0 = arith.muli %arg0, %c1_i32 : i32
    %1 = arith.addi %0, %arg1 : i32
    %c0_i32 = arith.constant 0 : i32
    %c0_i32_0 = arith.constant 0 : i32
    return %1, %c0_i32 : i32, i32
  }
  func.func @transform_3(%arg0: i32, %arg1: i32) -> (i32, i32, i32) {
    %c0_i32 = arith.constant 0 : i32
    %c0_i32_0 = arith.constant 0 : i32
    %c0_i32_1 = arith.constant 0 : i32
    return %arg0, %c0_i32, %c0_i32_0 : i32, i32, i32
  }
}

module attributes {stable_mosaic.version = 11 : i64} {
  func.func @_bn_relu_kernel(%arg0: i32, %arg1: memref<256x128xf32, #tpu.memory_space<vmem>>, %arg2: memref<1x128xf32, #tpu.memory_space<vmem>>, %arg3: memref<1x128xf32, #tpu.memory_space<vmem>>, %arg4: memref<256x128xf32, #tpu.memory_space<vmem>>) attributes {dimension_semantics = [#tpu.dimension_semantics<parallel>], iteration_bounds = array<i64: 2>, scalar_prefetch = 0 : i64, scratch_operands = 0 : i64, tpu.core_type = #tpu.core_type<tc>, window_params = [{transform_indices = @transform_0, window_bounds = array<i64: 256, 128>}, {pipeline_mode = #tpu.pipeline_mode<synchronous>, transform_indices = @transform_1, window_bounds = array<i64: 1, 128>}, {pipeline_mode = #tpu.pipeline_mode<synchronous>, transform_indices = @transform_2, window_bounds = array<i64: 1, 128>}, {transform_indices = @transform_3, window_bounds = array<i64: 256, 128>}]} {
    %c0 = arith.constant 0 : index
    %c0_0 = arith.constant 0 : index
    %0 = vector.load %arg1[%c0, %c0_0] : memref<256x128xf32, #tpu.memory_space<vmem>>, vector<256x128xf32>
    %c0_1 = arith.constant 0 : index
    %c0_2 = arith.constant 0 : index
    %1 = vector.load %arg2[%c0_1, %c0_2] : memref<1x128xf32, #tpu.memory_space<vmem>>, vector<1x128xf32>
    %2 = vector.broadcast %1 : vector<1x128xf32> to vector<256x128xf32>
    %3 = arith.mulf %0, %2 : vector<256x128xf32>
    %c0_3 = arith.constant 0 : index
    %c0_4 = arith.constant 0 : index
    %4 = vector.load %arg3[%c0_3, %c0_4] : memref<1x128xf32, #tpu.memory_space<vmem>>, vector<1x128xf32>
    %5 = vector.broadcast %4 : vector<1x128xf32> to vector<256x128xf32>
    %6 = arith.addf %3, %5 : vector<256x128xf32>
    %cst = arith.constant 0.000000e+00 : f32
    %7 = vector.broadcast %cst : f32 to vector<256x128xf32>
    %8 = arith.maximumf %6, %7 : vector<256x128xf32>
    %c0_5 = arith.constant 0 : index
    %c0_6 = arith.constant 0 : index
    %9 = vector.load %arg4[%c0_5, %c0_6] : memref<256x128xf32, #tpu.memory_space<vmem>>, vector<256x128xf32>
    tpu.vector_store %arg4[%c0_5, %c0_6], %8 {strides = array<i32>} : memref<256x128xf32, #tpu.memory_space<vmem>>, vector<256x128xf32>,
    return
  }
  func.func @transform_0(%arg0: i32) -> (i32, i32) {
    %c0_i32 = arith.constant 0 : i32
    %c0_i32_0 = arith.constant 0 : i32
    return %arg0, %c0_i32 : i32, i32
  }
  func.func @transform_1(%arg0: i32) -> (i32, i32) {
    %c0_i32 = arith.constant 0 : i32
    %c0_i32_0 = arith.constant 0 : i32
    %c0_i32_1 = arith.constant 0 : i32
    return %c0_i32, %c0_i32_0 : i32, i32
  }
  func.func @transform_2(%arg0: i32) -> (i32, i32) {
    %c0_i32 = arith.constant 0 : i32
    %c0_i32_0 = arith.constant 0 : i32
    %c0_i32_1 = arith.constant 0 : i32
    return %c0_i32, %c0_i32_0 : i32, i32
  }
  func.func @transform_3(%arg0: i32) -> (i32, i32) {
    %c0_i32 = arith.constant 0 : i32
    %c0_i32_0 = arith.constant 0 : i32
    return %arg0, %c0_i32 : i32, i32
  }
}

</mosaic_0001>

<llo_original>
// kernel: up_block_forward.5
$region0: #{up_block_forward.5}
  #allocation0 [shape = 'u32[]', space=smem, size = 0x4, offset = 0x4, fixed_abs, tag = 'smem constant byte address 0x4 - core index']
  #allocation1 [shape = 'u32[72,128]{1,0:T(1,128)}', space=vmem, size = 0x9000, scoped, tag = 'internal scratch']
  %s0 = inlined_call_operand.vmem [shape: bf16[256,128], index: 0, kind: input, shape index: {}]
  %s1 = inlined_call_operand.vmem [shape: bf16[128,512], index: 1, kind: input, shape index: {}]
  %s2 = inlined_call_operand.vmem [shape: f32[1,512], index: 2, kind: input, shape index: {}]
  %s3 = inlined_call_operand.vmem [shape: bf16[256,512], index: 3, kind: output, shape index: {}]
  %s4 = sld [smem:[#allocation0]]
  $region22: #{up_block_forward.5} parent=0
    _
  %s6 = ssub.s32 1, %s4
  %s7 = scalar_select 0, %s6, %s4
  // Predicated region
  $region2: #{up_block_forward.5} parent=0 // pred_check
    _
  $region3: #{up_block_forward.5} parent=0 // pred_check_branch
    %9 = sbr.rel (0) target = $region5
  $region4: #{up_block_forward.5} parent=0 // pred_region
    _
  $region5: #{up_block_forward.5} parent=0 // pred_fallthru
    _
  // Predicated region
  $region6: #{up_block_forward.5} parent=0 // pred_check
    _
  $region7: #{up_block_forward.5} parent=0 // pred_check_branch
    %11 = sbr.rel (0) target = $region9
  $region8: #{up_block_forward.5} parent=0 // pred_region
    _
  $region9: #{up_block_forward.5} parent=0 // pred_fallthru
    _
  // Predicated region
  $region10: #{up_block_forward.5} parent=0 // pred_check
    _
  $region11: #{up_block_forward.5} parent=0 // pred_check_branch
    %13 = sbr.rel (0) target = $region13
  $region12: #{up_block_forward.5} parent=0 // pred_region
    _
  $region13: #{up_block_forward.5} parent=0 // pred_fallthru
    _
  %v14 = vld [vmem:[%s0] sm:$0xf]
  %v15 = vld [vmem:[%s0 + $0x4] sm:$0xf]
  %v16 = vld [vmem:[%s0 + $0x8] sm:$0xf]
  %v17 = vld [vmem:[%s0 + $0xc] sm:$0xf]
  %v18 = vld [vmem:[%s0 + $0x10] sm:$0xf]
  %v19 = vld [vmem:[%s0 + $0x14] sm:$0xf]
  %v20 = vld [vmem:[%s0 + $0x18] sm:$0xf]
  %v21 = vld [vmem:[%s0 + $0x1c] sm:$0xf]
  %v22 = vld [vmem:[%s0 + $0x20] sm:$0xf]
  %v23 = vld [vmem:[%s0 + $0x24] sm:$0xf]
  %v24 = vld [vmem:[%s0 + $0x28] sm:$0xf]
  %v25 = vld [vmem:[%s0 + $0x2c] sm:$0xf]
  %v26 = vld [vmem:[%s0 + $0x30] sm:$0xf]
  %v27 = vld [vmem:[%s0 + $0x34] sm:$0xf]
  %v28 = vld [vmem:[%s0 + $0x38] sm:$0xf]
  %v29 = vld [vmem:[%s0 + $0x3c] sm:$0xf]
  %v30 = vld [vmem:[%s0 + $0x40] sm:$0xf]
  %v31 = vld [vmem:[%s0 + $0x44] sm:$0xf]
  %v32 = vld [vmem:[%s0 + $0x48] sm:$0xf]
  %v33 = vld [vmem:[%s0 + $0x4c] sm:$0xf]
  %v34 = vld [vmem:[%s0 + $0x50] sm:$0xf]
  %v35 = vld [vmem:[%s0 + $0x54] sm:$0xf]
  %v36 = vld [vmem:[%s0 + $0x58] sm:$0xf]
  %v37 = vld [vmem:[%s0 + $0x5c] sm:$0xf]
  %v38 = vld [vmem:[%s0 + $0x60] sm:$0xf]
  %v39 = vld [vmem:[%s0 + $0x64] sm:$0xf]
  %v40 = vld [vmem:[%s0 + $0x68] sm:$0xf]
  %v41 = vld [vmem:[%s0 + $0x6c] sm:$0xf]
  %v42 = vld [vmem:[%s0 + $0x70] sm:$0xf]
  %v43 = vld [vmem:[%s0 + $0x74] sm:$0xf]
  %v44 = vld [vmem:[%s0 + $0x78] sm:$0xf]
  %v45 = vld [vmem:[%s0 + $0x7c] sm:$0xf]
  %v46 = vld [vmem:[%s1] sm:$0xff]
  %v47 = vld [vmem:[%s1 + $0x8] sm:$0xff]
  %v48 = vld [vmem:[%s1 + $0x10] sm:$0xff]
  %v49 = vld [vmem:[%s1 + $0x18] sm:$0xff]
  %v50 = vld [vmem:[%s1 + $0x20] sm:$0xff]
  %v51 = vld [vmem:[%s1 + $0x28] sm:$0xff]
  %v52 = vld [vmem:[%s1 + $0x30] sm:$0xff]
  %v53 = vld [vmem:[%s1 + $0x38] sm:$0xff]
  %v54 = vld [vmem:[%s1 + $0x40] sm:$0xff]
  %v55 = vld [vmem:[%s1 + $0x48] sm:$0xff]
  %v56 = vld [vmem:[%s1 + $0x50] sm:$0xff]
  %v57 = vld [vmem:[%s1 + $0x58] sm:$0xff]
  %v58 = vld [vmem:[%s1 + $0x60] sm:$0xff]
  %v59 = vld [vmem:[%s1 + $0x68] sm:$0xff]
  %v60 = vld [vmem:[%s1 + $0x70] sm:$0xff]
  %v61 = vld [vmem:[%s1 + $0x78] sm:$0xff]
  %v62 = vld [vmem:[%s1 + $0x80] sm:$0xff]
  %v63 = vld [vmem:[%s1 + $0x88] sm:$0xff]
  %v64 = vld [vmem:[%s1 + $0x90] sm:$0xff]
  %v65 = vld [vmem:[%s1 + $0x98] sm:$0xff]
  %v66 = vld [vmem:[%s1 + $0xa0] sm:$0xff]
  %v67 = vld [vmem:[%s1 + $0xa8] sm:$0xff]
  %v68 = vld [vmem:[%s1 + $0xb0] sm:$0xff]
  %v69 = vld [vmem:[%s1 + $0xb8] sm:$0xff]
  %v70 = vld [vmem:[%s1 + $0xc0] sm:$0xff]
  %v71 = vld [vmem:[%s1 + $0xc8] sm:$0xff]
  %v72 = vld [vmem:[%s1 + $0xd0] sm:$0xff]
  %v73 = vld [vmem:[%s1 + $0xd8] sm:$0xff]
  %v74 = vld [vmem:[%s1 + $0xe0] sm:$0xff]
  %v75 = vld [vmem:[%s1 + $0xe8] sm:$0xff]
  %v76 = vld [vmem:[%s1 + $0xf0] sm:$0xff]
  %v77 = vld [vmem:[%s1 + $0xf8] sm:$0xff]
  %v78 = vld [vmem:[%s2] sm:$0xf]
  %v80 = vperm.slane %v78, 0
  %v81 = vperm.slane %v78, 1
  %v82 = vperm.slane %v78, 2
  %v83 = vperm.slane %v78, 3
  %v120 = vunpack.c.l.b16 %v14
  %v121 = vunpack.c.l.b16 %v15
  %v122 = vunpack.c.l.b16 %v16
  %v123 = vunpack.c.l.b16 %v17
  %v124 = vunpack.c.l.b16 %v18
  %v125 = vunpack.c.l.b16 %v19
  %v126 = vunpack.c.l.b16 %v20
  %v127 = vunpack.c.l.b16 %v21
  %v128 = vunpack.c.l.b16 %v22
  %v129 = vunpack.c.l.b16 %v23
  %v130 = vunpack.c.l.b16 %v24
  %v131 = vunpack.c.l.b16 %v25
  %v132 = vunpack.c.l.b16 %v26
  %v133 = vunpack.c.l.b16 %v27
  %v134 = vunpack.c.l.b16 %v28
  %v135 = vunpack.c.l.b16 %v29
  %v136 = vunpack.c.l.b16 %v30
  %v137 = vunpack.c.l.b16 %v31
  %v138 = vunpack.c.l.b16 %v32
  %v139 = vunpack.c.l.b16 %v33
  %v140 = vunpack.c.l.b16 %v34
  %v141 = vunpack.c.l.b16 %v35
  %v142 = vunpack.c.l.b16 %v36
  %v143 = vunpack.c.l.b16 %v37
  %v144 = vunpack.c.l.b16 %v38
  %v145 = vunpack.c.l.b16 %v39
  %v146 = vunpack.c.l.b16 %v40
  %v147 = vunpack.c.l.b16 %v41
  %v148 = vunpack.c.l.b16 %v42
  %v149 = vunpack.c.l.b16 %v43
  %v150 = vunpack.c.l.b16 %v44
  %v151 = vunpack.c.l.b16 %v45
  %v152 = vpack.c.b16 %v121, %v120
  %v153 = vpack.c.b16 %v123, %v122
  %v154 = vpack.c.b16 %v125, %v124
  %v155 = vpack.c.b16 %v127, %v126
  %v156 = vpack.c.b16 %v129, %v128
  %v157 = vpack.c.b16 %v131, %v130
  %v158 = vpack.c.b16 %v133, %v132
  %v159 = vpack.c.b16 %v135, %v134
  %v160 = vpack.c.b16 %v137, %v136
  %v161 = vpack.c.b16 %v139, %v138
  %v162 = vpack.c.b16 %v141, %v140
  %v163 = vpack.c.b16 %v143, %v142
  %v164 = vpack.c.b16 %v145, %v144
  %v165 = vpack.c.b16 %v147, %v146
  %v166 = vpack.c.b16 %v149, %v148
  %v167 = vpack.c.b16 %v151, %v150
  %v216 = vunpack.c.l.b16 %v46
  %v217 = vunpack.c.h.b16 %v46
  %v218 = vunpack.c.l.b16 %v47
  %v219 = vunpack.c.h.b16 %v47
  %v220 = vunpack.c.l.b16 %v48
  %v221 = vunpack.c.h.b16 %v48
  %v222 = vunpack.c.l.b16 %v49
  %v223 = vunpack.c.h.b16 %v49
  %v224 = vunpack.c.l.b16 %v50
  %v225 = vunpack.c.h.b16 %v50
  %v226 = vunpack.c.l.b16 %v51
  %v227 = vunpack.c.h.b16 %v51
  %v228 = vunpack.c.l.b16 %v52
  %v229 = vunpack.c.h.b16 %v52
  %v230 = vunpack.c.l.b16 %v53
  %v231 = vunpack.c.h.b16 %v53
  %v232 = vunpack.c.l.b16 %v54
  %v233 = vunpack.c.h.b16 %v54
  %v234 = vunpack.c.l.b16 %v55
  %v235 = vunpack.c.h.b16 %v55
  %v236 = vunpack.c.l.b16 %v56
  %v237 = vunpack.c.h.b16 %v56
  %v238 = vunpack.c.l.b16 %v57
  %v239 = vunpack.c.h.b16 %v57
  %v240 = vunpack.c.l.b16 %v58
  %v241 = vunpack.c.h.b16 %v58
  %v242 = vunpack.c.l.b16 %v59
  %v243 = vunpack.c.h.b16 %v59
  %v244 = vunpack.c.l.b16 %v60
  %v245 = vunpack.c.h.b16 %v60
  %v246 = vunpack.c.l.b16 %v61
  %v247 = vunpack.c.h.b16 %v61
  %v248 = vunpack.c.l.b16 %v62
  %v249 = vunpack.c.h.b16 %v62
  %v250 = vunpack.c.l.b16 %v63
  %v251 = vunpack.c.h.b16 %v63
  %v252 = vunpack.c.l.b16 %v64
  %v253 = vunpack.c.h.b16 %v64
  %v254 = vunpack.c.l.b16 %v65
  %v255 = vunpack.c.h.b16 %v65
  %v256 = vunpack.c.l.b16 %v66
  %v257 = vunpack.c.h.b16 %v66
  %v258 = vunpack.c.l.b16 %v67
  %v259 = vunpack.c.h.b16 %v67
  %v260 = vunpack.c.l.b16 %v68
  %v261 = vunpack.c.h.b16 %v68
  %v262 = vunpack.c.l.b16 %v69
  %v263 = vunpack.c.h.b16 %v69
  %v264 = vunpack.c.l.b16 %v70
  %v265 = vunpack.c.h.b16 %v70
  %v266 = vunpack.c.l.b16 %v71
  %v267 = vunpack.c.h.b16 %v71
  %v268 = vunpack.c.l.b16 %v72
  %v269 = vunpack.c.h.b16 %v72
  %v270 = vunpack.c.l.b16 %v73
  %v271 = vunpack.c.h.b16 %v73
  %v272 = vunpack.c.l.b16 %v74
  %v273 = vunpack.c.h.b16 %v74
  %v274 = vunpack.c.l.b16 %v75
  %v275 = vunpack.c.h.b16 %v75
  %v276 = vunpack.c.l.b16 %v76
  %v277 = vunpack.c.h.b16 %v76
  %v278 = vunpack.c.l.b16 %v77
  %v279 = vunpack.c.h.b16 %v77
  %v280 = vpack.c.b16 %v220, %v216
  %v281 = vpack.c.b16 %v221, %v217
  %v282 = vpack.c.b16 %v222, %v218
  %v283 = vpack.c.b16 %v223, %v219
  %v284 = vpack.c.b16 %v228, %v224
  %v285 = vpack.c.b16 %v229, %v225
  %v286 = vpack.c.b16 %v230, %v226
  %v287 = vpack.c.b16 %v231, %v227
  %v288 = vpack.c.b16 %v236, %v232
  %v289 = vpack.c.b16 %v237, %v233
  %v290 = vpack.c.b16 %v238, %v234
  %v291 = vpack.c.b16 %v239, %v235
  %v292 = vpack.c.b16 %v244, %v240
  %v293 = vpack.c.b16 %v245, %v241
  %v294 = vpack.c.b16 %v246, %v242
  %v295 = vpack.c.b16 %v247, %v243
  %v296 = vpack.c.b16 %v252, %v248
  %v297 = vpack.c.b16 %v253, %v249
  %v298 = vpack.c.b16 %v254, %v250
  %v299 = vpack.c.b16 %v255, %v251
  %v300 = vpack.c.b16 %v260, %v256
  %v301 = vpack.c.b16 %v261, %v257
  %v302 = vpack.c.b16 %v262, %v258
  %v303 = vpack.c.b16 %v263, %v259
  %v304 = vpack.c.b16 %v268, %v264
  %v305 = vpack.c.b16 %v269, %v265
  %v306 = vpack.c.b16 %v270, %v266
  %v307 = vpack.c.b16 %v271, %v267
  %v308 = vpack.c.b16 %v276, %v272
  %v309 = vpack.c.b16 %v277, %v273
  %v310 = vpack.c.b16 %v278, %v274
  %v311 = vpack.c.b16 %v279, %v275
  %344 = vmatpush.bf16.msra.mxu0 %v308
  %345 = vmatpush.bf16.msra.mxu0 %v304
  %346 = vmatpush.bf16.msra.mxu0 %v300
  %347 = vmatpush.bf16.msra.mxu0 %v296
  %348 = vmatpush.bf16.msra.mxu0 %v292
  %349 = vmatpush.bf16.msra.mxu0 %v288
  %350 = vmatpush.bf16.msra.mxu0 %v284
  %351 = vmatpush.bf16.msra.mxu0 %v280
  %352 = vmatmul.bf16.gmra.mxu0 %v152
  %v353 = vpop.f32.mrf.mxu0
  %v354 = vadd.f32 %v80, %v353
  %v355 = vpop.f32.mrf.mxu0
  %v356 = vadd.f32 %v80, %v355
  %357 = vmatmul.bf16.gmra.mxu0 %v153
  %v358 = vpop.f32.mrf.mxu0
  %v359 = vadd.f32 %v80, %v358
  %v360 = vpop.f32.mrf.mxu0
  %v361 = vadd.f32 %v80, %v360
  %362 = vmatmul.bf16.gmra.mxu0 %v154
  %v363 = vpop.f32.mrf.mxu0
  %v364 = vadd.f32 %v80, %v363
  %v365 = vpop.f32.mrf.mxu0
  %v366 = vadd.f32 %v80, %v365
  %367 = vmatmul.bf16.gmra.mxu0 %v155
  %v368 = vpop.f32.mrf.mxu0
  %v369 = vadd.f32 %v80, %v368
  %v370 = vpop.f32.mrf.mxu0
  %v371 = vadd.f32 %v80, %v370
  %372 = vmatmul.bf16.gmra.mxu0 %v156
  %v373 = vpop.f32.mrf.mxu0
  %v374 = vadd.f32 %v80, %v373
  %v375 = vpop.f32.mrf.mxu0
  %v376 = vadd.f32 %v80, %v375
  %377 = vmatmul.bf16.gmra.mxu0 %v157
  %v378 = vpop.f32.mrf.mxu0
  %v379 = vadd.f32 %v80, %v378
  %v380 = vpop.f32.mrf.mxu0
  %v381 = vadd.f32 %v80, %v380
  %382 = vmatmul.bf16.gmra.mxu0 %v158
  %v383 = vpop.f32.mrf.mxu0
  %v384 = vadd.f32 %v80, %v383
  %v385 = vpop.f32.mrf.mxu0
  %v386 = vadd.f32 %v80, %v385
  %387 = vmatmul.bf16.gmra.mxu0 %v159
  %v388 = vpop.f32.mrf.mxu0
  %v389 = vadd.f32 %v80, %v388
  %v390 = vpop.f32.mrf.mxu0
  %v391 = vadd.f32 %v80, %v390
  %392 = vmatmul.bf16.gmra.mxu0 %v160
  %v393 = vpop.f32.mrf.mxu0
  %v394 = vadd.f32 %v80, %v393
  %v395 = vpop.f32.mrf.mxu0
  %v396 = vadd.f32 %v80, %v395
  %397 = vmatmul.bf16.gmra.mxu0 %v161
  %v398 = vpop.f32.mrf.mxu0
  %v399 = vadd.f32 %v80, %v398
  %v400 = vpop.f32.mrf.mxu0
  %v401 = vadd.f32 %v80, %v400
  %402 = vmatmul.bf16.gmra.mxu0 %v162
  %v403 = vpop.f32.mrf.mxu0
  %v404 = vadd.f32 %v80, %v403
  %v405 = vpop.f32.mrf.mxu0
  %v406 = vadd.f32 %v80, %v405
  %407 = vmatmul.bf16.gmra.mxu0 %v163
  %v408 = vpop.f32.mrf.mxu0
  %v409 = vadd.f32 %v80, %v408
  %v410 = vpop.f32.mrf.mxu0
  %v411 = vadd.f32 %v80, %v410
  %412 = vmatmul.bf16.gmra.mxu0 %v164
  %v413 = vpop.f32.mrf.mxu0
  %v414 = vadd.f32 %v80, %v413
  %v415 = vpop.f32.mrf.mxu0
  %v416 = vadd.f32 %v80, %v415
  %417 = vmatmul.bf16.gmra.mxu0 %v165
  %v418 = vpop.f32.mrf.mxu0
  %v419 = vadd.f32 %v80, %v418
  %v420 = vpop.f32.mrf.mxu0
  %v421 = vadd.f32 %v80, %v420
  %422 = vmatmul.bf16.gmra.mxu0 %v166
  %v423 = vpop.f32.mrf.mxu0
  %v424 = vadd.f32 %v80, %v423
  %v425 = vpop.f32.mrf.mxu0
  %v426 = vadd.f32 %v80, %v425
  %427 = vmatmul.bf16.gmra.mxu0 %v167
  %v428 = vpop.f32.mrf.mxu0
  %v429 = vadd.f32 %v80, %v428
  %v430 = vpop.f32.mrf.mxu0
  %v431 = vadd.f32 %v80, %v430
  %432 = vdwg.mxu0
  %433 = vmatpush.bf16.msra.mxu0 %v309
  %434 = vmatpush.bf16.msra.mxu0 %v305
  %435 = vmatpush.bf16.msra.mxu0 %v301
  %436 = vmatpush.bf16.msra.mxu0 %v297
  %437 = vmatpush.bf16.msra.mxu0 %v293
  %438 = vmatpush.bf16.msra.mxu0 %v289
  %439 = vmatpush.bf16.msra.mxu0 %v285
  %440 = vmatpush.bf16.msra.mxu0 %v281
  %441 = vmatmul.bf16.gmra.mxu0 %v152
  %v442 = vpop.f32.mrf.mxu0
  %v443 = vadd.f32 %v81, %v442
  %v444 = vpop.f32.mrf.mxu0
  %v445 = vadd.f32 %v81, %v444
  %446 = vmatmul.bf16.gmra.mxu0 %v153
  %v447 = vpop.f32.mrf.mxu0
  %v448 = vadd.f32 %v81, %v447
  %v449 = vpop.f32.mrf.mxu0
  %v450 = vadd.f32 %v81, %v449
  %451 = vmatmul.bf16.gmra.mxu0 %v154
  %v452 = vpop.f32.mrf.mxu0
  %v453 = vadd.f32 %v81, %v452
  %v454 = vpop.f32.mrf.mxu0
  %v455 = vadd.f32 %v81, %v454
  %456 = vmatmul.bf16.gmra.mxu0 %v155
  %v457 = vpop.f32.mrf.mxu0
  %v458 = vadd.f32 %v81, %v457
  %v459 = vpop.f32.mrf.mxu0
  %v460 = vadd.f32 %v81, %v459
  %461 = vmatmul.bf16.gmra.mxu0 %v156
  %v462 = vpop.f32.mrf.mxu0
  %v463 = vadd.f32 %v81, %v462
  %v464 = vpop.f32.mrf.mxu0
  %v465 = vadd.f32 %v81, %v464
  %466 = vmatmul.bf16.gmra.mxu0 %v157
  %v467 = vpop.f32.mrf.mxu0
  %v468 = vadd.f32 %v81, %v467
  %v469 = vpop.f32.mrf.mxu0
  %v470 = vadd.f32 %v81, %v469
  %471 = vmatmul.bf16.gmra.mxu0 %v158
  %v472 = vpop.f32.mrf.mxu0
  %v473 = vadd.f32 %v81, %v472
  %v474 = vpop.f32.mrf.mxu0
  %v475 = vadd.f32 %v81, %v474
  %476 = vmatmul.bf16.gmra.mxu0 %v159
  %v477 = vpop.f32.mrf.mxu0
  %v478 = vadd.f32 %v81, %v477
  %v479 = vpop.f32.mrf.mxu0
  %v480 = vadd.f32 %v81, %v479
  %481 = vmatmul.bf16.gmra.mxu0 %v160
  %v482 = vpop.f32.mrf.mxu0
  %v483 = vadd.f32 %v81, %v482
  %v484 = vpop.f32.mrf.mxu0
  %v485 = vadd.f32 %v81, %v484
  %486 = vmatmul.bf16.gmra.mxu0 %v161
  %v487 = vpop.f32.mrf.mxu0
  %v488 = vadd.f32 %v81, %v487
  %v489 = vpop.f32.mrf.mxu0
  %v490 = vadd.f32 %v81, %v489
  %491 = vmatmul.bf16.gmra.mxu0 %v162
  %v492 = vpop.f32.mrf.mxu0
  %v493 = vadd.f32 %v81, %v492
  %v494 = vpop.f32.mrf.mxu0
  %v495 = vadd.f32 %v81, %v494
  %496 = vmatmul.bf16.gmra.mxu0 %v163
  %v497 = vpop.f32.mrf.mxu0
  %v498 = vadd.f32 %v81, %v497
  %v499 = vpop.f32.mrf.mxu0
  %v500 = vadd.f32 %v81, %v499
  %501 = vmatmul.bf16.gmra.mxu0 %v164
  %v502 = vpop.f32.mrf.mxu0
  %v503 = vadd.f32 %v81, %v502
  %v504 = vpop.f32.mrf.mxu0
  %v505 = vadd.f32 %v81, %v504
  %506 = vmatmul.bf16.gmra.mxu0 %v165
  %v507 = vpop.f32.mrf.mxu0
  %v508 = vadd.f32 %v81, %v507
  %v509 = vpop.f32.mrf.mxu0
  %v510 = vadd.f32 %v81, %v509
  %511 = vmatmul.bf16.gmra.mxu0 %v166
  %v512 = vpop.f32.mrf.mxu0
  %v513 = vadd.f32 %v81, %v512
  %v514 = vpop.f32.mrf.mxu0
  %v515 = vadd.f32 %v81, %v514
  %516 = vmatmul.bf16.gmra.mxu0 %v167
  %v517 = vpop.f32.mrf.mxu0
  %v518 = vadd.f32 %v81, %v517
  %v519 = vpop.f32.mrf.mxu0
  %v520 = vadd.f32 %v81, %v519
  %521 = vdwg.mxu0
  %522 = vmatpush.bf16.msra.mxu0 %v310
  %523 = vmatpush.bf16.msra.mxu0 %v306
  %524 = vmatpush.bf16.msra.mxu0 %v302
  %525 = vmatpush.bf16.msra.mxu0 %v298
  %526 = vmatpush.bf16.msra.mxu0 %v294
  %527 = vmatpush.bf16.msra.mxu0 %v290
  %528 = vmatpush.bf16.msra.mxu0 %v286
  %529 = vmatpush.bf16.msra.mxu0 %v282
  %530 = vmatmul.bf16.gmra.mxu0 %v152
  %v531 = vpop.f32.mrf.mxu0
  %v532 = vadd.f32 %v82, %v531
  %v533 = vpop.f32.mrf.mxu0
  %v534 = vadd.f32 %v82, %v533
  %535 = vmatmul.bf16.gmra.mxu0 %v153
  %v536 = vpop.f32.mrf.mxu0
  %v537 = vadd.f32 %v82, %v536
  %v538 = vpop.f32.mrf.mxu0
  %v539 = vadd.f32 %v82, %v538
  %540 = vmatmul.bf16.gmra.mxu0 %v154
  %v541 = vpop.f32.mrf.mxu0
  %v542 = vadd.f32 %v82, %v541
  %v543 = vpop.f32.mrf.mxu0
  %v544 = vadd.f32 %v82, %v543
  %545 = vmatmul.bf16.gmra.mxu0 %v155
  %v546 = vpop.f32.mrf.mxu0
  %v547 = vadd.f32 %v82, %v546
  %v548 = vpop.f32.mrf.mxu0
  %v549 = vadd.f32 %v82, %v548
  %550 = vmatmul.bf16.gmra.mxu0 %v156
  %v551 = vpop.f32.mrf.mxu0
  %v552 = vadd.f32 %v82, %v551
  %v553 = vpop.f32.mrf.mxu0
  %v554 = vadd.f32 %v82, %v553
  %555 = vmatmul.bf16.gmra.mxu0 %v157
  %v556 = vpop.f32.mrf.mxu0
  %v557 = vadd.f32 %v82, %v556
  %v558 = vpop.f32.mrf.mxu0
  %v559 = vadd.f32 %v82, %v558
  %560 = vmatmul.bf16.gmra.mxu0 %v158
  %v561 = vpop.f32.mrf.mxu0
  %v562 = vadd.f32 %v82, %v561
  %v563 = vpop.f32.mrf.mxu0
  %v564 = vadd.f32 %v82, %v563
  %565 = vmatmul.bf16.gmra.mxu0 %v159
  %v566 = vpop.f32.mrf.mxu0
  %v567 = vadd.f32 %v82, %v566
  %v568 = vpop.f32.mrf.mxu0
  %v569 = vadd.f32 %v82, %v568
  %570 = vmatmul.bf16.gmra.mxu0 %v160
  %v571 = vpop.f32.mrf.mxu0
  %v572 = vadd.f32 %v82, %v571
  %v573 = vpop.f32.mrf.mxu0
  %v574 = vadd.f32 %v82, %v573
  %575 = vmatmul.bf16.gmra.mxu0 %v161
  %v576 = vpop.f32.mrf.mxu0
  %v577 = vadd.f32 %v82, %v576
  %v578 = vpop.f32.mrf.mxu0
  %v579 = vadd.f32 %v82, %v578
  %580 = vmatmul.bf16.gmra.mxu0 %v162
  %v581 = vpop.f32.mrf.mxu0
  %v582 = vadd.f32 %v82, %v581
  %v583 = vpop.f32.mrf.mxu0
  %v584 = vadd.f32 %v82, %v583
  %585 = vmatmul.bf16.gmra.mxu0 %v163
  %v586 = vpop.f32.mrf.mxu0
  %v587 = vadd.f32 %v82, %v586
  %v588 = vpop.f32.mrf.mxu0
  %v589 = vadd.f32 %v82, %v588
  %590 = vmatmul.bf16.gmra.mxu0 %v164
  %v591 = vpop.f32.mrf.mxu0
  %v592 = vadd.f32 %v82, %v591
  %v593 = vpop.f32.mrf.mxu0
  %v594 = vadd.f32 %v82, %v593
  %595 = vmatmul.bf16.gmra.mxu0 %v165
  %v596 = vpop.f32.mrf.mxu0
  %v597 = vadd.f32 %v82, %v596
  %v598 = vpop.f32.mrf.mxu0
  %v599 = vadd.f32 %v82, %v598
  %600 = vmatmul.bf16.gmra.mxu0 %v166
  %v601 = vpop.f32.mrf.mxu0
  %v602 = vadd.f32 %v82, %v601
  %v603 = vpop.f32.mrf.mxu0
  %v604 = vadd.f32 %v82, %v603
  %605 = vmatmul.bf16.gmra.mxu0 %v167
  %v606 = vpop.f32.mrf.mxu0
  %v607 = vadd.f32 %v82, %v606
  %v608 = vpop.f32.mrf.mxu0
  %v609 = vadd.f32 %v82, %v608
  %610 = vdwg.mxu0
  %611 = vmatpush.bf16.msra.mxu0 %v311
  %612 = vmatpush.bf16.msra.mxu0 %v307
  %613 = vmatpush.bf16.msra.mxu0 %v303
  %614 = vmatpush.bf16.msra.mxu0 %v299
  %615 = vmatpush.bf16.msra.mxu0 %v295
  %616 = vmatpush.bf16.msra.mxu0 %v291
  %617 = vmatpush.bf16.msra.mxu0 %v287
  %618 = vmatpush.bf16.msra.mxu0 %v283
  %619 = vmatmul.bf16.gmra.mxu0 %v152
  %v620 = vpop.f32.mrf.mxu0
  %v621 = vadd.f32 %v83, %v620
  %v622 = vpop.f32.mrf.mxu0
  %v623 = vadd.f32 %v83, %v622
  %624 = vmatmul.bf16.gmra.mxu0 %v153
  %v625 = vpop.f32.mrf.mxu0
  %v626 = vadd.f32 %v83, %v625
  %v627 = vpop.f32.mrf.mxu0
  %v628 = vadd.f32 %v83, %v627
  %629 = vmatmul.bf16.gmra.mxu0 %v154
  %v630 = vpop.f32.mrf.mxu0
  %v631 = vadd.f32 %v83, %v630
  %v632 = vpop.f32.mrf.mxu0
  %v633 = vadd.f32 %v83, %v632
  %634 = vmatmul.bf16.gmra.mxu0 %v155
  %v635 = vpop.f32.mrf.mxu0
  %v636 = vadd.f32 %v83, %v635
  %v637 = vpop.f32.mrf.mxu0
  %v638 = vadd.f32 %v83, %v637
  %639 = vmatmul.bf16.gmra.mxu0 %v156
  %v640 = vpop.f32.mrf.mxu0
  %v641 = vadd.f32 %v83, %v640
  %v642 = vpop.f32.mrf.mxu0
  %v643 = vadd.f32 %v83, %v642
  %644 = vmatmul.bf16.gmra.mxu0 %v157
  %v645 = vpop.f32.mrf.mxu0
  %v646 = vadd.f32 %v83, %v645
  %v647 = vpop.f32.mrf.mxu0
  %v648 = vadd.f32 %v83, %v647
  %649 = vmatmul.bf16.gmra.mxu0 %v158
  %v650 = vpop.f32.mrf.mxu0
  %v651 = vadd.f32 %v83, %v650
  %v652 = vpop.f32.mrf.mxu0
  %v653 = vadd.f32 %v83, %v652
  %654 = vmatmul.bf16.gmra.mxu0 %v159
  %v655 = vpop.f32.mrf.mxu0
  %v656 = vadd.f32 %v83, %v655
  %v657 = vpop.f32.mrf.mxu0
  %v658 = vadd.f32 %v83, %v657
  %659 = vmatmul.bf16.gmra.mxu0 %v160
  %v660 = vpop.f32.mrf.mxu0
  %v661 = vadd.f32 %v83, %v660
  %v662 = vpop.f32.mrf.mxu0
  %v663 = vadd.f32 %v83, %v662
  %664 = vmatmul.bf16.gmra.mxu0 %v161
  %v665 = vpop.f32.mrf.mxu0
  %v666 = vadd.f32 %v83, %v665
  %v667 = vpop.f32.mrf.mxu0
  %v668 = vadd.f32 %v83, %v667
  %669 = vmatmul.bf16.gmra.mxu0 %v162
  %v670 = vpop.f32.mrf.mxu0
  %v671 = vadd.f32 %v83, %v670
  %v672 = vpop.f32.mrf.mxu0
  %v673 = vadd.f32 %v83, %v672
  %674 = vmatmul.bf16.gmra.mxu0 %v163
  %v675 = vpop.f32.mrf.mxu0
  %v676 = vadd.f32 %v83, %v675
  %v677 = vpop.f32.mrf.mxu0
  %v678 = vadd.f32 %v83, %v677
  %679 = vmatmul.bf16.gmra.mxu0 %v164
  %v680 = vpop.f32.mrf.mxu0
  %v681 = vadd.f32 %v83, %v680
  %v682 = vpop.f32.mrf.mxu0
  %v683 = vadd.f32 %v83, %v682
  %684 = vmatmul.bf16.gmra.mxu0 %v165
  %v685 = vpop.f32.mrf.mxu0
  %v686 = vadd.f32 %v83, %v685
  %v687 = vpop.f32.mrf.mxu0
  %v688 = vadd.f32 %v83, %v687
  %689 = vmatmul.bf16.gmra.mxu0 %v166
  %v690 = vpop.f32.mrf.mxu0
  %v691 = vadd.f32 %v83, %v690
  %v692 = vpop.f32.mrf.mxu0
  %v693 = vadd.f32 %v83, %v692
  %694 = vmatmul.bf16.gmra.mxu0 %v167
  %v695 = vpop.f32.mrf.mxu0
  %v696 = vadd.f32 %v83, %v695
  %v697 = vpop.f32.mrf.mxu0
  %v698 = vadd.f32 %v83, %v697
  %699 = vdwg.mxu0
  %v700 = vpack.c.bf16 %v443, %v354
  %v701 = vpack.c.bf16 %v621, %v532
  %v702 = vpack.c.bf16 %v445, %v356
  %v703 = vpack.c.bf16 %v623, %v534
  %v704 = vpack.c.bf16 %v448, %v359
  %v705 = vpack.c.bf16 %v626, %v537
  %v706 = vpack.c.bf16 %v450, %v361
  %v707 = vpack.c.bf16 %v628, %v539
  %v708 = vpack.c.bf16 %v453, %v364
  %v709 = vpack.c.bf16 %v631, %v542
  %v710 = vpack.c.bf16 %v455, %v366
  %v711 = vpack.c.bf16 %v633, %v544
  %v712 = vpack.c.bf16 %v458, %v369
  %v713 = vpack.c.bf16 %v636, %v547
  %v714 = vpack.c.bf16 %v460, %v371
  %v715 = vpack.c.bf16 %v638, %v549
  %v716 = vpack.c.bf16 %v463, %v374
  %v717 = vpack.c.bf16 %v641, %v552
  %v718 = vpack.c.bf16 %v465, %v376
  %v719 = vpack.c.bf16 %v643, %v554
  %v720 = vpack.c.bf16 %v468, %v379
  %v721 = vpack.c.bf16 %v646, %v557
  %v722 = vpack.c.bf16 %v470, %v381
  %v723 = vpack.c.bf16 %v648, %v559
  %v724 = vpack.c.bf16 %v473, %v384
  %v725 = vpack.c.bf16 %v651, %v562
  %v726 = vpack.c.bf16 %v475, %v386
  %v727 = vpack.c.bf16 %v653, %v564
  %v728 = vpack.c.bf16 %v478, %v389
  %v729 = vpack.c.bf16 %v656, %v567
  %v730 = vpack.c.bf16 %v480, %v391
  %v731 = vpack.c.bf16 %v658, %v569
  %v732 = vpack.c.bf16 %v483, %v394
  %v733 = vpack.c.bf16 %v661, %v572
  %v734 = vpack.c.bf16 %v485, %v396
  %v735 = vpack.c.bf16 %v663, %v574
  %v736 = vpack.c.bf16 %v488, %v399
  %v737 = vpack.c.bf16 %v666, %v577
  %v738 = vpack.c.bf16 %v490, %v401
  %v739 = vpack.c.bf16 %v668, %v579
  %v740 = vpack.c.bf16 %v493, %v404
  %v741 = vpack.c.bf16 %v671, %v582
  %v742 = vpack.c.bf16 %v495, %v406
  %v743 = vpack.c.bf16 %v673, %v584
  %v744 = vpack.c.bf16 %v498, %v409
  %v745 = vpack.c.bf16 %v676, %v587
  %v746 = vpack.c.bf16 %v500, %v411
  %v747 = vpack.c.bf16 %v678, %v589
  %v748 = vpack.c.bf16 %v503, %v414
  %v749 = vpack.c.bf16 %v681, %v592
  %v750 = vpack.c.bf16 %v505, %v416
  %v751 = vpack.c.bf16 %v683, %v594
  %v752 = vpack.c.bf16 %v508, %v419
  %v753 = vpack.c.bf16 %v686, %v597
  %v754 = vpack.c.bf16 %v510, %v421
  %v755 = vpack.c.bf16 %v688, %v599
  %v756 = vpack.c.bf16 %v513, %v424
  %v757 = vpack.c.bf16 %v691, %v602
  %v758 = vpack.c.bf16 %v515, %v426
  %v759 = vpack.c.bf16 %v693, %v604
  %v760 = vpack.c.bf16 %v518, %v429
  %v761 = vpack.c.bf16 %v696, %v607
  %v762 = vpack.c.bf16 %v520, %v431
  %v763 = vpack.c.bf16 %v698, %v609
  %764 = vst [vmem:[%s3] sm:$0xff] %v700
  %765 = vst [vmem:[%s3 + $0x8] sm:$0xff] %v701
  %766 = vst [vmem:[%s3 + $0x10] sm:$0xff] %v702
  %767 = vst [vmem:[%s3 + $0x18] sm:$0xff] %v703
  %768 = vst [vmem:[%s3 + $0x20] sm:$0xff] %v704
  %769 = vst [vmem:[%s3 + $0x28] sm:$0xff] %v705
  %770 = vst [vmem:[%s3 + $0x30] sm:$0xff] %v706
  %771 = vst [vmem:[%s3 + $0x38] sm:$0xff] %v707
  %772 = vst [vmem:[%s3 + $0x40] sm:$0xff] %v708
  %773 = vst [vmem:[%s3 + $0x48] sm:$0xff] %v709
  %774 = vst [vmem:[%s3 + $0x50] sm:$0xff] %v710
  %775 = vst [vmem:[%s3 + $0x58] sm:$0xff] %v711
  %776 = vst [vmem:[%s3 + $0x60] sm:$0xff] %v712
  %777 = vst [vmem:[%s3 + $0x68] sm:$0xff] %v713
  %778 = vst [vmem:[%s3 + $0x70] sm:$0xff] %v714
  %779 = vst [vmem:[%s3 + $0x78] sm:$0xff] %v715
  %780 = vst [vmem:[%s3 + $0x80] sm:$0xff] %v716
  %781 = vst [vmem:[%s3 + $0x88] sm:$0xff] %v717
  %782 = vst [vmem:[%s3 + $0x90] sm:$0xff] %v718
  %783 = vst [vmem:[%s3 + $0x98] sm:$0xff] %v719
  %784 = vst [vmem:[%s3 + $0xa0] sm:$0xff] %v720
  %785 = vst [vmem:[%s3 + $0xa8] sm:$0xff] %v721
  %786 = vst [vmem:[%s3 + $0xb0] sm:$0xff] %v722
  %787 = vst [vmem:[%s3 + $0xb8] sm:$0xff] %v723
  %788 = vst [vmem:[%s3 + $0xc0] sm:$0xff] %v724
  %789 = vst [vmem:[%s3 + $0xc8] sm:$0xff] %v725
  %790 = vst [vmem:[%s3 + $0xd0] sm:$0xff] %v726
  %791 = vst [vmem:[%s3 + $0xd8] sm:$0xff] %v727
  %792 = vst [vmem:[%s3 + $0xe0] sm:$0xff] %v728
  %793 = vst [vmem:[%s3 + $0xe8] sm:$0xff] %v729
  %794 = vst [vmem:[%s3 + $0xf0] sm:$0xff] %v730
  %795 = vst [vmem:[%s3 + $0xf8] sm:$0xff] %v731
  %796 = vst [vmem:[%s3 + $0x100] sm:$0xff] %v732
  %797 = vst [vmem:[%s3 + $0x108] sm:$0xff] %v733
  %798 = vst [vmem:[%s3 + $0x110] sm:$0xff] %v734
  %799 = vst [vmem:[%s3 + $0x118] sm:$0xff] %v735
  %800 = vst [vmem:[%s3 + $0x120] sm:$0xff] %v736
  %801 = vst [vmem:[%s3 + $0x128] sm:$0xff] %v737
  %802 = vst [vmem:[%s3 + $0x130] sm:$0xff] %v738
  %803 = vst [vmem:[%s3 + $0x138] sm:$0xff] %v739
  %804 = vst [vmem:[%s3 + $0x140] sm:$0xff] %v740
  %805 = vst [vmem:[%s3 + $0x148] sm:$0xff] %v741
  %806 = vst [vmem:[%s3 + $0x150] sm:$0xff] %v742
  %807 = vst [vmem:[%s3 + $0x158] sm:$0xff] %v743
  %808 = vst [vmem:[%s3 + $0x160] sm:$0xff] %v744
  %809 = vst [vmem:[%s3 + $0x168] sm:$0xff] %v745
  %810 = vst [vmem:[%s3 + $0x170] sm:$0xff] %v746
  %811 = vst [vmem:[%s3 + $0x178] sm:$0xff] %v747
  %812 = vst [vmem:[%s3 + $0x180] sm:$0xff] %v748
  %813 = vst [vmem:[%s3 + $0x188] sm:$0xff] %v749
  %814 = vst [vmem:[%s3 + $0x190] sm:$0xff] %v750
  %815 = vst [vmem:[%s3 + $0x198] sm:$0xff] %v751
  %816 = vst [vmem:[%s3 + $0x1a0] sm:$0xff] %v752
  %817 = vst [vmem:[%s3 + $0x1a8] sm:$0xff] %v753
  %818 = vst [vmem:[%s3 + $0x1b0] sm:$0xff] %v754
  %819 = vst [vmem:[%s3 + $0x1b8] sm:$0xff] %v755
  %820 = vst [vmem:[%s3 + $0x1c0] sm:$0xff] %v756
  %821 = vst [vmem:[%s3 + $0x1c8] sm:$0xff] %v757
  %822 = vst [vmem:[%s3 + $0x1d0] sm:$0xff] %v758
  %823 = vst [vmem:[%s3 + $0x1d8] sm:$0xff] %v759
  %824 = vst [vmem:[%s3 + $0x1e0] sm:$0xff] %v760
  %825 = vst [vmem:[%s3 + $0x1e8] sm:$0xff] %v761
  %826 = vst [vmem:[%s3 + $0x1f0] sm:$0xff] %v762
  %827 = vst [vmem:[%s3 + $0x1f8] sm:$0xff] %v763
  // Predicated region
  $region14: #{up_block_forward.5} parent=0 // pred_check
    _
  $region15: #{up_block_forward.5} parent=0 // pred_check_branch
    %829 = sbr.rel (0) target = $region17
  $region16: #{up_block_forward.5} parent=0 // pred_region
    _
  $region17: #{up_block_forward.5} parent=0 // pred_fallthru
    _
  // Predicated region
  $region18: #{up_block_forward.5} parent=0 // pred_check
    _
  $region19: #{up_block_forward.5} parent=0 // pred_check_branch
    %831 = sbr.rel (0) target = $region21
  $region20: #{up_block_forward.5} parent=0 // pred_region
    _
  $region21: #{up_block_forward.5} parent=0 // pred_fallthru
    _

// kernel: up_block_forward.7
$region0: #{up_block_forward.7}
  #allocation0 [shape = 'u32[]', space=smem, size = 0x4, offset = 0x4, fixed_abs, tag = 'smem constant byte address 0x4 - core index']
  #allocation1 [shape = 'u32[72,128]{1,0:T(1,128)}', space=vmem, size = 0x9000, scoped, tag = 'internal scratch']
  %s0 = inlined_call_operand.vmem [shape: f32[512,128], index: 0, kind: input, shape index: {}]
  %s1 = inlined_call_operand.vmem [shape: f32[1,128], index: 1, kind: input, shape index: {}]
  %s2 = inlined_call_operand.vmem [shape: f32[1,128], index: 2, kind: input, shape index: {}]
  %s3 = inlined_call_operand.vmem [shape: bf16[512,128], index: 3, kind: output, shape index: {}]
  %s4 = sld [smem:[#allocation0]]
  $region45: #{up_block_forward.7} parent=0
    _
  %s6 = ssub.s32 1, %s4
  %s7 = scalar_select 0, %s6, %s4
  loop: start=0, step=1, limit=4
  $region2: #{up_block_forward.7} parent=0 // loop_pre_header
    _
  $region3: #{up_block_forward.7} parent=0 // loop_header
    %s9 = sphi 0, %s13
    %p10 = scmp.ge.s32.totalorder %s9, 4
    %s19 = sphi 0, %s21
    %s22 = sphi 0, %s19
    %s23 = sphi 0, %s22
    %s39 = sphi 0, %s23
    %s43 = sphi 0, %s43
    %s45 = sphi 0, %s43
    %s46 = sphi 0, %s45
    %s60 = sphi 0, %s46
    %s64 = sphi 0, %s64
    %s66 = sphi 0, %s64
    %s67 = sphi 0, %s66
    %s81 = sphi 0, %s67
    %s87 = sphi 0, %s89
    %s90 = sphi 0, %s87
    %s91 = sphi 0, %s90
    %s107 = sphi 0, %s91
  $region4: #{up_block_forward.7} parent=0 // loop_header_branch
    %12 = sbr.rel (%p10) target = $region8
  $region5: #{up_block_forward.7} parent=0 // loop_body
    %s14 = ssub.s32 %s9, 1
    %s15 = ssub.s32 %s9, 2
    %s16 = sadd.s32 %s9, 1
    %s17 = ssub.s32 %s9, %s16
    %p18 = scmp.eq.s32.totalorder %s17, 0
    %s20 = sadd.s32 %s19, 1
    %s21 = scalar_select %p18, %s19, %s20
    %p24 = pneg %p18
    %p25 = scmp.eq.s32.totalorder %s9, 1
    %p26 = por %p24, %p25
    %p27 = scmp.ne.s32.totalorder %s19, %s22
    %p28 = scmp.eq.s32.totalorder %s9, 0
    %p29 = por %p27, %p28
    %p30 = scmp.ne.s32.totalorder %s19, %s22
    %p31 = scmp.eq.s32.totalorder %s14, 1
    %p32 = por %p30, %p31
    %p33 = scmp.ne.s32.totalorder %s22, %s23
    %p34 = scmp.eq.s32.totalorder %s14, 0
    %p35 = por %p33, %p34
    %p36 = scmp.ne.s32.totalorder %s22, %s23
    %p37 = scmp.eq.s32.totalorder %s15, 1
    %p38 = por %p36, %p37
    %p40 = scmp.ne.s32.totalorder %s23, %s39
    %p41 = scmp.eq.s32.totalorder %s15, 0
    %p42 = por %p40, %p41
    %s44 = sadd.s32 %s43, 1
    %p47 = scmp.eq.s32.totalorder %s9, 1
    %p48 = scmp.ne.s32.totalorder %s43, %s45
    %p49 = scmp.eq.s32.totalorder %s9, 0
    %p50 = por %p48, %p49
    %p51 = scmp.ne.s32.totalorder %s43, %s45
    %p52 = scmp.eq.s32.totalorder %s14, 1
    %p53 = por %p51, %p52
    %p54 = scmp.ne.s32.totalorder %s45, %s46
    %p55 = scmp.eq.s32.totalorder %s14, 0
    %p56 = por %p54, %p55
    %p57 = scmp.ne.s32.totalorder %s45, %s46
    %p58 = scmp.eq.s32.totalorder %s15, 1
    %p59 = por %p57, %p58
    %p61 = scmp.ne.s32.totalorder %s46, %s60
    %p62 = scmp.eq.s32.totalorder %s15, 0
    %p63 = por %p61, %p62
    %s65 = sadd.s32 %s64, 1
    %p68 = scmp.eq.s32.totalorder %s9, 1
    %p69 = scmp.ne.s32.totalorder %s64, %s66
    %p70 = scmp.eq.s32.totalorder %s9, 0
    %p71 = por %p69, %p70
    %p72 = scmp.ne.s32.totalorder %s64, %s66
    %p73 = scmp.eq.s32.totalorder %s14, 1
    %p74 = por %p72, %p73
    %p75 = scmp.ne.s32.totalorder %s66, %s67
    %p76 = scmp.eq.s32.totalorder %s14, 0
    %p77 = por %p75, %p76
    %p78 = scmp.ne.s32.totalorder %s66, %s67
    %p79 = scmp.eq.s32.totalorder %s15, 1
    %p80 = por %p78, %p79
    %p82 = scmp.ne.s32.totalorder %s67, %s81
    %p83 = scmp.eq.s32.totalorder %s15, 0
    %p84 = por %p82, %p83
    %s85 = ssub.s32 %s9, %s16
    %p86 = scmp.eq.s32.totalorder %s85, 0
    %s88 = sadd.s32 %s87, 1
    %s89 = scalar_select %p86, %s87, %s88
    %p92 = pneg %p86
    %p93 = scmp.eq.s32.totalorder %s9, 1
    %p94 = por %p92, %p93
    %p95 = scmp.ne.s32.totalorder %s87, %s90
    %p96 = scmp.eq.s32.totalorder %s9, 0
    %p97 = por %p95, %p96
    %p98 = scmp.ne.s32.totalorder %s87, %s90
    %p99 = scmp.eq.s32.totalorder %s14, 1
    %p100 = por %p98, %p99
    %p101 = scmp.ne.s32.totalorder %s90, %s91
    %p102 = scmp.eq.s32.totalorder %s14, 0
    %p103 = por %p101, %p102
    %p104 = scmp.ne.s32.totalorder %s90, %s91
    %p105 = scmp.eq.s32.totalorder %s15, 1
    %p106 = por %p104, %p105
    %p108 = scmp.ne.s32.totalorder %s91, %s107
    %p109 = scmp.eq.s32.totalorder %s15, 0
    %p110 = por %p108, %p109
    %p111 = scmp.le.s32.totalorder 1, %s9
    %p112 = scmp.lt.s32.totalorder %s9, 3
    %p113 = pnand %p111, %p112
    %p114 = pneg %p113
    // Predicated region
    $region9: #{up_block_forward.7} parent=5 // pred_check
      _
    $region10: #{up_block_forward.7} parent=5 // pred_check_branch
      %116 = sbr.rel (%p113) target = $region12
    $region11: #{up_block_forward.7} parent=5 // pred_region
      %s117 = ssub.s32 %s9, 1
      // Predicated region
      $region13: #{up_block_forward.7} parent=11 // pred_check
        %p118 = pneg %p56
      $region14: #{up_block_forward.7} parent=11 // pred_check_branch
        %120 = sbr.rel (%p118) target = $region16
      $region15: #{up_block_forward.7} parent=11 // pred_region
        _
      $region16: #{up_block_forward.7} parent=11 // pred_fallthru
        _
      // Predicated region
      $region17: #{up_block_forward.7} parent=11 // pred_check
        %p121 = pneg %p77
      $region18: #{up_block_forward.7} parent=11 // pred_check_branch
        %123 = sbr.rel (%p121) target = $region20
      $region19: #{up_block_forward.7} parent=11 // pred_region
        _
      $region20: #{up_block_forward.7} parent=11 // pred_fallthru
        _
    $region12: #{up_block_forward.7} parent=5 // pred_fallthru
      _
    %p124 = scmp.lt.s32.totalorder %s9, 2
    // Predicated region
    $region21: #{up_block_forward.7} parent=5 // pred_check
      %p125 = pneg %p124
    $region22: #{up_block_forward.7} parent=5 // pred_check_branch
      %127 = sbr.rel (%p125) target = $region24
    $region23: #{up_block_forward.7} parent=5 // pred_region
      // Predicated region
      $region25: #{up_block_forward.7} parent=23 // pred_check
        %p128 = pneg %p29
      $region26: #{up_block_forward.7} parent=23 // pred_check_branch
        %130 = sbr.rel (%p128) target = $region28
      $region27: #{up_block_forward.7} parent=23 // pred_region
        %s131 = smul.u32 32, %s9
        %p132 = scmp.lt.s32.totalorder %s131, 63
        %s133 = scalar_select %p132, %s131, 63
        %s134 = smul.addr %s133, 8
        %s135 = scalar_lea.vmem %s0, %s134
        %s136 = smul.u32 32, %s9
      $region28: #{up_block_forward.7} parent=23 // pred_fallthru
        _
    $region24: #{up_block_forward.7} parent=5 // pred_fallthru
      _
    %p137 = scmp.le.s32.totalorder 1, %s9
    %p138 = scmp.lt.s32.totalorder %s9, 3
    %p139 = pnand %p137, %p138
    %p140 = pneg %p139
    // Predicated region
    $region29: #{up_block_forward.7} parent=5 // pred_check
      _
    $region30: #{up_block_forward.7} parent=5 // pred_check_branch
      %142 = sbr.rel (%p139) target = $region32
    $region31: #{up_block_forward.7} parent=5 // pred_region
      %s143 = ssub.s32 %s9, 1
      %s144 = smul.u32 32, %s14
      %p145 = scmp.lt.s32.totalorder %s144, 63
      %s146 = scalar_select %p145, %s144, 63
      %s147 = smul.addr %s146, 8
      %s148 = scalar_lea.vmem %s0, %s147
      %p149 = pneg %p35
      %p150 = pneg %p32
      %p151 = pneg %p56
      %p152 = pneg %p53
      %p153 = pneg %p77
      %p154 = pneg %p74
      %p155 = pneg %p103
      %p156 = pneg %p100
      %s157 = smul.u32 32, %s14
      %p158 = scmp.lt.s32.totalorder %s157, 63
      %s159 = scalar_select %p158, %s157, 63
      %s160 = smul.addr %s159, 4
      %s161 = scalar_lea.vmem %s3, %s160
      %s162 = smul.u32 32, %s14
      %p163 = scmp.lt.s32.totalorder %s162, 63
      %s164 = scalar_select %p163, %s162, 63
      %s165 = smul.addr %s164, 8
      %s166 = scalar_lea.vmem %s0, %s165
      %s167 = smul.u32 32, %s14
      %s168 = smul.u32 32, %s14
      %p169 = scmp.lt.s32.totalorder %s168, 63
      %s170 = scalar_select %p169, %s168, 63
      %s171 = smul.addr %s170, 4
      %s172 = scalar_lea.vmem %s3, %s171
      %s173 = smul.u32 32, %s14
      %v174 = vld [vmem:[%s166] sm:$0xff]
      %v175 = vld [vmem:[%s166 + $0x8] sm:$0xff]
      %v176 = vld [vmem:[%s166 + $0x10] sm:$0xff]
      %v177 = vld [vmem:[%s166 + $0x18] sm:$0xff]
      %v178 = vld [vmem:[%s166 + $0x20] sm:$0xff]
      %v179 = vld [vmem:[%s166 + $0x28] sm:$0xff]
      %v180 = vld [vmem:[%s166 + $0x30] sm:$0xff]
      %v181 = vld [vmem:[%s166 + $0x38] sm:$0xff]
      %v182 = vld [vmem:[%s166 + $0x40] sm:$0xff]
      %v183 = vld [vmem:[%s166 + $0x48] sm:$0xff]
      %v184 = vld [vmem:[%s166 + $0x50] sm:$0xff]
      %v185 = vld [vmem:[%s166 + $0x58] sm:$0xff]
      %v186 = vld [vmem:[%s166 + $0x60] sm:$0xff]
      %v187 = vld [vmem:[%s166 + $0x68] sm:$0xff]
      %v188 = vld [vmem:[%s166 + $0x70] sm:$0xff]
      %v189 = vld [vmem:[%s166 + $0x78] sm:$0xff]
      %v190 = vld [vmem:[%s166 + $0x80] sm:$0xff]
      %v191 = vld [vmem:[%s166 + $0x88] sm:$0xff]
      %v192 = vld [vmem:[%s166 + $0x90] sm:$0xff]
      %v193 = vld [vmem:[%s166 + $0x98] sm:$0xff]
      %v194 = vld [vmem:[%s166 + $0xa0] sm:$0xff]
      %v195 = vld [vmem:[%s166 + $0xa8] sm:$0xff]
      %v196 = vld [vmem:[%s166 + $0xb0] sm:$0xff]
      %v197 = vld [vmem:[%s166 + $0xb8] sm:$0xff]
      %v198 = vld [vmem:[%s166 + $0xc0] sm:$0xff]
      %v199 = vld [vmem:[%s166 + $0xc8] sm:$0xff]
      %v200 = vld [vmem:[%s166 + $0xd0] sm:$0xff]
      %v201 = vld [vmem:[%s166 + $0xd8] sm:$0xff]
      %v202 = vld [vmem:[%s166 + $0xe0] sm:$0xff]
      %v203 = vld [vmem:[%s166 + $0xe8] sm:$0xff]
      %v204 = vld [vmem:[%s166 + $0xf0] sm:$0xff]
      %v205 = vld [vmem:[%s166 + $0xf8] sm:$0xff]
      %v206 = vld [vmem:[%s1] sm:$0x1]
      %v208 = vperm.slane %v206, 0
      %v210 = vmul.f32 %v174, %v208
      %v211 = vmul.f32 %v175, %v208
      %v212 = vmul.f32 %v176, %v208
      %v213 = vmul.f32 %v177, %v208
      %v214 = vmul.f32 %v178, %v208
      %v215 = vmul.f32 %v179, %v208
      %v216 = vmul.f32 %v180, %v208
      %v217 = vmul.f32 %v181, %v208
      %v218 = vmul.f32 %v182, %v208
      %v219 = vmul.f32 %v183, %v208
      %v220 = vmul.f32 %v184, %v208
      %v221 = vmul.f32 %v185, %v208
      %v222 = vmul.f32 %v186, %v208
      %v223 = vmul.f32 %v187, %v208
      %v224 = vmul.f32 %v188, %v208
      %v225 = vmul.f32 %v189, %v208
      %v226 = vmul.f32 %v190, %v208
      %v227 = vmul.f32 %v191, %v208
      %v228 = vmul.f32 %v192, %v208
      %v229 = vmul.f32 %v193, %v208
      %v230 = vmul.f32 %v194, %v208
      %v231 = vmul.f32 %v195, %v208
      %v232 = vmul.f32 %v196, %v208
      %v233 = vmul.f32 %v197, %v208
      %v234 = vmul.f32 %v198, %v208
      %v235 = vmul.f32 %v199, %v208
      %v236 = vmul.f32 %v200, %v208
      %v237 = vmul.f32 %v201, %v208
      %v238 = vmul.f32 %v202, %v208
      %v239 = vmul.f32 %v203, %v208
      %v240 = vmul.f32 %v204, %v208
      %v241 = vmul.f32 %v205, %v208
      %v242 = vld [vmem:[%s2] sm:$0x1]
      %v244 = vperm.slane %v242, 0
      %v246 = vadd.f32 %v210, %v244
      %v247 = vadd.f32 %v211, %v244
      %v248 = vadd.f32 %v212, %v244
      %v249 = vadd.f32 %v213, %v244
      %v250 = vadd.f32 %v214, %v244
      %v251 = vadd.f32 %v215, %v244
      %v252 = vadd.f32 %v216, %v244
      %v253 = vadd.f32 %v217, %v244
      %v254 = vadd.f32 %v218, %v244
      %v255 = vadd.f32 %v219, %v244
      %v256 = vadd.f32 %v220, %v244
      %v257 = vadd.f32 %v221, %v244
      %v258 = vadd.f32 %v222, %v244
      %v259 = vadd.f32 %v223, %v244
      %v260 = vadd.f32 %v224, %v244
      %v261 = vadd.f32 %v225, %v244
      %v262 = vadd.f32 %v226, %v244
      %v263 = vadd.f32 %v227, %v244
      %v264 = vadd.f32 %v228, %v244
      %v265 = vadd.f32 %v229, %v244
      %v266 = vadd.f32 %v230, %v244
      %v267 = vadd.f32 %v231, %v244
      %v268 = vadd.f32 %v232, %v244
      %v269 = vadd.f32 %v233, %v244
      %v270 = vadd.f32 %v234, %v244
      %v271 = vadd.f32 %v235, %v244
      %v272 = vadd.f32 %v236, %v244
      %v273 = vadd.f32 %v237, %v244
      %v274 = vadd.f32 %v238, %v244
      %v275 = vadd.f32 %v239, %v244
      %v276 = vadd.f32 %v240, %v244
      %v277 = vadd.f32 %v241, %v244
      %v278 = vmax.f32 %v246, 0.0
      %v279 = vmax.f32 %v247, 0.0
      %v280 = vmax.f32 %v248, 0.0
      %v281 = vmax.f32 %v249, 0.0
      %v282 = vmax.f32 %v250, 0.0
      %v283 = vmax.f32 %v251, 0.0
      %v284 = vmax.f32 %v252, 0.0
      %v285 = vmax.f32 %v253, 0.0
      %v286 = vmax.f32 %v254, 0.0
      %v287 = vmax.f32 %v255, 0.0
      %v288 = vmax.f32 %v256, 0.0
      %v289 = vmax.f32 %v257, 0.0
      %v290 = vmax.f32 %v258, 0.0
      %v291 = vmax.f32 %v259, 0.0
      %v292 = vmax.f32 %v260, 0.0
      %v293 = vmax.f32 %v261, 0.0
      %v294 = vmax.f32 %v262, 0.0
      %v295 = vmax.f32 %v263, 0.0
      %v296 = vmax.f32 %v264, 0.0
      %v297 = vmax.f32 %v265, 0.0
      %v298 = vmax.f32 %v266, 0.0
      %v299 = vmax.f32 %v267, 0.0
      %v300 = vmax.f32 %v268, 0.0
      %v301 = vmax.f32 %v269, 0.0
      %v302 = vmax.f32 %v270, 0.0
      %v303 = vmax.f32 %v271, 0.0
      %v304 = vmax.f32 %v272, 0.0
      %v305 = vmax.f32 %v273, 0.0
      %v306 = vmax.f32 %v274, 0.0
      %v307 = vmax.f32 %v275, 0.0
      %v308 = vmax.f32 %v276, 0.0
      %v309 = vmax.f32 %v277, 0.0
      %v310 = vpack.c.bf16 %v278, %v278
      %v311 = vpack.c.bf16 %v279, %v279
      %v312 = vpack.c.bf16 %v280, %v280
      %v313 = vpack.c.bf16 %v281, %v281
      %v314 = vpack.c.bf16 %v282, %v282
      %v315 = vpack.c.bf16 %v283, %v283
      %v316 = vpack.c.bf16 %v284, %v284
      %v317 = vpack.c.bf16 %v285, %v285
      %v318 = vpack.c.bf16 %v286, %v286
      %v319 = vpack.c.bf16 %v287, %v287
      %v320 = vpack.c.bf16 %v288, %v288
      %v321 = vpack.c.bf16 %v289, %v289
      %v322 = vpack.c.bf16 %v290, %v290
      %v323 = vpack.c.bf16 %v291, %v291
      %v324 = vpack.c.bf16 %v292, %v292
      %v325 = vpack.c.bf16 %v293, %v293
      %v326 = vpack.c.bf16 %v294, %v294
      %v327 = vpack.c.bf16 %v295, %v295
      %v328 = vpack.c.bf16 %v296, %v296
      %v329 = vpack.c.bf16 %v297, %v297
      %v330 = vpack.c.bf16 %v298, %v298
      %v331 = vpack.c.bf16 %v299, %v299
      %v332 = vpack.c.bf16 %v300, %v300
      %v333 = vpack.c.bf16 %v301, %v301
      %v334 = vpack.c.bf16 %v302, %v302
      %v335 = vpack.c.bf16 %v303, %v303
      %v336 = vpack.c.bf16 %v304, %v304
      %v337 = vpack.c.bf16 %v305, %v305
      %v338 = vpack.c.bf16 %v306, %v306
      %v339 = vpack.c.bf16 %v307, %v307
      %v340 = vpack.c.bf16 %v308, %v308
      %v341 = vpack.c.bf16 %v309, %v309
      %342 = vst [vmem:[%s172] sm:$0xf] %v310
      %343 = vst [vmem:[%s172 + $0x4] sm:$0xf] %v311
      %344 = vst [vmem:[%s172 + $0x8] sm:$0xf] %v312
      %345 = vst [vmem:[%s172 + $0xc] sm:$0xf] %v313
      %346 = vst [vmem:[%s172 + $0x10] sm:$0xf] %v314
      %347 = vst [vmem:[%s172 + $0x14] sm:$0xf] %v315
      %348 = vst [vmem:[%s172 + $0x18] sm:$0xf] %v316
      %349 = vst [vmem:[%s172 + $0x1c] sm:$0xf] %v317
      %350 = vst [vmem:[%s172 + $0x20] sm:$0xf] %v318
      %351 = vst [vmem:[%s172 + $0x24] sm:$0xf] %v319
      %352 = vst [vmem:[%s172 + $0x28] sm:$0xf] %v320
      %353 = vst [vmem:[%s172 + $0x2c] sm:$0xf] %v321
      %354 = vst [vmem:[%s172 + $0x30] sm:$0xf] %v322
      %355 = vst [vmem:[%s172 + $0x34] sm:$0xf] %v323
      %356 = vst [vmem:[%s172 + $0x38] sm:$0xf] %v324
      %357 = vst [vmem:[%s172 + $0x3c] sm:$0xf] %v325
      %358 = vst [vmem:[%s172 + $0x40] sm:$0xf] %v326
      %359 = vst [vmem:[%s172 + $0x44] sm:$0xf] %v327
      %360 = vst [vmem:[%s172 + $0x48] sm:$0xf] %v328
      %361 = vst [vmem:[%s172 + $0x4c] sm:$0xf] %v329
      %362 = vst [vmem:[%s172 + $0x50] sm:$0xf] %v330
      %363 = vst [vmem:[%s172 + $0x54] sm:$0xf] %v331
      %364 = vst [vmem:[%s172 + $0x58] sm:$0xf] %v332
      %365 = vst [vmem:[%s172 + $0x5c] sm:$0xf] %v333
      %366 = vst [vmem:[%s172 + $0x60] sm:$0xf] %v334
      %367 = vst [vmem:[%s172 + $0x64] sm:$0xf] %v335
      %368 = vst [vmem:[%s172 + $0x68] sm:$0xf] %v336
      %369 = vst [vmem:[%s172 + $0x6c] sm:$0xf] %v337
      %370 = vst [vmem:[%s172 + $0x70] sm:$0xf] %v338
      %371 = vst [vmem:[%s172 + $0x74] sm:$0xf] %v339
      %372 = vst [vmem:[%s172 + $0x78] sm:$0xf] %v340
      %373 = vst [vmem:[%s172 + $0x7c] sm:$0xf] %v341
      %s374 = smul.u32 32, %s14
      %p375 = scmp.lt.s32.totalorder %s374, 63
      %s376 = scalar_select %p375, %s374, 63
      %s377 = smul.addr %s376, 4
      %s378 = scalar_lea.vmem %s3, %s377
      // Predicated region
      $region33: #{up_block_forward.7} parent=31 // pred_check
        %p379 = pneg %p100
      $region34: #{up_block_forward.7} parent=31 // pred_check_branch
        %381 = sbr.rel (%p379) target = $region36
      $region35: #{up_block_forward.7} parent=31 // pred_region
        %s382 = smul.u32 32, %s14
      $region36: #{up_block_forward.7} parent=31 // pred_fallthru
        _
    $region32: #{up_block_forward.7} parent=5 // pred_fallthru
      _
    %p383 = scmp.le.s32.totalorder 2, %s9
    // Predicated region
    $region37: #{up_block_forward.7} parent=5 // pred_check
      %p384 = pneg %p383
    $region38: #{up_block_forward.7} parent=5 // pred_check_branch
      %386 = sbr.rel (%p384) target = $region40
    $region39: #{up_block_forward.7} parent=5 // pred_region
      %s387 = ssub.s32 %s9, 2
      // Predicated region
      $region41: #{up_block_forward.7} parent=39 // pred_check
        %p388 = pneg %p106
      $region42: #{up_block_forward.7} parent=39 // pred_check_branch
        %390 = sbr.rel (%p388) target = $region44
      $region43: #{up_block_forward.7} parent=39 // pred_region
        %s391 = smul.u32 32, %s15
        %p392 = scmp.lt.s32.totalorder %s391, 63
        %s393 = scalar_select %p392, %s391, 63
        %s394 = smul.addr %s393, 4
        %s395 = scalar_lea.vmem %s3, %s394
      $region44: #{up_block_forward.7} parent=39 // pred_fallthru
        _
    $region40: #{up_block_forward.7} parent=5 // pred_fallthru
      _
  $region6: #{up_block_forward.7} parent=0 // loop_footer
    %s13 = sadd.s32 1, %s9
  $region7: #{up_block_forward.7} parent=0 // loop_footer_branch
    %8 = sbr.rel target = $region3
  $region8: #{up_block_forward.7} parent=0 // loop_exit
    _

// kernel: up_block_forward.8
$region0: #{up_block_forward.8}
  #allocation0 [shape = 'u32[]', space=smem, size = 0x4, offset = 0x4, fixed_abs, tag = 'smem constant byte address 0x4 - core index']
  #allocation1 [shape = 'u32[72,128]{1,0:T(1,128)}', space=vmem, size = 0x9000, scoped, tag = 'internal scratch']
  %s0 = inlined_call_operand.vmem [shape: bf16[512,1152], index: 0, kind: input, shape index: {}]
  %s1 = inlined_call_operand.vmem [shape: bf16[1152,128], index: 1, kind: input, shape index: {}]
  %s2 = inlined_call_operand.vmem [shape: f32[512,128], index: 2, kind: output, shape index: {0}]
  %s3 = inlined_call_operand.vmem [shape: f32[2,2,128], index: 3, kind: output, shape index: {1}]
  %4 = xla_tuple %s2, %s3
  %s5 = sld [smem:[#allocation0]]
  $region53: #{up_block_forward.8} parent=0
    _
  %s7 = ssub.s32 1, %s5
  %s8 = scalar_select 0, %s7, %s5
  loop: start=0, step=1, limit=4
  $region2: #{up_block_forward.8} parent=0 // loop_pre_header
    _
  $region3: #{up_block_forward.8} parent=0 // loop_header
    %s10 = sphi 0, %s14
    %p11 = scmp.ge.s32.totalorder %s10, 4
    %s17 = sphi 0, %s29
    %s18 = sphi 0, %s25
    %s19 = sphi 0, %s17
    %s20 = sphi 0, %s18
    %s21 = sphi 0, %s19
    %s22 = sphi 0, %s20
    %s34 = sphi 0, %s36
    %s37 = sphi 0, %s34
    %s38 = sphi 0, %s37
    %s54 = sphi 0, %s38
    %s58 = sphi 0, %s58
    %s60 = sphi 0, %s58
    %s61 = sphi 0, %s60
    %s75 = sphi 0, %s61
    %s83 = sphi 0, %s85
    %s86 = sphi 0, %s83
    %s87 = sphi 0, %s86
    %s103 = sphi 0, %s87
    %s109 = sphi 0, %s111
    %s112 = sphi 0, %s109
    %s113 = sphi 0, %s112
    %s129 = sphi 0, %s113
  $region4: #{up_block_forward.8} parent=0 // loop_header_branch
    %13 = sbr.rel (%p11) target = $region8
  $region5: #{up_block_forward.8} parent=0 // loop_body
    %s15 = ssub.s32 %s10, 1
    %s16 = ssub.s32 %s10, 2
    %s23 = sadd.s32 1, %s18
    %p24 = scmp.ge.s32.totalorder %s23, 1
    %s25 = scalar_select %p24, 0, %s23
    %s26 = sadd.s32 1, %s17
    %s27 = scalar_select %p24, %s26, %s17
    %p28 = scmp.ge.s32.totalorder %s27, 2
    %s29 = scalar_select %p28, 0, %s27
    %s30 = sadd.s32 %s17, %s18
    %s31 = sadd.s32 %s29, %s25
    %s32 = ssub.s32 %s30, %s31
    %p33 = scmp.eq.s32.totalorder %s32, 0
    %s35 = sadd.s32 %s34, 1
    %s36 = scalar_select %p33, %s34, %s35
    %p39 = pneg %p33
    %p40 = scmp.eq.s32.totalorder %s10, 1
    %p41 = por %p39, %p40
    %p42 = scmp.ne.s32.totalorder %s34, %s37
    %p43 = scmp.eq.s32.totalorder %s10, 0
    %p44 = por %p42, %p43
    %p45 = scmp.ne.s32.totalorder %s34, %s37
    %p46 = scmp.eq.s32.totalorder %s15, 1
    %p47 = por %p45, %p46
    %p48 = scmp.ne.s32.totalorder %s37, %s38
    %p49 = scmp.eq.s32.totalorder %s15, 0
    %p50 = por %p48, %p49
    %p51 = scmp.ne.s32.totalorder %s37, %s38
    %p52 = scmp.eq.s32.totalorder %s16, 1
    %p53 = por %p51, %p52
    %p55 = scmp.ne.s32.totalorder %s38, %s54
    %p56 = scmp.eq.s32.totalorder %s16, 0
    %p57 = por %p55, %p56
    %s59 = sadd.s32 %s58, 1
    %p62 = scmp.eq.s32.totalorder %s10, 1
    %p63 = scmp.ne.s32.totalorder %s58, %s60
    %p64 = scmp.eq.s32.totalorder %s10, 0
    %p65 = por %p63, %p64
    %p66 = scmp.ne.s32.totalorder %s58, %s60
    %p67 = scmp.eq.s32.totalorder %s15, 1
    %p68 = por %p66, %p67
    %p69 = scmp.ne.s32.totalorder %s60, %s61
    %p70 = scmp.eq.s32.totalorder %s15, 0
    %p71 = por %p69, %p70
    %p72 = scmp.ne.s32.totalorder %s60, %s61
    %p73 = scmp.eq.s32.totalorder %s16, 1
    %p74 = por %p72, %p73
    %p76 = scmp.ne.s32.totalorder %s61, %s75
    %p77 = scmp.eq.s32.totalorder %s16, 0
    %p78 = por %p76, %p77
    %s79 = sadd.s32 %s17, %s18
    %s80 = sadd.s32 %s29, %s25
    %s81 = ssub.s32 %s79, %s80
    %p82 = scmp.eq.s32.totalorder %s81, 0
    %s84 = sadd.s32 %s83, 1
    %s85 = scalar_select %p82, %s83, %s84
    %p88 = pneg %p82
    %p89 = scmp.eq.s32.totalorder %s10, 1
    %p90 = por %p88, %p89
    %p91 = scmp.ne.s32.totalorder %s83, %s86
    %p92 = scmp.eq.s32.totalorder %s10, 0
    %p93 = por %p91, %p92
    %p94 = scmp.ne.s32.totalorder %s83, %s86
    %p95 = scmp.eq.s32.totalorder %s15, 1
    %p96 = por %p94, %p95
    %p97 = scmp.ne.s32.totalorder %s86, %s87
    %p98 = scmp.eq.s32.totalorder %s15, 0
    %p99 = por %p97, %p98
    %p100 = scmp.ne.s32.totalorder %s86, %s87
    %p101 = scmp.eq.s32.totalorder %s16, 1
    %p102 = por %p100, %p101
    %p104 = scmp.ne.s32.totalorder %s87, %s103
    %p105 = scmp.eq.s32.totalorder %s16, 0
    %p106 = por %p104, %p105
    %s107 = ssub.s32 %s17, %s29
    %p108 = scmp.eq.s32.totalorder %s107, 0
    %s110 = sadd.s32 %s109, 1
    %s111 = scalar_select %p108, %s109, %s110
    %p114 = pneg %p108
    %p115 = scmp.eq.s32.totalorder %s10, 1
    %p116 = por %p114, %p115
    %p117 = scmp.ne.s32.totalorder %s109, %s112
    %p118 = scmp.eq.s32.totalorder %s10, 0
    %p119 = por %p117, %p118
    %p120 = scmp.ne.s32.totalorder %s109, %s112
    %p121 = scmp.eq.s32.totalorder %s15, 1
    %p122 = por %p120, %p121
    %p123 = scmp.ne.s32.totalorder %s112, %s113
    %p124 = scmp.eq.s32.totalorder %s15, 0
    %p125 = por %p123, %p124
    %p126 = scmp.ne.s32.totalorder %s112, %s113
    %p127 = scmp.eq.s32.totalorder %s16, 1
    %p128 = por %p126, %p127
    %p130 = scmp.ne.s32.totalorder %s113, %s129
    %p131 = scmp.eq.s32.totalorder %s16, 0
    %p132 = por %p130, %p131
    %p133 = scmp.le.s32.totalorder 1, %s10
    %p134 = scmp.lt.s32.totalorder %s10, 3
    %p135 = pnand %p133, %p134
    %p136 = pneg %p135
    // Predicated region
    $region9: #{up_block_forward.8} parent=5 // pred_check
      _
    $region10: #{up_block_forward.8} parent=5 // pred_check_branch
      %138 = sbr.rel (%p135) target = $region12
    $region11: #{up_block_forward.8} parent=5 // pred_region
      %s139 = ssub.s32 %s10, 1
      // Predicated region
      $region13: #{up_block_forward.8} parent=11 // pred_check
        %p140 = pneg %p71
      $region14: #{up_block_forward.8} parent=11 // pred_check_branch
        %142 = sbr.rel (%p140) target = $region16
      $region15: #{up_block_forward.8} parent=11 // pred_region
        _
      $region16: #{up_block_forward.8} parent=11 // pred_fallthru
        _
    $region12: #{up_block_forward.8} parent=5 // pred_fallthru
      _
    %p143 = scmp.lt.s32.totalorder %s10, 2
    // Predicated region
    $region17: #{up_block_forward.8} parent=5 // pred_check
      %p144 = pneg %p143
    $region18: #{up_block_forward.8} parent=5 // pred_check_branch
      %146 = sbr.rel (%p144) target = $region20
    $region19: #{up_block_forward.8} parent=5 // pred_region
      // Predicated region
      $region21: #{up_block_forward.8} parent=19 // pred_check
        %p147 = pneg %p44
      $region22: #{up_block_forward.8} parent=19 // pred_check_branch
        %149 = sbr.rel (%p147) target = $region24
      $region23: #{up_block_forward.8} parent=19 // pred_region
        %s150 = sadd.s32 %s17, %s18
        %s151 = smul.u32 32, %s150
        %p152 = scmp.lt.s32.totalorder %s151, 63
        %s153 = scalar_select %p152, %s151, 63
        %s154 = smul.addr %s153, 9
        %s155 = smul.addr %s154, 4
        %s156 = scalar_lea.vmem %s0, %s155
        %s157 = sadd.s32 %s17, %s18
        %s158 = smul.u32 32, %s157
      $region24: #{up_block_forward.8} parent=19 // pred_fallthru
        _
    $region20: #{up_block_forward.8} parent=5 // pred_fallthru
      _
    %p159 = scmp.le.s32.totalorder 1, %s10
    %p160 = scmp.lt.s32.totalorder %s10, 3
    %p161 = pnand %p159, %p160
    %p162 = pneg %p161
    // Predicated region
    $region25: #{up_block_forward.8} parent=5 // pred_check
      _
    $region26: #{up_block_forward.8} parent=5 // pred_check_branch
      %164 = sbr.rel (%p161) target = $region28
    $region27: #{up_block_forward.8} parent=5 // pred_region
      %s165 = ssub.s32 %s10, 1
      %s166 = sadd.s32 %s19, %s20
      %s167 = smul.u32 32, %s166
      %p168 = scmp.lt.s32.totalorder %s167, 63
      %s169 = scalar_select %p168, %s167, 63
      %s170 = smul.addr %s169, 9
      %s171 = smul.addr %s170, 4
      %s172 = scalar_lea.vmem %s0, %s171
      %p173 = pneg %p50
      %p174 = pneg %p47
      %p175 = pneg %p71
      %p176 = pneg %p68
      %p177 = pneg %p99
      %p178 = pneg %p96
      %s179 = sadd.s32 %s19, %s20
      %s180 = smul.u32 32, %s179
      %p181 = scmp.lt.s32.totalorder %s180, 63
      %s182 = scalar_select %p181, %s180, 63
      %s183 = smul.addr %s182, 8
      %s184 = scalar_lea.vmem %s2, %s183
      %p185 = pneg %p125
      %p186 = pneg %p122
      %p187 = scmp.lt.s32.totalorder %s19, 1
      %s188 = scalar_select %p187, %s19, 1
      %s189 = smul.addr %s188, 2
      %s190 = scalar_lea.vmem %s3, %s189
      %s191 = sadd.s32 %s19, %s20
      %s192 = smul.u32 32, %s191
      %p193 = scmp.lt.s32.totalorder %s192, 63
      %s194 = scalar_select %p193, %s192, 63
      %s195 = smul.addr %s194, 9
      %s196 = smul.addr %s195, 4
      %s197 = scalar_lea.vmem %s0, %s196
      %s198 = sadd.s32 %s19, %s20
      %s199 = smul.u32 32, %s198
      %s200 = sadd.s32 %s19, %s20
      %s201 = smul.u32 32, %s200
      %p202 = scmp.lt.s32.totalorder %s201, 63
      %s203 = scalar_select %p202, %s201, 63
      %s204 = smul.addr %s203, 8
      %s205 = scalar_lea.vmem %s2, %s204
      %s206 = sadd.s32 %s19, %s20
      %s207 = smul.u32 32, %s206
      %p208 = scmp.lt.s32.totalorder %s19, 1
      %s209 = scalar_select %p208, %s19, 1
      %s210 = smul.addr %s209, 2
      %s211 = scalar_lea.vmem %s3, %s210
      %v212 = vld [vmem:[%s197] sm:$0xff]
      %v213 = vld [vmem:[%s197 + $0x8] sm:$0xff]
      %v214 = vld [vmem:[%s197 + $0x10] sm:$0xff]
      %v215 = vld [vmem:[%s197 + $0x18] sm:$0xff]
      %v216 = vld [vmem:[%s197 + $0x20] sm:$0xf]
      %v217 = vld [vmem:[%s197 + $0x24] sm:$0xff]
      %v218 = vld [vmem:[%s197 + $0x2c] sm:$0xff]
      %v219 = vld [vmem:[%s197 + $0x34] sm:$0xff]
      %v220 = vld [vmem:[%s197 + $0x3c] sm:$0xff]
      %v221 = vld [vmem:[%s197 + $0x44] sm:$0xf]
      %v222 = vld [vmem:[%s197 + $0x48] sm:$0xff]
      %v223 = vld [vmem:[%s197 + $0x50] sm:$0xff]
      %v224 = vld [vmem:[%s197 + $0x58] sm:$0xff]
      %v225 = vld [vmem:[%s197 + $0x60] sm:$0xff]
      %v226 = vld [vmem:[%s197 + $0x68] sm:$0xf]
      %v227 = vld [vmem:[%s197 + $0x6c] sm:$0xff]
      %v228 = vld [vmem:[%s197 + $0x74] sm:$0xff]
      %v229 = vld [vmem:[%s197 + $0x7c] sm:$0xff]
      %v230 = vld [vmem:[%s197 + $0x84] sm:$0xff]
      %v231 = vld [vmem:[%s197 + $0x8c] sm:$0xf]
      %v232 = vld [vmem:[%s197 + $0x90] sm:$0xff]
      %v233 = vld [vmem:[%s197 + $0x98] sm:$0xff]
      %v234 = vld [vmem:[%s197 + $0xa0] sm:$0xff]
      %v235 = vld [vmem:[%s197 + $0xa8] sm:$0xff]
      %v236 = vld [vmem:[%s197 + $0xb0] sm:$0xf]
      %v237 = vld [vmem:[%s197 + $0xb4] sm:$0xff]
      %v238 = vld [vmem:[%s197 + $0xbc] sm:$0xff]
      %v239 = vld [vmem:[%s197 + $0xc4] sm:$0xff]
      %v240 = vld [vmem:[%s197 + $0xcc] sm:$0xff]
      %v241 = vld [vmem:[%s197 + $0xd4] sm:$0xf]
      %v242 = vld [vmem:[%s197 + $0xd8] sm:$0xff]
      %v243 = vld [vmem:[%s197 + $0xe0] sm:$0xff]
      %v244 = vld [vmem:[%s197 + $0xe8] sm:$0xff]
      %v245 = vld [vmem:[%s197 + $0xf0] sm:$0xff]
      %v246 = vld [vmem:[%s197 + $0xf8] sm:$0xf]
      %v247 = vld [vmem:[%s197 + $0xfc] sm:$0xff]
      %v248 = vld [vmem:[%s197 + $0x104] sm:$0xff]
      %v249 = vld [vmem:[%s197 + $0x10c] sm:$0xff]
      %v250 = vld [vmem:[%s197 + $0x114] sm:$0xff]
      %v251 = vld [vmem:[%s197 + $0x11c] sm:$0xf]
      %v252 = vld [vmem:[%s197 + $0x120] sm:$0xff]
      %v253 = vld [vmem:[%s197 + $0x128] sm:$0xff]
      %v254 = vld [vmem:[%s197 + $0x130] sm:$0xff]
      %v255 = vld [vmem:[%s197 + $0x138] sm:$0xff]
      %v256 = vld [vmem:[%s197 + $0x140] sm:$0xf]
      %v257 = vld [vmem:[%s197 + $0x144] sm:$0xff]
      %v258 = vld [vmem:[%s197 + $0x14c] sm:$0xff]
      %v259 = vld [vmem:[%s197 + $0x154] sm:$0xff]
      %v260 = vld [vmem:[%s197 + $0x15c] sm:$0xff]
      %v261 = vld [vmem:[%s197 + $0x164] sm:$0xf]
      %v262 = vld [vmem:[%s197 + $0x168] sm:$0xff]
      %v263 = vld [vmem:[%s197 + $0x170] sm:$0xff]
      %v264 = vld [vmem:[%s197 + $0x178] sm:$0xff]
      %v265 = vld [vmem:[%s197 + $0x180] sm:$0xff]
      %v266 = vld [vmem:[%s197 + $0x188] sm:$0xf]
      %v267 = vld [vmem:[%s197 + $0x18c] sm:$0xff]
      %v268 = vld [vmem:[%s197 + $0x194] sm:$0xff]
      %v269 = vld [vmem:[%s197 + $0x19c] sm:$0xff]
      %v270 = vld [vmem:[%s197 + $0x1a4] sm:$0xff]
      %v271 = vld [vmem:[%s197 + $0x1ac] sm:$0xf]
      %v272 = vld [vmem:[%s197 + $0x1b0] sm:$0xff]
      %v273 = vld [vmem:[%s197 + $0x1b8] sm:$0xff]
      %v274 = vld [vmem:[%s197 + $0x1c0] sm:$0xff]
      %v275 = vld [vmem:[%s197 + $0x1c8] sm:$0xff]
      %v276 = vld [vmem:[%s197 + $0x1d0] sm:$0xf]
      %v277 = vld [vmem:[%s197 + $0x1d4] sm:$0xff]
      %v278 = vld [vmem:[%s197 + $0x1dc] sm:$0xff]
      %v279 = vld [vmem:[%s197 + $0x1e4] sm:$0xff]
      %v280 = vld [vmem:[%s197 + $0x1ec] sm:$0xff]
      %v281 = vld [vmem:[%s197 + $0x1f4] sm:$0xf]
      %v282 = vld [vmem:[%s197 + $0x1f8] sm:$0xff]
      %v283 = vld [vmem:[%s197 + $0x200] sm:$0xff]
      %v284 = vld [vmem:[%s197 + $0x208] sm:$0xff]
      %v285 = vld [vmem:[%s197 + $0x210] sm:$0xff]
      %v286 = vld [vmem:[%s197 + $0x218] sm:$0xf]
      %v287 = vld [vmem:[%s197 + $0x21c] sm:$0xff]
      %v288 = vld [vmem:[%s197 + $0x224] sm:$0xff]
      %v289 = vld [vmem:[%s197 + $0x22c] sm:$0xff]
      %v290 = vld [vmem:[%s197 + $0x234] sm:$0xff]
      %v291 = vld [vmem:[%s197 + $0x23c] sm:$0xf]
      %v292 = vld [vmem:[%s197 + $0x240] sm:$0xff]
      %v293 = vld [vmem:[%s197 + $0x248] sm:$0xff]
      %v294 = vld [vmem:[%s197 + $0x250] sm:$0xff]
      %v295 = vld [vmem:[%s197 + $0x258] sm:$0xff]
      %v296 = vld [vmem:[%s197 + $0x260] sm:$0xf]
      %v297 = vld [vmem:[%s197 + $0x264] sm:$0xff]
      %v298 = vld [vmem:[%s197 + $0x26c] sm:$0xff]
      %v299 = vld [vmem:[%s197 + $0x274] sm:$0xff]
      %v300 = vld [vmem:[%s197 + $0x27c] sm:$0xff]
      %v301 = vld [vmem:[%s197 + $0x284] sm:$0xf]
      %v302 = vld [vmem:[%s197 + $0x288] sm:$0xff]
      %v303 = vld [vmem:[%s197 + $0x290] sm:$0xff]
      %v304 = vld [vmem:[%s197 + $0x298] sm:$0xff]
      %v305 = vld [vmem:[%s197 + $0x2a0] sm:$0xff]
      %v306 = vld [vmem:[%s197 + $0x2a8] sm:$0xf]
      %v307 = vld [vmem:[%s197 + $0x2ac] sm:$0xff]
      %v308 = vld [vmem:[%s197 + $0x2b4] sm:$0xff]
      %v309 = vld [vmem:[%s197 + $0x2bc] sm:$0xff]
      %v310 = vld [vmem:[%s197 + $0x2c4] sm:$0xff]
      %v311 = vld [vmem:[%s197 + $0x2cc] sm:$0xf]
      %v312 = vld [vmem:[%s197 + $0x2d0] sm:$0xff]
      %v313 = vld [vmem:[%s197 + $0x2d8] sm:$0xff]
      %v314 = vld [vmem:[%s197 + $0x2e0] sm:$0xff]
      %v315 = vld [vmem:[%s197 + $0x2e8] sm:$0xff]
      %v316 = vld [vmem:[%s197 + $0x2f0] sm:$0xf]
      %v317 = vld [vmem:[%s197 + $0x2f4] sm:$0xff]
      %v318 = vld [vmem:[%s197 + $0x2fc] sm:$0xff]
      %v319 = vld [vmem:[%s197 + $0x304] sm:$0xff]
      %v320 = vld [vmem:[%s197 + $0x30c] sm:$0xff]
      %v321 = vld [vmem:[%s197 + $0x314] sm:$0xf]
      %v322 = vld [vmem:[%s197 + $0x318] sm:$0xff]
      %v323 = vld [vmem:[%s197 + $0x320] sm:$0xff]
      %v324 = vld [vmem:[%s197 + $0x328] sm:$0xff]
      %v325 = vld [vmem:[%s197 + $0x330] sm:$0xff]
      %v326 = vld [vmem:[%s197 + $0x338] sm:$0xf]
      %v327 = vld [vmem:[%s197 + $0x33c] sm:$0xff]
      %v328 = vld [vmem:[%s197 + $0x344] sm:$0xff]
      %v329 = vld [vmem:[%s197 + $0x34c] sm:$0xff]
      %v330 = vld [vmem:[%s197 + $0x354] sm:$0xff]
      %v331 = vld [vmem:[%s197 + $0x35c] sm:$0xf]
      %v332 = vld [vmem:[%s197 + $0x360] sm:$0xff]
      %v333 = vld [vmem:[%s197 + $0x368] sm:$0xff]
      %v334 = vld [vmem:[%s197 + $0x370] sm:$0xff]
      %v335 = vld [vmem:[%s197 + $0x378] sm:$0xff]
      %v336 = vld [vmem:[%s197 + $0x380] sm:$0xf]
      %v337 = vld [vmem:[%s197 + $0x384] sm:$0xff]
      %v338 = vld [vmem:[%s197 + $0x38c] sm:$0xff]
      %v339 = vld [vmem:[%s197 + $0x394] sm:$0xff]
      %v340 = vld [vmem:[%s197 + $0x39c] sm:$0xff]
      %v341 = vld [vmem:[%s197 + $0x3a4] sm:$0xf]
      %v342 = vld [vmem:[%s197 + $0x3a8] sm:$0xff]
      %v343 = vld [vmem:[%s197 + $0x3b0] sm:$0xff]
      %v344 = vld [vmem:[%s197 + $0x3b8] sm:$0xff]
      %v345 = vld [vmem:[%s197 + $0x3c0] sm:$0xff]
      %v346 = vld [vmem:[%s197 + $0x3c8] sm:$0xf]
      %v347 = vld [vmem:[%s197 + $0x3cc] sm:$0xff]
      %v348 = vld [vmem:[%s197 + $0x3d4] sm:$0xff]
      %v349 = vld [vmem:[%s197 + $0x3dc] sm:$0xff]
      %v350 = vld [vmem:[%s197 + $0x3e4] sm:$0xff]
      %v351 = vld [vmem:[%s197 + $0x3ec] sm:$0xf]
      %v352 = vld [vmem:[%s197 + $0x3f0] sm:$0xff]
      %v353 = vld [vmem:[%s197 + $0x3f8] sm:$0xff]
      %v354 = vld [vmem:[%s197 + $0x400] sm:$0xff]
      %v355 = vld [vmem:[%s197 + $0x408] sm:$0xff]
      %v356 = vld [vmem:[%s197 + $0x410] sm:$0xf]
      %v357 = vld [vmem:[%s197 + $0x414] sm:$0xff]
      %v358 = vld [vmem:[%s197 + $0x41c] sm:$0xff]
      %v359 = vld [vmem:[%s197 + $0x424] sm:$0xff]
      %v360 = vld [vmem:[%s197 + $0x42c] sm:$0xff]
      %v361 = vld [vmem:[%s197 + $0x434] sm:$0xf]
      %v362 = vld [vmem:[%s197 + $0x438] sm:$0xff]
      %v363 = vld [vmem:[%s197 + $0x440] sm:$0xff]
      %v364 = vld [vmem:[%s197 + $0x448] sm:$0xff]
      %v365 = vld [vmem:[%s197 + $0x450] sm:$0xff]
      %v366 = vld [vmem:[%s197 + $0x458] sm:$0xf]
      %v367 = vld [vmem:[%s197 + $0x45c] sm:$0xff]
      %v368 = vld [vmem:[%s197 + $0x464] sm:$0xff]
      %v369 = vld [vmem:[%s197 + $0x46c] sm:$0xff]
      %v370 = vld [vmem:[%s197 + $0x474] sm:$0xff]
      %v371 = vld [vmem:[%s197 + $0x47c] sm:$0xf]
      %v372 = vld [vmem:[%s1] sm:$0xf]
      %v373 = vld [vmem:[%s1 + $0x4] sm:$0xf]
      %v374 = vld [vmem:[%s1 + $0x8] sm:$0xf]
      %v375 = vld [vmem:[%s1 + $0xc] sm:$0xf]
      %v376 = vld [vmem:[%s1 + $0x10] sm:$0xf]
      %v377 = vld [vmem:[%s1 + $0x14] sm:$0xf]
      %v378 = vld [vmem:[%s1 + $0x18] sm:$0xf]
      %v379 = vld [vmem:[%s1 + $0x1c] sm:$0xf]
      %v380 = vld [vmem:[%s1 + $0x20] sm:$0xf]
      %v381 = vld [vmem:[%s1 + $0x24] sm:$0xf]
      %v382 = vld [vmem:[%s1 + $0x28] sm:$0xf]
      %v383 = vld [vmem:[%s1 + $0x2c] sm:$0xf]
      %v384 = vld [vmem:[%s1 + $0x30] sm:$0xf]
      %v385 = vld [vmem:[%s1 + $0x34] sm:$0xf]
      %v386 = vld [vmem:[%s1 + $0x38] sm:$0xf]
      %v387 = vld [vmem:[%s1 + $0x3c] sm:$0xf]
      %v388 = vld [vmem:[%s1 + $0x40] sm:$0xf]
      %v389 = vld [vmem:[%s1 + $0x44] sm:$0xf]
      %v390 = vld [vmem:[%s1 + $0x48] sm:$0xf]
      %v391 = vld [vmem:[%s1 + $0x4c] sm:$0xf]
      %v392 = vld [vmem:[%s1 + $0x50] sm:$0xf]
      %v393 = vld [vmem:[%s1 + $0x54] sm:$0xf]
      %v394 = vld [vmem:[%s1 + $0x58] sm:$0xf]
      %v395 = vld [vmem:[%s1 + $0x5c] sm:$0xf]
      %v396 = vld [vmem:[%s1 + $0x60] sm:$0xf]
      %v397 = vld [vmem:[%s1 + $0x64] sm:$0xf]
      %v398 = vld [vmem:[%s1 + $0x68] sm:$0xf]
      %v399 = vld [vmem:[%s1 + $0x6c] sm:$0xf]
      %v400 = vld [vmem:[%s1 + $0x70] sm:$0xf]
      %v401 = vld [vmem:[%s1 + $0x74] sm:$0xf]
      %v402 = vld [vmem:[%s1 + $0x78] sm:$0xf]
      %v403 = vld [vmem:[%s1 + $0x7c] sm:$0xf]
      %v404 = vld [vmem:[%s1 + $0x80] sm:$0xf]
      %v405 = vld [vmem:[%s1 + $0x84] sm:$0xf]
      %v406 = vld [vmem:[%s1 + $0x88] sm:$0xf]
      %v407 = vld [vmem:[%s1 + $0x8c] sm:$0xf]
      %v408 = vld [vmem:[%s1 + $0x90] sm:$0xf]
      %v409 = vld [vmem:[%s1 + $0x94] sm:$0xf]
      %v410 = vld [vmem:[%s1 + $0x98] sm:$0xf]
      %v411 = vld [vmem:[%s1 + $0x9c] sm:$0xf]
      %v412 = vld [vmem:[%s1 + $0xa0] sm:$0xf]
      %v413 = vld [vmem:[%s1 + $0xa4] sm:$0xf]
      %v414 = vld [vmem:[%s1 + $0xa8] sm:$0xf]
      %v415 = vld [vmem:[%s1 + $0xac] sm:$0xf]
      %v416 = vld [vmem:[%s1 + $0xb0] sm:$0xf]
      %v417 = vld [vmem:[%s1 + $0xb4] sm:$0xf]
      %v418 = vld [vmem:[%s1 + $0xb8] sm:$0xf]
      %v419 = vld [vmem:[%s1 + $0xbc] sm:$0xf]
      %v420 = vld [vmem:[%s1 + $0xc0] sm:$0xf]
      %v421 = vld [vmem:[%s1 + $0xc4] sm:$0xf]
      %v422 = vld [vmem:[%s1 + $0xc8] sm:$0xf]
      %v423 = vld [vmem:[%s1 + $0xcc] sm:$0xf]
      %v424 = vld [vmem:[%s1 + $0xd0] sm:$0xf]
      %v425 = vld [vmem:[%s1 + $0xd4] sm:$0xf]
      %v426 = vld [vmem:[%s1 + $0xd8] sm:$0xf]
      %v427 = vld [vmem:[%s1 + $0xdc] sm:$0xf]
      %v428 = vld [vmem:[%s1 + $0xe0] sm:$0xf]
      %v429 = vld [vmem:[%s1 + $0xe4] sm:$0xf]
      %v430 = vld [vmem:[%s1 + $0xe8] sm:$0xf]
      %v431 = vld [vmem:[%s1 + $0xec] sm:$0xf]
      %v432 = vld [vmem:[%s1 + $0xf0] sm:$0xf]
      %v433 = vld [vmem:[%s1 + $0xf4] sm:$0xf]
      %v434 = vld [vmem:[%s1 + $0xf8] sm:$0xf]
      %v435 = vld [vmem:[%s1 + $0xfc] sm:$0xf]
      %v436 = vld [vmem:[%s1 + $0x100] sm:$0xf]
      %v437 = vld [vmem:[%s1 + $0x104] sm:$0xf]
      %v438 = vld [vmem:[%s1 + $0x108] sm:$0xf]
      %v439 = vld [vmem:[%s1 + $0x10c] sm:$0xf]
      %v440 = vld [vmem:[%s1 + $0x110] sm:$0xf]
      %v441 = vld [vmem:[%s1 + $0x114] sm:$0xf]
      %v442 = vld [vmem:[%s1 + $0x118] sm:$0xf]
      %v443 = vld [vmem:[%s1 + $0x11c] sm:$0xf]
      %v444 = vld [vmem:[%s1 + $0x120] sm:$0xf]
      %v445 = vld [vmem:[%s1 + $0x124] sm:$0xf]
      %v446 = vld [vmem:[%s1 + $0x128] sm:$0xf]
      %v447 = vld [vmem:[%s1 + $0x12c] sm:$0xf]
      %v448 = vld [vmem:[%s1 + $0x130] sm:$0xf]
      %v449 = vld [vmem:[%s1 + $0x134] sm:$0xf]
      %v450 = vld [vmem:[%s1 + $0x138] sm:$0xf]
      %v451 = vld [vmem:[%s1 + $0x13c] sm:$0xf]
      %v452 = vld [vmem:[%s1 + $0x140] sm:$0xf]
      %v453 = vld [vmem:[%s1 + $0x144] sm:$0xf]
      %v454 = vld [vmem:[%s1 + $0x148] sm:$0xf]
      %v455 = vld [vmem:[%s1 + $0x14c] sm:$0xf]
      %v456 = vld [vmem:[%s1 + $0x150] sm:$0xf]
      %v457 = vld [vmem:[%s1 + $0x154] sm:$0xf]
      %v458 = vld [vmem:[%s1 + $0x158] sm:$0xf]
      %v459 = vld [vmem:[%s1 + $0x15c] sm:$0xf]
      %v460 = vld [vmem:[%s1 + $0x160] sm:$0xf]
      %v461 = vld [vmem:[%s1 + $0x164] sm:$0xf]
      %v462 = vld [vmem:[%s1 + $0x168] sm:$0xf]
      %v463 = vld [vmem:[%s1 + $0x16c] sm:$0xf]
      %v464 = vld [vmem:[%s1 + $0x170] sm:$0xf]
      %v465 = vld [vmem:[%s1 + $0x174] sm:$0xf]
      %v466 = vld [vmem:[%s1 + $0x178] sm:$0xf]
      %v467 = vld [vmem:[%s1 + $0x17c] sm:$0xf]
      %v468 = vld [vmem:[%s1 + $0x180] sm:$0xf]
      %v469 = vld [vmem:[%s1 + $0x184] sm:$0xf]
      %v470 = vld [vmem:[%s1 + $0x188] sm:$0xf]
      %v471 = vld [vmem:[%s1 + $0x18c] sm:$0xf]
      %v472 = vld [vmem:[%s1 + $0x190] sm:$0xf]
      %v473 = vld [vmem:[%s1 + $0x194] sm:$0xf]
      %v474 = vld [vmem:[%s1 + $0x198] sm:$0xf]
      %v475 = vld [vmem:[%s1 + $0x19c] sm:$0xf]
      %v476 = vld [vmem:[%s1 + $0x1a0] sm:$0xf]
      %v477 = vld [vmem:[%s1 + $0x1a4] sm:$0xf]
      %v478 = vld [vmem:[%s1 + $0x1a8] sm:$0xf]
      %v479 = vld [vmem:[%s1 + $0x1ac] sm:$0xf]
      %v480 = vld [vmem:[%s1 + $0x1b0] sm:$0xf]
      %v481 = vld [vmem:[%s1 + $0x1b4] sm:$0xf]
      %v482 = vld [vmem:[%s1 + $0x1b8] sm:$0xf]
      %v483 = vld [vmem:[%s1 + $0x1bc] sm:$0xf]
      %v484 = vld [vmem:[%s1 + $0x1c0] sm:$0xf]
      %v485 = vld [vmem:[%s1 + $0x1c4] sm:$0xf]
      %v486 = vld [vmem:[%s1 + $0x1c8] sm:$0xf]
      %v487 = vld [vmem:[%s1 + $0x1cc] sm:$0xf]
      %v488 = vld [vmem:[%s1 + $0x1d0] sm:$0xf]
      %v489 = vld [vmem:[%s1 + $0x1d4] sm:$0xf]
      %v490 = vld [vmem:[%s1 + $0x1d8] sm:$0xf]
      %v491 = vld [vmem:[%s1 + $0x1dc] sm:$0xf]
      %v492 = vld [vmem:[%s1 + $0x1e0] sm:$0xf]
      %v493 = vld [vmem:[%s1 + $0x1e4] sm:$0xf]
      %v494 = vld [vmem:[%s1 + $0x1e8] sm:$0xf]
      %v495 = vld [vmem:[%s1 + $0x1ec] sm:$0xf]
      %v496 = vld [vmem:[%s1 + $0x1f0] sm:$0xf]
      %v497 = vld [vmem:[%s1 + $0x1f4] sm:$0xf]
      %v498 = vld [vmem:[%s1 + $0x1f8] sm:$0xf]
      %v499 = vld [vmem:[%s1 + $0x1fc] sm:$0xf]
      %v500 = vld [vmem:[%s1 + $0x200] sm:$0xf]
      %v501 = vld [vmem:[%s1 + $0x204] sm:$0xf]
      %v502 = vld [vmem:[%s1 + $0x208] sm:$0xf]
      %v503 = vld [vmem:[%s1 + $0x20c] sm:$0xf]
      %v504 = vld [vmem:[%s1 + $0x210] sm:$0xf]
      %v505 = vld [vmem:[%s1 + $0x214] sm:$0xf]
      %v506 = vld [vmem:[%s1 + $0x218] sm:$0xf]
      %v507 = vld [vmem:[%s1 + $0x21c] sm:$0xf]
      %v508 = vld [vmem:[%s1 + $0x220] sm:$0xf]
      %v509 = vld [vmem:[%s1 + $0x224] sm:$0xf]
      %v510 = vld [vmem:[%s1 + $0x228] sm:$0xf]
      %v511 = vld [vmem:[%s1 + $0x22c] sm:$0xf]
      %v512 = vld [vmem:[%s1 + $0x230] sm:$0xf]
      %v513 = vld [vmem:[%s1 + $0x234] sm:$0xf]
      %v514 = vld [vmem:[%s1 + $0x238] sm:$0xf]
      %v515 = vld [vmem:[%s1 + $0x23c] sm:$0xf]
      %v676 = vunpack.c.l.b16 %v212
      %v677 = vunpack.c.h.b16 %v212
      %v678 = vunpack.c.l.b16 %v213
      %v679 = vunpack.c.h.b16 %v213
      %v680 = vunpack.c.l.b16 %v214
      %v681 = vunpack.c.h.b16 %v214
      %v682 = vunpack.c.l.b16 %v215
      %v683 = vunpack.c.h.b16 %v215
      %v684 = vunpack.c.l.b16 %v216
      %v685 = vunpack.c.l.b16 %v217
      %v686 = vunpack.c.h.b16 %v217
      %v687 = vunpack.c.l.b16 %v218
      %v688 = vunpack.c.h.b16 %v218
      %v689 = vunpack.c.l.b16 %v219
      %v690 = vunpack.c.h.b16 %v219
      %v691 = vunpack.c.l.b16 %v220
      %v692 = vunpack.c.h.b16 %v220
      %v693 = vunpack.c.l.b16 %v221
      %v694 = vunpack.c.l.b16 %v222
      %v695 = vunpack.c.h.b16 %v222
      %v696 = vunpack.c.l.b16 %v223
      %v697 = vunpack.c.h.b16 %v223
      %v698 = vunpack.c.l.b16 %v224
      %v699 = vunpack.c.h.b16 %v224
      %v700 = vunpack.c.l.b16 %v225
      %v701 = vunpack.c.h.b16 %v225
      %v702 = vunpack.c.l.b16 %v226
      %v703 = vunpack.c.l.b16 %v227
      %v704 = vunpack.c.h.b16 %v227
      %v705 = vunpack.c.l.b16 %v228
      %v706 = vunpack.c.h.b16 %v228
      %v707 = vunpack.c.l.b16 %v229
      %v708 = vunpack.c.h.b16 %v229
      %v709 = vunpack.c.l.b16 %v230
      %v710 = vunpack.c.h.b16 %v230
      %v711 = vunpack.c.l.b16 %v231
      %v712 = vunpack.c.l.b16 %v232
      %v713 = vunpack.c.h.b16 %v232
      %v714 = vunpack.c.l.b16 %v233
      %v715 = vunpack.c.h.b16 %v233
      %v716 = vunpack.c.l.b16 %v234
      %v717 = vunpack.c.h.b16 %v234
      %v718 = vunpack.c.l.b16 %v235
      %v719 = vunpack.c.h.b16 %v235
      %v720 = vunpack.c.l.b16 %v236
      %v721 = vunpack.c.l.b16 %v237
      %v722 = vunpack.c.h.b16 %v237
      %v723 = vunpack.c.l.b16 %v238
      %v724 = vunpack.c.h.b16 %v238
      %v725 = vunpack.c.l.b16 %v239
      %v726 = vunpack.c.h.b16 %v239
      %v727 = vunpack.c.l.b16 %v240
      %v728 = vunpack.c.h.b16 %v240
      %v729 = vunpack.c.l.b16 %v241
      %v730 = vunpack.c.l.b16 %v242
      %v731 = vunpack.c.h.b16 %v242
      %v732 = vunpack.c.l.b16 %v243
      %v733 = vunpack.c.h.b16 %v243
      %v734 = vunpack.c.l.b16 %v244
      %v735 = vunpack.c.h.b16 %v244
      %v736 = vunpack.c.l.b16 %v245
      %v737 = vunpack.c.h.b16 %v245
      %v738 = vunpack.c.l.b16 %v246
      %v739 = vunpack.c.l.b16 %v247
      %v740 = vunpack.c.h.b16 %v247
      %v741 = vunpack.c.l.b16 %v248
      %v742 = vunpack.c.h.b16 %v248
      %v743 = vunpack.c.l.b16 %v249
      %v744 = vunpack.c.h.b16 %v249
      %v745 = vunpack.c.l.b16 %v250
      %v746 = vunpack.c.h.b16 %v250
      %v747 = vunpack.c.l.b16 %v251
      %v748 = vunpack.c.l.b16 %v252
      %v749 = vunpack.c.h.b16 %v252
      %v750 = vunpack.c.l.b16 %v253
      %v751 = vunpack.c.h.b16 %v253
      %v752 = vunpack.c.l.b16 %v254
      %v753 = vunpack.c.h.b16 %v254
      %v754 = vunpack.c.l.b16 %v255
      %v755 = vunpack.c.h.b16 %v255
      %v756 = vunpack.c.l.b16 %v256
      %v757 = vunpack.c.l.b16 %v257
      %v758 = vunpack.c.h.b16 %v257
      %v759 = vunpack.c.l.b16 %v258
      %v760 = vunpack.c.h.b16 %v258
      %v761 = vunpack.c.l.b16 %v259
      %v762 = vunpack.c.h.b16 %v259
      %v763 = vunpack.c.l.b16 %v260
      %v764 = vunpack.c.h.b16 %v260
      %v765 = vunpack.c.l.b16 %v261
      %v766 = vunpack.c.l.b16 %v262
      %v767 = vunpack.c.h.b16 %v262
      %v768 = vunpack.c.l.b16 %v263
      %v769 = vunpack.c.h.b16 %v263
      %v770 = vunpack.c.l.b16 %v264
      %v771 = vunpack.c.h.b16 %v264
      %v772 = vunpack.c.l.b16 %v265
      %v773 = vunpack.c.h.b16 %v265
      %v774 = vunpack.c.l.b16 %v266
      %v775 = vunpack.c.l.b16 %v267
      %v776 = vunpack.c.h.b16 %v267
      %v777 = vunpack.c.l.b16 %v268
      %v778 = vunpack.c.h.b16 %v268
      %v779 = vunpack.c.l.b16 %v269
      %v780 = vunpack.c.h.b16 %v269
      %v781 = vunpack.c.l.b16 %v270
      %v782 = vunpack.c.h.b16 %v270
      %v783 = vunpack.c.l.b16 %v271
      %v784 = vunpack.c.l.b16 %v272
      %v785 = vunpack.c.h.b16 %v272
      %v786 = vunpack.c.l.b16 %v273
      %v787 = vunpack.c.h.b16 %v273
      %v788 = vunpack.c.l.b16 %v274
      %v789 = vunpack.c.h.b16 %v274
      %v790 = vunpack.c.l.b16 %v275
      %v791 = vunpack.c.h.b16 %v275
      %v792 = vunpack.c.l.b16 %v276
      %v793 = vunpack.c.l.b16 %v277
      %v794 = vunpack.c.h.b16 %v277
      %v795 = vunpack.c.l.b16 %v278
      %v796 = vunpack.c.h.b16 %v278
      %v797 = vunpack.c.l.b16 %v279
      %v798 = vunpack.c.h.b16 %v279
      %v799 = vunpack.c.l.b16 %v280
      %v800 = vunpack.c.h.b16 %v280
      %v801 = vunpack.c.l.b16 %v281
      %v802 = vunpack.c.l.b16 %v282
      %v803 = vunpack.c.h.b16 %v282
      %v804 = vunpack.c.l.b16 %v283
      %v805 = vunpack.c.h.b16 %v283
      %v806 = vunpack.c.l.b16 %v284
      %v807 = vunpack.c.h.b16 %v284
      %v808 = vunpack.c.l.b16 %v285
      %v809 = vunpack.c.h.b16 %v285
      %v810 = vunpack.c.l.b16 %v286
      %v811 = vunpack.c.l.b16 %v287
      %v812 = vunpack.c.h.b16 %v287
      %v813 = vunpack.c.l.b16 %v288
      %v814 = vunpack.c.h.b16 %v288
      %v815 = vunpack.c.l.b16 %v289
      %v816 = vunpack.c.h.b16 %v289
      %v817 = vunpack.c.l.b16 %v290
      %v818 = vunpack.c.h.b16 %v290
      %v819 = vunpack.c.l.b16 %v291
      %v820 = vunpack.c.l.b16 %v292
      %v821 = vunpack.c.h.b16 %v292
      %v822 = vunpack.c.l.b16 %v293
      %v823 = vunpack.c.h.b16 %v293
      %v824 = vunpack.c.l.b16 %v294
      %v825 = vunpack.c.h.b16 %v294
      %v826 = vunpack.c.l.b16 %v295
      %v827 = vunpack.c.h.b16 %v295
      %v828 = vunpack.c.l.b16 %v296
      %v829 = vunpack.c.l.b16 %v297
      %v830 = vunpack.c.h.b16 %v297
      %v831 = vunpack.c.l.b16 %v298
      %v832 = vunpack.c.h.b16 %v298
      %v833 = vunpack.c.l.b16 %v299
      %v834 = vunpack.c.h.b16 %v299
      %v835 = vunpack.c.l.b16 %v300
      %v836 = vunpack.c.h.b16 %v300
      %v837 = vunpack.c.l.b16 %v301
      %v838 = vunpack.c.l.b16 %v302
      %v839 = vunpack.c.h.b16 %v302
      %v840 = vunpack.c.l.b16 %v303
      %v841 = vunpack.c.h.b16 %v303
      %v842 = vunpack.c.l.b16 %v304
      %v843 = vunpack.c.h.b16 %v304
      %v844 = vunpack.c.l.b16 %v305
      %v845 = vunpack.c.h.b16 %v305
      %v846 = vunpack.c.l.b16 %v306
      %v847 = vunpack.c.l.b16 %v307
      %v848 = vunpack.c.h.b16 %v307
      %v849 = vunpack.c.l.b16 %v308
      %v850 = vunpack.c.h.b16 %v308
      %v851 = vunpack.c.l.b16 %v309
      %v852 = vunpack.c.h.b16 %v309
      %v853 = vunpack.c.l.b16 %v310
      %v854 = vunpack.c.h.b16 %v310
      %v855 = vunpack.c.l.b16 %v311
      %v856 = vunpack.c.l.b16 %v312
      %v857 = vunpack.c.h.b16 %v312
      %v858 = vunpack.c.l.b16 %v313
      %v859 = vunpack.c.h.b16 %v313
      %v860 = vunpack.c.l.b16 %v314
      %v861 = vunpack.c.h.b16 %v314
      %v862 = vunpack.c.l.b16 %v315
      %v863 = vunpack.c.h.b16 %v315
      %v864 = vunpack.c.l.b16 %v316
      %v865 = vunpack.c.l.b16 %v317
      %v866 = vunpack.c.h.b16 %v317
      %v867 = vunpack.c.l.b16 %v318
      %v868 = vunpack.c.h.b16 %v318
      %v869 = vunpack.c.l.b16 %v319
      %v870 = vunpack.c.h.b16 %v319
      %v871 = vunpack.c.l.b16 %v320
      %v872 = vunpack.c.h.b16 %v320
      %v873 = vunpack.c.l.b16 %v321
      %v874 = vunpack.c.l.b16 %v322
      %v875 = vunpack.c.h.b16 %v322
      %v876 = vunpack.c.l.b16 %v323
      %v877 = vunpack.c.h.b16 %v323
      %v878 = vunpack.c.l.b16 %v324
      %v879 = vunpack.c.h.b16 %v324
      %v880 = vunpack.c.l.b16 %v325
      %v881 = vunpack.c.h.b16 %v325
      %v882 = vunpack.c.l.b16 %v326
      %v883 = vunpack.c.l.b16 %v327
      %v884 = vunpack.c.h.b16 %v327
      %v885 = vunpack.c.l.b16 %v328
      %v886 = vunpack.c.h.b16 %v328
      %v887 = vunpack.c.l.b16 %v329
      %v888 = vunpack.c.h.b16 %v329
      %v889 = vunpack.c.l.b16 %v330
      %v890 = vunpack.c.h.b16 %v330
      %v891 = vunpack.c.l.b16 %v331
      %v892 = vunpack.c.l.b16 %v332
      %v893 = vunpack.c.h.b16 %v332
      %v894 = vunpack.c.l.b16 %v333
      %v895 = vunpack.c.h.b16 %v333
      %v896 = vunpack.c.l.b16 %v334
      %v897 = vunpack.c.h.b16 %v334
      %v898 = vunpack.c.l.b16 %v335
      %v899 = vunpack.c.h.b16 %v335
      %v900 = vunpack.c.l.b16 %v336
      %v901 = vunpack.c.l.b16 %v337
      %v902 = vunpack.c.h.b16 %v337
      %v903 = vunpack.c.l.b16 %v338
      %v904 = vunpack.c.h.b16 %v338
      %v905 = vunpack.c.l.b16 %v339
      %v906 = vunpack.c.h.b16 %v339
      %v907 = vunpack.c.l.b16 %v340
      %v908 = vunpack.c.h.b16 %v340
      %v909 = vunpack.c.l.b16 %v341
      %v910 = vunpack.c.l.b16 %v342
      %v911 = vunpack.c.h.b16 %v342
      %v912 = vunpack.c.l.b16 %v343
      %v913 = vunpack.c.h.b16 %v343
      %v914 = vunpack.c.l.b16 %v344
      %v915 = vunpack.c.h.b16 %v344
      %v916 = vunpack.c.l.b16 %v345
      %v917 = vunpack.c.h.b16 %v345
      %v918 = vunpack.c.l.b16 %v346
      %v919 = vunpack.c.l.b16 %v347
      %v920 = vunpack.c.h.b16 %v347
      %v921 = vunpack.c.l.b16 %v348
      %v922 = vunpack.c.h.b16 %v348
      %v923 = vunpack.c.l.b16 %v349
      %v924 = vunpack.c.h.b16 %v349
      %v925 = vunpack.c.l.b16 %v350
      %v926 = vunpack.c.h.b16 %v350
      %v927 = vunpack.c.l.b16 %v351
      %v928 = vunpack.c.l.b16 %v352
      %v929 = vunpack.c.h.b16 %v352
      %v930 = vunpack.c.l.b16 %v353
      %v931 = vunpack.c.h.b16 %v353
      %v932 = vunpack.c.l.b16 %v354
      %v933 = vunpack.c.h.b16 %v354
      %v934 = vunpack.c.l.b16 %v355
      %v935 = vunpack.c.h.b16 %v355
      %v936 = vunpack.c.l.b16 %v356
      %v937 = vunpack.c.l.b16 %v357
      %v938 = vunpack.c.h.b16 %v357
      %v939 = vunpack.c.l.b16 %v358
      %v940 = vunpack.c.h.b16 %v358
      %v941 = vunpack.c.l.b16 %v359
      %v942 = vunpack.c.h.b16 %v359
      %v943 = vunpack.c.l.b16 %v360
      %v944 = vunpack.c.h.b16 %v360
      %v945 = vunpack.c.l.b16 %v361
      %v946 = vunpack.c.l.b16 %v362
      %v947 = vunpack.c.h.b16 %v362
      %v948 = vunpack.c.l.b16 %v363
      %v949 = vunpack.c.h.b16 %v363
      %v950 = vunpack.c.l.b16 %v364
      %v951 = vunpack.c.h.b16 %v364
      %v952 = vunpack.c.l.b16 %v365
      %v953 = vunpack.c.h.b16 %v365
      %v954 = vunpack.c.l.b16 %v366
      %v955 = vunpack.c.l.b16 %v367
      %v956 = vunpack.c.h.b16 %v367
      %v957 = vunpack.c.l.b16 %v368
      %v958 = vunpack.c.h.b16 %v368
      %v959 = vunpack.c.l.b16 %v369
      %v960 = vunpack.c.h.b16 %v369
      %v961 = vunpack.c.l.b16 %v370
      %v962 = vunpack.c.h.b16 %v370
      %v963 = vunpack.c.l.b16 %v371
      %v964 = vpack.c.b16 %v685, %v676
      %v965 = vpack.c.b16 %v686, %v677
      %v966 = vpack.c.b16 %v687, %v678
      %v967 = vpack.c.b16 %v688, %v679
      %v968 = vpack.c.b16 %v689, %v680
      %v969 = vpack.c.b16 %v690, %v681
      %v970 = vpack.c.b16 %v691, %v682
      %v971 = vpack.c.b16 %v692, %v683
      %v972 = vpack.c.b16 %v693, %v684
      %v973 = vpack.c.b16 %v703, %v694
      %v974 = vpack.c.b16 %v704, %v695
      %v975 = vpack.c.b16 %v705, %v696
      %v976 = vpack.c.b16 %v706, %v697
      %v977 = vpack.c.b16 %v707, %v698
      %v978 = vpack.c.b16 %v708, %v699
      %v979 = vpack.c.b16 %v709, %v700
      %v980 = vpack.c.b16 %v710, %v701
      %v981 = vpack.c.b16 %v711, %v702
      %v982 = vpack.c.b16 %v721, %v712
      %v983 = vpack.c.b16 %v722, %v713
      %v984 = vpack.c.b16 %v723, %v714
      %v985 = vpack.c.b16 %v724, %v715
      %v986 = vpack.c.b16 %v725, %v716
      %v987 = vpack.c.b16 %v726, %v717
      %v988 = vpack.c.b16 %v727, %v718
      %v989 = vpack.c.b16 %v728, %v719
      %v990 = vpack.c.b16 %v729, %v720
      %v991 = vpack.c.b16 %v739, %v730
      %v992 = vpack.c.b16 %v740, %v731
      %v993 = vpack.c.b16 %v741, %v732
      %v994 = vpack.c.b16 %v742, %v733
      %v995 = vpack.c.b16 %v743, %v734
      %v996 = vpack.c.b16 %v744, %v735
      %v997 = vpack.c.b16 %v745, %v736
      %v998 = vpack.c.b16 %v746, %v737
      %v999 = vpack.c.b16 %v747, %v738
      %v1000 = vpack.c.b16 %v757, %v748
      %v1001 = vpack.c.b16 %v758, %v749
      %v1002 = vpack.c.b16 %v759, %v750
      %v1003 = vpack.c.b16 %v760, %v751
      %v1004 = vpack.c.b16 %v761, %v752
      %v1005 = vpack.c.b16 %v762, %v753
      %v1006 = vpack.c.b16 %v763, %v754
      %v1007 = vpack.c.b16 %v764, %v755
      %v1008 = vpack.c.b16 %v765, %v756
      %v1009 = vpack.c.b16 %v775, %v766
      %v1010 = vpack.c.b16 %v776, %v767
      %v1011 = vpack.c.b16 %v777, %v768
      %v1012 = vpack.c.b16 %v778, %v769
      %v1013 = vpack.c.b16 %v779, %v770
      %v1014 = vpack.c.b16 %v780, %v771
      %v1015 = vpack.c.b16 %v781, %v772
      %v1016 = vpack.c.b16 %v782, %v773
      %v1017 = vpack.c.b16 %v783, %v774
      %v1018 = vpack.c.b16 %v793, %v784
      %v1019 = vpack.c.b16 %v794, %v785
      %v1020 = vpack.c.b16 %v795, %v786
      %v1021 = vpack.c.b16 %v796, %v787
      %v1022 = vpack.c.b16 %v797, %v788
      %v1023 = vpack.c.b16 %v798, %v789
      %v1024 = vpack.c.b16 %v799, %v790
      %v1025 = vpack.c.b16 %v800, %v791
      %v1026 = vpack.c.b16 %v801, %v792
      %v1027 = vpack.c.b16 %v811, %v802
      %v1028 = vpack.c.b16 %v812, %v803
      %v1029 = vpack.c.b16 %v813, %v804
      %v1030 = vpack.c.b16 %v814, %v805
      %v1031 = vpack.c.b16 %v815, %v806
      %v1032 = vpack.c.b16 %v816, %v807
      %v1033 = vpack.c.b16 %v817, %v808
      %v1034 = vpack.c.b16 %v818, %v809
      %v1035 = vpack.c.b16 %v819, %v810
      %v1036 = vpack.c.b16 %v829, %v820
      %v1037 = vpack.c.b16 %v830, %v821
      %v1038 = vpack.c.b16 %v831, %v822
      %v1039 = vpack.c.b16 %v832, %v823
      %v1040 = vpack.c.b16 %v833, %v824
      %v1041 = vpack.c.b16 %v834, %v825
      %v1042 = vpack.c.b16 %v835, %v826
      %v1043 = vpack.c.b16 %v836, %v827
      %v1044 = vpack.c.b16 %v837, %v828
      %v1045 = vpack.c.b16 %v847, %v838
      %v1046 = vpack.c.b16 %v848, %v839
      %v1047 = vpack.c.b16 %v849, %v840
      %v1048 = vpack.c.b16 %v850, %v841
      %v1049 = vpack.c.b16 %v851, %v842
      %v1050 = vpack.c.b16 %v852, %v843
      %v1051 = vpack.c.b16 %v853, %v844
      %v1052 = vpack.c.b16 %v854, %v845
      %v1053 = vpack.c.b16 %v855, %v846
      %v1054 = vpack.c.b16 %v865, %v856
      %v1055 = vpack.c.b16 %v866, %v857
      %v1056 = vpack.c.b16 %v867, %v858
      %v1057 = vpack.c.b16 %v868, %v859
      %v1058 = vpack.c.b16 %v869, %v860
      %v1059 = vpack.c.b16 %v870, %v861
      %v1060 = vpack.c.b16 %v871, %v862
      %v1061 = vpack.c.b16 %v872, %v863
      %v1062 = vpack.c.b16 %v873, %v864
      %v1063 = vpack.c.b16 %v883, %v874
      %v1064 = vpack.c.b16 %v884, %v875
      %v1065 = vpack.c.b16 %v885, %v876
      %v1066 = vpack.c.b16 %v886, %v877
      %v1067 = vpack.c.b16 %v887, %v878
      %v1068 = vpack.c.b16 %v888, %v879
      %v1069 = vpack.c.b16 %v889, %v880
      %v1070 = vpack.c.b16 %v890, %v881
      %v1071 = vpack.c.b16 %v891, %v882
      %v1072 = vpack.c.b16 %v901, %v892
      %v1073 = vpack.c.b16 %v902, %v893
      %v1074 = vpack.c.b16 %v903, %v894
      %v1075 = vpack.c.b16 %v904, %v895
      %v1076 = vpack.c.b16 %v905, %v896
      %v1077 = vpack.c.b16 %v906, %v897
      %v1078 = vpack.c.b16 %v907, %v898
      %v1079 = vpack.c.b16 %v908, %v899
      %v1080 = vpack.c.b16 %v909, %v900
      %v1081 = vpack.c.b16 %v919, %v910
      %v1082 = vpack.c.b16 %v920, %v911
      %v1083 = vpack.c.b16 %v921, %v912
      %v1084 = vpack.c.b16 %v922, %v913
      %v1085 = vpack.c.b16 %v923, %v914
      %v1086 = vpack.c.b16 %v924, %v915
      %v1087 = vpack.c.b16 %v925, %v916
      %v1088 = vpack.c.b16 %v926, %v917
      %v1089 = vpack.c.b16 %v927, %v918
      %v1090 = vpack.c.b16 %v937, %v928
      %v1091 = vpack.c.b16 %v938, %v929
      %v1092 = vpack.c.b16 %v939, %v930
      %v1093 = vpack.c.b16 %v940, %v931
      %v1094 = vpack.c.b16 %v941, %v932
      %v1095 = vpack.c.b16 %v942, %v933
      %v1096 = vpack.c.b16 %v943, %v934
      %v1097 = vpack.c.b16 %v944, %v935
      %v1098 = vpack.c.b16 %v945, %v936
      %v1099 = vpack.c.b16 %v955, %v946
      %v1100 = vpack.c.b16 %v956, %v947
      %v1101 = vpack.c.b16 %v957, %v948
      %v1102 = vpack.c.b16 %v958, %v949
      %v1103 = vpack.c.b16 %v959, %v950
      %v1104 = vpack.c.b16 %v960, %v951
      %v1105 = vpack.c.b16 %v961, %v952
      %v1106 = vpack.c.b16 %v962, %v953
      %v1107 = vpack.c.b16 %v963, %v954
      %v1396 = vunpack.c.l.b16 %v372
      %v1397 = vunpack.c.l.b16 %v373
      %v1398 = vunpack.c.l.b16 %v374
      %v1399 = vunpack.c.l.b16 %v375
      %v1400 = vunpack.c.l.b16 %v376
      %v1401 = vunpack.c.l.b16 %v377
      %v1402 = vunpack.c.l.b16 %v378
      %v1403 = vunpack.c.l.b16 %v379
      %v1404 = vunpack.c.l.b16 %v380
      %v1405 = vunpack.c.l.b16 %v381
      %v1406 = vunpack.c.l.b16 %v382
      %v1407 = vunpack.c.l.b16 %v383
      %v1408 = vunpack.c.l.b16 %v384
      %v1409 = vunpack.c.l.b16 %v385
      %v1410 = vunpack.c.l.b16 %v386
      %v1411 = vunpack.c.l.b16 %v387
      %v1412 = vunpack.c.l.b16 %v388
      %v1413 = vunpack.c.l.b16 %v389
      %v1414 = vunpack.c.l.b16 %v390
      %v1415 = vunpack.c.l.b16 %v391
      %v1416 = vunpack.c.l.b16 %v392
      %v1417 = vunpack.c.l.b16 %v393
      %v1418 = vunpack.c.l.b16 %v394
      %v1419 = vunpack.c.l.b16 %v395
      %v1420 = vunpack.c.l.b16 %v396
      %v1421 = vunpack.c.l.b16 %v397
      %v1422 = vunpack.c.l.b16 %v398
      %v1423 = vunpack.c.l.b16 %v399
      %v1424 = vunpack.c.l.b16 %v400
      %v1425 = vunpack.c.l.b16 %v401
      %v1426 = vunpack.c.l.b16 %v402
      %v1427 = vunpack.c.l.b16 %v403
      %v1428 = vunpack.c.l.b16 %v404
      %v1429 = vunpack.c.l.b16 %v405
      %v1430 = vunpack.c.l.b16 %v406
      %v1431 = vunpack.c.l.b16 %v407
      %v1432 = vunpack.c.l.b16 %v408
      %v1433 = vunpack.c.l.b16 %v409
      %v1434 = vunpack.c.l.b16 %v410
      %v1435 = vunpack.c.l.b16 %v411
      %v1436 = vunpack.c.l.b16 %v412
      %v1437 = vunpack.c.l.b16 %v413
      %v1438 = vunpack.c.l.b16 %v414
      %v1439 = vunpack.c.l.b16 %v415
      %v1440 = vunpack.c.l.b16 %v416
      %v1441 = vunpack.c.l.b16 %v417
      %v1442 = vunpack.c.l.b16 %v418
      %v1443 = vunpack.c.l.b16 %v419
      %v1444 = vunpack.c.l.b16 %v420
      %v1445 = vunpack.c.l.b16 %v421
      %v1446 = vunpack.c.l.b16 %v422
      %v1447 = vunpack.c.l.b16 %v423
      %v1448 = vunpack.c.l.b16 %v424
      %v1449 = vunpack.c.l.b16 %v425
      %v1450 = vunpack.c.l.b16 %v426
      %v1451 = vunpack.c.l.b16 %v427
      %v1452 = vunpack.c.l.b16 %v428
      %v1453 = vunpack.c.l.b16 %v429
      %v1454 = vunpack.c.l.b16 %v430
      %v1455 = vunpack.c.l.b16 %v431
      %v1456 = vunpack.c.l.b16 %v432
      %v1457 = vunpack.c.l.b16 %v433
      %v1458 = vunpack.c.l.b16 %v434
      %v1459 = vunpack.c.l.b16 %v435
      %v1460 = vunpack.c.l.b16 %v436
      %v1461 = vunpack.c.l.b16 %v437
      %v1462 = vunpack.c.l.b16 %v438
      %v1463 = vunpack.c.l.b16 %v439
      %v1464 = vunpack.c.l.b16 %v440
      %v1465 = vunpack.c.l.b16 %v441
      %v1466 = vunpack.c.l.b16 %v442
      %v1467 = vunpack.c.l.b16 %v443
      %v1468 = vunpack.c.l.b16 %v444
      %v1469 = vunpack.c.l.b16 %v445
      %v1470 = vunpack.c.l.b16 %v446
      %v1471 = vunpack.c.l.b16 %v447
      %v1472 = vunpack.c.l.b16 %v448
      %v1473 = vunpack.c.l.b16 %v449
      %v1474 = vunpack.c.l.b16 %v450
      %v1475 = vunpack.c.l.b16 %v451
      %v1476 = vunpack.c.l.b16 %v452
      %v1477 = vunpack.c.l.b16 %v453
      %v1478 = vunpack.c.l.b16 %v454
      %v1479 = vunpack.c.l.b16 %v455
      %v1480 = vunpack.c.l.b16 %v456
      %v1481 = vunpack.c.l.b16 %v457
      %v1482 = vunpack.c.l.b16 %v458
      %v1483 = vunpack.c.l.b16 %v459
      %v1484 = vunpack.c.l.b16 %v460
      %v1485 = vunpack.c.l.b16 %v461
      %v1486 = vunpack.c.l.b16 %v462
      %v1487 = vunpack.c.l.b16 %v463
      %v1488 = vunpack.c.l.b16 %v464
      %v1489 = vunpack.c.l.b16 %v465
      %v1490 = vunpack.c.l.b16 %v466
      %v1491 = vunpack.c.l.b16 %v467
      %v1492 = vunpack.c.l.b16 %v468
      %v1493 = vunpack.c.l.b16 %v469
      %v1494 = vunpack.c.l.b16 %v470
      %v1495 = vunpack.c.l.b16 %v471
      %v1496 = vunpack.c.l.b16 %v472
      %v1497 = vunpack.c.l.b16 %v473
      %v1498 = vunpack.c.l.b16 %v474
      %v1499 = vunpack.c.l.b16 %v475
      %v1500 = vunpack.c.l.b16 %v476
      %v1501 = vunpack.c.l.b16 %v477
      %v1502 = vunpack.c.l.b16 %v478
      %v1503 = vunpack.c.l.b16 %v479
      %v1504 = vunpack.c.l.b16 %v480
      %v1505 = vunpack.c.l.b16 %v481
      %v1506 = vunpack.c.l.b16 %v482
      %v1507 = vunpack.c.l.b16 %v483
      %v1508 = vunpack.c.l.b16 %v484
      %v1509 = vunpack.c.l.b16 %v485
      %v1510 = vunpack.c.l.b16 %v486
      %v1511 = vunpack.c.l.b16 %v487
      %v1512 = vunpack.c.l.b16 %v488
      %v1513 = vunpack.c.l.b16 %v489
      %v1514 = vunpack.c.l.b16 %v490
      %v1515 = vunpack.c.l.b16 %v491
      %v1516 = vunpack.c.l.b16 %v492
      %v1517 = vunpack.c.l.b16 %v493
      %v1518 = vunpack.c.l.b16 %v494
      %v1519 = vunpack.c.l.b16 %v495
      %v1520 = vunpack.c.l.b16 %v496
      %v1521 = vunpack.c.l.b16 %v497
      %v1522 = vunpack.c.l.b16 %v498
      %v1523 = vunpack.c.l.b16 %v499
      %v1524 = vunpack.c.l.b16 %v500
      %v1525 = vunpack.c.l.b16 %v501
      %v1526 = vunpack.c.l.b16 %v502
      %v1527 = vunpack.c.l.b16 %v503
      %v1528 = vunpack.c.l.b16 %v504
      %v1529 = vunpack.c.l.b16 %v505
      %v1530 = vunpack.c.l.b16 %v506
      %v1531 = vunpack.c.l.b16 %v507
      %v1532 = vunpack.c.l.b16 %v508
      %v1533 = vunpack.c.l.b16 %v509
      %v1534 = vunpack.c.l.b16 %v510
      %v1535 = vunpack.c.l.b16 %v511
      %v1536 = vunpack.c.l.b16 %v512
      %v1537 = vunpack.c.l.b16 %v513
      %v1538 = vunpack.c.l.b16 %v514
      %v1539 = vunpack.c.l.b16 %v515
      %v1540 = vpack.c.b16 %v1397, %v1396
      %v1541 = vpack.c.b16 %v1399, %v1398
      %v1542 = vpack.c.b16 %v1401, %v1400
      %v1543 = vpack.c.b16 %v1403, %v1402
      %v1544 = vpack.c.b16 %v1405, %v1404
      %v1545 = vpack.c.b16 %v1407, %v1406
      %v1546 = vpack.c.b16 %v1409, %v1408
      %v1547 = vpack.c.b16 %v1411, %v1410
      %v1548 = vpack.c.b16 %v1413, %v1412
      %v1549 = vpack.c.b16 %v1415, %v1414
      %v1550 = vpack.c.b16 %v1417, %v1416
      %v1551 = vpack.c.b16 %v1419, %v1418
      %v1552 = vpack.c.b16 %v1421, %v1420
      %v1553 = vpack.c.b16 %v1423, %v1422
      %v1554 = vpack.c.b16 %v1425, %v1424
      %v1555 = vpack.c.b16 %v1427, %v1426
      %v1556 = vpack.c.b16 %v1429, %v1428
      %v1557 = vpack.c.b16 %v1431, %v1430
      %v1558 = vpack.c.b16 %v1433, %v1432
      %v1559 = vpack.c.b16 %v1435, %v1434
      %v1560 = vpack.c.b16 %v1437, %v1436
      %v1561 = vpack.c.b16 %v1439, %v1438
      %v1562 = vpack.c.b16 %v1441, %v1440
      %v1563 = vpack.c.b16 %v1443, %v1442
      %v1564 = vpack.c.b16 %v1445, %v1444
      %v1565 = vpack.c.b16 %v1447, %v1446
      %v1566 = vpack.c.b16 %v1449, %v1448
      %v1567 = vpack.c.b16 %v1451, %v1450
      %v1568 = vpack.c.b16 %v1453, %v1452
      %v1569 = vpack.c.b16 %v1455, %v1454
      %v1570 = vpack.c.b16 %v1457, %v1456
      %v1571 = vpack.c.b16 %v1459, %v1458
      %v1572 = vpack.c.b16 %v1461, %v1460
      %v1573 = vpack.c.b16 %v1463, %v1462
      %v1574 = vpack.c.b16 %v1465, %v1464
      %v1575 = vpack.c.b16 %v1467, %v1466
      %v1576 = vpack.c.b16 %v1469, %v1468
      %v1577 = vpack.c.b16 %v1471, %v1470
      %v1578 = vpack.c.b16 %v1473, %v1472
      %v1579 = vpack.c.b16 %v1475, %v1474
      %v1580 = vpack.c.b16 %v1477, %v1476
      %v1581 = vpack.c.b16 %v1479, %v1478
      %v1582 = vpack.c.b16 %v1481, %v1480
      %v1583 = vpack.c.b16 %v1483, %v1482
      %v1584 = vpack.c.b16 %v1485, %v1484
      %v1585 = vpack.c.b16 %v1487, %v1486
      %v1586 = vpack.c.b16 %v1489, %v1488
      %v1587 = vpack.c.b16 %v1491, %v1490
      %v1588 = vpack.c.b16 %v1493, %v1492
      %v1589 = vpack.c.b16 %v1495, %v1494
      %v1590 = vpack.c.b16 %v1497, %v1496
      %v1591 = vpack.c.b16 %v1499, %v1498
      %v1592 = vpack.c.b16 %v1501, %v1500
      %v1593 = vpack.c.b16 %v1503, %v1502
      %v1594 = vpack.c.b16 %v1505, %v1504
      %v1595 = vpack.c.b16 %v1507, %v1506
      %v1596 = vpack.c.b16 %v1509, %v1508
      %v1597 = vpack.c.b16 %v1511, %v1510
      %v1598 = vpack.c.b16 %v1513, %v1512
      %v1599 = vpack.c.b16 %v1515, %v1514
      %v1600 = vpack.c.b16 %v1517, %v1516
      %v1601 = vpack.c.b16 %v1519, %v1518
      %v1602 = vpack.c.b16 %v1521, %v1520
      %v1603 = vpack.c.b16 %v1523, %v1522
      %v1604 = vpack.c.b16 %v1525, %v1524
      %v1605 = vpack.c.b16 %v1527, %v1526
      %v1606 = vpack.c.b16 %v1529, %v1528
      %v1607 = vpack.c.b16 %v1531, %v1530
      %v1608 = vpack.c.b16 %v1533, %v1532
      %v1609 = vpack.c.b16 %v1535, %v1534
      %v1610 = vpack.c.b16 %v1537, %v1536
      %v1611 = vpack.c.b16 %v1539, %v1538
      %1684 = vmatpush.bf16.msra.mxu0 %v1547
      %1685 = vmatpush.bf16.msra.mxu0 %v1546
      %1686 = vmatpush.bf16.msra.mxu0 %v1545
      %1687 = vmatpush.bf16.msra.mxu0 %v1544
      %1688 = vmatpush.bf16.msra.mxu0 %v1543
      %1689 = vmatpush.bf16.msra.mxu0 %v1542
      %1690 = vmatpush.bf16.msra.mxu0 %v1541
      %1691 = vmatpush.bf16.msra.mxu0 %v1540
      %1692 = vmatmul.bf16.gmra.mxu0 %v964
      %v1693 = vpop.f32.mrf.mxu0
      %v1694 = vadd.f32 0.0, %v1693
      %v1695 = vpop.f32.mrf.mxu0
      %v1696 = vadd.f32 0.0, %v1695
      %1697 = vmatmul.bf16.gmra.mxu0 %v973
      %v1698 = vpop.f32.mrf.mxu0
      %v1699 = vadd.f32 0.0, %v1698
      %v1700 = vpop.f32.mrf.mxu0
      %v1701 = vadd.f32 0.0, %v1700
      %1702 = vmatmul.bf16.gmra.mxu0 %v982
      %v1703 = vpop.f32.mrf.mxu0
      %v1704 = vadd.f32 0.0, %v1703
      %v1705 = vpop.f32.mrf.mxu0
      %v1706 = vadd.f32 0.0, %v1705
      %1707 = vmatmul.bf16.gmra.mxu0 %v991
      %v1708 = vpop.f32.mrf.mxu0
      %v1709 = vadd.f32 0.0, %v1708
      %v1710 = vpop.f32.mrf.mxu0
      %v1711 = vadd.f32 0.0, %v1710
      %1712 = vmatmul.bf16.gmra.mxu0 %v1000
      %v1713 = vpop.f32.mrf.mxu0
      %v1714 = vadd.f32 0.0, %v1713
      %v1715 = vpop.f32.mrf.mxu0
      %v1716 = vadd.f32 0.0, %v1715
      %1717 = vmatmul.bf16.gmra.mxu0 %v1009
      %v1718 = vpop.f32.mrf.mxu0
      %v1719 = vadd.f32 0.0, %v1718
      %v1720 = vpop.f32.mrf.mxu0
      %v1721 = vadd.f32 0.0, %v1720
      %1722 = vmatmul.bf16.gmra.mxu0 %v1018
      %v1723 = vpop.f32.mrf.mxu0
      %v1724 = vadd.f32 0.0, %v1723
      %v1725 = vpop.f32.mrf.mxu0
      %v1726 = vadd.f32 0.0, %v1725
      %1727 = vmatmul.bf16.gmra.mxu0 %v1027
      %v1728 = vpop.f32.mrf.mxu0
      %v1729 = vadd.f32 0.0, %v1728
      %v1730 = vpop.f32.mrf.mxu0
      %v1731 = vadd.f32 0.0, %v1730
      %1732 = vmatmul.bf16.gmra.mxu0 %v1036
      %v1733 = vpop.f32.mrf.mxu0
      %v1734 = vadd.f32 0.0, %v1733
      %v1735 = vpop.f32.mrf.mxu0
      %v1736 = vadd.f32 0.0, %v1735
      %1737 = vmatmul.bf16.gmra.mxu0 %v1045
      %v1738 = vpop.f32.mrf.mxu0
      %v1739 = vadd.f32 0.0, %v1738
      %v1740 = vpop.f32.mrf.mxu0
      %v1741 = vadd.f32 0.0, %v1740
      %1742 = vmatmul.bf16.gmra.mxu0 %v1054
      %v1743 = vpop.f32.mrf.mxu0
      %v1744 = vadd.f32 0.0, %v1743
      %v1745 = vpop.f32.mrf.mxu0
      %v1746 = vadd.f32 0.0, %v1745
      %1747 = vmatmul.bf16.gmra.mxu0 %v1063
      %v1748 = vpop.f32.mrf.mxu0
      %v1749 = vadd.f32 0.0, %v1748
      %v1750 = vpop.f32.mrf.mxu0
      %v1751 = vadd.f32 0.0, %v1750
      %1752 = vmatmul.bf16.gmra.mxu0 %v1072
      %v1753 = vpop.f32.mrf.mxu0
      %v1754 = vadd.f32 0.0, %v1753
      %v1755 = vpop.f32.mrf.mxu0
      %v1756 = vadd.f32 0.0, %v1755
      %1757 = vmatmul.bf16.gmra.mxu0 %v1081
      %v1758 = vpop.f32.mrf.mxu0
      %v1759 = vadd.f32 0.0, %v1758
      %v1760 = vpop.f32.mrf.mxu0
      %v1761 = vadd.f32 0.0, %v1760
      %1762 = vmatmul.bf16.gmra.mxu0 %v1090
      %v1763 = vpop.f32.mrf.mxu0
      %v1764 = vadd.f32 0.0, %v1763
      %v1765 = vpop.f32.mrf.mxu0
      %v1766 = vadd.f32 0.0, %v1765
      %1767 = vmatmul.bf16.gmra.mxu0 %v1099
      %v1768 = vpop.f32.mrf.mxu0
      %v1769 = vadd.f32 0.0, %v1768
      %v1770 = vpop.f32.mrf.mxu0
      %v1771 = vadd.f32 0.0, %v1770
      %1772 = vdwg.mxu0
      %1773 = vmatpush.bf16.msra.mxu0 %v1555
      %1774 = vmatpush.bf16.msra.mxu0 %v1554
      %1775 = vmatpush.bf16.msra.mxu0 %v1553
      %1776 = vmatpush.bf16.msra.mxu0 %v1552
      %1777 = vmatpush.bf16.msra.mxu0 %v1551
      %1778 = vmatpush.bf16.msra.mxu0 %v1550
      %1779 = vmatpush.bf16.msra.mxu0 %v1549
      %1780 = vmatpush.bf16.msra.mxu0 %v1548
      %1781 = vmatmul.bf16.gmra.mxu0 %v965
      %v1782 = vpop.f32.mrf.mxu0
      %v1783 = vadd.f32 %v1694, %v1782
      %v1784 = vpop.f32.mrf.mxu0
      %v1785 = vadd.f32 %v1696, %v1784
      %1786 = vmatmul.bf16.gmra.mxu0 %v974
      %v1787 = vpop.f32.mrf.mxu0
      %v1788 = vadd.f32 %v1699, %v1787
      %v1789 = vpop.f32.mrf.mxu0
      %v1790 = vadd.f32 %v1701, %v1789
      %1791 = vmatmul.bf16.gmra.mxu0 %v983
      %v1792 = vpop.f32.mrf.mxu0
      %v1793 = vadd.f32 %v1704, %v1792
      %v1794 = vpop.f32.mrf.mxu0
      %v1795 = vadd.f32 %v1706, %v1794
      %1796 = vmatmul.bf16.gmra.mxu0 %v992
      %v1797 = vpop.f32.mrf.mxu0
      %v1798 = vadd.f32 %v1709, %v1797
      %v1799 = vpop.f32.mrf.mxu0
      %v1800 = vadd.f32 %v1711, %v1799
      %1801 = vmatmul.bf16.gmra.mxu0 %v1001
      %v1802 = vpop.f32.mrf.mxu0
      %v1803 = vadd.f32 %v1714, %v1802
      %v1804 = vpop.f32.mrf.mxu0
      %v1805 = vadd.f32 %v1716, %v1804
      %1806 = vmatmul.bf16.gmra.mxu0 %v1010
      %v1807 = vpop.f32.mrf.mxu0
      %v1808 = vadd.f32 %v1719, %v1807
      %v1809 = vpop.f32.mrf.mxu0
      %v1810 = vadd.f32 %v1721, %v1809
      %1811 = vmatmul.bf16.gmra.mxu0 %v1019
      %v1812 = vpop.f32.mrf.mxu0
      %v1813 = vadd.f32 %v1724, %v1812
      %v1814 = vpop.f32.mrf.mxu0
      %v1815 = vadd.f32 %v1726, %v1814
      %1816 = vmatmul.bf16.gmra.mxu0 %v1028
      %v1817 = vpop.f32.mrf.mxu0
      %v1818 = vadd.f32 %v1729, %v1817
      %v1819 = vpop.f32.mrf.mxu0
      %v1820 = vadd.f32 %v1731, %v1819
      %1821 = vmatmul.bf16.gmra.mxu0 %v1037
      %v1822 = vpop.f32.mrf.mxu0
      %v1823 = vadd.f32 %v1734, %v1822
      %v1824 = vpop.f32.mrf.mxu0
      %v1825 = vadd.f32 %v1736, %v1824
      %1826 = vmatmul.bf16.gmra.mxu0 %v1046
      %v1827 = vpop.f32.mrf.mxu0
      %v1828 = vadd.f32 %v1739, %v1827
      %v1829 = vpop.f32.mrf.mxu0
      %v1830 = vadd.f32 %v1741, %v1829
      %1831 = vmatmul.bf16.gmra.mxu0 %v1055
      %v1832 = vpop.f32.mrf.mxu0
      %v1833 = vadd.f32 %v1744, %v1832
      %v1834 = vpop.f32.mrf.mxu0
      %v1835 = vadd.f32 %v1746, %v1834
      %1836 = vmatmul.bf16.gmra.mxu0 %v1064
      %v1837 = vpop.f32.mrf.mxu0
      %v1838 = vadd.f32 %v1749, %v1837
      %v1839 = vpop.f32.mrf.mxu0
      %v1840 = vadd.f32 %v1751, %v1839
      %1841 = vmatmul.bf16.gmra.mxu0 %v1073
      %v1842 = vpop.f32.mrf.mxu0
      %v1843 = vadd.f32 %v1754, %v1842
      %v1844 = vpop.f32.mrf.mxu0
      %v1845 = vadd.f32 %v1756, %v1844
      %1846 = vmatmul.bf16.gmra.mxu0 %v1082
      %v1847 = vpop.f32.mrf.mxu0
      %v1848 = vadd.f32 %v1759, %v1847
      %v1849 = vpop.f32.mrf.mxu0
      %v1850 = vadd.f32 %v1761, %v1849
      %1851 = vmatmul.bf16.gmra.mxu0 %v1091
      %v1852 = vpop.f32.mrf.mxu0
      %v1853 = vadd.f32 %v1764, %v1852
      %v1854 = vpop.f32.mrf.mxu0
      %v1855 = vadd.f32 %v1766, %v1854
      %1856 = vmatmul.bf16.gmra.mxu0 %v1100
      %v1857 = vpop.f32.mrf.mxu0
      %v1858 = vadd.f32 %v1769, %v1857
      %v1859 = vpop.f32.mrf.mxu0
      %v1860 = vadd.f32 %v1771, %v1859
      %1861 = vdwg.mxu0
      %1862 = vmatpush.bf16.msra.mxu0 %v1563
      %1863 = vmatpush.bf16.msra.mxu0 %v1562
      %1864 = vmatpush.bf16.msra.mxu0 %v1561
      %1865 = vmatpush.bf16.msra.mxu0 %v1560
      %1866 = vmatpush.bf16.msra.mxu0 %v1559
      %1867 = vmatpush.bf16.msra.mxu0 %v1558
      %1868 = vmatpush.bf16.msra.mxu0 %v1557
      %1869 = vmatpush.bf16.msra.mxu0 %v1556
      %1870 = vmatmul.bf16.gmra.mxu0 %v966
      %v1871 = vpop.f32.mrf.mxu0
      %v1872 = vadd.f32 %v1783, %v1871
      %v1873 = vpop.f32.mrf.mxu0
      %v1874 = vadd.f32 %v1785, %v1873
      %1875 = vmatmul.bf16.gmra.mxu0 %v975
      %v1876 = vpop.f32.mrf.mxu0
      %v1877 = vadd.f32 %v1788, %v1876
      %v1878 = vpop.f32.mrf.mxu0
      %v1879 = vadd.f32 %v1790, %v1878
      %1880 = vmatmul.bf16.gmra.mxu0 %v984
      %v1881 = vpop.f32.mrf.mxu0
      %v1882 = vadd.f32 %v1793, %v1881
      %v1883 = vpop.f32.mrf.mxu0
      %v1884 = vadd.f32 %v1795, %v1883
      %1885 = vmatmul.bf16.gmra.mxu0 %v993
      %v1886 = vpop.f32.mrf.mxu0
      %v1887 = vadd.f32 %v1798, %v1886
      %v1888 = vpop.f32.mrf.mxu0
      %v1889 = vadd.f32 %v1800, %v1888
      %1890 = vmatmul.bf16.gmra.mxu0 %v1002
      %v1891 = vpop.f32.mrf.mxu0
      %v1892 = vadd.f32 %v1803, %v1891
      %v1893 = vpop.f32.mrf.mxu0
      %v1894 = vadd.f32 %v1805, %v1893
      %1895 = vmatmul.bf16.gmra.mxu0 %v1011
      %v1896 = vpop.f32.mrf.mxu0
      %v1897 = vadd.f32 %v1808, %v1896
      %v1898 = vpop.f32.mrf.mxu0
      %v1899 = vadd.f32 %v1810, %v1898
      %1900 = vmatmul.bf16.gmra.mxu0 %v1020
      %v1901 = vpop.f32.mrf.mxu0
      %v1902 = vadd.f32 %v1813, %v1901
      %v1903 = vpop.f32.mrf.mxu0
      %v1904 = vadd.f32 %v1815, %v1903
      %1905 = vmatmul.bf16.gmra.mxu0 %v1029
      %v1906 = vpop.f32.mrf.mxu0
      %v1907 = vadd.f32 %v1818, %v1906
      %v1908 = vpop.f32.mrf.mxu0
      %v1909 = vadd.f32 %v1820, %v1908
      %1910 = vmatmul.bf16.gmra.mxu0 %v1038
      %v1911 = vpop.f32.mrf.mxu0
      %v1912 = vadd.f32 %v1823, %v1911
      %v1913 = vpop.f32.mrf.mxu0
      %v1914 = vadd.f32 %v1825, %v1913
      %1915 = vmatmul.bf16.gmra.mxu0 %v1047
      %v1916 = vpop.f32.mrf.mxu0
      %v1917 = vadd.f32 %v1828, %v1916
      %v1918 = vpop.f32.mrf.mxu0
      %v1919 = vadd.f32 %v1830, %v1918
      %1920 = vmatmul.bf16.gmra.mxu0 %v1056
      %v1921 = vpop.f32.mrf.mxu0
      %v1922 = vadd.f32 %v1833, %v1921
      %v1923 = vpop.f32.mrf.mxu0
      %v1924 = vadd.f32 %v1835, %v1923
      %1925 = vmatmul.bf16.gmra.mxu0 %v1065
      %v1926 = vpop.f32.mrf.mxu0
      %v1927 = vadd.f32 %v1838, %v1926
      %v1928 = vpop.f32.mrf.mxu0
      %v1929 = vadd.f32 %v1840, %v1928
      %1930 = vmatmul.bf16.gmra.mxu0 %v1074
      %v1931 = vpop.f32.mrf.mxu0
      %v1932 = vadd.f32 %v1843, %v1931
      %v1933 = vpop.f32.mrf.mxu0
      %v1934 = vadd.f32 %v1845, %v1933
      %1935 = vmatmul.bf16.gmra.mxu0 %v1083
      %v1936 = vpop.f32.mrf.mxu0
      %v1937 = vadd.f32 %v1848, %v1936
      %v1938 = vpop.f32.mrf.mxu0
      %v1939 = vadd.f32 %v1850, %v1938
      %1940 = vmatmul.bf16.gmra.mxu0 %v1092
      %v1941 = vpop.f32.mrf.mxu0
      %v1942 = vadd.f32 %v1853, %v1941
      %v1943 = vpop.f32.mrf.mxu0
      %v1944 = vadd.f32 %v1855, %v1943
      %1945 = vmatmul.bf16.gmra.mxu0 %v1101
      %v1946 = vpop.f32.mrf.mxu0
      %v1947 = vadd.f32 %v1858, %v1946
      %v1948 = vpop.f32.mrf.mxu0
      %v1949 = vadd.f32 %v1860, %v1948
      %1950 = vdwg.mxu0
      %1951 = vmatpush.bf16.msra.mxu0 %v1571
      %1952 = vmatpush.bf16.msra.mxu0 %v1570
      %1953 = vmatpush.bf16.msra.mxu0 %v1569
      %1954 = vmatpush.bf16.msra.mxu0 %v1568
      %1955 = vmatpush.bf16.msra.mxu0 %v1567
      %1956 = vmatpush.bf16.msra.mxu0 %v1566
      %1957 = vmatpush.bf16.msra.mxu0 %v1565
      %1958 = vmatpush.bf16.msra.mxu0 %v1564
      %1959 = vmatmul.bf16.gmra.mxu0 %v967
      %v1960 = vpop.f32.mrf.mxu0
      %v1961 = vadd.f32 %v1872, %v1960
      %v1962 = vpop.f32.mrf.mxu0
      %v1963 = vadd.f32 %v1874, %v1962
      %1964 = vmatmul.bf16.gmra.mxu0 %v976
      %v1965 = vpop.f32.mrf.mxu0
      %v1966 = vadd.f32 %v1877, %v1965
      %v1967 = vpop.f32.mrf.mxu0
      %v1968 = vadd.f32 %v1879, %v1967
      %1969 = vmatmul.bf16.gmra.mxu0 %v985
      %v1970 = vpop.f32.mrf.mxu0
      %v1971 = vadd.f32 %v1882, %v1970
      %v1972 = vpop.f32.mrf.mxu0
      %v1973 = vadd.f32 %v1884, %v1972
      %1974 = vmatmul.bf16.gmra.mxu0 %v994
      %v1975 = vpop.f32.mrf.mxu0
      %v1976 = vadd.f32 %v1887, %v1975
      %v1977 = vpop.f32.mrf.mxu0
      %v1978 = vadd.f32 %v1889, %v1977
      %1979 = vmatmul.bf16.gmra.mxu0 %v1003
      %v1980 = vpop.f32.mrf.mxu0
      %v1981 = vadd.f32 %v1892, %v1980
      %v1982 = vpop.f32.mrf.mxu0
      %v1983 = vadd.f32 %v1894, %v1982
      %1984 = vmatmul.bf16.gmra.mxu0 %v1012
      %v1985 = vpop.f32.mrf.mxu0
      %v1986 = vadd.f32 %v1897, %v1985
      %v1987 = vpop.f32.mrf.mxu0
      %v1988 = vadd.f32 %v1899, %v1987
      %1989 = vmatmul.bf16.gmra.mxu0 %v1021
      %v1990 = vpop.f32.mrf.mxu0
      %v1991 = vadd.f32 %v1902, %v1990
      %v1992 = vpop.f32.mrf.mxu0
      %v1993 = vadd.f32 %v1904, %v1992
      %1994 = vmatmul.bf16.gmra.mxu0 %v1030
      %v1995 = vpop.f32.mrf.mxu0
      %v1996 = vadd.f32 %v1907, %v1995
      %v1997 = vpop.f32.mrf.mxu0
      %v1998 = vadd.f32 %v1909, %v1997
      %1999 = vmatmul.bf16.gmra.mxu0 %v1039
      %v2000 = vpop.f32.mrf.mxu0
      %v2001 = vadd.f32 %v1912, %v2000
      %v2002 = vpop.f32.mrf.mxu0
      %v2003 = vadd.f32 %v1914, %v2002
      %2004 = vmatmul.bf16.gmra.mxu0 %v1048
      %v2005 = vpop.f32.mrf.mxu0
      %v2006 = vadd.f32 %v1917, %v2005
      %v2007 = vpop.f32.mrf.mxu0
      %v2008 = vadd.f32 %v1919, %v2007
      %2009 = vmatmul.bf16.gmra.mxu0 %v1057
      %v2010 = vpop.f32.mrf.mxu0
      %v2011 = vadd.f32 %v1922, %v2010
      %v2012 = vpop.f32.mrf.mxu0
      %v2013 = vadd.f32 %v1924, %v2012
      %2014 = vmatmul.bf16.gmra.mxu0 %v1066
      %v2015 = vpop.f32.mrf.mxu0
      %v2016 = vadd.f32 %v1927, %v2015
      %v2017 = vpop.f32.mrf.mxu0
      %v2018 = vadd.f32 %v1929, %v2017
      %2019 = vmatmul.bf16.gmra.mxu0 %v1075
      %v2020 = vpop.f32.mrf.mxu0
      %v2021 = vadd.f32 %v1932, %v2020
      %v2022 = vpop.f32.mrf.mxu0
      %v2023 = vadd.f32 %v1934, %v2022
      %2024 = vmatmul.bf16.gmra.mxu0 %v1084
      %v2025 = vpop.f32.mrf.mxu0
      %v2026 = vadd.f32 %v1937, %v2025
      %v2027 = vpop.f32.mrf.mxu0
      %v2028 = vadd.f32 %v1939, %v2027
      %2029 = vmatmul.bf16.gmra.mxu0 %v1093
      %v2030 = vpop.f32.mrf.mxu0
      %v2031 = vadd.f32 %v1942, %v2030
      %v2032 = vpop.f32.mrf.mxu0
      %v2033 = vadd.f32 %v1944, %v2032
      %2034 = vmatmul.bf16.gmra.mxu0 %v1102
      %v2035 = vpop.f32.mrf.mxu0
      %v2036 = vadd.f32 %v1947, %v2035
      %v2037 = vpop.f32.mrf.mxu0
      %v2038 = vadd.f32 %v1949, %v2037
      %2039 = vdwg.mxu0
      %2040 = vmatpush.bf16.msra.mxu0 %v1579
      %2041 = vmatpush.bf16.msra.mxu0 %v1578
      %2042 = vmatpush.bf16.msra.mxu0 %v1577
      %2043 = vmatpush.bf16.msra.mxu0 %v1576
      %2044 = vmatpush.bf16.msra.mxu0 %v1575
      %2045 = vmatpush.bf16.msra.mxu0 %v1574
      %2046 = vmatpush.bf16.msra.mxu0 %v1573
      %2047 = vmatpush.bf16.msra.mxu0 %v1572
      %2048 = vmatmul.bf16.gmra.mxu0 %v968
      %v2049 = vpop.f32.mrf.mxu0
      %v2050 = vadd.f32 %v1961, %v2049
      %v2051 = vpop.f32.mrf.mxu0
      %v2052 = vadd.f32 %v1963, %v2051
      %2053 = vmatmul.bf16.gmra.mxu0 %v977
      %v2054 = vpop.f32.mrf.mxu0
      %v2055 = vadd.f32 %v1966, %v2054
      %v2056 = vpop.f32.mrf.mxu0
      %v2057 = vadd.f32 %v1968, %v2056
      %2058 = vmatmul.bf16.gmra.mxu0 %v986
      %v2059 = vpop.f32.mrf.mxu0
      %v2060 = vadd.f32 %v1971, %v2059
      %v2061 = vpop.f32.mrf.mxu0
      %v2062 = vadd.f32 %v1973, %v2061
      %2063 = vmatmul.bf16.gmra.mxu0 %v995
      %v2064 = vpop.f32.mrf.mxu0
      %v2065 = vadd.f32 %v1976, %v2064
      %v2066 = vpop.f32.mrf.mxu0
      %v2067 = vadd.f32 %v1978, %v2066
      %2068 = vmatmul.bf16.gmra.mxu0 %v1004
      %v2069 = vpop.f32.mrf.mxu0
      %v2070 = vadd.f32 %v1981, %v2069
      %v2071 = vpop.f32.mrf.mxu0
      %v2072 = vadd.f32 %v1983, %v2071
      %2073 = vmatmul.bf16.gmra.mxu0 %v1013
      %v2074 = vpop.f32.mrf.mxu0
      %v2075 = vadd.f32 %v1986, %v2074
      %v2076 = vpop.f32.mrf.mxu0
      %v2077 = vadd.f32 %v1988, %v2076
      %2078 = vmatmul.bf16.gmra.mxu0 %v1022
      %v2079 = vpop.f32.mrf.mxu0
      %v2080 = vadd.f32 %v1991, %v2079
      %v2081 = vpop.f32.mrf.mxu0
      %v2082 = vadd.f32 %v1993, %v2081
      %2083 = vmatmul.bf16.gmra.mxu0 %v1031
      %v2084 = vpop.f32.mrf.mxu0
      %v2085 = vadd.f32 %v1996, %v2084
      %v2086 = vpop.f32.mrf.mxu0
      %v2087 = vadd.f32 %v1998, %v2086
      %2088 = vmatmul.bf16.gmra.mxu0 %v1040
      %v2089 = vpop.f32.mrf.mxu0
      %v2090 = vadd.f32 %v2001, %v2089
      %v2091 = vpop.f32.mrf.mxu0
      %v2092 = vadd.f32 %v2003, %v2091
      %2093 = vmatmul.bf16.gmra.mxu0 %v1049
      %v2094 = vpop.f32.mrf.mxu0
      %v2095 = vadd.f32 %v2006, %v2094
      %v2096 = vpop.f32.mrf.mxu0
      %v2097 = vadd.f32 %v2008, %v2096
      %2098 = vmatmul.bf16.gmra.mxu0 %v1058
      %v2099 = vpop.f32.mrf.mxu0
      %v2100 = vadd.f32 %v2011, %v2099
      %v2101 = vpop.f32.mrf.mxu0
      %v2102 = vadd.f32 %v2013, %v2101
      %2103 = vmatmul.bf16.gmra.mxu0 %v1067
      %v2104 = vpop.f32.mrf.mxu0
      %v2105 = vadd.f32 %v2016, %v2104
      %v2106 = vpop.f32.mrf.mxu0
      %v2107 = vadd.f32 %v2018, %v2106
      %2108 = vmatmul.bf16.gmra.mxu0 %v1076
      %v2109 = vpop.f32.mrf.mxu0
      %v2110 = vadd.f32 %v2021, %v2109
      %v2111 = vpop.f32.mrf.mxu0
      %v2112 = vadd.f32 %v2023, %v2111
      %2113 = vmatmul.bf16.gmra.mxu0 %v1085
      %v2114 = vpop.f32.mrf.mxu0
      %v2115 = vadd.f32 %v2026, %v2114
      %v2116 = vpop.f32.mrf.mxu0
      %v2117 = vadd.f32 %v2028, %v2116
      %2118 = vmatmul.bf16.gmra.mxu0 %v1094
      %v2119 = vpop.f32.mrf.mxu0
      %v2120 = vadd.f32 %v2031, %v2119
      %v2121 = vpop.f32.mrf.mxu0
      %v2122 = vadd.f32 %v2033, %v2121
      %2123 = vmatmul.bf16.gmra.mxu0 %v1103
      %v2124 = vpop.f32.mrf.mxu0
      %v2125 = vadd.f32 %v2036, %v2124
      %v2126 = vpop.f32.mrf.mxu0
      %v2127 = vadd.f32 %v2038, %v2126
      %2128 = vdwg.mxu0
      %2129 = vmatpush.bf16.msra.mxu0 %v1587
      %2130 = vmatpush.bf16.msra.mxu0 %v1586
      %2131 = vmatpush.bf16.msra.mxu0 %v1585
      %2132 = vmatpush.bf16.msra.mxu0 %v1584
      %2133 = vmatpush.bf16.msra.mxu0 %v1583
      %2134 = vmatpush.bf16.msra.mxu0 %v1582
      %2135 = vmatpush.bf16.msra.mxu0 %v1581
      %2136 = vmatpush.bf16.msra.mxu0 %v1580
      %2137 = vmatmul.bf16.gmra.mxu0 %v969
      %v2138 = vpop.f32.mrf.mxu0
      %v2139 = vadd.f32 %v2050, %v2138
      %v2140 = vpop.f32.mrf.mxu0
      %v2141 = vadd.f32 %v2052, %v2140
      %2142 = vmatmul.bf16.gmra.mxu0 %v978
      %v2143 = vpop.f32.mrf.mxu0
      %v2144 = vadd.f32 %v2055, %v2143
      %v2145 = vpop.f32.mrf.mxu0
      %v2146 = vadd.f32 %v2057, %v2145
      %2147 = vmatmul.bf16.gmra.mxu0 %v987
      %v2148 = vpop.f32.mrf.mxu0
      %v2149 = vadd.f32 %v2060, %v2148
      %v2150 = vpop.f32.mrf.mxu0
      %v2151 = vadd.f32 %v2062, %v2150
      %2152 = vmatmul.bf16.gmra.mxu0 %v996
      %v2153 = vpop.f32.mrf.mxu0
      %v2154 = vadd.f32 %v2065, %v2153
      %v2155 = vpop.f32.mrf.mxu0
      %v2156 = vadd.f32 %v2067, %v2155
      %2157 = vmatmul.bf16.gmra.mxu0 %v1005
      %v2158 = vpop.f32.mrf.mxu0
      %v2159 = vadd.f32 %v2070, %v2158
      %v2160 = vpop.f32.mrf.mxu0
      %v2161 = vadd.f32 %v2072, %v2160
      %2162 = vmatmul.bf16.gmra.mxu0 %v1014
      %v2163 = vpop.f32.mrf.mxu0
      %v2164 = vadd.f32 %v2075, %v2163
      %v2165 = vpop.f32.mrf.mxu0
      %v2166 = vadd.f32 %v2077, %v2165
      %2167 = vmatmul.bf16.gmra.mxu0 %v1023
      %v2168 = vpop.f32.mrf.mxu0
      %v2169 = vadd.f32 %v2080, %v2168
      %v2170 = vpop.f32.mrf.mxu0
      %v2171 = vadd.f32 %v2082, %v2170
      %2172 = vmatmul.bf16.gmra.mxu0 %v1032
      %v2173 = vpop.f32.mrf.mxu0
      %v2174 = vadd.f32 %v2085, %v2173
      %v2175 = vpop.f32.mrf.mxu0
      %v2176 = vadd.f32 %v2087, %v2175
      %2177 = vmatmul.bf16.gmra.mxu0 %v1041
      %v2178 = vpop.f32.mrf.mxu0
      %v2179 = vadd.f32 %v2090, %v2178
      %v2180 = vpop.f32.mrf.mxu0
      %v2181 = vadd.f32 %v2092, %v2180
      %2182 = vmatmul.bf16.gmra.mxu0 %v1050
      %v2183 = vpop.f32.mrf.mxu0
      %v2184 = vadd.f32 %v2095, %v2183
      %v2185 = vpop.f32.mrf.mxu0
      %v2186 = vadd.f32 %v2097, %v2185
      %2187 = vmatmul.bf16.gmra.mxu0 %v1059
      %v2188 = vpop.f32.mrf.mxu0
      %v2189 = vadd.f32 %v2100, %v2188
      %v2190 = vpop.f32.mrf.mxu0
      %v2191 = vadd.f32 %v2102, %v2190
      %2192 = vmatmul.bf16.gmra.mxu0 %v1068
      %v2193 = vpop.f32.mrf.mxu0
      %v2194 = vadd.f32 %v2105, %v2193
      %v2195 = vpop.f32.mrf.mxu0
      %v2196 = vadd.f32 %v2107, %v2195
      %2197 = vmatmul.bf16.gmra.mxu0 %v1077
      %v2198 = vpop.f32.mrf.mxu0
      %v2199 = vadd.f32 %v2110, %v2198
      %v2200 = vpop.f32.mrf.mxu0
      %v2201 = vadd.f32 %v2112, %v2200
      %2202 = vmatmul.bf16.gmra.mxu0 %v1086
      %v2203 = vpop.f32.mrf.mxu0
      %v2204 = vadd.f32 %v2115, %v2203
      %v2205 = vpop.f32.mrf.mxu0
      %v2206 = vadd.f32 %v2117, %v2205
      %2207 = vmatmul.bf16.gmra.mxu0 %v1095
      %v2208 = vpop.f32.mrf.mxu0
      %v2209 = vadd.f32 %v2120, %v2208
      %v2210 = vpop.f32.mrf.mxu0
      %v2211 = vadd.f32 %v2122, %v2210
      %2212 = vmatmul.bf16.gmra.mxu0 %v1104
      %v2213 = vpop.f32.mrf.mxu0
      %v2214 = vadd.f32 %v2125, %v2213
      %v2215 = vpop.f32.mrf.mxu0
      %v2216 = vadd.f32 %v2127, %v2215
      %2217 = vdwg.mxu0
      %2218 = vmatpush.bf16.msra.mxu0 %v1595
      %2219 = vmatpush.bf16.msra.mxu0 %v1594
      %2220 = vmatpush.bf16.msra.mxu0 %v1593
      %2221 = vmatpush.bf16.msra.mxu0 %v1592
      %2222 = vmatpush.bf16.msra.mxu0 %v1591
      %2223 = vmatpush.bf16.msra.mxu0 %v1590
      %2224 = vmatpush.bf16.msra.mxu0 %v1589
      %2225 = vmatpush.bf16.msra.mxu0 %v1588
      %2226 = vmatmul.bf16.gmra.mxu0 %v970
      %v2227 = vpop.f32.mrf.mxu0
      %v2228 = vadd.f32 %v2139, %v2227
      %v2229 = vpop.f32.mrf.mxu0
      %v2230 = vadd.f32 %v2141, %v2229
      %2231 = vmatmul.bf16.gmra.mxu0 %v979
      %v2232 = vpop.f32.mrf.mxu0
      %v2233 = vadd.f32 %v2144, %v2232
      %v2234 = vpop.f32.mrf.mxu0
      %v2235 = vadd.f32 %v2146, %v2234
      %2236 = vmatmul.bf16.gmra.mxu0 %v988
      %v2237 = vpop.f32.mrf.mxu0
      %v2238 = vadd.f32 %v2149, %v2237
      %v2239 = vpop.f32.mrf.mxu0
      %v2240 = vadd.f32 %v2151, %v2239
      %2241 = vmatmul.bf16.gmra.mxu0 %v997
      %v2242 = vpop.f32.mrf.mxu0
      %v2243 = vadd.f32 %v2154, %v2242
      %v2244 = vpop.f32.mrf.mxu0
      %v2245 = vadd.f32 %v2156, %v2244
      %2246 = vmatmul.bf16.gmra.mxu0 %v1006
      %v2247 = vpop.f32.mrf.mxu0
      %v2248 = vadd.f32 %v2159, %v2247
      %v2249 = vpop.f32.mrf.mxu0
      %v2250 = vadd.f32 %v2161, %v2249
      %2251 = vmatmul.bf16.gmra.mxu0 %v1015
      %v2252 = vpop.f32.mrf.mxu0
      %v2253 = vadd.f32 %v2164, %v2252
      %v2254 = vpop.f32.mrf.mxu0
      %v2255 = vadd.f32 %v2166, %v2254
      %2256 = vmatmul.bf16.gmra.mxu0 %v1024
      %v2257 = vpop.f32.mrf.mxu0
      %v2258 = vadd.f32 %v2169, %v2257
      %v2259 = vpop.f32.mrf.mxu0
      %v2260 = vadd.f32 %v2171, %v2259
      %2261 = vmatmul.bf16.gmra.mxu0 %v1033
      %v2262 = vpop.f32.mrf.mxu0
      %v2263 = vadd.f32 %v2174, %v2262
      %v2264 = vpop.f32.mrf.mxu0
      %v2265 = vadd.f32 %v2176, %v2264
      %2266 = vmatmul.bf16.gmra.mxu0 %v1042
      %v2267 = vpop.f32.mrf.mxu0
      %v2268 = vadd.f32 %v2179, %v2267
      %v2269 = vpop.f32.mrf.mxu0
      %v2270 = vadd.f32 %v2181, %v2269
      %2271 = vmatmul.bf16.gmra.mxu0 %v1051
      %v2272 = vpop.f32.mrf.mxu0
      %v2273 = vadd.f32 %v2184, %v2272
      %v2274 = vpop.f32.mrf.mxu0
      %v2275 = vadd.f32 %v2186, %v2274
      %2276 = vmatmul.bf16.gmra.mxu0 %v1060
      %v2277 = vpop.f32.mrf.mxu0
      %v2278 = vadd.f32 %v2189, %v2277
      %v2279 = vpop.f32.mrf.mxu0
      %v2280 = vadd.f32 %v2191, %v2279
      %2281 = vmatmul.bf16.gmra.mxu0 %v1069
      %v2282 = vpop.f32.mrf.mxu0
      %v2283 = vadd.f32 %v2194, %v2282
      %v2284 = vpop.f32.mrf.mxu0
      %v2285 = vadd.f32 %v2196, %v2284
      %2286 = vmatmul.bf16.gmra.mxu0 %v1078
      %v2287 = vpop.f32.mrf.mxu0
      %v2288 = vadd.f32 %v2199, %v2287
      %v2289 = vpop.f32.mrf.mxu0
      %v2290 = vadd.f32 %v2201, %v2289
      %2291 = vmatmul.bf16.gmra.mxu0 %v1087
      %v2292 = vpop.f32.mrf.mxu0
      %v2293 = vadd.f32 %v2204, %v2292
      %v2294 = vpop.f32.mrf.mxu0
      %v2295 = vadd.f32 %v2206, %v2294
      %2296 = vmatmul.bf16.gmra.mxu0 %v1096
      %v2297 = vpop.f32.mrf.mxu0
      %v2298 = vadd.f32 %v2209, %v2297
      %v2299 = vpop.f32.mrf.mxu0
      %v2300 = vadd.f32 %v2211, %v2299
      %2301 = vmatmul.bf16.gmra.mxu0 %v1105
      %v2302 = vpop.f32.mrf.mxu0
      %v2303 = vadd.f32 %v2214, %v2302
      %v2304 = vpop.f32.mrf.mxu0
      %v2305 = vadd.f32 %v2216, %v2304
      %2306 = vdwg.mxu0
      %2307 = vmatpush.bf16.msra.mxu0 %v1603
      %2308 = vmatpush.bf16.msra.mxu0 %v1602
      %2309 = vmatpush.bf16.msra.mxu0 %v1601
      %2310 = vmatpush.bf16.msra.mxu0 %v1600
      %2311 = vmatpush.bf16.msra.mxu0 %v1599
      %2312 = vmatpush.bf16.msra.mxu0 %v1598
      %2313 = vmatpush.bf16.msra.mxu0 %v1597
      %2314 = vmatpush.bf16.msra.mxu0 %v1596
      %2315 = vmatmul.bf16.gmra.mxu0 %v971
      %v2316 = vpop.f32.mrf.mxu0
      %v2317 = vadd.f32 %v2228, %v2316
      %v2318 = vpop.f32.mrf.mxu0
      %v2319 = vadd.f32 %v2230, %v2318
      %2320 = vmatmul.bf16.gmra.mxu0 %v980
      %v2321 = vpop.f32.mrf.mxu0
      %v2322 = vadd.f32 %v2233, %v2321
      %v2323 = vpop.f32.mrf.mxu0
      %v2324 = vadd.f32 %v2235, %v2323
      %2325 = vmatmul.bf16.gmra.mxu0 %v989
      %v2326 = vpop.f32.mrf.mxu0
      %v2327 = vadd.f32 %v2238, %v2326
      %v2328 = vpop.f32.mrf.mxu0
      %v2329 = vadd.f32 %v2240, %v2328
      %2330 = vmatmul.bf16.gmra.mxu0 %v998
      %v2331 = vpop.f32.mrf.mxu0
      %v2332 = vadd.f32 %v2243, %v2331
      %v2333 = vpop.f32.mrf.mxu0
      %v2334 = vadd.f32 %v2245, %v2333
      %2335 = vmatmul.bf16.gmra.mxu0 %v1007
      %v2336 = vpop.f32.mrf.mxu0
      %v2337 = vadd.f32 %v2248, %v2336
      %v2338 = vpop.f32.mrf.mxu0
      %v2339 = vadd.f32 %v2250, %v2338
      %2340 = vmatmul.bf16.gmra.mxu0 %v1016
      %v2341 = vpop.f32.mrf.mxu0
      %v2342 = vadd.f32 %v2253, %v2341
      %v2343 = vpop.f32.mrf.mxu0
      %v2344 = vadd.f32 %v2255, %v2343
      %2345 = vmatmul.bf16.gmra.mxu0 %v1025
      %v2346 = vpop.f32.mrf.mxu0
      %v2347 = vadd.f32 %v2258, %v2346
      %v2348 = vpop.f32.mrf.mxu0
      %v2349 = vadd.f32 %v2260, %v2348
      %2350 = vmatmul.bf16.gmra.mxu0 %v1034
      %v2351 = vpop.f32.mrf.mxu0
      %v2352 = vadd.f32 %v2263, %v2351
      %v2353 = vpop.f32.mrf.mxu0
      %v2354 = vadd.f32 %v2265, %v2353
      %2355 = vmatmul.bf16.gmra.mxu0 %v1043
      %v2356 = vpop.f32.mrf.mxu0
      %v2357 = vadd.f32 %v2268, %v2356
      %v2358 = vpop.f32.mrf.mxu0
      %v2359 = vadd.f32 %v2270, %v2358
      %2360 = vmatmul.bf16.gmra.mxu0 %v1052
      %v2361 = vpop.f32.mrf.mxu0
      %v2362 = vadd.f32 %v2273, %v2361
      %v2363 = vpop.f32.mrf.mxu0
      %v2364 = vadd.f32 %v2275, %v2363
      %2365 = vmatmul.bf16.gmra.mxu0 %v1061
      %v2366 = vpop.f32.mrf.mxu0
      %v2367 = vadd.f32 %v2278, %v2366
      %v2368 = vpop.f32.mrf.mxu0
      %v2369 = vadd.f32 %v2280, %v2368
      %2370 = vmatmul.bf16.gmra.mxu0 %v1070
      %v2371 = vpop.f32.mrf.mxu0
      %v2372 = vadd.f32 %v2283, %v2371
      %v2373 = vpop.f32.mrf.mxu0
      %v2374 = vadd.f32 %v2285, %v2373
      %2375 = vmatmul.bf16.gmra.mxu0 %v1079
      %v2376 = vpop.f32.mrf.mxu0
      %v2377 = vadd.f32 %v2288, %v2376
      %v2378 = vpop.f32.mrf.mxu0
      %v2379 = vadd.f32 %v2290, %v2378
      %2380 = vmatmul.bf16.gmra.mxu0 %v1088
      %v2381 = vpop.f32.mrf.mxu0
      %v2382 = vadd.f32 %v2293, %v2381
      %v2383 = vpop.f32.mrf.mxu0
      %v2384 = vadd.f32 %v2295, %v2383
      %2385 = vmatmul.bf16.gmra.mxu0 %v1097
      %v2386 = vpop.f32.mrf.mxu0
      %v2387 = vadd.f32 %v2298, %v2386
      %v2388 = vpop.f32.mrf.mxu0
      %v2389 = vadd.f32 %v2300, %v2388
      %2390 = vmatmul.bf16.gmra.mxu0 %v1106
      %v2391 = vpop.f32.mrf.mxu0
      %v2392 = vadd.f32 %v2303, %v2391
      %v2393 = vpop.f32.mrf.mxu0
      %v2394 = vadd.f32 %v2305, %v2393
      %2395 = vdwg.mxu0
      %2396 = vmatpush.bf16.msra.mxu0 %v1611
      %2397 = vmatpush.bf16.msra.mxu0 %v1610
      %2398 = vmatpush.bf16.msra.mxu0 %v1609
      %2399 = vmatpush.bf16.msra.mxu0 %v1608
      %2400 = vmatpush.bf16.msra.mxu0 %v1607
      %2401 = vmatpush.bf16.msra.mxu0 %v1606
      %2402 = vmatpush.bf16.msra.mxu0 %v1605
      %2403 = vmatpush.bf16.msra.mxu0 %v1604
      %2404 = vmatmul.bf16.gmra.mxu0 %v972
      %v2405 = vpop.f32.mrf.mxu0
      %v2406 = vadd.f32 %v2317, %v2405
      %v2407 = vpop.f32.mrf.mxu0
      %v2408 = vadd.f32 %v2319, %v2407
      %2409 = vmatmul.bf16.gmra.mxu0 %v981
      %v2410 = vpop.f32.mrf.mxu0
      %v2411 = vadd.f32 %v2322, %v2410
      %v2412 = vpop.f32.mrf.mxu0
      %v2413 = vadd.f32 %v2324, %v2412
      %2414 = vmatmul.bf16.gmra.mxu0 %v990
      %v2415 = vpop.f32.mrf.mxu0
      %v2416 = vadd.f32 %v2327, %v2415
      %v2417 = vpop.f32.mrf.mxu0
      %v2418 = vadd.f32 %v2329, %v2417
      %2419 = vmatmul.bf16.gmra.mxu0 %v999
      %v2420 = vpop.f32.mrf.mxu0
      %v2421 = vadd.f32 %v2332, %v2420
      %v2422 = vpop.f32.mrf.mxu0
      %v2423 = vadd.f32 %v2334, %v2422
      %2424 = vmatmul.bf16.gmra.mxu0 %v1008
      %v2425 = vpop.f32.mrf.mxu0
      %v2426 = vadd.f32 %v2337, %v2425
      %v2427 = vpop.f32.mrf.mxu0
      %v2428 = vadd.f32 %v2339, %v2427
      %2429 = vmatmul.bf16.gmra.mxu0 %v1017
      %v2430 = vpop.f32.mrf.mxu0
      %v2431 = vadd.f32 %v2342, %v2430
      %v2432 = vpop.f32.mrf.mxu0
      %v2433 = vadd.f32 %v2344, %v2432
      %2434 = vmatmul.bf16.gmra.mxu0 %v1026
      %v2435 = vpop.f32.mrf.mxu0
      %v2436 = vadd.f32 %v2347, %v2435
      %v2437 = vpop.f32.mrf.mxu0
      %v2438 = vadd.f32 %v2349, %v2437
      %2439 = vmatmul.bf16.gmra.mxu0 %v1035
      %v2440 = vpop.f32.mrf.mxu0
      %v2441 = vadd.f32 %v2352, %v2440
      %v2442 = vpop.f32.mrf.mxu0
      %v2443 = vadd.f32 %v2354, %v2442
      %2444 = vmatmul.bf16.gmra.mxu0 %v1044
      %v2445 = vpop.f32.mrf.mxu0
      %v2446 = vadd.f32 %v2357, %v2445
      %v2447 = vpop.f32.mrf.mxu0
      %v2448 = vadd.f32 %v2359, %v2447
      %2449 = vmatmul.bf16.gmra.mxu0 %v1053
      %v2450 = vpop.f32.mrf.mxu0
      %v2451 = vadd.f32 %v2362, %v2450
      %v2452 = vpop.f32.mrf.mxu0
      %v2453 = vadd.f32 %v2364, %v2452
      %2454 = vmatmul.bf16.gmra.mxu0 %v1062
      %v2455 = vpop.f32.mrf.mxu0
      %v2456 = vadd.f32 %v2367, %v2455
      %v2457 = vpop.f32.mrf.mxu0
      %v2458 = vadd.f32 %v2369, %v2457
      %2459 = vmatmul.bf16.gmra.mxu0 %v1071
      %v2460 = vpop.f32.mrf.mxu0
      %v2461 = vadd.f32 %v2372, %v2460
      %v2462 = vpop.f32.mrf.mxu0
      %v2463 = vadd.f32 %v2374, %v2462
      %2464 = vmatmul.bf16.gmra.mxu0 %v1080
      %v2465 = vpop.f32.mrf.mxu0
      %v2466 = vadd.f32 %v2377, %v2465
      %v2467 = vpop.f32.mrf.mxu0
      %v2468 = vadd.f32 %v2379, %v2467
      %2469 = vmatmul.bf16.gmra.mxu0 %v1089
      %v2470 = vpop.f32.mrf.mxu0
      %v2471 = vadd.f32 %v2382, %v2470
      %v2472 = vpop.f32.mrf.mxu0
      %v2473 = vadd.f32 %v2384, %v2472
      %2474 = vmatmul.bf16.gmra.mxu0 %v1098
      %v2475 = vpop.f32.mrf.mxu0
      %v2476 = vadd.f32 %v2387, %v2475
      %v2477 = vpop.f32.mrf.mxu0
      %v2478 = vadd.f32 %v2389, %v2477
      %2479 = vmatmul.bf16.gmra.mxu0 %v1107
      %v2480 = vpop.f32.mrf.mxu0
      %v2481 = vadd.f32 %v2392, %v2480
      %v2482 = vpop.f32.mrf.mxu0
      %v2483 = vadd.f32 %v2394, %v2482
      %2484 = vdwg.mxu0
      %2485 = vst [vmem:[%s205] sm:$0xff] %v2406
      %2486 = vst [vmem:[%s205 + $0x8] sm:$0xff] %v2408
      %2487 = vst [vmem:[%s205 + $0x10] sm:$0xff] %v2411
      %2488 = vst [vmem:[%s205 + $0x18] sm:$0xff] %v2413
      %2489 = vst [vmem:[%s205 + $0x20] sm:$0xff] %v2416
      %2490 = vst [vmem:[%s205 + $0x28] sm:$0xff] %v2418
      %2491 = vst [vmem:[%s205 + $0x30] sm:$0xff] %v2421
      %2492 = vst [vmem:[%s205 + $0x38] sm:$0xff] %v2423
      %2493 = vst [vmem:[%s205 + $0x40] sm:$0xff] %v2426
      %2494 = vst [vmem:[%s205 + $0x48] sm:$0xff] %v2428
      %2495 = vst [vmem:[%s205 + $0x50] sm:$0xff] %v2431
      %2496 = vst [vmem:[%s205 + $0x58] sm:$0xff] %v2433
      %2497 = vst [vmem:[%s205 + $0x60] sm:$0xff] %v2436
      %2498 = vst [vmem:[%s205 + $0x68] sm:$0xff] %v2438
      %2499 = vst [vmem:[%s205 + $0x70] sm:$0xff] %v2441
      %2500 = vst [vmem:[%s205 + $0x78] sm:$0xff] %v2443
      %2501 = vst [vmem:[%s205 + $0x80] sm:$0xff] %v2446
      %2502 = vst [vmem:[%s205 + $0x88] sm:$0xff] %v2448
      %2503 = vst [vmem:[%s205 + $0x90] sm:$0xff] %v2451
      %2504 = vst [vmem:[%s205 + $0x98] sm:$0xff] %v2453
      %2505 = vst [vmem:[%s205 + $0xa0] sm:$0xff] %v2456
      %2506 = vst [vmem:[%s205 + $0xa8] sm:$0xff] %v2458
      %2507 = vst [vmem:[%s205 + $0xb0] sm:$0xff] %v2461
      %2508 = vst [vmem:[%s205 + $0xb8] sm:$0xff] %v2463
      %2509 = vst [vmem:[%s205 + $0xc0] sm:$0xff] %v2466
      %2510 = vst [vmem:[%s205 + $0xc8] sm:$0xff] %v2468
      %2511 = vst [vmem:[%s205 + $0xd0] sm:$0xff] %v2471
      %2512 = vst [vmem:[%s205 + $0xd8] sm:$0xff] %v2473
      %2513 = vst [vmem:[%s205 + $0xe0] sm:$0xff] %v2476
      %2514 = vst [vmem:[%s205 + $0xe8] sm:$0xff] %v2478
      %2515 = vst [vmem:[%s205 + $0xf0] sm:$0xff] %v2481
      %2516 = vst [vmem:[%s205 + $0xf8] sm:$0xff] %v2483
      %2517 = vmatpush.msra.mxu0 %v2443
      %2518 = vmatpush.msra.mxu0 %v2441
      %2519 = vmatpush.msra.mxu0 %v2438
      %2520 = vmatpush.msra.mxu0 %v2436
      %2521 = vmatpush.msra.mxu0 %v2433
      %2522 = vmatpush.msra.mxu0 %v2431
      %2523 = vmatpush.msra.mxu0 %v2428
      %2524 = vmatpush.msra.mxu0 %v2426
      %2525 = vmatpush.msra.mxu0 %v2423
      %2526 = vmatpush.msra.mxu0 %v2421
      %2527 = vmatpush.msra.mxu0 %v2418
      %2528 = vmatpush.msra.mxu0 %v2416
      %2529 = vmatpush.msra.mxu0 %v2413
      %2530 = vmatpush.msra.mxu0 %v2411
      %2531 = vmatpush.msra.mxu0 %v2408
      %2532 = vmatpush.msra.mxu0 %v2406
      %2533 = vmatmul.f32.gmra.mxu0 1.0
      %v2534 = vpop.f32.mrf.mxu0
      %v2535 = vadd.f32 0.0, %v2534
      %2536 = vdwg.mxu0
      %2537 = vmatpush.msra.mxu0 %v2483
      %2538 = vmatpush.msra.mxu0 %v2481
      %2539 = vmatpush.msra.mxu0 %v2478
      %2540 = vmatpush.msra.mxu0 %v2476
      %2541 = vmatpush.msra.mxu0 %v2473
      %2542 = vmatpush.msra.mxu0 %v2471
      %2543 = vmatpush.msra.mxu0 %v2468
      %2544 = vmatpush.msra.mxu0 %v2466
      %2545 = vmatpush.msra.mxu0 %v2463
      %2546 = vmatpush.msra.mxu0 %v2461
      %2547 = vmatpush.msra.mxu0 %v2458
      %2548 = vmatpush.msra.mxu0 %v2456
      %2549 = vmatpush.msra.mxu0 %v2453
      %2550 = vmatpush.msra.mxu0 %v2451
      %2551 = vmatpush.msra.mxu0 %v2448
      %2552 = vmatpush.msra.mxu0 %v2446
      %2553 = vmatmul.f32.gmra.mxu0 1.0
      %v2554 = vpop.f32.mrf.mxu0
      %v2555 = vadd.f32 %v2535, %v2554
      %2556 = vdwg.mxu0
      %v2557 = vmul.f32 %v2406, %v2406
      %v2558 = vmul.f32 %v2408, %v2408
      %v2559 = vmul.f32 %v2411, %v2411
      %v2560 = vmul.f32 %v2413, %v2413
      %v2561 = vmul.f32 %v2416, %v2416
      %v2562 = vmul.f32 %v2418, %v2418
      %v2563 = vmul.f32 %v2421, %v2421
      %v2564 = vmul.f32 %v2423, %v2423
      %v2565 = vmul.f32 %v2426, %v2426
      %v2566 = vmul.f32 %v2428, %v2428
      %v2567 = vmul.f32 %v2431, %v2431
      %v2568 = vmul.f32 %v2433, %v2433
      %v2569 = vmul.f32 %v2436, %v2436
      %v2570 = vmul.f32 %v2438, %v2438
      %v2571 = vmul.f32 %v2441, %v2441
      %v2572 = vmul.f32 %v2443, %v2443
      %v2573 = vmul.f32 %v2446, %v2446
      %v2574 = vmul.f32 %v2448, %v2448
      %v2575 = vmul.f32 %v2451, %v2451
      %v2576 = vmul.f32 %v2453, %v2453
      %v2577 = vmul.f32 %v2456, %v2456
      %v2578 = vmul.f32 %v2458, %v2458
      %v2579 = vmul.f32 %v2461, %v2461
      %v2580 = vmul.f32 %v2463, %v2463
      %v2581 = vmul.f32 %v2466, %v2466
      %v2582 = vmul.f32 %v2468, %v2468
      %v2583 = vmul.f32 %v2471, %v2471
      %v2584 = vmul.f32 %v2473, %v2473
      %v2585 = vmul.f32 %v2476, %v2476
      %v2586 = vmul.f32 %v2478, %v2478
      %v2587 = vmul.f32 %v2481, %v2481
      %v2588 = vmul.f32 %v2483, %v2483
      %2589 = vmatpush.msra.mxu0 %v2572
      %2590 = vmatpush.msra.mxu0 %v2571
      %2591 = vmatpush.msra.mxu0 %v2570
      %2592 = vmatpush.msra.mxu0 %v2569
      %2593 = vmatpush.msra.mxu0 %v2568
      %2594 = vmatpush.msra.mxu0 %v2567
      %2595 = vmatpush.msra.mxu0 %v2566
      %2596 = vmatpush.msra.mxu0 %v2565
      %2597 = vmatpush.msra.mxu0 %v2564
      %2598 = vmatpush.msra.mxu0 %v2563
      %2599 = vmatpush.msra.mxu0 %v2562
      %2600 = vmatpush.msra.mxu0 %v2561
      %2601 = vmatpush.msra.mxu0 %v2560
      %2602 = vmatpush.msra.mxu0 %v2559
      %2603 = vmatpush.msra.mxu0 %v2558
      %2604 = vmatpush.msra.mxu0 %v2557
      %2605 = vmatmul.f32.gmra.mxu0 1.0
      %v2606 = vpop.f32.mrf.mxu0
      %v2607 = vadd.f32 0.0, %v2606
      %2608 = vdwg.mxu0
      %2609 = vmatpush.msra.mxu0 %v2588
      %2610 = vmatpush.msra.mxu0 %v2587
      %2611 = vmatpush.msra.mxu0 %v2586
      %2612 = vmatpush.msra.mxu0 %v2585
      %2613 = vmatpush.msra.mxu0 %v2584
      %2614 = vmatpush.msra.mxu0 %v2583
      %2615 = vmatpush.msra.mxu0 %v2582
      %2616 = vmatpush.msra.mxu0 %v2581
      %2617 = vmatpush.msra.mxu0 %v2580
      %2618 = vmatpush.msra.mxu0 %v2579
      %2619 = vmatpush.msra.mxu0 %v2578
      %2620 = vmatpush.msra.mxu0 %v2577
      %2621 = vmatpush.msra.mxu0 %v2576
      %2622 = vmatpush.msra.mxu0 %v2575
      %2623 = vmatpush.msra.mxu0 %v2574
      %2624 = vmatpush.msra.mxu0 %v2573
      %2625 = vmatmul.f32.gmra.mxu0 1.0
      %v2626 = vpop.f32.mrf.mxu0
      %v2627 = vadd.f32 %v2607, %v2626
      %2628 = vdwg.mxu0
      %v2630 = vrot.slane %v2627, 7
      %vm2632 = vcmask 1040384
      %v2633 = vsel %vm2632, %v2555, %v2630
      %p2634 = scmp.eq.s32.totalorder %s20, 0
      // Predicated region
      $region29: #{up_block_forward.8} parent=27 // pred_check
        %p2635 = pneg %p2634
      $region30: #{up_block_forward.8} parent=27 // pred_check_branch
        %2637 = sbr.rel (%p2635) target = $region32
      $region31: #{up_block_forward.8} parent=27 // pred_region
        %2638 = vst [vmem:[%s211] sm:$0x3] 0.0
      $region32: #{up_block_forward.8} parent=27 // pred_fallthru
        _
      %v2639 = vld [vmem:[%s211] sm:$0x3]
      %v2640 = vadd.f32 %v2639, %v2633
      %2641 = vst [vmem:[%s211] sm:$0x3] %v2640
      %s2642 = sadd.s32 %s19, %s20
      %s2643 = smul.u32 32, %s2642
      %p2644 = scmp.lt.s32.totalorder %s2643, 63
      %s2645 = scalar_select %p2644, %s2643, 63
      %s2646 = smul.addr %s2645, 8
      %s2647 = scalar_lea.vmem %s2, %s2646
      %p2648 = scmp.lt.s32.totalorder %s19, 1
      %s2649 = scalar_select %p2648, %s19, 1
      %s2650 = smul.addr %s2649, 2
      %s2651 = scalar_lea.vmem %s3, %s2650
      // Predicated region
      $region33: #{up_block_forward.8} parent=27 // pred_check
        %p2652 = pneg %p96
      $region34: #{up_block_forward.8} parent=27 // pred_check_branch
        %2654 = sbr.rel (%p2652) target = $region36
      $region35: #{up_block_forward.8} parent=27 // pred_region
        %s2655 = sadd.s32 %s19, %s20
        %s2656 = smul.u32 32, %s2655
      $region36: #{up_block_forward.8} parent=27 // pred_fallthru
        _
      // Predicated region
      $region37: #{up_block_forward.8} parent=27 // pred_check
        %p2657 = pneg %p122
      $region38: #{up_block_forward.8} parent=27 // pred_check_branch
        %2659 = sbr.rel (%p2657) target = $region40
      $region39: #{up_block_forward.8} parent=27 // pred_region
        _
      $region40: #{up_block_forward.8} parent=27 // pred_fallthru
        _
    $region28: #{up_block_forward.8} parent=5 // pred_fallthru
      _
    %p2660 = scmp.le.s32.totalorder 2, %s10
    // Predicated region
    $region41: #{up_block_forward.8} parent=5 // pred_check
      %p2661 = pneg %p2660
    $region42: #{up_block_forward.8} parent=5 // pred_check_branch
      %2663 = sbr.rel (%p2661) target = $region44
    $region43: #{up_block_forward.8} parent=5 // pred_region
      %s2664 = ssub.s32 %s10, 2
      // Predicated region
      $region45: #{up_block_forward.8} parent=43 // pred_check
        %p2665 = pneg %p102
      $region46: #{up_block_forward.8} parent=43 // pred_check_branch
        %2667 = sbr.rel (%p2665) target = $region48
      $region47: #{up_block_forward.8} parent=43 // pred_region
        %s2668 = sadd.s32 %s21, %s22
        %s2669 = smul.u32 32, %s2668
        %p2670 = scmp.lt.s32.totalorder %s2669, 63
        %s2671 = scalar_select %p2670, %s2669, 63
        %s2672 = smul.addr %s2671, 8
        %s2673 = scalar_lea.vmem %s2, %s2672
      $region48: #{up_block_forward.8} parent=43 // pred_fallthru
        _
      // Predicated region
      $region49: #{up_block_forward.8} parent=43 // pred_check
        %p2674 = pneg %p128
      $region50: #{up_block_forward.8} parent=43 // pred_check_branch
        %2676 = sbr.rel (%p2674) target = $region52
      $region51: #{up_block_forward.8} parent=43 // pred_region
        %p2677 = scmp.lt.s32.totalorder %s21, 1
        %s2678 = scalar_select %p2677, %s21, 1
        %s2679 = smul.addr %s2678, 2
        %s2680 = scalar_lea.vmem %s3, %s2679
      $region52: #{up_block_forward.8} parent=43 // pred_fallthru
        _
    $region44: #{up_block_forward.8} parent=5 // pred_fallthru
      _
  $region6: #{up_block_forward.8} parent=0 // loop_footer
    %s14 = sadd.s32 1, %s10
  $region7: #{up_block_forward.8} parent=0 // loop_footer_branch
    %9 = sbr.rel target = $region3
  $region8: #{up_block_forward.8} parent=0 // loop_exit
    _

// kernel: up_block_forward.6
$region0: #{up_block_forward.6}
  #allocation0 [shape = 'u32[]', space=smem, size = 0x4, offset = 0x4, fixed_abs, tag = 'smem constant byte address 0x4 - core index']
  #allocation1 [shape = 'u32[72,128]{1,0:T(1,128)}', space=vmem, size = 0x9000, scoped, tag = 'internal scratch']
  %s0 = inlined_call_operand.vmem [shape: bf16[512,1152], index: 0, kind: input, shape index: {}]
  %s1 = inlined_call_operand.vmem [shape: bf16[512,1152], index: 1, kind: input, shape index: {}]
  %s2 = inlined_call_operand.vmem [shape: bf16[1152,128], index: 2, kind: input, shape index: {}]
  %s3 = inlined_call_operand.vmem [shape: bf16[1152,128], index: 3, kind: input, shape index: {}]
  %s4 = inlined_call_operand.vmem [shape: f32[512,128], index: 4, kind: output, shape index: {0}]
  %s5 = inlined_call_operand.vmem [shape: f32[2,2,128], index: 5, kind: output, shape index: {1}]
  %6 = xla_tuple %s4, %s5
  %s7 = sld [smem:[#allocation0]]
  $region61: #{up_block_forward.6} parent=0
    _
  %s9 = ssub.s32 1, %s7
  %s10 = scalar_select 0, %s9, %s7
  loop: start=0, step=1, limit=4
  $region2: #{up_block_forward.6} parent=0 // loop_pre_header
    _
  $region3: #{up_block_forward.6} parent=0 // loop_header
    %s12 = sphi 0, %s16
    %p13 = scmp.ge.s32.totalorder %s12, 4
    %s19 = sphi 0, %s31
    %s20 = sphi 0, %s27
    %s21 = sphi 0, %s19
    %s22 = sphi 0, %s20
    %s23 = sphi 0, %s21
    %s24 = sphi 0, %s22
    %s36 = sphi 0, %s38
    %s39 = sphi 0, %s36
    %s40 = sphi 0, %s39
    %s56 = sphi 0, %s40
    %s64 = sphi 0, %s66
    %s67 = sphi 0, %s64
    %s68 = sphi 0, %s67
    %s84 = sphi 0, %s68
    %s88 = sphi 0, %s88
    %s90 = sphi 0, %s88
    %s91 = sphi 0, %s90
    %s105 = sphi 0, %s91
    %s109 = sphi 0, %s109
    %s111 = sphi 0, %s109
    %s112 = sphi 0, %s111
    %s126 = sphi 0, %s112
    %s134 = sphi 0, %s136
    %s137 = sphi 0, %s134
    %s138 = sphi 0, %s137
    %s154 = sphi 0, %s138
    %s160 = sphi 0, %s162
    %s163 = sphi 0, %s160
    %s164 = sphi 0, %s163
    %s180 = sphi 0, %s164
  $region4: #{up_block_forward.6} parent=0 // loop_header_branch
    %15 = sbr.rel (%p13) target = $region8
  $region5: #{up_block_forward.6} parent=0 // loop_body
    %s17 = ssub.s32 %s12, 1
    %s18 = ssub.s32 %s12, 2
    %s25 = sadd.s32 1, %s20
    %p26 = scmp.ge.s32.totalorder %s25, 1
    %s27 = scalar_select %p26, 0, %s25
    %s28 = sadd.s32 1, %s19
    %s29 = scalar_select %p26, %s28, %s19
    %p30 = scmp.ge.s32.totalorder %s29, 2
    %s31 = scalar_select %p30, 0, %s29
    %s32 = sadd.s32 %s19, %s20
    %s33 = sadd.s32 %s31, %s27
    %s34 = ssub.s32 %s32, %s33
    %p35 = scmp.eq.s32.totalorder %s34, 0
    %s37 = sadd.s32 %s36, 1
    %s38 = scalar_select %p35, %s36, %s37
    %p41 = pneg %p35
    %p42 = scmp.eq.s32.totalorder %s12, 1
    %p43 = por %p41, %p42
    %p44 = scmp.ne.s32.totalorder %s36, %s39
    %p45 = scmp.eq.s32.totalorder %s12, 0
    %p46 = por %p44, %p45
    %p47 = scmp.ne.s32.totalorder %s36, %s39
    %p48 = scmp.eq.s32.totalorder %s17, 1
    %p49 = por %p47, %p48
    %p50 = scmp.ne.s32.totalorder %s39, %s40
    %p51 = scmp.eq.s32.totalorder %s17, 0
    %p52 = por %p50, %p51
    %p53 = scmp.ne.s32.totalorder %s39, %s40
    %p54 = scmp.eq.s32.totalorder %s18, 1
    %p55 = por %p53, %p54
    %p57 = scmp.ne.s32.totalorder %s40, %s56
    %p58 = scmp.eq.s32.totalorder %s18, 0
    %p59 = por %p57, %p58
    %s60 = sadd.s32 %s19, %s20
    %s61 = sadd.s32 %s31, %s27
    %s62 = ssub.s32 %s60, %s61
    %p63 = scmp.eq.s32.totalorder %s62, 0
    %s65 = sadd.s32 %s64, 1
    %s66 = scalar_select %p63, %s64, %s65
    %p69 = pneg %p63
    %p70 = scmp.eq.s32.totalorder %s12, 1
    %p71 = por %p69, %p70
    %p72 = scmp.ne.s32.totalorder %s64, %s67
    %p73 = scmp.eq.s32.totalorder %s12, 0
    %p74 = por %p72, %p73
    %p75 = scmp.ne.s32.totalorder %s64, %s67
    %p76 = scmp.eq.s32.totalorder %s17, 1
    %p77 = por %p75, %p76
    %p78 = scmp.ne.s32.totalorder %s67, %s68
    %p79 = scmp.eq.s32.totalorder %s17, 0
    %p80 = por %p78, %p79
    %p81 = scmp.ne.s32.totalorder %s67, %s68
    %p82 = scmp.eq.s32.totalorder %s18, 1
    %p83 = por %p81, %p82
    %p85 = scmp.ne.s32.totalorder %s68, %s84
    %p86 = scmp.eq.s32.totalorder %s18, 0
    %p87 = por %p85, %p86
    %s89 = sadd.s32 %s88, 1
    %p92 = scmp.eq.s32.totalorder %s12, 1
    %p93 = scmp.ne.s32.totalorder %s88, %s90
    %p94 = scmp.eq.s32.totalorder %s12, 0
    %p95 = por %p93, %p94
    %p96 = scmp.ne.s32.totalorder %s88, %s90
    %p97 = scmp.eq.s32.totalorder %s17, 1
    %p98 = por %p96, %p97
    %p99 = scmp.ne.s32.totalorder %s90, %s91
    %p100 = scmp.eq.s32.totalorder %s17, 0
    %p101 = por %p99, %p100
    %p102 = scmp.ne.s32.totalorder %s90, %s91
    %p103 = scmp.eq.s32.totalorder %s18, 1
    %p104 = por %p102, %p103
    %p106 = scmp.ne.s32.totalorder %s91, %s105
    %p107 = scmp.eq.s32.totalorder %s18, 0
    %p108 = por %p106, %p107
    %s110 = sadd.s32 %s109, 1
    %p113 = scmp.eq.s32.totalorder %s12, 1
    %p114 = scmp.ne.s32.totalorder %s109, %s111
    %p115 = scmp.eq.s32.totalorder %s12, 0
    %p116 = por %p114, %p115
    %p117 = scmp.ne.s32.totalorder %s109, %s111
    %p118 = scmp.eq.s32.totalorder %s17, 1
    %p119 = por %p117, %p118
    %p120 = scmp.ne.s32.totalorder %s111, %s112
    %p121 = scmp.eq.s32.totalorder %s17, 0
    %p122 = por %p120, %p121
    %p123 = scmp.ne.s32.totalorder %s111, %s112
    %p124 = scmp.eq.s32.totalorder %s18, 1
    %p125 = por %p123, %p124
    %p127 = scmp.ne.s32.totalorder %s112, %s126
    %p128 = scmp.eq.s32.totalorder %s18, 0
    %p129 = por %p127, %p128
    %s130 = sadd.s32 %s19, %s20
    %s131 = sadd.s32 %s31, %s27
    %s132 = ssub.s32 %s130, %s131
    %p133 = scmp.eq.s32.totalorder %s132, 0
    %s135 = sadd.s32 %s134, 1
    %s136 = scalar_select %p133, %s134, %s135
    %p139 = pneg %p133
    %p140 = scmp.eq.s32.totalorder %s12, 1
    %p141 = por %p139, %p140
    %p142 = scmp.ne.s32.totalorder %s134, %s137
    %p143 = scmp.eq.s32.totalorder %s12, 0
    %p144 = por %p142, %p143
    %p145 = scmp.ne.s32.totalorder %s134, %s137
    %p146 = scmp.eq.s32.totalorder %s17, 1
    %p147 = por %p145, %p146
    %p148 = scmp.ne.s32.totalorder %s137, %s138
    %p149 = scmp.eq.s32.totalorder %s17, 0
    %p150 = por %p148, %p149
    %p151 = scmp.ne.s32.totalorder %s137, %s138
    %p152 = scmp.eq.s32.totalorder %s18, 1
    %p153 = por %p151, %p152
    %p155 = scmp.ne.s32.totalorder %s138, %s154
    %p156 = scmp.eq.s32.totalorder %s18, 0
    %p157 = por %p155, %p156
    %s158 = ssub.s32 %s19, %s31
    %p159 = scmp.eq.s32.totalorder %s158, 0
    %s161 = sadd.s32 %s160, 1
    %s162 = scalar_select %p159, %s160, %s161
    %p165 = pneg %p159
    %p166 = scmp.eq.s32.totalorder %s12, 1
    %p167 = por %p165, %p166
    %p168 = scmp.ne.s32.totalorder %s160, %s163
    %p169 = scmp.eq.s32.totalorder %s12, 0
    %p170 = por %p168, %p169
    %p171 = scmp.ne.s32.totalorder %s160, %s163
    %p172 = scmp.eq.s32.totalorder %s17, 1
    %p173 = por %p171, %p172
    %p174 = scmp.ne.s32.totalorder %s163, %s164
    %p175 = scmp.eq.s32.totalorder %s17, 0
    %p176 = por %p174, %p175
    %p177 = scmp.ne.s32.totalorder %s163, %s164
    %p178 = scmp.eq.s32.totalorder %s18, 1
    %p179 = por %p177, %p178
    %p181 = scmp.ne.s32.totalorder %s164, %s180
    %p182 = scmp.eq.s32.totalorder %s18, 0
    %p183 = por %p181, %p182
    %p184 = scmp.le.s32.totalorder 1, %s12
    %p185 = scmp.lt.s32.totalorder %s12, 3
    %p186 = pnand %p184, %p185
    %p187 = pneg %p186
    // Predicated region
    $region9: #{up_block_forward.6} parent=5 // pred_check
      _
    $region10: #{up_block_forward.6} parent=5 // pred_check_branch
      %189 = sbr.rel (%p186) target = $region12
    $region11: #{up_block_forward.6} parent=5 // pred_region
      %s190 = ssub.s32 %s12, 1
      // Predicated region
      $region13: #{up_block_forward.6} parent=11 // pred_check
        %p191 = pneg %p101
      $region14: #{up_block_forward.6} parent=11 // pred_check_branch
        %193 = sbr.rel (%p191) target = $region16
      $region15: #{up_block_forward.6} parent=11 // pred_region
        _
      $region16: #{up_block_forward.6} parent=11 // pred_fallthru
        _
      // Predicated region
      $region17: #{up_block_forward.6} parent=11 // pred_check
        %p194 = pneg %p122
      $region18: #{up_block_forward.6} parent=11 // pred_check_branch
        %196 = sbr.rel (%p194) target = $region20
      $region19: #{up_block_forward.6} parent=11 // pred_region
        _
      $region20: #{up_block_forward.6} parent=11 // pred_fallthru
        _
    $region12: #{up_block_forward.6} parent=5 // pred_fallthru
      _
    %p197 = scmp.lt.s32.totalorder %s12, 2
    // Predicated region
    $region21: #{up_block_forward.6} parent=5 // pred_check
      %p198 = pneg %p197
    $region22: #{up_block_forward.6} parent=5 // pred_check_branch
      %200 = sbr.rel (%p198) target = $region24
    $region23: #{up_block_forward.6} parent=5 // pred_region
      // Predicated region
      $region25: #{up_block_forward.6} parent=23 // pred_check
        %p201 = pneg %p46
      $region26: #{up_block_forward.6} parent=23 // pred_check_branch
        %203 = sbr.rel (%p201) target = $region28
      $region27: #{up_block_forward.6} parent=23 // pred_region
        %s204 = sadd.s32 %s19, %s20
        %s205 = smul.u32 32, %s204
        %p206 = scmp.lt.s32.totalorder %s205, 63
        %s207 = scalar_select %p206, %s205, 63
        %s208 = smul.addr %s207, 9
        %s209 = smul.addr %s208, 4
        %s210 = scalar_lea.vmem %s0, %s209
        %s211 = sadd.s32 %s19, %s20
        %s212 = smul.u32 32, %s211
      $region28: #{up_block_forward.6} parent=23 // pred_fallthru
        _
      // Predicated region
      $region29: #{up_block_forward.6} parent=23 // pred_check
        %p213 = pneg %p74
      $region30: #{up_block_forward.6} parent=23 // pred_check_branch
        %215 = sbr.rel (%p213) target = $region32
      $region31: #{up_block_forward.6} parent=23 // pred_region
        %s216 = sadd.s32 %s19, %s20
        %s217 = smul.u32 32, %s216
        %p218 = scmp.lt.s32.totalorder %s217, 63
        %s219 = scalar_select %p218, %s217, 63
        %s220 = smul.addr %s219, 9
        %s221 = smul.addr %s220, 4
        %s222 = scalar_lea.vmem %s1, %s221
        %s223 = sadd.s32 %s19, %s20
        %s224 = smul.u32 32, %s223
      $region32: #{up_block_forward.6} parent=23 // pred_fallthru
        _
    $region24: #{up_block_forward.6} parent=5 // pred_fallthru
      _
    %p225 = scmp.le.s32.totalorder 1, %s12
    %p226 = scmp.lt.s32.totalorder %s12, 3
    %p227 = pnand %p225, %p226
    %p228 = pneg %p227
    // Predicated region
    $region33: #{up_block_forward.6} parent=5 // pred_check
      _
    $region34: #{up_block_forward.6} parent=5 // pred_check_branch
      %230 = sbr.rel (%p227) target = $region36
    $region35: #{up_block_forward.6} parent=5 // pred_region
      %s231 = ssub.s32 %s12, 1
      %s232 = sadd.s32 %s21, %s22
      %s233 = smul.u32 32, %s232
      %p234 = scmp.lt.s32.totalorder %s233, 63
      %s235 = scalar_select %p234, %s233, 63
      %s236 = smul.addr %s235, 9
      %s237 = smul.addr %s236, 4
      %s238 = scalar_lea.vmem %s0, %s237
      %p239 = pneg %p52
      %p240 = pneg %p49
      %s241 = sadd.s32 %s21, %s22
      %s242 = smul.u32 32, %s241
      %p243 = scmp.lt.s32.totalorder %s242, 63
      %s244 = scalar_select %p243, %s242, 63
      %s245 = smul.addr %s244, 9
      %s246 = smul.addr %s245, 4
      %s247 = scalar_lea.vmem %s1, %s246
      %p248 = pneg %p80
      %p249 = pneg %p77
      %p250 = pneg %p101
      %p251 = pneg %p98
      %p252 = pneg %p122
      %p253 = pneg %p119
      %p254 = pneg %p150
      %p255 = pneg %p147
      %s256 = sadd.s32 %s21, %s22
      %s257 = smul.u32 32, %s256
      %p258 = scmp.lt.s32.totalorder %s257, 63
      %s259 = scalar_select %p258, %s257, 63
      %s260 = smul.addr %s259, 8
      %s261 = scalar_lea.vmem %s4, %s260
      %p262 = pneg %p176
      %p263 = pneg %p173
      %p264 = scmp.lt.s32.totalorder %s21, 1
      %s265 = scalar_select %p264, %s21, 1
      %s266 = smul.addr %s265, 2
      %s267 = scalar_lea.vmem %s5, %s266
      %s268 = sadd.s32 %s21, %s22
      %s269 = smul.u32 32, %s268
      %p270 = scmp.lt.s32.totalorder %s269, 63
      %s271 = scalar_select %p270, %s269, 63
      %s272 = smul.addr %s271, 9
      %s273 = smul.addr %s272, 4
      %s274 = scalar_lea.vmem %s0, %s273
      %s275 = sadd.s32 %s21, %s22
      %s276 = smul.u32 32, %s275
      %s277 = sadd.s32 %s21, %s22
      %s278 = smul.u32 32, %s277
      %p279 = scmp.lt.s32.totalorder %s278, 63
      %s280 = scalar_select %p279, %s278, 63
      %s281 = smul.addr %s280, 9
      %s282 = smul.addr %s281, 4
      %s283 = scalar_lea.vmem %s1, %s282
      %s284 = sadd.s32 %s21, %s22
      %s285 = smul.u32 32, %s284
      %s286 = sadd.s32 %s21, %s22
      %s287 = smul.u32 32, %s286
      %p288 = scmp.lt.s32.totalorder %s287, 63
      %s289 = scalar_select %p288, %s287, 63
      %s290 = smul.addr %s289, 8
      %s291 = scalar_lea.vmem %s4, %s290
      %s292 = sadd.s32 %s21, %s22
      %s293 = smul.u32 32, %s292
      %p294 = scmp.lt.s32.totalorder %s21, 1
      %s295 = scalar_select %p294, %s21, 1
      %s296 = smul.addr %s295, 2
      %s297 = scalar_lea.vmem %s5, %s296
      %v298 = vld [vmem:[%s274] sm:$0xff]
      %v299 = vld [vmem:[%s274 + $0x8] sm:$0xff]
      %v300 = vld [vmem:[%s274 + $0x10] sm:$0xff]
      %v301 = vld [vmem:[%s274 + $0x18] sm:$0xff]
      %v302 = vld [vmem:[%s274 + $0x20] sm:$0xf]
      %v303 = vld [vmem:[%s274 + $0x24] sm:$0xff]
      %v304 = vld [vmem:[%s274 + $0x2c] sm:$0xff]
      %v305 = vld [vmem:[%s274 + $0x34] sm:$0xff]
      %v306 = vld [vmem:[%s274 + $0x3c] sm:$0xff]
      %v307 = vld [vmem:[%s274 + $0x44] sm:$0xf]
      %v308 = vld [vmem:[%s274 + $0x48] sm:$0xff]
      %v309 = vld [vmem:[%s274 + $0x50] sm:$0xff]
      %v310 = vld [vmem:[%s274 + $0x58] sm:$0xff]
      %v311 = vld [vmem:[%s274 + $0x60] sm:$0xff]
      %v312 = vld [vmem:[%s274 + $0x68] sm:$0xf]
      %v313 = vld [vmem:[%s274 + $0x6c] sm:$0xff]
      %v314 = vld [vmem:[%s274 + $0x74] sm:$0xff]
      %v315 = vld [vmem:[%s274 + $0x7c] sm:$0xff]
      %v316 = vld [vmem:[%s274 + $0x84] sm:$0xff]
      %v317 = vld [vmem:[%s274 + $0x8c] sm:$0xf]
      %v318 = vld [vmem:[%s274 + $0x90] sm:$0xff]
      %v319 = vld [vmem:[%s274 + $0x98] sm:$0xff]
      %v320 = vld [vmem:[%s274 + $0xa0] sm:$0xff]
      %v321 = vld [vmem:[%s274 + $0xa8] sm:$0xff]
      %v322 = vld [vmem:[%s274 + $0xb0] sm:$0xf]
      %v323 = vld [vmem:[%s274 + $0xb4] sm:$0xff]
      %v324 = vld [vmem:[%s274 + $0xbc] sm:$0xff]
      %v325 = vld [vmem:[%s274 + $0xc4] sm:$0xff]
      %v326 = vld [vmem:[%s274 + $0xcc] sm:$0xff]
      %v327 = vld [vmem:[%s274 + $0xd4] sm:$0xf]
      %v328 = vld [vmem:[%s274 + $0xd8] sm:$0xff]
      %v329 = vld [vmem:[%s274 + $0xe0] sm:$0xff]
      %v330 = vld [vmem:[%s274 + $0xe8] sm:$0xff]
      %v331 = vld [vmem:[%s274 + $0xf0] sm:$0xff]
      %v332 = vld [vmem:[%s274 + $0xf8] sm:$0xf]
      %v333 = vld [vmem:[%s274 + $0xfc] sm:$0xff]
      %v334 = vld [vmem:[%s274 + $0x104] sm:$0xff]
      %v335 = vld [vmem:[%s274 + $0x10c] sm:$0xff]
      %v336 = vld [vmem:[%s274 + $0x114] sm:$0xff]
      %v337 = vld [vmem:[%s274 + $0x11c] sm:$0xf]
      %v338 = vld [vmem:[%s274 + $0x120] sm:$0xff]
      %v339 = vld [vmem:[%s274 + $0x128] sm:$0xff]
      %v340 = vld [vmem:[%s274 + $0x130] sm:$0xff]
      %v341 = vld [vmem:[%s274 + $0x138] sm:$0xff]
      %v342 = vld [vmem:[%s274 + $0x140] sm:$0xf]
      %v343 = vld [vmem:[%s274 + $0x144] sm:$0xff]
      %v344 = vld [vmem:[%s274 + $0x14c] sm:$0xff]
      %v345 = vld [vmem:[%s274 + $0x154] sm:$0xff]
      %v346 = vld [vmem:[%s274 + $0x15c] sm:$0xff]
      %v347 = vld [vmem:[%s274 + $0x164] sm:$0xf]
      %v348 = vld [vmem:[%s274 + $0x168] sm:$0xff]
      %v349 = vld [vmem:[%s274 + $0x170] sm:$0xff]
      %v350 = vld [vmem:[%s274 + $0x178] sm:$0xff]
      %v351 = vld [vmem:[%s274 + $0x180] sm:$0xff]
      %v352 = vld [vmem:[%s274 + $0x188] sm:$0xf]
      %v353 = vld [vmem:[%s274 + $0x18c] sm:$0xff]
      %v354 = vld [vmem:[%s274 + $0x194] sm:$0xff]
      %v355 = vld [vmem:[%s274 + $0x19c] sm:$0xff]
      %v356 = vld [vmem:[%s274 + $0x1a4] sm:$0xff]
      %v357 = vld [vmem:[%s274 + $0x1ac] sm:$0xf]
      %v358 = vld [vmem:[%s274 + $0x1b0] sm:$0xff]
      %v359 = vld [vmem:[%s274 + $0x1b8] sm:$0xff]
      %v360 = vld [vmem:[%s274 + $0x1c0] sm:$0xff]
      %v361 = vld [vmem:[%s274 + $0x1c8] sm:$0xff]
      %v362 = vld [vmem:[%s274 + $0x1d0] sm:$0xf]
      %v363 = vld [vmem:[%s274 + $0x1d4] sm:$0xff]
      %v364 = vld [vmem:[%s274 + $0x1dc] sm:$0xff]
      %v365 = vld [vmem:[%s274 + $0x1e4] sm:$0xff]
      %v366 = vld [vmem:[%s274 + $0x1ec] sm:$0xff]
      %v367 = vld [vmem:[%s274 + $0x1f4] sm:$0xf]
      %v368 = vld [vmem:[%s274 + $0x1f8] sm:$0xff]
      %v369 = vld [vmem:[%s274 + $0x200] sm:$0xff]
      %v370 = vld [vmem:[%s274 + $0x208] sm:$0xff]
      %v371 = vld [vmem:[%s274 + $0x210] sm:$0xff]
      %v372 = vld [vmem:[%s274 + $0x218] sm:$0xf]
      %v373 = vld [vmem:[%s274 + $0x21c] sm:$0xff]
      %v374 = vld [vmem:[%s274 + $0x224] sm:$0xff]
      %v375 = vld [vmem:[%s274 + $0x22c] sm:$0xff]
      %v376 = vld [vmem:[%s274 + $0x234] sm:$0xff]
      %v377 = vld [vmem:[%s274 + $0x23c] sm:$0xf]
      %v378 = vld [vmem:[%s274 + $0x240] sm:$0xff]
      %v379 = vld [vmem:[%s274 + $0x248] sm:$0xff]
      %v380 = vld [vmem:[%s274 + $0x250] sm:$0xff]
      %v381 = vld [vmem:[%s274 + $0x258] sm:$0xff]
      %v382 = vld [vmem:[%s274 + $0x260] sm:$0xf]
      %v383 = vld [vmem:[%s274 + $0x264] sm:$0xff]
      %v384 = vld [vmem:[%s274 + $0x26c] sm:$0xff]
      %v385 = vld [vmem:[%s274 + $0x274] sm:$0xff]
      %v386 = vld [vmem:[%s274 + $0x27c] sm:$0xff]
      %v387 = vld [vmem:[%s274 + $0x284] sm:$0xf]
      %v388 = vld [vmem:[%s274 + $0x288] sm:$0xff]
      %v389 = vld [vmem:[%s274 + $0x290] sm:$0xff]
      %v390 = vld [vmem:[%s274 + $0x298] sm:$0xff]
      %v391 = vld [vmem:[%s274 + $0x2a0] sm:$0xff]
      %v392 = vld [vmem:[%s274 + $0x2a8] sm:$0xf]
      %v393 = vld [vmem:[%s274 + $0x2ac] sm:$0xff]
      %v394 = vld [vmem:[%s274 + $0x2b4] sm:$0xff]
      %v395 = vld [vmem:[%s274 + $0x2bc] sm:$0xff]
      %v396 = vld [vmem:[%s274 + $0x2c4] sm:$0xff]
      %v397 = vld [vmem:[%s274 + $0x2cc] sm:$0xf]
      %v398 = vld [vmem:[%s274 + $0x2d0] sm:$0xff]
      %v399 = vld [vmem:[%s274 + $0x2d8] sm:$0xff]
      %v400 = vld [vmem:[%s274 + $0x2e0] sm:$0xff]
      %v401 = vld [vmem:[%s274 + $0x2e8] sm:$0xff]
      %v402 = vld [vmem:[%s274 + $0x2f0] sm:$0xf]
      %v403 = vld [vmem:[%s274 + $0x2f4] sm:$0xff]
      %v404 = vld [vmem:[%s274 + $0x2fc] sm:$0xff]
      %v405 = vld [vmem:[%s274 + $0x304] sm:$0xff]
      %v406 = vld [vmem:[%s274 + $0x30c] sm:$0xff]
      %v407 = vld [vmem:[%s274 + $0x314] sm:$0xf]
      %v408 = vld [vmem:[%s274 + $0x318] sm:$0xff]
      %v409 = vld [vmem:[%s274 + $0x320] sm:$0xff]
      %v410 = vld [vmem:[%s274 + $0x328] sm:$0xff]
      %v411 = vld [vmem:[%s274 + $0x330] sm:$0xff]
      %v412 = vld [vmem:[%s274 + $0x338] sm:$0xf]
      %v413 = vld [vmem:[%s274 + $0x33c] sm:$0xff]
      %v414 = vld [vmem:[%s274 + $0x344] sm:$0xff]
      %v415 = vld [vmem:[%s274 + $0x34c] sm:$0xff]
      %v416 = vld [vmem:[%s274 + $0x354] sm:$0xff]
      %v417 = vld [vmem:[%s274 + $0x35c] sm:$0xf]
      %v418 = vld [vmem:[%s274 + $0x360] sm:$0xff]
      %v419 = vld [vmem:[%s274 + $0x368] sm:$0xff]
      %v420 = vld [vmem:[%s274 + $0x370] sm:$0xff]
      %v421 = vld [vmem:[%s274 + $0x378] sm:$0xff]
      %v422 = vld [vmem:[%s274 + $0x380] sm:$0xf]
      %v423 = vld [vmem:[%s274 + $0x384] sm:$0xff]
      %v424 = vld [vmem:[%s274 + $0x38c] sm:$0xff]
      %v425 = vld [vmem:[%s274 + $0x394] sm:$0xff]
      %v426 = vld [vmem:[%s274 + $0x39c] sm:$0xff]
      %v427 = vld [vmem:[%s274 + $0x3a4] sm:$0xf]
      %v428 = vld [vmem:[%s274 + $0x3a8] sm:$0xff]
      %v429 = vld [vmem:[%s274 + $0x3b0] sm:$0xff]
      %v430 = vld [vmem:[%s274 + $0x3b8] sm:$0xff]
      %v431 = vld [vmem:[%s274 + $0x3c0] sm:$0xff]
      %v432 = vld [vmem:[%s274 + $0x3c8] sm:$0xf]
      %v433 = vld [vmem:[%s274 + $0x3cc] sm:$0xff]
      %v434 = vld [vmem:[%s274 + $0x3d4] sm:$0xff]
      %v435 = vld [vmem:[%s274 + $0x3dc] sm:$0xff]
      %v436 = vld [vmem:[%s274 + $0x3e4] sm:$0xff]
      %v437 = vld [vmem:[%s274 + $0x3ec] sm:$0xf]
      %v438 = vld [vmem:[%s274 + $0x3f0] sm:$0xff]
      %v439 = vld [vmem:[%s274 + $0x3f8] sm:$0xff]
      %v440 = vld [vmem:[%s274 + $0x400] sm:$0xff]
      %v441 = vld [vmem:[%s274 + $0x408] sm:$0xff]
      %v442 = vld [vmem:[%s274 + $0x410] sm:$0xf]
      %v443 = vld [vmem:[%s274 + $0x414] sm:$0xff]
      %v444 = vld [vmem:[%s274 + $0x41c] sm:$0xff]
      %v445 = vld [vmem:[%s274 + $0x424] sm:$0xff]
      %v446 = vld [vmem:[%s274 + $0x42c] sm:$0xff]
      %v447 = vld [vmem:[%s274 + $0x434] sm:$0xf]
      %v448 = vld [vmem:[%s274 + $0x438] sm:$0xff]
      %v449 = vld [vmem:[%s274 + $0x440] sm:$0xff]
      %v450 = vld [vmem:[%s274 + $0x448] sm:$0xff]
      %v451 = vld [vmem:[%s274 + $0x450] sm:$0xff]
      %v452 = vld [vmem:[%s274 + $0x458] sm:$0xf]
      %v453 = vld [vmem:[%s274 + $0x45c] sm:$0xff]
      %v454 = vld [vmem:[%s274 + $0x464] sm:$0xff]
      %v455 = vld [vmem:[%s274 + $0x46c] sm:$0xff]
      %v456 = vld [vmem:[%s274 + $0x474] sm:$0xff]
      %v457 = vld [vmem:[%s274 + $0x47c] sm:$0xf]
      %v458 = vld [vmem:[%s2] sm:$0xf]
      %v459 = vld [vmem:[%s2 + $0x4] sm:$0xf]
      %v460 = vld [vmem:[%s2 + $0x8] sm:$0xf]
      %v461 = vld [vmem:[%s2 + $0xc] sm:$0xf]
      %v462 = vld [vmem:[%s2 + $0x10] sm:$0xf]
      %v463 = vld [vmem:[%s2 + $0x14] sm:$0xf]
      %v464 = vld [vmem:[%s2 + $0x18] sm:$0xf]
      %v465 = vld [vmem:[%s2 + $0x1c] sm:$0xf]
      %v466 = vld [vmem:[%s2 + $0x20] sm:$0xf]
      %v467 = vld [vmem:[%s2 + $0x24] sm:$0xf]
      %v468 = vld [vmem:[%s2 + $0x28] sm:$0xf]
      %v469 = vld [vmem:[%s2 + $0x2c] sm:$0xf]
      %v470 = vld [vmem:[%s2 + $0x30] sm:$0xf]
      %v471 = vld [vmem:[%s2 + $0x34] sm:$0xf]
      %v472 = vld [vmem:[%s2 + $0x38] sm:$0xf]
      %v473 = vld [vmem:[%s2 + $0x3c] sm:$0xf]
      %v474 = vld [vmem:[%s2 + $0x40] sm:$0xf]
      %v475 = vld [vmem:[%s2 + $0x44] sm:$0xf]
      %v476 = vld [vmem:[%s2 + $0x48] sm:$0xf]
      %v477 = vld [vmem:[%s2 + $0x4c] sm:$0xf]
      %v478 = vld [vmem:[%s2 + $0x50] sm:$0xf]
      %v479 = vld [vmem:[%s2 + $0x54] sm:$0xf]
      %v480 = vld [vmem:[%s2 + $0x58] sm:$0xf]
      %v481 = vld [vmem:[%s2 + $0x5c] sm:$0xf]
      %v482 = vld [vmem:[%s2 + $0x60] sm:$0xf]
      %v483 = vld [vmem:[%s2 + $0x64] sm:$0xf]
      %v484 = vld [vmem:[%s2 + $0x68] sm:$0xf]
      %v485 = vld [vmem:[%s2 + $0x6c] sm:$0xf]
      %v486 = vld [vmem:[%s2 + $0x70] sm:$0xf]
      %v487 = vld [vmem:[%s2 + $0x74] sm:$0xf]
      %v488 = vld [vmem:[%s2 + $0x78] sm:$0xf]
      %v489 = vld [vmem:[%s2 + $0x7c] sm:$0xf]
      %v490 = vld [vmem:[%s2 + $0x80] sm:$0xf]
      %v491 = vld [vmem:[%s2 + $0x84] sm:$0xf]
      %v492 = vld [vmem:[%s2 + $0x88] sm:$0xf]
      %v493 = vld [vmem:[%s2 + $0x8c] sm:$0xf]
      %v494 = vld [vmem:[%s2 + $0x90] sm:$0xf]
      %v495 = vld [vmem:[%s2 + $0x94] sm:$0xf]
      %v496 = vld [vmem:[%s2 + $0x98] sm:$0xf]
      %v497 = vld [vmem:[%s2 + $0x9c] sm:$0xf]
      %v498 = vld [vmem:[%s2 + $0xa0] sm:$0xf]
      %v499 = vld [vmem:[%s2 + $0xa4] sm:$0xf]
      %v500 = vld [vmem:[%s2 + $0xa8] sm:$0xf]
      %v501 = vld [vmem:[%s2 + $0xac] sm:$0xf]
      %v502 = vld [vmem:[%s2 + $0xb0] sm:$0xf]
      %v503 = vld [vmem:[%s2 + $0xb4] sm:$0xf]
      %v504 = vld [vmem:[%s2 + $0xb8] sm:$0xf]
      %v505 = vld [vmem:[%s2 + $0xbc] sm:$0xf]
      %v506 = vld [vmem:[%s2 + $0xc0] sm:$0xf]
      %v507 = vld [vmem:[%s2 + $0xc4] sm:$0xf]
      %v508 = vld [vmem:[%s2 + $0xc8] sm:$0xf]
      %v509 = vld [vmem:[%s2 + $0xcc] sm:$0xf]
      %v510 = vld [vmem:[%s2 + $0xd0] sm:$0xf]
      %v511 = vld [vmem:[%s2 + $0xd4] sm:$0xf]
      %v512 = vld [vmem:[%s2 + $0xd8] sm:$0xf]
      %v513 = vld [vmem:[%s2 + $0xdc] sm:$0xf]
      %v514 = vld [vmem:[%s2 + $0xe0] sm:$0xf]
      %v515 = vld [vmem:[%s2 + $0xe4] sm:$0xf]
      %v516 = vld [vmem:[%s2 + $0xe8] sm:$0xf]
      %v517 = vld [vmem:[%s2 + $0xec] sm:$0xf]
      %v518 = vld [vmem:[%s2 + $0xf0] sm:$0xf]
      %v519 = vld [vmem:[%s2 + $0xf4] sm:$0xf]
      %v520 = vld [vmem:[%s2 + $0xf8] sm:$0xf]
      %v521 = vld [vmem:[%s2 + $0xfc] sm:$0xf]
      %v522 = vld [vmem:[%s2 + $0x100] sm:$0xf]
      %v523 = vld [vmem:[%s2 + $0x104] sm:$0xf]
      %v524 = vld [vmem:[%s2 + $0x108] sm:$0xf]
      %v525 = vld [vmem:[%s2 + $0x10c] sm:$0xf]
      %v526 = vld [vmem:[%s2 + $0x110] sm:$0xf]
      %v527 = vld [vmem:[%s2 + $0x114] sm:$0xf]
      %v528 = vld [vmem:[%s2 + $0x118] sm:$0xf]
      %v529 = vld [vmem:[%s2 + $0x11c] sm:$0xf]
      %v530 = vld [vmem:[%s2 + $0x120] sm:$0xf]
      %v531 = vld [vmem:[%s2 + $0x124] sm:$0xf]
      %v532 = vld [vmem:[%s2 + $0x128] sm:$0xf]
      %v533 = vld [vmem:[%s2 + $0x12c] sm:$0xf]
      %v534 = vld [vmem:[%s2 + $0x130] sm:$0xf]
      %v535 = vld [vmem:[%s2 + $0x134] sm:$0xf]
      %v536 = vld [vmem:[%s2 + $0x138] sm:$0xf]
      %v537 = vld [vmem:[%s2 + $0x13c] sm:$0xf]
      %v538 = vld [vmem:[%s2 + $0x140] sm:$0xf]
      %v539 = vld [vmem:[%s2 + $0x144] sm:$0xf]
      %v540 = vld [vmem:[%s2 + $0x148] sm:$0xf]
      %v541 = vld [vmem:[%s2 + $0x14c] sm:$0xf]
      %v542 = vld [vmem:[%s2 + $0x150] sm:$0xf]
      %v543 = vld [vmem:[%s2 + $0x154] sm:$0xf]
      %v544 = vld [vmem:[%s2 + $0x158] sm:$0xf]
      %v545 = vld [vmem:[%s2 + $0x15c] sm:$0xf]
      %v546 = vld [vmem:[%s2 + $0x160] sm:$0xf]
      %v547 = vld [vmem:[%s2 + $0x164] sm:$0xf]
      %v548 = vld [vmem:[%s2 + $0x168] sm:$0xf]
      %v549 = vld [vmem:[%s2 + $0x16c] sm:$0xf]
      %v550 = vld [vmem:[%s2 + $0x170] sm:$0xf]
      %v551 = vld [vmem:[%s2 + $0x174] sm:$0xf]
      %v552 = vld [vmem:[%s2 + $0x178] sm:$0xf]
      %v553 = vld [vmem:[%s2 + $0x17c] sm:$0xf]
      %v554 = vld [vmem:[%s2 + $0x180] sm:$0xf]
      %v555 = vld [vmem:[%s2 + $0x184] sm:$0xf]
      %v556 = vld [vmem:[%s2 + $0x188] sm:$0xf]
      %v557 = vld [vmem:[%s2 + $0x18c] sm:$0xf]
      %v558 = vld [vmem:[%s2 + $0x190] sm:$0xf]
      %v559 = vld [vmem:[%s2 + $0x194] sm:$0xf]
      %v560 = vld [vmem:[%s2 + $0x198] sm:$0xf]
      %v561 = vld [vmem:[%s2 + $0x19c] sm:$0xf]
      %v562 = vld [vmem:[%s2 + $0x1a0] sm:$0xf]
      %v563 = vld [vmem:[%s2 + $0x1a4] sm:$0xf]
      %v564 = vld [vmem:[%s2 + $0x1a8] sm:$0xf]
      %v565 = vld [vmem:[%s2 + $0x1ac] sm:$0xf]
      %v566 = vld [vmem:[%s2 + $0x1b0] sm:$0xf]
      %v567 = vld [vmem:[%s2 + $0x1b4] sm:$0xf]
      %v568 = vld [vmem:[%s2 + $0x1b8] sm:$0xf]
      %v569 = vld [vmem:[%s2 + $0x1bc] sm:$0xf]
      %v570 = vld [vmem:[%s2 + $0x1c0] sm:$0xf]
      %v571 = vld [vmem:[%s2 + $0x1c4] sm:$0xf]
      %v572 = vld [vmem:[%s2 + $0x1c8] sm:$0xf]
      %v573 = vld [vmem:[%s2 + $0x1cc] sm:$0xf]
      %v574 = vld [vmem:[%s2 + $0x1d0] sm:$0xf]
      %v575 = vld [vmem:[%s2 + $0x1d4] sm:$0xf]
      %v576 = vld [vmem:[%s2 + $0x1d8] sm:$0xf]
      %v577 = vld [vmem:[%s2 + $0x1dc] sm:$0xf]
      %v578 = vld [vmem:[%s2 + $0x1e0] sm:$0xf]
      %v579 = vld [vmem:[%s2 + $0x1e4] sm:$0xf]
      %v580 = vld [vmem:[%s2 + $0x1e8] sm:$0xf]
      %v581 = vld [vmem:[%s2 + $0x1ec] sm:$0xf]
      %v582 = vld [vmem:[%s2 + $0x1f0] sm:$0xf]
      %v583 = vld [vmem:[%s2 + $0x1f4] sm:$0xf]
      %v584 = vld [vmem:[%s2 + $0x1f8] sm:$0xf]
      %v585 = vld [vmem:[%s2 + $0x1fc] sm:$0xf]
      %v586 = vld [vmem:[%s2 + $0x200] sm:$0xf]
      %v587 = vld [vmem:[%s2 + $0x204] sm:$0xf]
      %v588 = vld [vmem:[%s2 + $0x208] sm:$0xf]
      %v589 = vld [vmem:[%s2 + $0x20c] sm:$0xf]
      %v590 = vld [vmem:[%s2 + $0x210] sm:$0xf]
      %v591 = vld [vmem:[%s2 + $0x214] sm:$0xf]
      %v592 = vld [vmem:[%s2 + $0x218] sm:$0xf]
      %v593 = vld [vmem:[%s2 + $0x21c] sm:$0xf]
      %v594 = vld [vmem:[%s2 + $0x220] sm:$0xf]
      %v595 = vld [vmem:[%s2 + $0x224] sm:$0xf]
      %v596 = vld [vmem:[%s2 + $0x228] sm:$0xf]
      %v597 = vld [vmem:[%s2 + $0x22c] sm:$0xf]
      %v598 = vld [vmem:[%s2 + $0x230] sm:$0xf]
      %v599 = vld [vmem:[%s2 + $0x234] sm:$0xf]
      %v600 = vld [vmem:[%s2 + $0x238] sm:$0xf]
      %v601 = vld [vmem:[%s2 + $0x23c] sm:$0xf]
      %v602 = vld [vmem:[%s283] sm:$0xff]
      %v603 = vld [vmem:[%s283 + $0x8] sm:$0xff]
      %v604 = vld [vmem:[%s283 + $0x10] sm:$0xff]
      %v605 = vld [vmem:[%s283 + $0x18] sm:$0xff]
      %v606 = vld [vmem:[%s283 + $0x20] sm:$0xf]
      %v607 = vld [vmem:[%s283 + $0x24] sm:$0xff]
      %v608 = vld [vmem:[%s283 + $0x2c] sm:$0xff]
      %v609 = vld [vmem:[%s283 + $0x34] sm:$0xff]
      %v610 = vld [vmem:[%s283 + $0x3c] sm:$0xff]
      %v611 = vld [vmem:[%s283 + $0x44] sm:$0xf]
      %v612 = vld [vmem:[%s283 + $0x48] sm:$0xff]
      %v613 = vld [vmem:[%s283 + $0x50] sm:$0xff]
      %v614 = vld [vmem:[%s283 + $0x58] sm:$0xff]
      %v615 = vld [vmem:[%s283 + $0x60] sm:$0xff]
      %v616 = vld [vmem:[%s283 + $0x68] sm:$0xf]
      %v617 = vld [vmem:[%s283 + $0x6c] sm:$0xff]
      %v618 = vld [vmem:[%s283 + $0x74] sm:$0xff]
      %v619 = vld [vmem:[%s283 + $0x7c] sm:$0xff]
      %v620 = vld [vmem:[%s283 + $0x84] sm:$0xff]
      %v621 = vld [vmem:[%s283 + $0x8c] sm:$0xf]
      %v622 = vld [vmem:[%s283 + $0x90] sm:$0xff]
      %v623 = vld [vmem:[%s283 + $0x98] sm:$0xff]
      %v624 = vld [vmem:[%s283 + $0xa0] sm:$0xff]
      %v625 = vld [vmem:[%s283 + $0xa8] sm:$0xff]
      %v626 = vld [vmem:[%s283 + $0xb0] sm:$0xf]
      %v627 = vld [vmem:[%s283 + $0xb4] sm:$0xff]
      %v628 = vld [vmem:[%s283 + $0xbc] sm:$0xff]
      %v629 = vld [vmem:[%s283 + $0xc4] sm:$0xff]
      %v630 = vld [vmem:[%s283 + $0xcc] sm:$0xff]
      %v631 = vld [vmem:[%s283 + $0xd4] sm:$0xf]
      %v632 = vld [vmem:[%s283 + $0xd8] sm:$0xff]
      %v633 = vld [vmem:[%s283 + $0xe0] sm:$0xff]
      %v634 = vld [vmem:[%s283 + $0xe8] sm:$0xff]
      %v635 = vld [vmem:[%s283 + $0xf0] sm:$0xff]
      %v636 = vld [vmem:[%s283 + $0xf8] sm:$0xf]
      %v637 = vld [vmem:[%s283 + $0xfc] sm:$0xff]
      %v638 = vld [vmem:[%s283 + $0x104] sm:$0xff]
      %v639 = vld [vmem:[%s283 + $0x10c] sm:$0xff]
      %v640 = vld [vmem:[%s283 + $0x114] sm:$0xff]
      %v641 = vld [vmem:[%s283 + $0x11c] sm:$0xf]
      %v642 = vld [vmem:[%s283 + $0x120] sm:$0xff]
      %v643 = vld [vmem:[%s283 + $0x128] sm:$0xff]
      %v644 = vld [vmem:[%s283 + $0x130] sm:$0xff]
      %v645 = vld [vmem:[%s283 + $0x138] sm:$0xff]
      %v646 = vld [vmem:[%s283 + $0x140] sm:$0xf]
      %v647 = vld [vmem:[%s283 + $0x144] sm:$0xff]
      %v648 = vld [vmem:[%s283 + $0x14c] sm:$0xff]
      %v649 = vld [vmem:[%s283 + $0x154] sm:$0xff]
      %v650 = vld [vmem:[%s283 + $0x15c] sm:$0xff]
      %v651 = vld [vmem:[%s283 + $0x164] sm:$0xf]
      %v652 = vld [vmem:[%s283 + $0x168] sm:$0xff]
      %v653 = vld [vmem:[%s283 + $0x170] sm:$0xff]
      %v654 = vld [vmem:[%s283 + $0x178] sm:$0xff]
      %v655 = vld [vmem:[%s283 + $0x180] sm:$0xff]
      %v656 = vld [vmem:[%s283 + $0x188] sm:$0xf]
      %v657 = vld [vmem:[%s283 + $0x18c] sm:$0xff]
      %v658 = vld [vmem:[%s283 + $0x194] sm:$0xff]
      %v659 = vld [vmem:[%s283 + $0x19c] sm:$0xff]
      %v660 = vld [vmem:[%s283 + $0x1a4] sm:$0xff]
      %v661 = vld [vmem:[%s283 + $0x1ac] sm:$0xf]
      %v662 = vld [vmem:[%s283 + $0x1b0] sm:$0xff]
      %v663 = vld [vmem:[%s283 + $0x1b8] sm:$0xff]
      %v664 = vld [vmem:[%s283 + $0x1c0] sm:$0xff]
      %v665 = vld [vmem:[%s283 + $0x1c8] sm:$0xff]
      %v666 = vld [vmem:[%s283 + $0x1d0] sm:$0xf]
      %v667 = vld [vmem:[%s283 + $0x1d4] sm:$0xff]
      %v668 = vld [vmem:[%s283 + $0x1dc] sm:$0xff]
      %v669 = vld [vmem:[%s283 + $0x1e4] sm:$0xff]
      %v670 = vld [vmem:[%s283 + $0x1ec] sm:$0xff]
      %v671 = vld [vmem:[%s283 + $0x1f4] sm:$0xf]
      %v672 = vld [vmem:[%s283 + $0x1f8] sm:$0xff]
      %v673 = vld [vmem:[%s283 + $0x200] sm:$0xff]
      %v674 = vld [vmem:[%s283 + $0x208] sm:$0xff]
      %v675 = vld [vmem:[%s283 + $0x210] sm:$0xff]
      %v676 = vld [vmem:[%s283 + $0x218] sm:$0xf]
      %v677 = vld [vmem:[%s283 + $0x21c] sm:$0xff]
      %v678 = vld [vmem:[%s283 + $0x224] sm:$0xff]
      %v679 = vld [vmem:[%s283 + $0x22c] sm:$0xff]
      %v680 = vld [vmem:[%s283 + $0x234] sm:$0xff]
      %v681 = vld [vmem:[%s283 + $0x23c] sm:$0xf]
      %v682 = vld [vmem:[%s283 + $0x240] sm:$0xff]
      %v683 = vld [vmem:[%s283 + $0x248] sm:$0xff]
      %v684 = vld [vmem:[%s283 + $0x250] sm:$0xff]
      %v685 = vld [vmem:[%s283 + $0x258] sm:$0xff]
      %v686 = vld [vmem:[%s283 + $0x260] sm:$0xf]
      %v687 = vld [vmem:[%s283 + $0x264] sm:$0xff]
      %v688 = vld [vmem:[%s283 + $0x26c] sm:$0xff]
      %v689 = vld [vmem:[%s283 + $0x274] sm:$0xff]
      %v690 = vld [vmem:[%s283 + $0x27c] sm:$0xff]
      %v691 = vld [vmem:[%s283 + $0x284] sm:$0xf]
      %v692 = vld [vmem:[%s283 + $0x288] sm:$0xff]
      %v693 = vld [vmem:[%s283 + $0x290] sm:$0xff]
      %v694 = vld [vmem:[%s283 + $0x298] sm:$0xff]
      %v695 = vld [vmem:[%s283 + $0x2a0] sm:$0xff]
      %v696 = vld [vmem:[%s283 + $0x2a8] sm:$0xf]
      %v697 = vld [vmem:[%s283 + $0x2ac] sm:$0xff]
      %v698 = vld [vmem:[%s283 + $0x2b4] sm:$0xff]
      %v699 = vld [vmem:[%s283 + $0x2bc] sm:$0xff]
      %v700 = vld [vmem:[%s283 + $0x2c4] sm:$0xff]
      %v701 = vld [vmem:[%s283 + $0x2cc] sm:$0xf]
      %v702 = vld [vmem:[%s283 + $0x2d0] sm:$0xff]
      %v703 = vld [vmem:[%s283 + $0x2d8] sm:$0xff]
      %v704 = vld [vmem:[%s283 + $0x2e0] sm:$0xff]
      %v705 = vld [vmem:[%s283 + $0x2e8] sm:$0xff]
      %v706 = vld [vmem:[%s283 + $0x2f0] sm:$0xf]
      %v707 = vld [vmem:[%s283 + $0x2f4] sm:$0xff]
      %v708 = vld [vmem:[%s283 + $0x2fc] sm:$0xff]
      %v709 = vld [vmem:[%s283 + $0x304] sm:$0xff]
      %v710 = vld [vmem:[%s283 + $0x30c] sm:$0xff]
      %v711 = vld [vmem:[%s283 + $0x314] sm:$0xf]
      %v712 = vld [vmem:[%s283 + $0x318] sm:$0xff]
      %v713 = vld [vmem:[%s283 + $0x320] sm:$0xff]
      %v714 = vld [vmem:[%s283 + $0x328] sm:$0xff]
      %v715 = vld [vmem:[%s283 + $0x330] sm:$0xff]
      %v716 = vld [vmem:[%s283 + $0x338] sm:$0xf]
      %v717 = vld [vmem:[%s283 + $0x33c] sm:$0xff]
      %v718 = vld [vmem:[%s283 + $0x344] sm:$0xff]
      %v719 = vld [vmem:[%s283 + $0x34c] sm:$0xff]
      %v720 = vld [vmem:[%s283 + $0x354] sm:$0xff]
      %v721 = vld [vmem:[%s283 + $0x35c] sm:$0xf]
      %v722 = vld [vmem:[%s283 + $0x360] sm:$0xff]
      %v723 = vld [vmem:[%s283 + $0x368] sm:$0xff]
      %v724 = vld [vmem:[%s283 + $0x370] sm:$0xff]
      %v725 = vld [vmem:[%s283 + $0x378] sm:$0xff]
      %v726 = vld [vmem:[%s283 + $0x380] sm:$0xf]
      %v727 = vld [vmem:[%s283 + $0x384] sm:$0xff]
      %v728 = vld [vmem:[%s283 + $0x38c] sm:$0xff]
      %v729 = vld [vmem:[%s283 + $0x394] sm:$0xff]
      %v730 = vld [vmem:[%s283 + $0x39c] sm:$0xff]
      %v731 = vld [vmem:[%s283 + $0x3a4] sm:$0xf]
      %v732 = vld [vmem:[%s283 + $0x3a8] sm:$0xff]
      %v733 = vld [vmem:[%s283 + $0x3b0] sm:$0xff]
      %v734 = vld [vmem:[%s283 + $0x3b8] sm:$0xff]
      %v735 = vld [vmem:[%s283 + $0x3c0] sm:$0xff]
      %v736 = vld [vmem:[%s283 + $0x3c8] sm:$0xf]
      %v737 = vld [vmem:[%s283 + $0x3cc] sm:$0xff]
      %v738 = vld [vmem:[%s283 + $0x3d4] sm:$0xff]
      %v739 = vld [vmem:[%s283 + $0x3dc] sm:$0xff]
      %v740 = vld [vmem:[%s283 + $0x3e4] sm:$0xff]
      %v741 = vld [vmem:[%s283 + $0x3ec] sm:$0xf]
      %v742 = vld [vmem:[%s283 + $0x3f0] sm:$0xff]
      %v743 = vld [vmem:[%s283 + $0x3f8] sm:$0xff]
      %v744 = vld [vmem:[%s283 + $0x400] sm:$0xff]
      %v745 = vld [vmem:[%s283 + $0x408] sm:$0xff]
      %v746 = vld [vmem:[%s283 + $0x410] sm:$0xf]
      %v747 = vld [vmem:[%s283 + $0x414] sm:$0xff]
      %v748 = vld [vmem:[%s283 + $0x41c] sm:$0xff]
      %v749 = vld [vmem:[%s283 + $0x424] sm:$0xff]
      %v750 = vld [vmem:[%s283 + $0x42c] sm:$0xff]
      %v751 = vld [vmem:[%s283 + $0x434] sm:$0xf]
      %v752 = vld [vmem:[%s283 + $0x438] sm:$0xff]
      %v753 = vld [vmem:[%s283 + $0x440] sm:$0xff]
      %v754 = vld [vmem:[%s283 + $0x448] sm:$0xff]
      %v755 = vld [vmem:[%s283 + $0x450] sm:$0xff]
      %v756 = vld [vmem:[%s283 + $0x458] sm:$0xf]
      %v757 = vld [vmem:[%s283 + $0x45c] sm:$0xff]
      %v758 = vld [vmem:[%s283 + $0x464] sm:$0xff]
      %v759 = vld [vmem:[%s283 + $0x46c] sm:$0xff]
      %v760 = vld [vmem:[%s283 + $0x474] sm:$0xff]
      %v761 = vld [vmem:[%s283 + $0x47c] sm:$0xf]
      %v762 = vld [vmem:[%s3] sm:$0xf]
      %v763 = vld [vmem:[%s3 + $0x4] sm:$0xf]
      %v764 = vld [vmem:[%s3 + $0x8] sm:$0xf]
      %v765 = vld [vmem:[%s3 + $0xc] sm:$0xf]
      %v766 = vld [vmem:[%s3 + $0x10] sm:$0xf]
      %v767 = vld [vmem:[%s3 + $0x14] sm:$0xf]
      %v768 = vld [vmem:[%s3 + $0x18] sm:$0xf]
      %v769 = vld [vmem:[%s3 + $0x1c] sm:$0xf]
      %v770 = vld [vmem:[%s3 + $0x20] sm:$0xf]
      %v771 = vld [vmem:[%s3 + $0x24] sm:$0xf]
      %v772 = vld [vmem:[%s3 + $0x28] sm:$0xf]
      %v773 = vld [vmem:[%s3 + $0x2c] sm:$0xf]
      %v774 = vld [vmem:[%s3 + $0x30] sm:$0xf]
      %v775 = vld [vmem:[%s3 + $0x34] sm:$0xf]
      %v776 = vld [vmem:[%s3 + $0x38] sm:$0xf]
      %v777 = vld [vmem:[%s3 + $0x3c] sm:$0xf]
      %v778 = vld [vmem:[%s3 + $0x40] sm:$0xf]
      %v779 = vld [vmem:[%s3 + $0x44] sm:$0xf]
      %v780 = vld [vmem:[%s3 + $0x48] sm:$0xf]
      %v781 = vld [vmem:[%s3 + $0x4c] sm:$0xf]
      %v782 = vld [vmem:[%s3 + $0x50] sm:$0xf]
      %v783 = vld [vmem:[%s3 + $0x54] sm:$0xf]
      %v784 = vld [vmem:[%s3 + $0x58] sm:$0xf]
      %v785 = vld [vmem:[%s3 + $0x5c] sm:$0xf]
      %v786 = vld [vmem:[%s3 + $0x60] sm:$0xf]
      %v787 = vld [vmem:[%s3 + $0x64] sm:$0xf]
      %v788 = vld [vmem:[%s3 + $0x68] sm:$0xf]
      %v789 = vld [vmem:[%s3 + $0x6c] sm:$0xf]
      %v790 = vld [vmem:[%s3 + $0x70] sm:$0xf]
      %v791 = vld [vmem:[%s3 + $0x74] sm:$0xf]
      %v792 = vld [vmem:[%s3 + $0x78] sm:$0xf]
      %v793 = vld [vmem:[%s3 + $0x7c] sm:$0xf]
      %v794 = vld [vmem:[%s3 + $0x80] sm:$0xf]
      %v795 = vld [vmem:[%s3 + $0x84] sm:$0xf]
      %v796 = vld [vmem:[%s3 + $0x88] sm:$0xf]
      %v797 = vld [vmem:[%s3 + $0x8c] sm:$0xf]
      %v798 = vld [vmem:[%s3 + $0x90] sm:$0xf]
      %v799 = vld [vmem:[%s3 + $0x94] sm:$0xf]
      %v800 = vld [vmem:[%s3 + $0x98] sm:$0xf]
      %v801 = vld [vmem:[%s3 + $0x9c] sm:$0xf]
      %v802 = vld [vmem:[%s3 + $0xa0] sm:$0xf]
      %v803 = vld [vmem:[%s3 + $0xa4] sm:$0xf]
      %v804 = vld [vmem:[%s3 + $0xa8] sm:$0xf]
      %v805 = vld [vmem:[%s3 + $0xac] sm:$0xf]
      %v806 = vld [vmem:[%s3 + $0xb0] sm:$0xf]
      %v807 = vld [vmem:[%s3 + $0xb4] sm:$0xf]
      %v808 = vld [vmem:[%s3 + $0xb8] sm:$0xf]
      %v809 = vld [vmem:[%s3 + $0xbc] sm:$0xf]
      %v810 = vld [vmem:[%s3 + $0xc0] sm:$0xf]
      %v811 = vld [vmem:[%s3 + $0xc4] sm:$0xf]
      %v812 = vld [vmem:[%s3 + $0xc8] sm:$0xf]
      %v813 = vld [vmem:[%s3 + $0xcc] sm:$0xf]
      %v814 = vld [vmem:[%s3 + $0xd0] sm:$0xf]
      %v815 = vld [vmem:[%s3 + $0xd4] sm:$0xf]
      %v816 = vld [vmem:[%s3 + $0xd8] sm:$0xf]
      %v817 = vld [vmem:[%s3 + $0xdc] sm:$0xf]
      %v818 = vld [vmem:[%s3 + $0xe0] sm:$0xf]
      %v819 = vld [vmem:[%s3 + $0xe4] sm:$0xf]
      %v820 = vld [vmem:[%s3 + $0xe8] sm:$0xf]
      %v821 = vld [vmem:[%s3 + $0xec] sm:$0xf]
      %v822 = vld [vmem:[%s3 + $0xf0] sm:$0xf]
      %v823 = vld [vmem:[%s3 + $0xf4] sm:$0xf]
      %v824 = vld [vmem:[%s3 + $0xf8] sm:$0xf]
      %v825 = vld [vmem:[%s3 + $0xfc] sm:$0xf]
      %v826 = vld [vmem:[%s3 + $0x100] sm:$0xf]
      %v827 = vld [vmem:[%s3 + $0x104] sm:$0xf]
      %v828 = vld [vmem:[%s3 + $0x108] sm:$0xf]
      %v829 = vld [vmem:[%s3 + $0x10c] sm:$0xf]
      %v830 = vld [vmem:[%s3 + $0x110] sm:$0xf]
      %v831 = vld [vmem:[%s3 + $0x114] sm:$0xf]
      %v832 = vld [vmem:[%s3 + $0x118] sm:$0xf]
      %v833 = vld [vmem:[%s3 + $0x11c] sm:$0xf]
      %v834 = vld [vmem:[%s3 + $0x120] sm:$0xf]
      %v835 = vld [vmem:[%s3 + $0x124] sm:$0xf]
      %v836 = vld [vmem:[%s3 + $0x128] sm:$0xf]
      %v837 = vld [vmem:[%s3 + $0x12c] sm:$0xf]
      %v838 = vld [vmem:[%s3 + $0x130] sm:$0xf]
      %v839 = vld [vmem:[%s3 + $0x134] sm:$0xf]
      %v840 = vld [vmem:[%s3 + $0x138] sm:$0xf]
      %v841 = vld [vmem:[%s3 + $0x13c] sm:$0xf]
      %v842 = vld [vmem:[%s3 + $0x140] sm:$0xf]
      %v843 = vld [vmem:[%s3 + $0x144] sm:$0xf]
      %v844 = vld [vmem:[%s3 + $0x148] sm:$0xf]
      %v845 = vld [vmem:[%s3 + $0x14c] sm:$0xf]
      %v846 = vld [vmem:[%s3 + $0x150] sm:$0xf]
      %v847 = vld [vmem:[%s3 + $0x154] sm:$0xf]
      %v848 = vld [vmem:[%s3 + $0x158] sm:$0xf]
      %v849 = vld [vmem:[%s3 + $0x15c] sm:$0xf]
      %v850 = vld [vmem:[%s3 + $0x160] sm:$0xf]
      %v851 = vld [vmem:[%s3 + $0x164] sm:$0xf]
      %v852 = vld [vmem:[%s3 + $0x168] sm:$0xf]
      %v853 = vld [vmem:[%s3 + $0x16c] sm:$0xf]
      %v854 = vld [vmem:[%s3 + $0x170] sm:$0xf]
      %v855 = vld [vmem:[%s3 + $0x174] sm:$0xf]
      %v856 = vld [vmem:[%s3 + $0x178] sm:$0xf]
      %v857 = vld [vmem:[%s3 + $0x17c] sm:$0xf]
      %v858 = vld [vmem:[%s3 + $0x180] sm:$0xf]
      %v859 = vld [vmem:[%s3 + $0x184] sm:$0xf]
      %v860 = vld [vmem:[%s3 + $0x188] sm:$0xf]
      %v861 = vld [vmem:[%s3 + $0x18c] sm:$0xf]
      %v862 = vld [vmem:[%s3 + $0x190] sm:$0xf]
      %v863 = vld [vmem:[%s3 + $0x194] sm:$0xf]
      %v864 = vld [vmem:[%s3 + $0x198] sm:$0xf]
      %v865 = vld [vmem:[%s3 + $0x19c] sm:$0xf]
      %v866 = vld [vmem:[%s3 + $0x1a0] sm:$0xf]
      %v867 = vld [vmem:[%s3 + $0x1a4] sm:$0xf]
      %v868 = vld [vmem:[%s3 + $0x1a8] sm:$0xf]
      %v869 = vld [vmem:[%s3 + $0x1ac] sm:$0xf]
      %v870 = vld [vmem:[%s3 + $0x1b0] sm:$0xf]
      %v871 = vld [vmem:[%s3 + $0x1b4] sm:$0xf]
      %v872 = vld [vmem:[%s3 + $0x1b8] sm:$0xf]
      %v873 = vld [vmem:[%s3 + $0x1bc] sm:$0xf]
      %v874 = vld [vmem:[%s3 + $0x1c0] sm:$0xf]
      %v875 = vld [vmem:[%s3 + $0x1c4] sm:$0xf]
      %v876 = vld [vmem:[%s3 + $0x1c8] sm:$0xf]
      %v877 = vld [vmem:[%s3 + $0x1cc] sm:$0xf]
      %v878 = vld [vmem:[%s3 + $0x1d0] sm:$0xf]
      %v879 = vld [vmem:[%s3 + $0x1d4] sm:$0xf]
      %v880 = vld [vmem:[%s3 + $0x1d8] sm:$0xf]
      %v881 = vld [vmem:[%s3 + $0x1dc] sm:$0xf]
      %v882 = vld [vmem:[%s3 + $0x1e0] sm:$0xf]
      %v883 = vld [vmem:[%s3 + $0x1e4] sm:$0xf]
      %v884 = vld [vmem:[%s3 + $0x1e8] sm:$0xf]
      %v885 = vld [vmem:[%s3 + $0x1ec] sm:$0xf]
      %v886 = vld [vmem:[%s3 + $0x1f0] sm:$0xf]
      %v887 = vld [vmem:[%s3 + $0x1f4] sm:$0xf]
      %v888 = vld [vmem:[%s3 + $0x1f8] sm:$0xf]
      %v889 = vld [vmem:[%s3 + $0x1fc] sm:$0xf]
      %v890 = vld [vmem:[%s3 + $0x200] sm:$0xf]
      %v891 = vld [vmem:[%s3 + $0x204] sm:$0xf]
      %v892 = vld [vmem:[%s3 + $0x208] sm:$0xf]
      %v893 = vld [vmem:[%s3 + $0x20c] sm:$0xf]
      %v894 = vld [vmem:[%s3 + $0x210] sm:$0xf]
      %v895 = vld [vmem:[%s3 + $0x214] sm:$0xf]
      %v896 = vld [vmem:[%s3 + $0x218] sm:$0xf]
      %v897 = vld [vmem:[%s3 + $0x21c] sm:$0xf]
      %v898 = vld [vmem:[%s3 + $0x220] sm:$0xf]
      %v899 = vld [vmem:[%s3 + $0x224] sm:$0xf]
      %v900 = vld [vmem:[%s3 + $0x228] sm:$0xf]
      %v901 = vld [vmem:[%s3 + $0x22c] sm:$0xf]
      %v902 = vld [vmem:[%s3 + $0x230] sm:$0xf]
      %v903 = vld [vmem:[%s3 + $0x234] sm:$0xf]
      %v904 = vld [vmem:[%s3 + $0x238] sm:$0xf]
      %v905 = vld [vmem:[%s3 + $0x23c] sm:$0xf]
      %v1066 = vunpack.c.l.b16 %v602
      %v1067 = vunpack.c.h.b16 %v602
      %v1068 = vunpack.c.l.b16 %v603
      %v1069 = vunpack.c.h.b16 %v603
      %v1070 = vunpack.c.l.b16 %v604
      %v1071 = vunpack.c.h.b16 %v604
      %v1072 = vunpack.c.l.b16 %v605
      %v1073 = vunpack.c.h.b16 %v605
      %v1074 = vunpack.c.l.b16 %v606
      %v1075 = vunpack.c.l.b16 %v607
      %v1076 = vunpack.c.h.b16 %v607
      %v1077 = vunpack.c.l.b16 %v608
      %v1078 = vunpack.c.h.b16 %v608
      %v1079 = vunpack.c.l.b16 %v609
      %v1080 = vunpack.c.h.b16 %v609
      %v1081 = vunpack.c.l.b16 %v610
      %v1082 = vunpack.c.h.b16 %v610
      %v1083 = vunpack.c.l.b16 %v611
      %v1084 = vunpack.c.l.b16 %v612
      %v1085 = vunpack.c.h.b16 %v612
      %v1086 = vunpack.c.l.b16 %v613
      %v1087 = vunpack.c.h.b16 %v613
      %v1088 = vunpack.c.l.b16 %v614
      %v1089 = vunpack.c.h.b16 %v614
      %v1090 = vunpack.c.l.b16 %v615
      %v1091 = vunpack.c.h.b16 %v615
      %v1092 = vunpack.c.l.b16 %v616
      %v1093 = vunpack.c.l.b16 %v617
      %v1094 = vunpack.c.h.b16 %v617
      %v1095 = vunpack.c.l.b16 %v618
      %v1096 = vunpack.c.h.b16 %v618
      %v1097 = vunpack.c.l.b16 %v619
      %v1098 = vunpack.c.h.b16 %v619
      %v1099 = vunpack.c.l.b16 %v620
      %v1100 = vunpack.c.h.b16 %v620
      %v1101 = vunpack.c.l.b16 %v621
      %v1102 = vunpack.c.l.b16 %v622
      %v1103 = vunpack.c.h.b16 %v622
      %v1104 = vunpack.c.l.b16 %v623
      %v1105 = vunpack.c.h.b16 %v623
      %v1106 = vunpack.c.l.b16 %v624
      %v1107 = vunpack.c.h.b16 %v624
      %v1108 = vunpack.c.l.b16 %v625
      %v1109 = vunpack.c.h.b16 %v625
      %v1110 = vunpack.c.l.b16 %v626
      %v1111 = vunpack.c.l.b16 %v627
      %v1112 = vunpack.c.h.b16 %v627
      %v1113 = vunpack.c.l.b16 %v628
      %v1114 = vunpack.c.h.b16 %v628
      %v1115 = vunpack.c.l.b16 %v629
      %v1116 = vunpack.c.h.b16 %v629
      %v1117 = vunpack.c.l.b16 %v630
      %v1118 = vunpack.c.h.b16 %v630
      %v1119 = vunpack.c.l.b16 %v631
      %v1120 = vunpack.c.l.b16 %v632
      %v1121 = vunpack.c.h.b16 %v632
      %v1122 = vunpack.c.l.b16 %v633
      %v1123 = vunpack.c.h.b16 %v633
      %v1124 = vunpack.c.l.b16 %v634
      %v1125 = vunpack.c.h.b16 %v634
      %v1126 = vunpack.c.l.b16 %v635
      %v1127 = vunpack.c.h.b16 %v635
      %v1128 = vunpack.c.l.b16 %v636
      %v1129 = vunpack.c.l.b16 %v637
      %v1130 = vunpack.c.h.b16 %v637
      %v1131 = vunpack.c.l.b16 %v638
      %v1132 = vunpack.c.h.b16 %v638
      %v1133 = vunpack.c.l.b16 %v639
      %v1134 = vunpack.c.h.b16 %v639
      %v1135 = vunpack.c.l.b16 %v640
      %v1136 = vunpack.c.h.b16 %v640
      %v1137 = vunpack.c.l.b16 %v641
      %v1138 = vunpack.c.l.b16 %v642
      %v1139 = vunpack.c.h.b16 %v642
      %v1140 = vunpack.c.l.b16 %v643
      %v1141 = vunpack.c.h.b16 %v643
      %v1142 = vunpack.c.l.b16 %v644
      %v1143 = vunpack.c.h.b16 %v644
      %v1144 = vunpack.c.l.b16 %v645
      %v1145 = vunpack.c.h.b16 %v645
      %v1146 = vunpack.c.l.b16 %v646
      %v1147 = vunpack.c.l.b16 %v647
      %v1148 = vunpack.c.h.b16 %v647
      %v1149 = vunpack.c.l.b16 %v648
      %v1150 = vunpack.c.h.b16 %v648
      %v1151 = vunpack.c.l.b16 %v649
      %v1152 = vunpack.c.h.b16 %v649
      %v1153 = vunpack.c.l.b16 %v650
      %v1154 = vunpack.c.h.b16 %v650
      %v1155 = vunpack.c.l.b16 %v651
      %v1156 = vunpack.c.l.b16 %v652
      %v1157 = vunpack.c.h.b16 %v652
      %v1158 = vunpack.c.l.b16 %v653
      %v1159 = vunpack.c.h.b16 %v653
      %v1160 = vunpack.c.l.b16 %v654
      %v1161 = vunpack.c.h.b16 %v654
      %v1162 = vunpack.c.l.b16 %v655
      %v1163 = vunpack.c.h.b16 %v655
      %v1164 = vunpack.c.l.b16 %v656
      %v1165 = vunpack.c.l.b16 %v657
      %v1166 = vunpack.c.h.b16 %v657
      %v1167 = vunpack.c.l.b16 %v658
      %v1168 = vunpack.c.h.b16 %v658
      %v1169 = vunpack.c.l.b16 %v659
      %v1170 = vunpack.c.h.b16 %v659
      %v1171 = vunpack.c.l.b16 %v660
      %v1172 = vunpack.c.h.b16 %v660
      %v1173 = vunpack.c.l.b16 %v661
      %v1174 = vunpack.c.l.b16 %v662
      %v1175 = vunpack.c.h.b16 %v662
      %v1176 = vunpack.c.l.b16 %v663
      %v1177 = vunpack.c.h.b16 %v663
      %v1178 = vunpack.c.l.b16 %v664
      %v1179 = vunpack.c.h.b16 %v664
      %v1180 = vunpack.c.l.b16 %v665
      %v1181 = vunpack.c.h.b16 %v665
      %v1182 = vunpack.c.l.b16 %v666
      %v1183 = vunpack.c.l.b16 %v667
      %v1184 = vunpack.c.h.b16 %v667
      %v1185 = vunpack.c.l.b16 %v668
      %v1186 = vunpack.c.h.b16 %v668
      %v1187 = vunpack.c.l.b16 %v669
      %v1188 = vunpack.c.h.b16 %v669
      %v1189 = vunpack.c.l.b16 %v670
      %v1190 = vunpack.c.h.b16 %v670
      %v1191 = vunpack.c.l.b16 %v671
      %v1192 = vunpack.c.l.b16 %v672
      %v1193 = vunpack.c.h.b16 %v672
      %v1194 = vunpack.c.l.b16 %v673
      %v1195 = vunpack.c.h.b16 %v673
      %v1196 = vunpack.c.l.b16 %v674
      %v1197 = vunpack.c.h.b16 %v674
      %v1198 = vunpack.c.l.b16 %v675
      %v1199 = vunpack.c.h.b16 %v675
      %v1200 = vunpack.c.l.b16 %v676
      %v1201 = vunpack.c.l.b16 %v677
      %v1202 = vunpack.c.h.b16 %v677
      %v1203 = vunpack.c.l.b16 %v678
      %v1204 = vunpack.c.h.b16 %v678
      %v1205 = vunpack.c.l.b16 %v679
      %v1206 = vunpack.c.h.b16 %v679
      %v1207 = vunpack.c.l.b16 %v680
      %v1208 = vunpack.c.h.b16 %v680
      %v1209 = vunpack.c.l.b16 %v681
      %v1210 = vunpack.c.l.b16 %v682
      %v1211 = vunpack.c.h.b16 %v682
      %v1212 = vunpack.c.l.b16 %v683
      %v1213 = vunpack.c.h.b16 %v683
      %v1214 = vunpack.c.l.b16 %v684
      %v1215 = vunpack.c.h.b16 %v684
      %v1216 = vunpack.c.l.b16 %v685
      %v1217 = vunpack.c.h.b16 %v685
      %v1218 = vunpack.c.l.b16 %v686
      %v1219 = vunpack.c.l.b16 %v687
      %v1220 = vunpack.c.h.b16 %v687
      %v1221 = vunpack.c.l.b16 %v688
      %v1222 = vunpack.c.h.b16 %v688
      %v1223 = vunpack.c.l.b16 %v689
      %v1224 = vunpack.c.h.b16 %v689
      %v1225 = vunpack.c.l.b16 %v690
      %v1226 = vunpack.c.h.b16 %v690
      %v1227 = vunpack.c.l.b16 %v691
      %v1228 = vunpack.c.l.b16 %v692
      %v1229 = vunpack.c.h.b16 %v692
      %v1230 = vunpack.c.l.b16 %v693
      %v1231 = vunpack.c.h.b16 %v693
      %v1232 = vunpack.c.l.b16 %v694
      %v1233 = vunpack.c.h.b16 %v694
      %v1234 = vunpack.c.l.b16 %v695
      %v1235 = vunpack.c.h.b16 %v695
      %v1236 = vunpack.c.l.b16 %v696
      %v1237 = vunpack.c.l.b16 %v697
      %v1238 = vunpack.c.h.b16 %v697
      %v1239 = vunpack.c.l.b16 %v698
      %v1240 = vunpack.c.h.b16 %v698
      %v1241 = vunpack.c.l.b16 %v699
      %v1242 = vunpack.c.h.b16 %v699
      %v1243 = vunpack.c.l.b16 %v700
      %v1244 = vunpack.c.h.b16 %v700
      %v1245 = vunpack.c.l.b16 %v701
      %v1246 = vunpack.c.l.b16 %v702
      %v1247 = vunpack.c.h.b16 %v702
      %v1248 = vunpack.c.l.b16 %v703
      %v1249 = vunpack.c.h.b16 %v703
      %v1250 = vunpack.c.l.b16 %v704
      %v1251 = vunpack.c.h.b16 %v704
      %v1252 = vunpack.c.l.b16 %v705
      %v1253 = vunpack.c.h.b16 %v705
      %v1254 = vunpack.c.l.b16 %v706
      %v1255 = vunpack.c.l.b16 %v707
      %v1256 = vunpack.c.h.b16 %v707
      %v1257 = vunpack.c.l.b16 %v708
      %v1258 = vunpack.c.h.b16 %v708
      %v1259 = vunpack.c.l.b16 %v709
      %v1260 = vunpack.c.h.b16 %v709
      %v1261 = vunpack.c.l.b16 %v710
      %v1262 = vunpack.c.h.b16 %v710
      %v1263 = vunpack.c.l.b16 %v711
      %v1264 = vunpack.c.l.b16 %v712
      %v1265 = vunpack.c.h.b16 %v712
      %v1266 = vunpack.c.l.b16 %v713
      %v1267 = vunpack.c.h.b16 %v713
      %v1268 = vunpack.c.l.b16 %v714
      %v1269 = vunpack.c.h.b16 %v714
      %v1270 = vunpack.c.l.b16 %v715
      %v1271 = vunpack.c.h.b16 %v715
      %v1272 = vunpack.c.l.b16 %v716
      %v1273 = vunpack.c.l.b16 %v717
      %v1274 = vunpack.c.h.b16 %v717
      %v1275 = vunpack.c.l.b16 %v718
      %v1276 = vunpack.c.h.b16 %v718
      %v1277 = vunpack.c.l.b16 %v719
      %v1278 = vunpack.c.h.b16 %v719
      %v1279 = vunpack.c.l.b16 %v720
      %v1280 = vunpack.c.h.b16 %v720
      %v1281 = vunpack.c.l.b16 %v721
      %v1282 = vunpack.c.l.b16 %v722
      %v1283 = vunpack.c.h.b16 %v722
      %v1284 = vunpack.c.l.b16 %v723
      %v1285 = vunpack.c.h.b16 %v723
      %v1286 = vunpack.c.l.b16 %v724
      %v1287 = vunpack.c.h.b16 %v724
      %v1288 = vunpack.c.l.b16 %v725
      %v1289 = vunpack.c.h.b16 %v725
      %v1290 = vunpack.c.l.b16 %v726
      %v1291 = vunpack.c.l.b16 %v727
      %v1292 = vunpack.c.h.b16 %v727
      %v1293 = vunpack.c.l.b16 %v728
      %v1294 = vunpack.c.h.b16 %v728
      %v1295 = vunpack.c.l.b16 %v729
      %v1296 = vunpack.c.h.b16 %v729
      %v1297 = vunpack.c.l.b16 %v730
      %v1298 = vunpack.c.h.b16 %v730
      %v1299 = vunpack.c.l.b16 %v731
      %v1300 = vunpack.c.l.b16 %v732
      %v1301 = vunpack.c.h.b16 %v732
      %v1302 = vunpack.c.l.b16 %v733
      %v1303 = vunpack.c.h.b16 %v733
      %v1304 = vunpack.c.l.b16 %v734
      %v1305 = vunpack.c.h.b16 %v734
      %v1306 = vunpack.c.l.b16 %v735
      %v1307 = vunpack.c.h.b16 %v735
      %v1308 = vunpack.c.l.b16 %v736
      %v1309 = vunpack.c.l.b16 %v737
      %v1310 = vunpack.c.h.b16 %v737
      %v1311 = vunpack.c.l.b16 %v738
      %v1312 = vunpack.c.h.b16 %v738
      %v1313 = vunpack.c.l.b16 %v739
      %v1314 = vunpack.c.h.b16 %v739
      %v1315 = vunpack.c.l.b16 %v740
      %v1316 = vunpack.c.h.b16 %v740
      %v1317 = vunpack.c.l.b16 %v741
      %v1318 = vunpack.c.l.b16 %v742
      %v1319 = vunpack.c.h.b16 %v742
      %v1320 = vunpack.c.l.b16 %v743
      %v1321 = vunpack.c.h.b16 %v743
      %v1322 = vunpack.c.l.b16 %v744
      %v1323 = vunpack.c.h.b16 %v744
      %v1324 = vunpack.c.l.b16 %v745
      %v1325 = vunpack.c.h.b16 %v745
      %v1326 = vunpack.c.l.b16 %v746
      %v1327 = vunpack.c.l.b16 %v747
      %v1328 = vunpack.c.h.b16 %v747
      %v1329 = vunpack.c.l.b16 %v748
      %v1330 = vunpack.c.h.b16 %v748
      %v1331 = vunpack.c.l.b16 %v749
      %v1332 = vunpack.c.h.b16 %v749
      %v1333 = vunpack.c.l.b16 %v750
      %v1334 = vunpack.c.h.b16 %v750
      %v1335 = vunpack.c.l.b16 %v751
      %v1336 = vunpack.c.l.b16 %v752
      %v1337 = vunpack.c.h.b16 %v752
      %v1338 = vunpack.c.l.b16 %v753
      %v1339 = vunpack.c.h.b16 %v753
      %v1340 = vunpack.c.l.b16 %v754
      %v1341 = vunpack.c.h.b16 %v754
      %v1342 = vunpack.c.l.b16 %v755
      %v1343 = vunpack.c.h.b16 %v755
      %v1344 = vunpack.c.l.b16 %v756
      %v1345 = vunpack.c.l.b16 %v757
      %v1346 = vunpack.c.h.b16 %v757
      %v1347 = vunpack.c.l.b16 %v758
      %v1348 = vunpack.c.h.b16 %v758
      %v1349 = vunpack.c.l.b16 %v759
      %v1350 = vunpack.c.h.b16 %v759
      %v1351 = vunpack.c.l.b16 %v760
      %v1352 = vunpack.c.h.b16 %v760
      %v1353 = vunpack.c.l.b16 %v761
      %v1354 = vpack.c.b16 %v1075, %v1066
      %v1355 = vpack.c.b16 %v1076, %v1067
      %v1356 = vpack.c.b16 %v1077, %v1068
      %v1357 = vpack.c.b16 %v1078, %v1069
      %v1358 = vpack.c.b16 %v1079, %v1070
      %v1359 = vpack.c.b16 %v1080, %v1071
      %v1360 = vpack.c.b16 %v1081, %v1072
      %v1361 = vpack.c.b16 %v1082, %v1073
      %v1362 = vpack.c.b16 %v1083, %v1074
      %v1363 = vpack.c.b16 %v1093, %v1084
      %v1364 = vpack.c.b16 %v1094, %v1085
      %v1365 = vpack.c.b16 %v1095, %v1086
      %v1366 = vpack.c.b16 %v1096, %v1087
      %v1367 = vpack.c.b16 %v1097, %v1088
      %v1368 = vpack.c.b16 %v1098, %v1089
      %v1369 = vpack.c.b16 %v1099, %v1090
      %v1370 = vpack.c.b16 %v1100, %v1091
      %v1371 = vpack.c.b16 %v1101, %v1092
      %v1372 = vpack.c.b16 %v1111, %v1102
      %v1373 = vpack.c.b16 %v1112, %v1103
      %v1374 = vpack.c.b16 %v1113, %v1104
      %v1375 = vpack.c.b16 %v1114, %v1105
      %v1376 = vpack.c.b16 %v1115, %v1106
      %v1377 = vpack.c.b16 %v1116, %v1107
      %v1378 = vpack.c.b16 %v1117, %v1108
      %v1379 = vpack.c.b16 %v1118, %v1109
      %v1380 = vpack.c.b16 %v1119, %v1110
      %v1381 = vpack.c.b16 %v1129, %v1120
      %v1382 = vpack.c.b16 %v1130, %v1121
      %v1383 = vpack.c.b16 %v1131, %v1122
      %v1384 = vpack.c.b16 %v1132, %v1123
      %v1385 = vpack.c.b16 %v1133, %v1124
      %v1386 = vpack.c.b16 %v1134, %v1125
      %v1387 = vpack.c.b16 %v1135, %v1126
      %v1388 = vpack.c.b16 %v1136, %v1127
      %v1389 = vpack.c.b16 %v1137, %v1128
      %v1390 = vpack.c.b16 %v1147, %v1138
      %v1391 = vpack.c.b16 %v1148, %v1139
      %v1392 = vpack.c.b16 %v1149, %v1140
      %v1393 = vpack.c.b16 %v1150, %v1141
      %v1394 = vpack.c.b16 %v1151, %v1142
      %v1395 = vpack.c.b16 %v1152, %v1143
      %v1396 = vpack.c.b16 %v1153, %v1144
      %v1397 = vpack.c.b16 %v1154, %v1145
      %v1398 = vpack.c.b16 %v1155, %v1146
      %v1399 = vpack.c.b16 %v1165, %v1156
      %v1400 = vpack.c.b16 %v1166, %v1157
      %v1401 = vpack.c.b16 %v1167, %v1158
      %v1402 = vpack.c.b16 %v1168, %v1159
      %v1403 = vpack.c.b16 %v1169, %v1160
      %v1404 = vpack.c.b16 %v1170, %v1161
      %v1405 = vpack.c.b16 %v1171, %v1162
      %v1406 = vpack.c.b16 %v1172, %v1163
      %v1407 = vpack.c.b16 %v1173, %v1164
      %v1408 = vpack.c.b16 %v1183, %v1174
      %v1409 = vpack.c.b16 %v1184, %v1175
      %v1410 = vpack.c.b16 %v1185, %v1176
      %v1411 = vpack.c.b16 %v1186, %v1177
      %v1412 = vpack.c.b16 %v1187, %v1178
      %v1413 = vpack.c.b16 %v1188, %v1179
      %v1414 = vpack.c.b16 %v1189, %v1180
      %v1415 = vpack.c.b16 %v1190, %v1181
      %v1416 = vpack.c.b16 %v1191, %v1182
      %v1417 = vpack.c.b16 %v1201, %v1192
      %v1418 = vpack.c.b16 %v1202, %v1193
      %v1419 = vpack.c.b16 %v1203, %v1194
      %v1420 = vpack.c.b16 %v1204, %v1195
      %v1421 = vpack.c.b16 %v1205, %v1196
      %v1422 = vpack.c.b16 %v1206, %v1197
      %v1423 = vpack.c.b16 %v1207, %v1198
      %v1424 = vpack.c.b16 %v1208, %v1199
      %v1425 = vpack.c.b16 %v1209, %v1200
      %v1426 = vpack.c.b16 %v1219, %v1210
      %v1427 = vpack.c.b16 %v1220, %v1211
      %v1428 = vpack.c.b16 %v1221, %v1212
      %v1429 = vpack.c.b16 %v1222, %v1213
      %v1430 = vpack.c.b16 %v1223, %v1214
      %v1431 = vpack.c.b16 %v1224, %v1215
      %v1432 = vpack.c.b16 %v1225, %v1216
      %v1433 = vpack.c.b16 %v1226, %v1217
      %v1434 = vpack.c.b16 %v1227, %v1218
      %v1435 = vpack.c.b16 %v1237, %v1228
      %v1436 = vpack.c.b16 %v1238, %v1229
      %v1437 = vpack.c.b16 %v1239, %v1230
      %v1438 = vpack.c.b16 %v1240, %v1231
      %v1439 = vpack.c.b16 %v1241, %v1232
      %v1440 = vpack.c.b16 %v1242, %v1233
      %v1441 = vpack.c.b16 %v1243, %v1234
      %v1442 = vpack.c.b16 %v1244, %v1235
      %v1443 = vpack.c.b16 %v1245, %v1236
      %v1444 = vpack.c.b16 %v1255, %v1246
      %v1445 = vpack.c.b16 %v1256, %v1247
      %v1446 = vpack.c.b16 %v1257, %v1248
      %v1447 = vpack.c.b16 %v1258, %v1249
      %v1448 = vpack.c.b16 %v1259, %v1250
      %v1449 = vpack.c.b16 %v1260, %v1251
      %v1450 = vpack.c.b16 %v1261, %v1252
      %v1451 = vpack.c.b16 %v1262, %v1253
      %v1452 = vpack.c.b16 %v1263, %v1254
      %v1453 = vpack.c.b16 %v1273, %v1264
      %v1454 = vpack.c.b16 %v1274, %v1265
      %v1455 = vpack.c.b16 %v1275, %v1266
      %v1456 = vpack.c.b16 %v1276, %v1267
      %v1457 = vpack.c.b16 %v1277, %v1268
      %v1458 = vpack.c.b16 %v1278, %v1269
      %v1459 = vpack.c.b16 %v1279, %v1270
      %v1460 = vpack.c.b16 %v1280, %v1271
      %v1461 = vpack.c.b16 %v1281, %v1272
      %v1462 = vpack.c.b16 %v1291, %v1282
      %v1463 = vpack.c.b16 %v1292, %v1283
      %v1464 = vpack.c.b16 %v1293, %v1284
      %v1465 = vpack.c.b16 %v1294, %v1285
      %v1466 = vpack.c.b16 %v1295, %v1286
      %v1467 = vpack.c.b16 %v1296, %v1287
      %v1468 = vpack.c.b16 %v1297, %v1288
      %v1469 = vpack.c.b16 %v1298, %v1289
      %v1470 = vpack.c.b16 %v1299, %v1290
      %v1471 = vpack.c.b16 %v1309, %v1300
      %v1472 = vpack.c.b16 %v1310, %v1301
      %v1473 = vpack.c.b16 %v1311, %v1302
      %v1474 = vpack.c.b16 %v1312, %v1303
      %v1475 = vpack.c.b16 %v1313, %v1304
      %v1476 = vpack.c.b16 %v1314, %v1305
      %v1477 = vpack.c.b16 %v1315, %v1306
      %v1478 = vpack.c.b16 %v1316, %v1307
      %v1479 = vpack.c.b16 %v1317, %v1308
      %v1480 = vpack.c.b16 %v1327, %v1318
      %v1481 = vpack.c.b16 %v1328, %v1319
      %v1482 = vpack.c.b16 %v1329, %v1320
      %v1483 = vpack.c.b16 %v1330, %v1321
      %v1484 = vpack.c.b16 %v1331, %v1322
      %v1485 = vpack.c.b16 %v1332, %v1323
      %v1486 = vpack.c.b16 %v1333, %v1324
      %v1487 = vpack.c.b16 %v1334, %v1325
      %v1488 = vpack.c.b16 %v1335, %v1326
      %v1489 = vpack.c.b16 %v1345, %v1336
      %v1490 = vpack.c.b16 %v1346, %v1337
      %v1491 = vpack.c.b16 %v1347, %v1338
      %v1492 = vpack.c.b16 %v1348, %v1339
      %v1493 = vpack.c.b16 %v1349, %v1340
      %v1494 = vpack.c.b16 %v1350, %v1341
      %v1495 = vpack.c.b16 %v1351, %v1342
      %v1496 = vpack.c.b16 %v1352, %v1343
      %v1497 = vpack.c.b16 %v1353, %v1344
      %v1786 = vunpack.c.l.b16 %v762
      %v1787 = vunpack.c.l.b16 %v763
      %v1788 = vunpack.c.l.b16 %v764
      %v1789 = vunpack.c.l.b16 %v765
      %v1790 = vunpack.c.l.b16 %v766
      %v1791 = vunpack.c.l.b16 %v767
      %v1792 = vunpack.c.l.b16 %v768
      %v1793 = vunpack.c.l.b16 %v769
      %v1794 = vunpack.c.l.b16 %v770
      %v1795 = vunpack.c.l.b16 %v771
      %v1796 = vunpack.c.l.b16 %v772
      %v1797 = vunpack.c.l.b16 %v773
      %v1798 = vunpack.c.l.b16 %v774
      %v1799 = vunpack.c.l.b16 %v775
      %v1800 = vunpack.c.l.b16 %v776
      %v1801 = vunpack.c.l.b16 %v777
      %v1802 = vunpack.c.l.b16 %v778
      %v1803 = vunpack.c.l.b16 %v779
      %v1804 = vunpack.c.l.b16 %v780
      %v1805 = vunpack.c.l.b16 %v781
      %v1806 = vunpack.c.l.b16 %v782
      %v1807 = vunpack.c.l.b16 %v783
      %v1808 = vunpack.c.l.b16 %v784
      %v1809 = vunpack.c.l.b16 %v785
      %v1810 = vunpack.c.l.b16 %v786
      %v1811 = vunpack.c.l.b16 %v787
      %v1812 = vunpack.c.l.b16 %v788
      %v1813 = vunpack.c.l.b16 %v789
      %v1814 = vunpack.c.l.b16 %v790
      %v1815 = vunpack.c.l.b16 %v791
      %v1816 = vunpack.c.l.b16 %v792
      %v1817 = vunpack.c.l.b16 %v793
      %v1818 = vunpack.c.l.b16 %v794
      %v1819 = vunpack.c.l.b16 %v795
      %v1820 = vunpack.c.l.b16 %v796
      %v1821 = vunpack.c.l.b16 %v797
      %v1822 = vunpack.c.l.b16 %v798
      %v1823 = vunpack.c.l.b16 %v799
      %v1824 = vunpack.c.l.b16 %v800
      %v1825 = vunpack.c.l.b16 %v801
      %v1826 = vunpack.c.l.b16 %v802
      %v1827 = vunpack.c.l.b16 %v803
      %v1828 = vunpack.c.l.b16 %v804
      %v1829 = vunpack.c.l.b16 %v805
      %v1830 = vunpack.c.l.b16 %v806
      %v1831 = vunpack.c.l.b16 %v807
      %v1832 = vunpack.c.l.b16 %v808
      %v1833 = vunpack.c.l.b16 %v809
      %v1834 = vunpack.c.l.b16 %v810
      %v1835 = vunpack.c.l.b16 %v811
      %v1836 = vunpack.c.l.b16 %v812
      %v1837 = vunpack.c.l.b16 %v813
      %v1838 = vunpack.c.l.b16 %v814
      %v1839 = vunpack.c.l.b16 %v815
      %v1840 = vunpack.c.l.b16 %v816
      %v1841 = vunpack.c.l.b16 %v817
      %v1842 = vunpack.c.l.b16 %v818
      %v1843 = vunpack.c.l.b16 %v819
      %v1844 = vunpack.c.l.b16 %v820
      %v1845 = vunpack.c.l.b16 %v821
      %v1846 = vunpack.c.l.b16 %v822
      %v1847 = vunpack.c.l.b16 %v823
      %v1848 = vunpack.c.l.b16 %v824
      %v1849 = vunpack.c.l.b16 %v825
      %v1850 = vunpack.c.l.b16 %v826
      %v1851 = vunpack.c.l.b16 %v827
      %v1852 = vunpack.c.l.b16 %v828
      %v1853 = vunpack.c.l.b16 %v829
      %v1854 = vunpack.c.l.b16 %v830
      %v1855 = vunpack.c.l.b16 %v831
      %v1856 = vunpack.c.l.b16 %v832
      %v1857 = vunpack.c.l.b16 %v833
      %v1858 = vunpack.c.l.b16 %v834
      %v1859 = vunpack.c.l.b16 %v835
      %v1860 = vunpack.c.l.b16 %v836
      %v1861 = vunpack.c.l.b16 %v837
      %v1862 = vunpack.c.l.b16 %v838
      %v1863 = vunpack.c.l.b16 %v839
      %v1864 = vunpack.c.l.b16 %v840
      %v1865 = vunpack.c.l.b16 %v841
      %v1866 = vunpack.c.l.b16 %v842
      %v1867 = vunpack.c.l.b16 %v843
      %v1868 = vunpack.c.l.b16 %v844
      %v1869 = vunpack.c.l.b16 %v845
      %v1870 = vunpack.c.l.b16 %v846
      %v1871 = vunpack.c.l.b16 %v847
      %v1872 = vunpack.c.l.b16 %v848
      %v1873 = vunpack.c.l.b16 %v849
      %v1874 = vunpack.c.l.b16 %v850
      %v1875 = vunpack.c.l.b16 %v851
      %v1876 = vunpack.c.l.b16 %v852
      %v1877 = vunpack.c.l.b16 %v853
      %v1878 = vunpack.c.l.b16 %v854
      %v1879 = vunpack.c.l.b16 %v855
      %v1880 = vunpack.c.l.b16 %v856
      %v1881 = vunpack.c.l.b16 %v857
      %v1882 = vunpack.c.l.b16 %v858
      %v1883 = vunpack.c.l.b16 %v859
      %v1884 = vunpack.c.l.b16 %v860
      %v1885 = vunpack.c.l.b16 %v861
      %v1886 = vunpack.c.l.b16 %v862
      %v1887 = vunpack.c.l.b16 %v863
      %v1888 = vunpack.c.l.b16 %v864
      %v1889 = vunpack.c.l.b16 %v865
      %v1890 = vunpack.c.l.b16 %v866
      %v1891 = vunpack.c.l.b16 %v867
      %v1892 = vunpack.c.l.b16 %v868
      %v1893 = vunpack.c.l.b16 %v869
      %v1894 = vunpack.c.l.b16 %v870
      %v1895 = vunpack.c.l.b16 %v871
      %v1896 = vunpack.c.l.b16 %v872
      %v1897 = vunpack.c.l.b16 %v873
      %v1898 = vunpack.c.l.b16 %v874
      %v1899 = vunpack.c.l.b16 %v875
      %v1900 = vunpack.c.l.b16 %v876
      %v1901 = vunpack.c.l.b16 %v877
      %v1902 = vunpack.c.l.b16 %v878
      %v1903 = vunpack.c.l.b16 %v879
      %v1904 = vunpack.c.l.b16 %v880
      %v1905 = vunpack.c.l.b16 %v881
      %v1906 = vunpack.c.l.b16 %v882
      %v1907 = vunpack.c.l.b16 %v883
      %v1908 = vunpack.c.l.b16 %v884
      %v1909 = vunpack.c.l.b16 %v885
      %v1910 = vunpack.c.l.b16 %v886
      %v1911 = vunpack.c.l.b16 %v887
      %v1912 = vunpack.c.l.b16 %v888
      %v1913 = vunpack.c.l.b16 %v889
      %v1914 = vunpack.c.l.b16 %v890
      %v1915 = vunpack.c.l.b16 %v891
      %v1916 = vunpack.c.l.b16 %v892
      %v1917 = vunpack.c.l.b16 %v893
      %v1918 = vunpack.c.l.b16 %v894
      %v1919 = vunpack.c.l.b16 %v895
      %v1920 = vunpack.c.l.b16 %v896
      %v1921 = vunpack.c.l.b16 %v897
      %v1922 = vunpack.c.l.b16 %v898
      %v1923 = vunpack.c.l.b16 %v899
      %v1924 = vunpack.c.l.b16 %v900
      %v1925 = vunpack.c.l.b16 %v901
      %v1926 = vunpack.c.l.b16 %v902
      %v1927 = vunpack.c.l.b16 %v903
      %v1928 = vunpack.c.l.b16 %v904
      %v1929 = vunpack.c.l.b16 %v905
      %v1930 = vpack.c.b16 %v1787, %v1786
      %v1931 = vpack.c.b16 %v1789, %v1788
      %v1932 = vpack.c.b16 %v1791, %v1790
      %v1933 = vpack.c.b16 %v1793, %v1792
      %v1934 = vpack.c.b16 %v1795, %v1794
      %v1935 = vpack.c.b16 %v1797, %v1796
      %v1936 = vpack.c.b16 %v1799, %v1798
      %v1937 = vpack.c.b16 %v1801, %v1800
      %v1938 = vpack.c.b16 %v1803, %v1802
      %v1939 = vpack.c.b16 %v1805, %v1804
      %v1940 = vpack.c.b16 %v1807, %v1806
      %v1941 = vpack.c.b16 %v1809, %v1808
      %v1942 = vpack.c.b16 %v1811, %v1810
      %v1943 = vpack.c.b16 %v1813, %v1812
      %v1944 = vpack.c.b16 %v1815, %v1814
      %v1945 = vpack.c.b16 %v1817, %v1816
      %v1946 = vpack.c.b16 %v1819, %v1818
      %v1947 = vpack.c.b16 %v1821, %v1820
      %v1948 = vpack.c.b16 %v1823, %v1822
      %v1949 = vpack.c.b16 %v1825, %v1824
      %v1950 = vpack.c.b16 %v1827, %v1826
      %v1951 = vpack.c.b16 %v1829, %v1828
      %v1952 = vpack.c.b16 %v1831, %v1830
      %v1953 = vpack.c.b16 %v1833, %v1832
      %v1954 = vpack.c.b16 %v1835, %v1834
      %v1955 = vpack.c.b16 %v1837, %v1836
      %v1956 = vpack.c.b16 %v1839, %v1838
      %v1957 = vpack.c.b16 %v1841, %v1840
      %v1958 = vpack.c.b16 %v1843, %v1842
      %v1959 = vpack.c.b16 %v1845, %v1844
      %v1960 = vpack.c.b16 %v1847, %v1846
      %v1961 = vpack.c.b16 %v1849, %v1848
      %v1962 = vpack.c.b16 %v1851, %v1850
      %v1963 = vpack.c.b16 %v1853, %v1852
      %v1964 = vpack.c.b16 %v1855, %v1854
      %v1965 = vpack.c.b16 %v1857, %v1856
      %v1966 = vpack.c.b16 %v1859, %v1858
      %v1967 = vpack.c.b16 %v1861, %v1860
      %v1968 = vpack.c.b16 %v1863, %v1862
      %v1969 = vpack.c.b16 %v1865, %v1864
      %v1970 = vpack.c.b16 %v1867, %v1866
      %v1971 = vpack.c.b16 %v1869, %v1868
      %v1972 = vpack.c.b16 %v1871, %v1870
      %v1973 = vpack.c.b16 %v1873, %v1872
      %v1974 = vpack.c.b16 %v1875, %v1874
      %v1975 = vpack.c.b16 %v1877, %v1876
      %v1976 = vpack.c.b16 %v1879, %v1878
      %v1977 = vpack.c.b16 %v1881, %v1880
      %v1978 = vpack.c.b16 %v1883, %v1882
      %v1979 = vpack.c.b16 %v1885, %v1884
      %v1980 = vpack.c.b16 %v1887, %v1886
      %v1981 = vpack.c.b16 %v1889, %v1888
      %v1982 = vpack.c.b16 %v1891, %v1890
      %v1983 = vpack.c.b16 %v1893, %v1892
      %v1984 = vpack.c.b16 %v1895, %v1894
      %v1985 = vpack.c.b16 %v1897, %v1896
      %v1986 = vpack.c.b16 %v1899, %v1898
      %v1987 = vpack.c.b16 %v1901, %v1900
      %v1988 = vpack.c.b16 %v1903, %v1902
      %v1989 = vpack.c.b16 %v1905, %v1904
      %v1990 = vpack.c.b16 %v1907, %v1906
      %v1991 = vpack.c.b16 %v1909, %v1908
      %v1992 = vpack.c.b16 %v1911, %v1910
      %v1993 = vpack.c.b16 %v1913, %v1912
      %v1994 = vpack.c.b16 %v1915, %v1914
      %v1995 = vpack.c.b16 %v1917, %v1916
      %v1996 = vpack.c.b16 %v1919, %v1918
      %v1997 = vpack.c.b16 %v1921, %v1920
      %v1998 = vpack.c.b16 %v1923, %v1922
      %v1999 = vpack.c.b16 %v1925, %v1924
      %v2000 = vpack.c.b16 %v1927, %v1926
      %v2001 = vpack.c.b16 %v1929, %v1928
      %2074 = vmatpush.bf16.msra.mxu0 %v1937
      %2075 = vmatpush.bf16.msra.mxu0 %v1936
      %2076 = vmatpush.bf16.msra.mxu0 %v1935
      %2077 = vmatpush.bf16.msra.mxu0 %v1934
      %2078 = vmatpush.bf16.msra.mxu0 %v1933
      %2079 = vmatpush.bf16.msra.mxu0 %v1932
      %2080 = vmatpush.bf16.msra.mxu0 %v1931
      %2081 = vmatpush.bf16.msra.mxu0 %v1930
      %2082 = vmatmul.bf16.gmra.mxu0 %v1354
      %v2083 = vpop.f32.mrf.mxu0
      %v2084 = vadd.f32 0.0, %v2083
      %v2085 = vpop.f32.mrf.mxu0
      %v2086 = vadd.f32 0.0, %v2085
      %2087 = vmatmul.bf16.gmra.mxu0 %v1363
      %v2088 = vpop.f32.mrf.mxu0
      %v2089 = vadd.f32 0.0, %v2088
      %v2090 = vpop.f32.mrf.mxu0
      %v2091 = vadd.f32 0.0, %v2090
      %2092 = vmatmul.bf16.gmra.mxu0 %v1372
      %v2093 = vpop.f32.mrf.mxu0
      %v2094 = vadd.f32 0.0, %v2093
      %v2095 = vpop.f32.mrf.mxu0
      %v2096 = vadd.f32 0.0, %v2095
      %2097 = vmatmul.bf16.gmra.mxu0 %v1381
      %v2098 = vpop.f32.mrf.mxu0
      %v2099 = vadd.f32 0.0, %v2098
      %v2100 = vpop.f32.mrf.mxu0
      %v2101 = vadd.f32 0.0, %v2100
      %2102 = vmatmul.bf16.gmra.mxu0 %v1390
      %v2103 = vpop.f32.mrf.mxu0
      %v2104 = vadd.f32 0.0, %v2103
      %v2105 = vpop.f32.mrf.mxu0
      %v2106 = vadd.f32 0.0, %v2105
      %2107 = vmatmul.bf16.gmra.mxu0 %v1399
      %v2108 = vpop.f32.mrf.mxu0
      %v2109 = vadd.f32 0.0, %v2108
      %v2110 = vpop.f32.mrf.mxu0
      %v2111 = vadd.f32 0.0, %v2110
      %2112 = vmatmul.bf16.gmra.mxu0 %v1408
      %v2113 = vpop.f32.mrf.mxu0
      %v2114 = vadd.f32 0.0, %v2113
      %v2115 = vpop.f32.mrf.mxu0
      %v2116 = vadd.f32 0.0, %v2115
      %2117 = vmatmul.bf16.gmra.mxu0 %v1417
      %v2118 = vpop.f32.mrf.mxu0
      %v2119 = vadd.f32 0.0, %v2118
      %v2120 = vpop.f32.mrf.mxu0
      %v2121 = vadd.f32 0.0, %v2120
      %2122 = vmatmul.bf16.gmra.mxu0 %v1426
      %v2123 = vpop.f32.mrf.mxu0
      %v2124 = vadd.f32 0.0, %v2123
      %v2125 = vpop.f32.mrf.mxu0
      %v2126 = vadd.f32 0.0, %v2125
      %2127 = vmatmul.bf16.gmra.mxu0 %v1435
      %v2128 = vpop.f32.mrf.mxu0
      %v2129 = vadd.f32 0.0, %v2128
      %v2130 = vpop.f32.mrf.mxu0
      %v2131 = vadd.f32 0.0, %v2130
      %2132 = vmatmul.bf16.gmra.mxu0 %v1444
      %v2133 = vpop.f32.mrf.mxu0
      %v2134 = vadd.f32 0.0, %v2133
      %v2135 = vpop.f32.mrf.mxu0
      %v2136 = vadd.f32 0.0, %v2135
      %2137 = vmatmul.bf16.gmra.mxu0 %v1453
      %v2138 = vpop.f32.mrf.mxu0
      %v2139 = vadd.f32 0.0, %v2138
      %v2140 = vpop.f32.mrf.mxu0
      %v2141 = vadd.f32 0.0, %v2140
      %2142 = vmatmul.bf16.gmra.mxu0 %v1462
      %v2143 = vpop.f32.mrf.mxu0
      %v2144 = vadd.f32 0.0, %v2143
      %v2145 = vpop.f32.mrf.mxu0
      %v2146 = vadd.f32 0.0, %v2145
      %2147 = vmatmul.bf16.gmra.mxu0 %v1471
      %v2148 = vpop.f32.mrf.mxu0
      %v2149 = vadd.f32 0.0, %v2148
      %v2150 = vpop.f32.mrf.mxu0
      %v2151 = vadd.f32 0.0, %v2150
      %2152 = vmatmul.bf16.gmra.mxu0 %v1480
      %v2153 = vpop.f32.mrf.mxu0
      %v2154 = vadd.f32 0.0, %v2153
      %v2155 = vpop.f32.mrf.mxu0
      %v2156 = vadd.f32 0.0, %v2155
      %2157 = vmatmul.bf16.gmra.mxu0 %v1489
      %v2158 = vpop.f32.mrf.mxu0
      %v2159 = vadd.f32 0.0, %v2158
      %v2160 = vpop.f32.mrf.mxu0
      %v2161 = vadd.f32 0.0, %v2160
      %2162 = vdwg.mxu0
      %2163 = vmatpush.bf16.msra.mxu0 %v1945
      %2164 = vmatpush.bf16.msra.mxu0 %v1944
      %2165 = vmatpush.bf16.msra.mxu0 %v1943
      %2166 = vmatpush.bf16.msra.mxu0 %v1942
      %2167 = vmatpush.bf16.msra.mxu0 %v1941
      %2168 = vmatpush.bf16.msra.mxu0 %v1940
      %2169 = vmatpush.bf16.msra.mxu0 %v1939
      %2170 = vmatpush.bf16.msra.mxu0 %v1938
      %2171 = vmatmul.bf16.gmra.mxu0 %v1355
      %v2172 = vpop.f32.mrf.mxu0
      %v2173 = vadd.f32 %v2084, %v2172
      %v2174 = vpop.f32.mrf.mxu0
      %v2175 = vadd.f32 %v2086, %v2174
      %2176 = vmatmul.bf16.gmra.mxu0 %v1364
      %v2177 = vpop.f32.mrf.mxu0
      %v2178 = vadd.f32 %v2089, %v2177
      %v2179 = vpop.f32.mrf.mxu0
      %v2180 = vadd.f32 %v2091, %v2179
      %2181 = vmatmul.bf16.gmra.mxu0 %v1373
      %v2182 = vpop.f32.mrf.mxu0
      %v2183 = vadd.f32 %v2094, %v2182
      %v2184 = vpop.f32.mrf.mxu0
      %v2185 = vadd.f32 %v2096, %v2184
      %2186 = vmatmul.bf16.gmra.mxu0 %v1382
      %v2187 = vpop.f32.mrf.mxu0
      %v2188 = vadd.f32 %v2099, %v2187
      %v2189 = vpop.f32.mrf.mxu0
      %v2190 = vadd.f32 %v2101, %v2189
      %2191 = vmatmul.bf16.gmra.mxu0 %v1391
      %v2192 = vpop.f32.mrf.mxu0
      %v2193 = vadd.f32 %v2104, %v2192
      %v2194 = vpop.f32.mrf.mxu0
      %v2195 = vadd.f32 %v2106, %v2194
      %2196 = vmatmul.bf16.gmra.mxu0 %v1400
      %v2197 = vpop.f32.mrf.mxu0
      %v2198 = vadd.f32 %v2109, %v2197
      %v2199 = vpop.f32.mrf.mxu0
      %v2200 = vadd.f32 %v2111, %v2199
      %2201 = vmatmul.bf16.gmra.mxu0 %v1409
      %v2202 = vpop.f32.mrf.mxu0
      %v2203 = vadd.f32 %v2114, %v2202
      %v2204 = vpop.f32.mrf.mxu0
      %v2205 = vadd.f32 %v2116, %v2204
      %2206 = vmatmul.bf16.gmra.mxu0 %v1418
      %v2207 = vpop.f32.mrf.mxu0
      %v2208 = vadd.f32 %v2119, %v2207
      %v2209 = vpop.f32.mrf.mxu0
      %v2210 = vadd.f32 %v2121, %v2209
      %2211 = vmatmul.bf16.gmra.mxu0 %v1427
      %v2212 = vpop.f32.mrf.mxu0
      %v2213 = vadd.f32 %v2124, %v2212
      %v2214 = vpop.f32.mrf.mxu0
      %v2215 = vadd.f32 %v2126, %v2214
      %2216 = vmatmul.bf16.gmra.mxu0 %v1436
      %v2217 = vpop.f32.mrf.mxu0
      %v2218 = vadd.f32 %v2129, %v2217
      %v2219 = vpop.f32.mrf.mxu0
      %v2220 = vadd.f32 %v2131, %v2219
      %2221 = vmatmul.bf16.gmra.mxu0 %v1445
      %v2222 = vpop.f32.mrf.mxu0
      %v2223 = vadd.f32 %v2134, %v2222
      %v2224 = vpop.f32.mrf.mxu0
      %v2225 = vadd.f32 %v2136, %v2224
      %2226 = vmatmul.bf16.gmra.mxu0 %v1454
      %v2227 = vpop.f32.mrf.mxu0
      %v2228 = vadd.f32 %v2139, %v2227
      %v2229 = vpop.f32.mrf.mxu0
      %v2230 = vadd.f32 %v2141, %v2229
      %2231 = vmatmul.bf16.gmra.mxu0 %v1463
      %v2232 = vpop.f32.mrf.mxu0
      %v2233 = vadd.f32 %v2144, %v2232
      %v2234 = vpop.f32.mrf.mxu0
      %v2235 = vadd.f32 %v2146, %v2234
      %2236 = vmatmul.bf16.gmra.mxu0 %v1472
      %v2237 = vpop.f32.mrf.mxu0
      %v2238 = vadd.f32 %v2149, %v2237
      %v2239 = vpop.f32.mrf.mxu0
      %v2240 = vadd.f32 %v2151, %v2239
      %2241 = vmatmul.bf16.gmra.mxu0 %v1481
      %v2242 = vpop.f32.mrf.mxu0
      %v2243 = vadd.f32 %v2154, %v2242
      %v2244 = vpop.f32.mrf.mxu0
      %v2245 = vadd.f32 %v2156, %v2244
      %2246 = vmatmul.bf16.gmra.mxu0 %v1490
      %v2247 = vpop.f32.mrf.mxu0
      %v2248 = vadd.f32 %v2159, %v2247
      %v2249 = vpop.f32.mrf.mxu0
      %v2250 = vadd.f32 %v2161, %v2249
      %2251 = vdwg.mxu0
      %2252 = vmatpush.bf16.msra.mxu0 %v1953
      %2253 = vmatpush.bf16.msra.mxu0 %v1952
      %2254 = vmatpush.bf16.msra.mxu0 %v1951
      %2255 = vmatpush.bf16.msra.mxu0 %v1950
      %2256 = vmatpush.bf16.msra.mxu0 %v1949
      %2257 = vmatpush.bf16.msra.mxu0 %v1948
      %2258 = vmatpush.bf16.msra.mxu0 %v1947
      %2259 = vmatpush.bf16.msra.mxu0 %v1946
      %2260 = vmatmul.bf16.gmra.mxu0 %v1356
      %v2261 = vpop.f32.mrf.mxu0
      %v2262 = vadd.f32 %v2173, %v2261
      %v2263 = vpop.f32.mrf.mxu0
      %v2264 = vadd.f32 %v2175, %v2263
      %2265 = vmatmul.bf16.gmra.mxu0 %v1365
      %v2266 = vpop.f32.mrf.mxu0
      %v2267 = vadd.f32 %v2178, %v2266
      %v2268 = vpop.f32.mrf.mxu0
      %v2269 = vadd.f32 %v2180, %v2268
      %2270 = vmatmul.bf16.gmra.mxu0 %v1374
      %v2271 = vpop.f32.mrf.mxu0
      %v2272 = vadd.f32 %v2183, %v2271
      %v2273 = vpop.f32.mrf.mxu0
      %v2274 = vadd.f32 %v2185, %v2273
      %2275 = vmatmul.bf16.gmra.mxu0 %v1383
      %v2276 = vpop.f32.mrf.mxu0
      %v2277 = vadd.f32 %v2188, %v2276
      %v2278 = vpop.f32.mrf.mxu0
      %v2279 = vadd.f32 %v2190, %v2278
      %2280 = vmatmul.bf16.gmra.mxu0 %v1392
      %v2281 = vpop.f32.mrf.mxu0
      %v2282 = vadd.f32 %v2193, %v2281
      %v2283 = vpop.f32.mrf.mxu0
      %v2284 = vadd.f32 %v2195, %v2283
      %2285 = vmatmul.bf16.gmra.mxu0 %v1401
      %v2286 = vpop.f32.mrf.mxu0
      %v2287 = vadd.f32 %v2198, %v2286
      %v2288 = vpop.f32.mrf.mxu0
      %v2289 = vadd.f32 %v2200, %v2288
      %2290 = vmatmul.bf16.gmra.mxu0 %v1410
      %v2291 = vpop.f32.mrf.mxu0
      %v2292 = vadd.f32 %v2203, %v2291
      %v2293 = vpop.f32.mrf.mxu0
      %v2294 = vadd.f32 %v2205, %v2293
      %2295 = vmatmul.bf16.gmra.mxu0 %v1419
      %v2296 = vpop.f32.mrf.mxu0
      %v2297 = vadd.f32 %v2208, %v2296
      %v2298 = vpop.f32.mrf.mxu0
      %v2299 = vadd.f32 %v2210, %v2298
      %2300 = vmatmul.bf16.gmra.mxu0 %v1428
      %v2301 = vpop.f32.mrf.mxu0
      %v2302 = vadd.f32 %v2213, %v2301
      %v2303 = vpop.f32.mrf.mxu0
      %v2304 = vadd.f32 %v2215, %v2303
      %2305 = vmatmul.bf16.gmra.mxu0 %v1437
      %v2306 = vpop.f32.mrf.mxu0
      %v2307 = vadd.f32 %v2218, %v2306
      %v2308 = vpop.f32.mrf.mxu0
      %v2309 = vadd.f32 %v2220, %v2308
      %2310 = vmatmul.bf16.gmra.mxu0 %v1446
      %v2311 = vpop.f32.mrf.mxu0
      %v2312 = vadd.f32 %v2223, %v2311
      %v2313 = vpop.f32.mrf.mxu0
      %v2314 = vadd.f32 %v2225, %v2313
      %2315 = vmatmul.bf16.gmra.mxu0 %v1455
      %v2316 = vpop.f32.mrf.mxu0
      %v2317 = vadd.f32 %v2228, %v2316
      %v2318 = vpop.f32.mrf.mxu0
      %v2319 = vadd.f32 %v2230, %v2318
      %2320 = vmatmul.bf16.gmra.mxu0 %v1464
      %v2321 = vpop.f32.mrf.mxu0
      %v2322 = vadd.f32 %v2233, %v2321
      %v2323 = vpop.f32.mrf.mxu0
      %v2324 = vadd.f32 %v2235, %v2323
      %2325 = vmatmul.bf16.gmra.mxu0 %v1473
      %v2326 = vpop.f32.mrf.mxu0
      %v2327 = vadd.f32 %v2238, %v2326
      %v2328 = vpop.f32.mrf.mxu0
      %v2329 = vadd.f32 %v2240, %v2328
      %2330 = vmatmul.bf16.gmra.mxu0 %v1482
      %v2331 = vpop.f32.mrf.mxu0
      %v2332 = vadd.f32 %v2243, %v2331
      %v2333 = vpop.f32.mrf.mxu0
      %v2334 = vadd.f32 %v2245, %v2333
      %2335 = vmatmul.bf16.gmra.mxu0 %v1491
      %v2336 = vpop.f32.mrf.mxu0
      %v2337 = vadd.f32 %v2248, %v2336
      %v2338 = vpop.f32.mrf.mxu0
      %v2339 = vadd.f32 %v2250, %v2338
      %2340 = vdwg.mxu0
      %2341 = vmatpush.bf16.msra.mxu0 %v1961
      %2342 = vmatpush.bf16.msra.mxu0 %v1960
      %2343 = vmatpush.bf16.msra.mxu0 %v1959
      %2344 = vmatpush.bf16.msra.mxu0 %v1958
      %2345 = vmatpush.bf16.msra.mxu0 %v1957
      %2346 = vmatpush.bf16.msra.mxu0 %v1956
      %2347 = vmatpush.bf16.msra.mxu0 %v1955
      %2348 = vmatpush.bf16.msra.mxu0 %v1954
      %2349 = vmatmul.bf16.gmra.mxu0 %v1357
      %v2350 = vpop.f32.mrf.mxu0
      %v2351 = vadd.f32 %v2262, %v2350
      %v2352 = vpop.f32.mrf.mxu0
      %v2353 = vadd.f32 %v2264, %v2352
      %2354 = vmatmul.bf16.gmra.mxu0 %v1366
      %v2355 = vpop.f32.mrf.mxu0
      %v2356 = vadd.f32 %v2267, %v2355
      %v2357 = vpop.f32.mrf.mxu0
      %v2358 = vadd.f32 %v2269, %v2357
      %2359 = vmatmul.bf16.gmra.mxu0 %v1375
      %v2360 = vpop.f32.mrf.mxu0
      %v2361 = vadd.f32 %v2272, %v2360
      %v2362 = vpop.f32.mrf.mxu0
      %v2363 = vadd.f32 %v2274, %v2362
      %2364 = vmatmul.bf16.gmra.mxu0 %v1384
      %v2365 = vpop.f32.mrf.mxu0
      %v2366 = vadd.f32 %v2277, %v2365
      %v2367 = vpop.f32.mrf.mxu0
      %v2368 = vadd.f32 %v2279, %v2367
      %2369 = vmatmul.bf16.gmra.mxu0 %v1393
      %v2370 = vpop.f32.mrf.mxu0
      %v2371 = vadd.f32 %v2282, %v2370
      %v2372 = vpop.f32.mrf.mxu0
      %v2373 = vadd.f32 %v2284, %v2372
      %2374 = vmatmul.bf16.gmra.mxu0 %v1402
      %v2375 = vpop.f32.mrf.mxu0
      %v2376 = vadd.f32 %v2287, %v2375
      %v2377 = vpop.f32.mrf.mxu0
      %v2378 = vadd.f32 %v2289, %v2377
      %2379 = vmatmul.bf16.gmra.mxu0 %v1411
      %v2380 = vpop.f32.mrf.mxu0
      %v2381 = vadd.f32 %v2292, %v2380
      %v2382 = vpop.f32.mrf.mxu0
      %v2383 = vadd.f32 %v2294, %v2382
      %2384 = vmatmul.bf16.gmra.mxu0 %v1420
      %v2385 = vpop.f32.mrf.mxu0
      %v2386 = vadd.f32 %v2297, %v2385
      %v2387 = vpop.f32.mrf.mxu0
      %v2388 = vadd.f32 %v2299, %v2387
      %2389 = vmatmul.bf16.gmra.mxu0 %v1429
      %v2390 = vpop.f32.mrf.mxu0
      %v2391 = vadd.f32 %v2302, %v2390
      %v2392 = vpop.f32.mrf.mxu0
      %v2393 = vadd.f32 %v2304, %v2392
      %2394 = vmatmul.bf16.gmra.mxu0 %v1438
      %v2395 = vpop.f32.mrf.mxu0
      %v2396 = vadd.f32 %v2307, %v2395
      %v2397 = vpop.f32.mrf.mxu0
      %v2398 = vadd.f32 %v2309, %v2397
      %2399 = vmatmul.bf16.gmra.mxu0 %v1447
      %v2400 = vpop.f32.mrf.mxu0
      %v2401 = vadd.f32 %v2312, %v2400
      %v2402 = vpop.f32.mrf.mxu0
      %v2403 = vadd.f32 %v2314, %v2402
      %2404 = vmatmul.bf16.gmra.mxu0 %v1456
      %v2405 = vpop.f32.mrf.mxu0
      %v2406 = vadd.f32 %v2317, %v2405
      %v2407 = vpop.f32.mrf.mxu0
      %v2408 = vadd.f32 %v2319, %v2407
      %2409 = vmatmul.bf16.gmra.mxu0 %v1465
      %v2410 = vpop.f32.mrf.mxu0
      %v2411 = vadd.f32 %v2322, %v2410
      %v2412 = vpop.f32.mrf.mxu0
      %v2413 = vadd.f32 %v2324, %v2412
      %2414 = vmatmul.bf16.gmra.mxu0 %v1474
      %v2415 = vpop.f32.mrf.mxu0
      %v2416 = vadd.f32 %v2327, %v2415
      %v2417 = vpop.f32.mrf.mxu0
      %v2418 = vadd.f32 %v2329, %v2417
      %2419 = vmatmul.bf16.gmra.mxu0 %v1483
      %v2420 = vpop.f32.mrf.mxu0
      %v2421 = vadd.f32 %v2332, %v2420
      %v2422 = vpop.f32.mrf.mxu0
      %v2423 = vadd.f32 %v2334, %v2422
      %2424 = vmatmul.bf16.gmra.mxu0 %v1492
      %v2425 = vpop.f32.mrf.mxu0
      %v2426 = vadd.f32 %v2337, %v2425
      %v2427 = vpop.f32.mrf.mxu0
      %v2428 = vadd.f32 %v2339, %v2427
      %2429 = vdwg.mxu0
      %2430 = vmatpush.bf16.msra.mxu0 %v1969
      %2431 = vmatpush.bf16.msra.mxu0 %v1968
      %2432 = vmatpush.bf16.msra.mxu0 %v1967
      %2433 = vmatpush.bf16.msra.mxu0 %v1966
      %2434 = vmatpush.bf16.msra.mxu0 %v1965
      %2435 = vmatpush.bf16.msra.mxu0 %v1964
      %2436 = vmatpush.bf16.msra.mxu0 %v1963
      %2437 = vmatpush.bf16.msra.mxu0 %v1962
      %2438 = vmatmul.bf16.gmra.mxu0 %v1358
      %v2439 = vpop.f32.mrf.mxu0
      %v2440 = vadd.f32 %v2351, %v2439
      %v2441 = vpop.f32.mrf.mxu0
      %v2442 = vadd.f32 %v2353, %v2441
      %2443 = vmatmul.bf16.gmra.mxu0 %v1367
      %v2444 = vpop.f32.mrf.mxu0
      %v2445 = vadd.f32 %v2356, %v2444
      %v2446 = vpop.f32.mrf.mxu0
      %v2447 = vadd.f32 %v2358, %v2446
      %2448 = vmatmul.bf16.gmra.mxu0 %v1376
      %v2449 = vpop.f32.mrf.mxu0
      %v2450 = vadd.f32 %v2361, %v2449
      %v2451 = vpop.f32.mrf.mxu0
      %v2452 = vadd.f32 %v2363, %v2451
      %2453 = vmatmul.bf16.gmra.mxu0 %v1385
      %v2454 = vpop.f32.mrf.mxu0
      %v2455 = vadd.f32 %v2366, %v2454
      %v2456 = vpop.f32.mrf.mxu0
      %v2457 = vadd.f32 %v2368, %v2456
      %2458 = vmatmul.bf16.gmra.mxu0 %v1394
      %v2459 = vpop.f32.mrf.mxu0
      %v2460 = vadd.f32 %v2371, %v2459
      %v2461 = vpop.f32.mrf.mxu0
      %v2462 = vadd.f32 %v2373, %v2461
      %2463 = vmatmul.bf16.gmra.mxu0 %v1403
      %v2464 = vpop.f32.mrf.mxu0
      %v2465 = vadd.f32 %v2376, %v2464
      %v2466 = vpop.f32.mrf.mxu0
      %v2467 = vadd.f32 %v2378, %v2466
      %2468 = vmatmul.bf16.gmra.mxu0 %v1412
      %v2469 = vpop.f32.mrf.mxu0
      %v2470 = vadd.f32 %v2381, %v2469
      %v2471 = vpop.f32.mrf.mxu0
      %v2472 = vadd.f32 %v2383, %v2471
      %2473 = vmatmul.bf16.gmra.mxu0 %v1421
      %v2474 = vpop.f32.mrf.mxu0
      %v2475 = vadd.f32 %v2386, %v2474
      %v2476 = vpop.f32.mrf.mxu0
      %v2477 = vadd.f32 %v2388, %v2476
      %2478 = vmatmul.bf16.gmra.mxu0 %v1430
      %v2479 = vpop.f32.mrf.mxu0
      %v2480 = vadd.f32 %v2391, %v2479
      %v2481 = vpop.f32.mrf.mxu0
      %v2482 = vadd.f32 %v2393, %v2481
      %2483 = vmatmul.bf16.gmra.mxu0 %v1439
      %v2484 = vpop.f32.mrf.mxu0
      %v2485 = vadd.f32 %v2396, %v2484
      %v2486 = vpop.f32.mrf.mxu0
      %v2487 = vadd.f32 %v2398, %v2486
      %2488 = vmatmul.bf16.gmra.mxu0 %v1448
      %v2489 = vpop.f32.mrf.mxu0
      %v2490 = vadd.f32 %v2401, %v2489
      %v2491 = vpop.f32.mrf.mxu0
      %v2492 = vadd.f32 %v2403, %v2491
      %2493 = vmatmul.bf16.gmra.mxu0 %v1457
      %v2494 = vpop.f32.mrf.mxu0
      %v2495 = vadd.f32 %v2406, %v2494
      %v2496 = vpop.f32.mrf.mxu0
      %v2497 = vadd.f32 %v2408, %v2496
      %2498 = vmatmul.bf16.gmra.mxu0 %v1466
      %v2499 = vpop.f32.mrf.mxu0
      %v2500 = vadd.f32 %v2411, %v2499
      %v2501 = vpop.f32.mrf.mxu0
      %v2502 = vadd.f32 %v2413, %v2501
      %2503 = vmatmul.bf16.gmra.mxu0 %v1475
      %v2504 = vpop.f32.mrf.mxu0
      %v2505 = vadd.f32 %v2416, %v2504
      %v2506 = vpop.f32.mrf.mxu0
      %v2507 = vadd.f32 %v2418, %v2506
      %2508 = vmatmul.bf16.gmra.mxu0 %v1484
      %v2509 = vpop.f32.mrf.mxu0
      %v2510 = vadd.f32 %v2421, %v2509
      %v2511 = vpop.f32.mrf.mxu0
      %v2512 = vadd.f32 %v2423, %v2511
      %2513 = vmatmul.bf16.gmra.mxu0 %v1493
      %v2514 = vpop.f32.mrf.mxu0
      %v2515 = vadd.f32 %v2426, %v2514
      %v2516 = vpop.f32.mrf.mxu0
      %v2517 = vadd.f32 %v2428, %v2516
      %2518 = vdwg.mxu0
      %2519 = vmatpush.bf16.msra.mxu0 %v1977
      %2520 = vmatpush.bf16.msra.mxu0 %v1976
      %2521 = vmatpush.bf16.msra.mxu0 %v1975
      %2522 = vmatpush.bf16.msra.mxu0 %v1974
      %2523 = vmatpush.bf16.msra.mxu0 %v1973
      %2524 = vmatpush.bf16.msra.mxu0 %v1972
      %2525 = vmatpush.bf16.msra.mxu0 %v1971
      %2526 = vmatpush.bf16.msra.mxu0 %v1970
      %2527 = vmatmul.bf16.gmra.mxu0 %v1359
      %v2528 = vpop.f32.mrf.mxu0
      %v2529 = vadd.f32 %v2440, %v2528
      %v2530 = vpop.f32.mrf.mxu0
      %v2531 = vadd.f32 %v2442, %v2530
      %2532 = vmatmul.bf16.gmra.mxu0 %v1368
      %v2533 = vpop.f32.mrf.mxu0
      %v2534 = vadd.f32 %v2445, %v2533
      %v2535 = vpop.f32.mrf.mxu0
      %v2536 = vadd.f32 %v2447, %v2535
      %2537 = vmatmul.bf16.gmra.mxu0 %v1377
      %v2538 = vpop.f32.mrf.mxu0
      %v2539 = vadd.f32 %v2450, %v2538
      %v2540 = vpop.f32.mrf.mxu0
      %v2541 = vadd.f32 %v2452, %v2540
      %2542 = vmatmul.bf16.gmra.mxu0 %v1386
      %v2543 = vpop.f32.mrf.mxu0
      %v2544 = vadd.f32 %v2455, %v2543
      %v2545 = vpop.f32.mrf.mxu0
      %v2546 = vadd.f32 %v2457, %v2545
      %2547 = vmatmul.bf16.gmra.mxu0 %v1395
      %v2548 = vpop.f32.mrf.mxu0
      %v2549 = vadd.f32 %v2460, %v2548
      %v2550 = vpop.f32.mrf.mxu0
      %v2551 = vadd.f32 %v2462, %v2550
      %2552 = vmatmul.bf16.gmra.mxu0 %v1404
      %v2553 = vpop.f32.mrf.mxu0
      %v2554 = vadd.f32 %v2465, %v2553
      %v2555 = vpop.f32.mrf.mxu0
      %v2556 = vadd.f32 %v2467, %v2555
      %2557 = vmatmul.bf16.gmra.mxu0 %v1413
      %v2558 = vpop.f32.mrf.mxu0
      %v2559 = vadd.f32 %v2470, %v2558
      %v2560 = vpop.f32.mrf.mxu0
      %v2561 = vadd.f32 %v2472, %v2560
      %2562 = vmatmul.bf16.gmra.mxu0 %v1422
      %v2563 = vpop.f32.mrf.mxu0
      %v2564 = vadd.f32 %v2475, %v2563
      %v2565 = vpop.f32.mrf.mxu0
      %v2566 = vadd.f32 %v2477, %v2565
      %2567 = vmatmul.bf16.gmra.mxu0 %v1431
      %v2568 = vpop.f32.mrf.mxu0
      %v2569 = vadd.f32 %v2480, %v2568
      %v2570 = vpop.f32.mrf.mxu0
      %v2571 = vadd.f32 %v2482, %v2570
      %2572 = vmatmul.bf16.gmra.mxu0 %v1440
      %v2573 = vpop.f32.mrf.mxu0
      %v2574 = vadd.f32 %v2485, %v2573
      %v2575 = vpop.f32.mrf.mxu0
      %v2576 = vadd.f32 %v2487, %v2575
      %2577 = vmatmul.bf16.gmra.mxu0 %v1449
      %v2578 = vpop.f32.mrf.mxu0
      %v2579 = vadd.f32 %v2490, %v2578
      %v2580 = vpop.f32.mrf.mxu0
      %v2581 = vadd.f32 %v2492, %v2580
      %2582 = vmatmul.bf16.gmra.mxu0 %v1458
      %v2583 = vpop.f32.mrf.mxu0
      %v2584 = vadd.f32 %v2495, %v2583
      %v2585 = vpop.f32.mrf.mxu0
      %v2586 = vadd.f32 %v2497, %v2585
      %2587 = vmatmul.bf16.gmra.mxu0 %v1467
      %v2588 = vpop.f32.mrf.mxu0
      %v2589 = vadd.f32 %v2500, %v2588
      %v2590 = vpop.f32.mrf.mxu0
      %v2591 = vadd.f32 %v2502, %v2590
      %2592 = vmatmul.bf16.gmra.mxu0 %v1476
      %v2593 = vpop.f32.mrf.mxu0
      %v2594 = vadd.f32 %v2505, %v2593
      %v2595 = vpop.f32.mrf.mxu0
      %v2596 = vadd.f32 %v2507, %v2595
      %2597 = vmatmul.bf16.gmra.mxu0 %v1485
      %v2598 = vpop.f32.mrf.mxu0
      %v2599 = vadd.f32 %v2510, %v2598
      %v2600 = vpop.f32.mrf.mxu0
      %v2601 = vadd.f32 %v2512, %v2600
      %2602 = vmatmul.bf16.gmra.mxu0 %v1494
      %v2603 = vpop.f32.mrf.mxu0
      %v2604 = vadd.f32 %v2515, %v2603
      %v2605 = vpop.f32.mrf.mxu0
      %v2606 = vadd.f32 %v2517, %v2605
      %2607 = vdwg.mxu0
      %2608 = vmatpush.bf16.msra.mxu0 %v1985
      %2609 = vmatpush.bf16.msra.mxu0 %v1984
      %2610 = vmatpush.bf16.msra.mxu0 %v1983
      %2611 = vmatpush.bf16.msra.mxu0 %v1982
      %2612 = vmatpush.bf16.msra.mxu0 %v1981
      %2613 = vmatpush.bf16.msra.mxu0 %v1980
      %2614 = vmatpush.bf16.msra.mxu0 %v1979
      %2615 = vmatpush.bf16.msra.mxu0 %v1978
      %2616 = vmatmul.bf16.gmra.mxu0 %v1360
      %v2617 = vpop.f32.mrf.mxu0
      %v2618 = vadd.f32 %v2529, %v2617
      %v2619 = vpop.f32.mrf.mxu0
      %v2620 = vadd.f32 %v2531, %v2619
      %2621 = vmatmul.bf16.gmra.mxu0 %v1369
      %v2622 = vpop.f32.mrf.mxu0
      %v2623 = vadd.f32 %v2534, %v2622
      %v2624 = vpop.f32.mrf.mxu0
      %v2625 = vadd.f32 %v2536, %v2624
      %2626 = vmatmul.bf16.gmra.mxu0 %v1378
      %v2627 = vpop.f32.mrf.mxu0
      %v2628 = vadd.f32 %v2539, %v2627
      %v2629 = vpop.f32.mrf.mxu0
      %v2630 = vadd.f32 %v2541, %v2629
      %2631 = vmatmul.bf16.gmra.mxu0 %v1387
      %v2632 = vpop.f32.mrf.mxu0
      %v2633 = vadd.f32 %v2544, %v2632
      %v2634 = vpop.f32.mrf.mxu0
      %v2635 = vadd.f32 %v2546, %v2634
      %2636 = vmatmul.bf16.gmra.mxu0 %v1396
      %v2637 = vpop.f32.mrf.mxu0
      %v2638 = vadd.f32 %v2549, %v2637
      %v2639 = vpop.f32.mrf.mxu0
      %v2640 = vadd.f32 %v2551, %v2639
      %2641 = vmatmul.bf16.gmra.mxu0 %v1405
      %v2642 = vpop.f32.mrf.mxu0
      %v2643 = vadd.f32 %v2554, %v2642
      %v2644 = vpop.f32.mrf.mxu0
      %v2645 = vadd.f32 %v2556, %v2644
      %2646 = vmatmul.bf16.gmra.mxu0 %v1414
      %v2647 = vpop.f32.mrf.mxu0
      %v2648 = vadd.f32 %v2559, %v2647
      %v2649 = vpop.f32.mrf.mxu0
      %v2650 = vadd.f32 %v2561, %v2649
      %2651 = vmatmul.bf16.gmra.mxu0 %v1423
      %v2652 = vpop.f32.mrf.mxu0
      %v2653 = vadd.f32 %v2564, %v2652
      %v2654 = vpop.f32.mrf.mxu0
      %v2655 = vadd.f32 %v2566, %v2654
      %2656 = vmatmul.bf16.gmra.mxu0 %v1432
      %v2657 = vpop.f32.mrf.mxu0
      %v2658 = vadd.f32 %v2569, %v2657
      %v2659 = vpop.f32.mrf.mxu0
      %v2660 = vadd.f32 %v2571, %v2659
      %2661 = vmatmul.bf16.gmra.mxu0 %v1441
      %v2662 = vpop.f32.mrf.mxu0
      %v2663 = vadd.f32 %v2574, %v2662
      %v2664 = vpop.f32.mrf.mxu0
      %v2665 = vadd.f32 %v2576, %v2664
      %2666 = vmatmul.bf16.gmra.mxu0 %v1450
      %v2667 = vpop.f32.mrf.mxu0
      %v2668 = vadd.f32 %v2579, %v2667
      %v2669 = vpop.f32.mrf.mxu0
      %v2670 = vadd.f32 %v2581, %v2669
      %2671 = vmatmul.bf16.gmra.mxu0 %v1459
      %v2672 = vpop.f32.mrf.mxu0
      %v2673 = vadd.f32 %v2584, %v2672
      %v2674 = vpop.f32.mrf.mxu0
      %v2675 = vadd.f32 %v2586, %v2674
      %2676 = vmatmul.bf16.gmra.mxu0 %v1468
      %v2677 = vpop.f32.mrf.mxu0
      %v2678 = vadd.f32 %v2589, %v2677
      %v2679 = vpop.f32.mrf.mxu0
      %v2680 = vadd.f32 %v2591, %v2679
      %2681 = vmatmul.bf16.gmra.mxu0 %v1477
      %v2682 = vpop.f32.mrf.mxu0
      %v2683 = vadd.f32 %v2594, %v2682
      %v2684 = vpop.f32.mrf.mxu0
      %v2685 = vadd.f32 %v2596, %v2684
      %2686 = vmatmul.bf16.gmra.mxu0 %v1486
      %v2687 = vpop.f32.mrf.mxu0
      %v2688 = vadd.f32 %v2599, %v2687
      %v2689 = vpop.f32.mrf.mxu0
      %v2690 = vadd.f32 %v2601, %v2689
      %2691 = vmatmul.bf16.gmra.mxu0 %v1495
      %v2692 = vpop.f32.mrf.mxu0
      %v2693 = vadd.f32 %v2604, %v2692
      %v2694 = vpop.f32.mrf.mxu0
      %v2695 = vadd.f32 %v2606, %v2694
      %2696 = vdwg.mxu0
      %2697 = vmatpush.bf16.msra.mxu0 %v1993
      %2698 = vmatpush.bf16.msra.mxu0 %v1992
      %2699 = vmatpush.bf16.msra.mxu0 %v1991
      %2700 = vmatpush.bf16.msra.mxu0 %v1990
      %2701 = vmatpush.bf16.msra.mxu0 %v1989
      %2702 = vmatpush.bf16.msra.mxu0 %v1988
      %2703 = vmatpush.bf16.msra.mxu0 %v1987
      %2704 = vmatpush.bf16.msra.mxu0 %v1986
      %2705 = vmatmul.bf16.gmra.mxu0 %v1361
      %v2706 = vpop.f32.mrf.mxu0
      %v2707 = vadd.f32 %v2618, %v2706
      %v2708 = vpop.f32.mrf.mxu0
      %v2709 = vadd.f32 %v2620, %v2708
      %2710 = vmatmul.bf16.gmra.mxu0 %v1370
      %v2711 = vpop.f32.mrf.mxu0
      %v2712 = vadd.f32 %v2623, %v2711
      %v2713 = vpop.f32.mrf.mxu0
      %v2714 = vadd.f32 %v2625, %v2713
      %2715 = vmatmul.bf16.gmra.mxu0 %v1379
      %v2716 = vpop.f32.mrf.mxu0
      %v2717 = vadd.f32 %v2628, %v2716
      %v2718 = vpop.f32.mrf.mxu0
      %v2719 = vadd.f32 %v2630, %v2718
      %2720 = vmatmul.bf16.gmra.mxu0 %v1388
      %v2721 = vpop.f32.mrf.mxu0
      %v2722 = vadd.f32 %v2633, %v2721
      %v2723 = vpop.f32.mrf.mxu0
      %v2724 = vadd.f32 %v2635, %v2723
      %2725 = vmatmul.bf16.gmra.mxu0 %v1397
      %v2726 = vpop.f32.mrf.mxu0
      %v2727 = vadd.f32 %v2638, %v2726
      %v2728 = vpop.f32.mrf.mxu0
      %v2729 = vadd.f32 %v2640, %v2728
      %2730 = vmatmul.bf16.gmra.mxu0 %v1406
      %v2731 = vpop.f32.mrf.mxu0
      %v2732 = vadd.f32 %v2643, %v2731
      %v2733 = vpop.f32.mrf.mxu0
      %v2734 = vadd.f32 %v2645, %v2733
      %2735 = vmatmul.bf16.gmra.mxu0 %v1415
      %v2736 = vpop.f32.mrf.mxu0
      %v2737 = vadd.f32 %v2648, %v2736
      %v2738 = vpop.f32.mrf.mxu0
      %v2739 = vadd.f32 %v2650, %v2738
      %2740 = vmatmul.bf16.gmra.mxu0 %v1424
      %v2741 = vpop.f32.mrf.mxu0
      %v2742 = vadd.f32 %v2653, %v2741
      %v2743 = vpop.f32.mrf.mxu0
      %v2744 = vadd.f32 %v2655, %v2743
      %2745 = vmatmul.bf16.gmra.mxu0 %v1433
      %v2746 = vpop.f32.mrf.mxu0
      %v2747 = vadd.f32 %v2658, %v2746
      %v2748 = vpop.f32.mrf.mxu0
      %v2749 = vadd.f32 %v2660, %v2748
      %2750 = vmatmul.bf16.gmra.mxu0 %v1442
      %v2751 = vpop.f32.mrf.mxu0
      %v2752 = vadd.f32 %v2663, %v2751
      %v2753 = vpop.f32.mrf.mxu0
      %v2754 = vadd.f32 %v2665, %v2753
      %2755 = vmatmul.bf16.gmra.mxu0 %v1451
      %v2756 = vpop.f32.mrf.mxu0
      %v2757 = vadd.f32 %v2668, %v2756
      %v2758 = vpop.f32.mrf.mxu0
      %v2759 = vadd.f32 %v2670, %v2758
      %2760 = vmatmul.bf16.gmra.mxu0 %v1460
      %v2761 = vpop.f32.mrf.mxu0
      %v2762 = vadd.f32 %v2673, %v2761
      %v2763 = vpop.f32.mrf.mxu0
      %v2764 = vadd.f32 %v2675, %v2763
      %2765 = vmatmul.bf16.gmra.mxu0 %v1469
      %v2766 = vpop.f32.mrf.mxu0
      %v2767 = vadd.f32 %v2678, %v2766
      %v2768 = vpop.f32.mrf.mxu0
      %v2769 = vadd.f32 %v2680, %v2768
      %2770 = vmatmul.bf16.gmra.mxu0 %v1478
      %v2771 = vpop.f32.mrf.mxu0
      %v2772 = vadd.f32 %v2683, %v2771
      %v2773 = vpop.f32.mrf.mxu0
      %v2774 = vadd.f32 %v2685, %v2773
      %2775 = vmatmul.bf16.gmra.mxu0 %v1487
      %v2776 = vpop.f32.mrf.mxu0
      %v2777 = vadd.f32 %v2688, %v2776
      %v2778 = vpop.f32.mrf.mxu0
      %v2779 = vadd.f32 %v2690, %v2778
      %2780 = vmatmul.bf16.gmra.mxu0 %v1496
      %v2781 = vpop.f32.mrf.mxu0
      %v2782 = vadd.f32 %v2693, %v2781
      %v2783 = vpop.f32.mrf.mxu0
      %v2784 = vadd.f32 %v2695, %v2783
      %2785 = vdwg.mxu0
      %2786 = vmatpush.bf16.msra.mxu0 %v2001
      %2787 = vmatpush.bf16.msra.mxu0 %v2000
      %2788 = vmatpush.bf16.msra.mxu0 %v1999
      %2789 = vmatpush.bf16.msra.mxu0 %v1998
      %2790 = vmatpush.bf16.msra.mxu0 %v1997
      %2791 = vmatpush.bf16.msra.mxu0 %v1996
      %2792 = vmatpush.bf16.msra.mxu0 %v1995
      %2793 = vmatpush.bf16.msra.mxu0 %v1994
      %2794 = vmatmul.bf16.gmra.mxu0 %v1362
      %v2795 = vpop.f32.mrf.mxu0
      %v2796 = vadd.f32 %v2707, %v2795
      %v2797 = vpop.f32.mrf.mxu0
      %v2798 = vadd.f32 %v2709, %v2797
      %2799 = vmatmul.bf16.gmra.mxu0 %v1371
      %v2800 = vpop.f32.mrf.mxu0
      %v2801 = vadd.f32 %v2712, %v2800
      %v2802 = vpop.f32.mrf.mxu0
      %v2803 = vadd.f32 %v2714, %v2802
      %2804 = vmatmul.bf16.gmra.mxu0 %v1380
      %v2805 = vpop.f32.mrf.mxu0
      %v2806 = vadd.f32 %v2717, %v2805
      %v2807 = vpop.f32.mrf.mxu0
      %v2808 = vadd.f32 %v2719, %v2807
      %2809 = vmatmul.bf16.gmra.mxu0 %v1389
      %v2810 = vpop.f32.mrf.mxu0
      %v2811 = vadd.f32 %v2722, %v2810
      %v2812 = vpop.f32.mrf.mxu0
      %v2813 = vadd.f32 %v2724, %v2812
      %2814 = vmatmul.bf16.gmra.mxu0 %v1398
      %v2815 = vpop.f32.mrf.mxu0
      %v2816 = vadd.f32 %v2727, %v2815
      %v2817 = vpop.f32.mrf.mxu0
      %v2818 = vadd.f32 %v2729, %v2817
      %2819 = vmatmul.bf16.gmra.mxu0 %v1407
      %v2820 = vpop.f32.mrf.mxu0
      %v2821 = vadd.f32 %v2732, %v2820
      %v2822 = vpop.f32.mrf.mxu0
      %v2823 = vadd.f32 %v2734, %v2822
      %2824 = vmatmul.bf16.gmra.mxu0 %v1416
      %v2825 = vpop.f32.mrf.mxu0
      %v2826 = vadd.f32 %v2737, %v2825
      %v2827 = vpop.f32.mrf.mxu0
      %v2828 = vadd.f32 %v2739, %v2827
      %2829 = vmatmul.bf16.gmra.mxu0 %v1425
      %v2830 = vpop.f32.mrf.mxu0
      %v2831 = vadd.f32 %v2742, %v2830
      %v2832 = vpop.f32.mrf.mxu0
      %v2833 = vadd.f32 %v2744, %v2832
      %2834 = vmatmul.bf16.gmra.mxu0 %v1434
      %v2835 = vpop.f32.mrf.mxu0
      %v2836 = vadd.f32 %v2747, %v2835
      %v2837 = vpop.f32.mrf.mxu0
      %v2838 = vadd.f32 %v2749, %v2837
      %2839 = vmatmul.bf16.gmra.mxu0 %v1443
      %v2840 = vpop.f32.mrf.mxu0
      %v2841 = vadd.f32 %v2752, %v2840
      %v2842 = vpop.f32.mrf.mxu0
      %v2843 = vadd.f32 %v2754, %v2842
      %2844 = vmatmul.bf16.gmra.mxu0 %v1452
      %v2845 = vpop.f32.mrf.mxu0
      %v2846 = vadd.f32 %v2757, %v2845
      %v2847 = vpop.f32.mrf.mxu0
      %v2848 = vadd.f32 %v2759, %v2847
      %2849 = vmatmul.bf16.gmra.mxu0 %v1461
      %v2850 = vpop.f32.mrf.mxu0
      %v2851 = vadd.f32 %v2762, %v2850
      %v2852 = vpop.f32.mrf.mxu0
      %v2853 = vadd.f32 %v2764, %v2852
      %2854 = vmatmul.bf16.gmra.mxu0 %v1470
      %v2855 = vpop.f32.mrf.mxu0
      %v2856 = vadd.f32 %v2767, %v2855
      %v2857 = vpop.f32.mrf.mxu0
      %v2858 = vadd.f32 %v2769, %v2857
      %2859 = vmatmul.bf16.gmra.mxu0 %v1479
      %v2860 = vpop.f32.mrf.mxu0
      %v2861 = vadd.f32 %v2772, %v2860
      %v2862 = vpop.f32.mrf.mxu0
      %v2863 = vadd.f32 %v2774, %v2862
      %2864 = vmatmul.bf16.gmra.mxu0 %v1488
      %v2865 = vpop.f32.mrf.mxu0
      %v2866 = vadd.f32 %v2777, %v2865
      %v2867 = vpop.f32.mrf.mxu0
      %v2868 = vadd.f32 %v2779, %v2867
      %2869 = vmatmul.bf16.gmra.mxu0 %v1497
      %v2870 = vpop.f32.mrf.mxu0
      %v2871 = vadd.f32 %v2782, %v2870
      %v2872 = vpop.f32.mrf.mxu0
      %v2873 = vadd.f32 %v2784, %v2872
      %2874 = vdwg.mxu0
      %v3035 = vunpack.c.l.b16 %v298
      %v3036 = vunpack.c.h.b16 %v298
      %v3037 = vunpack.c.l.b16 %v299
      %v3038 = vunpack.c.h.b16 %v299
      %v3039 = vunpack.c.l.b16 %v300
      %v3040 = vunpack.c.h.b16 %v300
      %v3041 = vunpack.c.l.b16 %v301
      %v3042 = vunpack.c.h.b16 %v301
      %v3043 = vunpack.c.l.b16 %v302
      %v3044 = vunpack.c.l.b16 %v303
      %v3045 = vunpack.c.h.b16 %v303
      %v3046 = vunpack.c.l.b16 %v304
      %v3047 = vunpack.c.h.b16 %v304
      %v3048 = vunpack.c.l.b16 %v305
      %v3049 = vunpack.c.h.b16 %v305
      %v3050 = vunpack.c.l.b16 %v306
      %v3051 = vunpack.c.h.b16 %v306
      %v3052 = vunpack.c.l.b16 %v307
      %v3053 = vunpack.c.l.b16 %v308
      %v3054 = vunpack.c.h.b16 %v308
      %v3055 = vunpack.c.l.b16 %v309
      %v3056 = vunpack.c.h.b16 %v309
      %v3057 = vunpack.c.l.b16 %v310
      %v3058 = vunpack.c.h.b16 %v310
      %v3059 = vunpack.c.l.b16 %v311
      %v3060 = vunpack.c.h.b16 %v311
      %v3061 = vunpack.c.l.b16 %v312
      %v3062 = vunpack.c.l.b16 %v313
      %v3063 = vunpack.c.h.b16 %v313
      %v3064 = vunpack.c.l.b16 %v314
      %v3065 = vunpack.c.h.b16 %v314
      %v3066 = vunpack.c.l.b16 %v315
      %v3067 = vunpack.c.h.b16 %v315
      %v3068 = vunpack.c.l.b16 %v316
      %v3069 = vunpack.c.h.b16 %v316
      %v3070 = vunpack.c.l.b16 %v317
      %v3071 = vunpack.c.l.b16 %v318
      %v3072 = vunpack.c.h.b16 %v318
      %v3073 = vunpack.c.l.b16 %v319
      %v3074 = vunpack.c.h.b16 %v319
      %v3075 = vunpack.c.l.b16 %v320
      %v3076 = vunpack.c.h.b16 %v320
      %v3077 = vunpack.c.l.b16 %v321
      %v3078 = vunpack.c.h.b16 %v321
      %v3079 = vunpack.c.l.b16 %v322
      %v3080 = vunpack.c.l.b16 %v323
      %v3081 = vunpack.c.h.b16 %v323
      %v3082 = vunpack.c.l.b16 %v324
      %v3083 = vunpack.c.h.b16 %v324
      %v3084 = vunpack.c.l.b16 %v325
      %v3085 = vunpack.c.h.b16 %v325
      %v3086 = vunpack.c.l.b16 %v326
      %v3087 = vunpack.c.h.b16 %v326
      %v3088 = vunpack.c.l.b16 %v327
      %v3089 = vunpack.c.l.b16 %v328
      %v3090 = vunpack.c.h.b16 %v328
      %v3091 = vunpack.c.l.b16 %v329
      %v3092 = vunpack.c.h.b16 %v329
      %v3093 = vunpack.c.l.b16 %v330
      %v3094 = vunpack.c.h.b16 %v330
      %v3095 = vunpack.c.l.b16 %v331
      %v3096 = vunpack.c.h.b16 %v331
      %v3097 = vunpack.c.l.b16 %v332
      %v3098 = vunpack.c.l.b16 %v333
      %v3099 = vunpack.c.h.b16 %v333
      %v3100 = vunpack.c.l.b16 %v334
      %v3101 = vunpack.c.h.b16 %v334
      %v3102 = vunpack.c.l.b16 %v335
      %v3103 = vunpack.c.h.b16 %v335
      %v3104 = vunpack.c.l.b16 %v336
      %v3105 = vunpack.c.h.b16 %v336
      %v3106 = vunpack.c.l.b16 %v337
      %v3107 = vunpack.c.l.b16 %v338
      %v3108 = vunpack.c.h.b16 %v338
      %v3109 = vunpack.c.l.b16 %v339
      %v3110 = vunpack.c.h.b16 %v339
      %v3111 = vunpack.c.l.b16 %v340
      %v3112 = vunpack.c.h.b16 %v340
      %v3113 = vunpack.c.l.b16 %v341
      %v3114 = vunpack.c.h.b16 %v341
      %v3115 = vunpack.c.l.b16 %v342
      %v3116 = vunpack.c.l.b16 %v343
      %v3117 = vunpack.c.h.b16 %v343
      %v3118 = vunpack.c.l.b16 %v344
      %v3119 = vunpack.c.h.b16 %v344
      %v3120 = vunpack.c.l.b16 %v345
      %v3121 = vunpack.c.h.b16 %v345
      %v3122 = vunpack.c.l.b16 %v346
      %v3123 = vunpack.c.h.b16 %v346
      %v3124 = vunpack.c.l.b16 %v347
      %v3125 = vunpack.c.l.b16 %v348
      %v3126 = vunpack.c.h.b16 %v348
      %v3127 = vunpack.c.l.b16 %v349
      %v3128 = vunpack.c.h.b16 %v349
      %v3129 = vunpack.c.l.b16 %v350
      %v3130 = vunpack.c.h.b16 %v350
      %v3131 = vunpack.c.l.b16 %v351
      %v3132 = vunpack.c.h.b16 %v351
      %v3133 = vunpack.c.l.b16 %v352
      %v3134 = vunpack.c.l.b16 %v353
      %v3135 = vunpack.c.h.b16 %v353
      %v3136 = vunpack.c.l.b16 %v354
      %v3137 = vunpack.c.h.b16 %v354
      %v3138 = vunpack.c.l.b16 %v355
      %v3139 = vunpack.c.h.b16 %v355
      %v3140 = vunpack.c.l.b16 %v356
      %v3141 = vunpack.c.h.b16 %v356
      %v3142 = vunpack.c.l.b16 %v357
      %v3143 = vunpack.c.l.b16 %v358
      %v3144 = vunpack.c.h.b16 %v358
      %v3145 = vunpack.c.l.b16 %v359
      %v3146 = vunpack.c.h.b16 %v359
      %v3147 = vunpack.c.l.b16 %v360
      %v3148 = vunpack.c.h.b16 %v360
      %v3149 = vunpack.c.l.b16 %v361
      %v3150 = vunpack.c.h.b16 %v361
      %v3151 = vunpack.c.l.b16 %v362
      %v3152 = vunpack.c.l.b16 %v363
      %v3153 = vunpack.c.h.b16 %v363
      %v3154 = vunpack.c.l.b16 %v364
      %v3155 = vunpack.c.h.b16 %v364
      %v3156 = vunpack.c.l.b16 %v365
      %v3157 = vunpack.c.h.b16 %v365
      %v3158 = vunpack.c.l.b16 %v366
      %v3159 = vunpack.c.h.b16 %v366
      %v3160 = vunpack.c.l.b16 %v367
      %v3161 = vunpack.c.l.b16 %v368
      %v3162 = vunpack.c.h.b16 %v368
      %v3163 = vunpack.c.l.b16 %v369
      %v3164 = vunpack.c.h.b16 %v369
      %v3165 = vunpack.c.l.b16 %v370
      %v3166 = vunpack.c.h.b16 %v370
      %v3167 = vunpack.c.l.b16 %v371
      %v3168 = vunpack.c.h.b16 %v371
      %v3169 = vunpack.c.l.b16 %v372
      %v3170 = vunpack.c.l.b16 %v373
      %v3171 = vunpack.c.h.b16 %v373
      %v3172 = vunpack.c.l.b16 %v374
      %v3173 = vunpack.c.h.b16 %v374
      %v3174 = vunpack.c.l.b16 %v375
      %v3175 = vunpack.c.h.b16 %v375
      %v3176 = vunpack.c.l.b16 %v376
      %v3177 = vunpack.c.h.b16 %v376
      %v3178 = vunpack.c.l.b16 %v377
      %v3179 = vunpack.c.l.b16 %v378
      %v3180 = vunpack.c.h.b16 %v378
      %v3181 = vunpack.c.l.b16 %v379
      %v3182 = vunpack.c.h.b16 %v379
      %v3183 = vunpack.c.l.b16 %v380
      %v3184 = vunpack.c.h.b16 %v380
      %v3185 = vunpack.c.l.b16 %v381
      %v3186 = vunpack.c.h.b16 %v381
      %v3187 = vunpack.c.l.b16 %v382
      %v3188 = vunpack.c.l.b16 %v383
      %v3189 = vunpack.c.h.b16 %v383
      %v3190 = vunpack.c.l.b16 %v384
      %v3191 = vunpack.c.h.b16 %v384
      %v3192 = vunpack.c.l.b16 %v385
      %v3193 = vunpack.c.h.b16 %v385
      %v3194 = vunpack.c.l.b16 %v386
      %v3195 = vunpack.c.h.b16 %v386
      %v3196 = vunpack.c.l.b16 %v387
      %v3197 = vunpack.c.l.b16 %v388
      %v3198 = vunpack.c.h.b16 %v388
      %v3199 = vunpack.c.l.b16 %v389
      %v3200 = vunpack.c.h.b16 %v389
      %v3201 = vunpack.c.l.b16 %v390
      %v3202 = vunpack.c.h.b16 %v390
      %v3203 = vunpack.c.l.b16 %v391
      %v3204 = vunpack.c.h.b16 %v391
      %v3205 = vunpack.c.l.b16 %v392
      %v3206 = vunpack.c.l.b16 %v393
      %v3207 = vunpack.c.h.b16 %v393
      %v3208 = vunpack.c.l.b16 %v394
      %v3209 = vunpack.c.h.b16 %v394
      %v3210 = vunpack.c.l.b16 %v395
      %v3211 = vunpack.c.h.b16 %v395
      %v3212 = vunpack.c.l.b16 %v396
      %v3213 = vunpack.c.h.b16 %v396
      %v3214 = vunpack.c.l.b16 %v397
      %v3215 = vunpack.c.l.b16 %v398
      %v3216 = vunpack.c.h.b16 %v398
      %v3217 = vunpack.c.l.b16 %v399
      %v3218 = vunpack.c.h.b16 %v399
      %v3219 = vunpack.c.l.b16 %v400
      %v3220 = vunpack.c.h.b16 %v400
      %v3221 = vunpack.c.l.b16 %v401
      %v3222 = vunpack.c.h.b16 %v401
      %v3223 = vunpack.c.l.b16 %v402
      %v3224 = vunpack.c.l.b16 %v403
      %v3225 = vunpack.c.h.b16 %v403
      %v3226 = vunpack.c.l.b16 %v404
      %v3227 = vunpack.c.h.b16 %v404
      %v3228 = vunpack.c.l.b16 %v405
      %v3229 = vunpack.c.h.b16 %v405
      %v3230 = vunpack.c.l.b16 %v406
      %v3231 = vunpack.c.h.b16 %v406
      %v3232 = vunpack.c.l.b16 %v407
      %v3233 = vunpack.c.l.b16 %v408
      %v3234 = vunpack.c.h.b16 %v408
      %v3235 = vunpack.c.l.b16 %v409
      %v3236 = vunpack.c.h.b16 %v409
      %v3237 = vunpack.c.l.b16 %v410
      %v3238 = vunpack.c.h.b16 %v410
      %v3239 = vunpack.c.l.b16 %v411
      %v3240 = vunpack.c.h.b16 %v411
      %v3241 = vunpack.c.l.b16 %v412
      %v3242 = vunpack.c.l.b16 %v413
      %v3243 = vunpack.c.h.b16 %v413
      %v3244 = vunpack.c.l.b16 %v414
      %v3245 = vunpack.c.h.b16 %v414
      %v3246 = vunpack.c.l.b16 %v415
      %v3247 = vunpack.c.h.b16 %v415
      %v3248 = vunpack.c.l.b16 %v416
      %v3249 = vunpack.c.h.b16 %v416
      %v3250 = vunpack.c.l.b16 %v417
      %v3251 = vunpack.c.l.b16 %v418
      %v3252 = vunpack.c.h.b16 %v418
      %v3253 = vunpack.c.l.b16 %v419
      %v3254 = vunpack.c.h.b16 %v419
      %v3255 = vunpack.c.l.b16 %v420
      %v3256 = vunpack.c.h.b16 %v420
      %v3257 = vunpack.c.l.b16 %v421
      %v3258 = vunpack.c.h.b16 %v421
      %v3259 = vunpack.c.l.b16 %v422
      %v3260 = vunpack.c.l.b16 %v423
      %v3261 = vunpack.c.h.b16 %v423
      %v3262 = vunpack.c.l.b16 %v424
      %v3263 = vunpack.c.h.b16 %v424
      %v3264 = vunpack.c.l.b16 %v425
      %v3265 = vunpack.c.h.b16 %v425
      %v3266 = vunpack.c.l.b16 %v426
      %v3267 = vunpack.c.h.b16 %v426
      %v3268 = vunpack.c.l.b16 %v427
      %v3269 = vunpack.c.l.b16 %v428
      %v3270 = vunpack.c.h.b16 %v428
      %v3271 = vunpack.c.l.b16 %v429
      %v3272 = vunpack.c.h.b16 %v429
      %v3273 = vunpack.c.l.b16 %v430
      %v3274 = vunpack.c.h.b16 %v430
      %v3275 = vunpack.c.l.b16 %v431
      %v3276 = vunpack.c.h.b16 %v431
      %v3277 = vunpack.c.l.b16 %v432
      %v3278 = vunpack.c.l.b16 %v433
      %v3279 = vunpack.c.h.b16 %v433
      %v3280 = vunpack.c.l.b16 %v434
      %v3281 = vunpack.c.h.b16 %v434
      %v3282 = vunpack.c.l.b16 %v435
      %v3283 = vunpack.c.h.b16 %v435
      %v3284 = vunpack.c.l.b16 %v436
      %v3285 = vunpack.c.h.b16 %v436
      %v3286 = vunpack.c.l.b16 %v437
      %v3287 = vunpack.c.l.b16 %v438
      %v3288 = vunpack.c.h.b16 %v438
      %v3289 = vunpack.c.l.b16 %v439
      %v3290 = vunpack.c.h.b16 %v439
      %v3291 = vunpack.c.l.b16 %v440
      %v3292 = vunpack.c.h.b16 %v440
      %v3293 = vunpack.c.l.b16 %v441
      %v3294 = vunpack.c.h.b16 %v441
      %v3295 = vunpack.c.l.b16 %v442
      %v3296 = vunpack.c.l.b16 %v443
      %v3297 = vunpack.c.h.b16 %v443
      %v3298 = vunpack.c.l.b16 %v444
      %v3299 = vunpack.c.h.b16 %v444
      %v3300 = vunpack.c.l.b16 %v445
      %v3301 = vunpack.c.h.b16 %v445
      %v3302 = vunpack.c.l.b16 %v446
      %v3303 = vunpack.c.h.b16 %v446
      %v3304 = vunpack.c.l.b16 %v447
      %v3305 = vunpack.c.l.b16 %v448
      %v3306 = vunpack.c.h.b16 %v448
      %v3307 = vunpack.c.l.b16 %v449
      %v3308 = vunpack.c.h.b16 %v449
      %v3309 = vunpack.c.l.b16 %v450
      %v3310 = vunpack.c.h.b16 %v450
      %v3311 = vunpack.c.l.b16 %v451
      %v3312 = vunpack.c.h.b16 %v451
      %v3313 = vunpack.c.l.b16 %v452
      %v3314 = vunpack.c.l.b16 %v453
      %v3315 = vunpack.c.h.b16 %v453
      %v3316 = vunpack.c.l.b16 %v454
      %v3317 = vunpack.c.h.b16 %v454
      %v3318 = vunpack.c.l.b16 %v455
      %v3319 = vunpack.c.h.b16 %v455
      %v3320 = vunpack.c.l.b16 %v456
      %v3321 = vunpack.c.h.b16 %v456
      %v3322 = vunpack.c.l.b16 %v457
      %v3323 = vpack.c.b16 %v3044, %v3035
      %v3324 = vpack.c.b16 %v3045, %v3036
      %v3325 = vpack.c.b16 %v3046, %v3037
      %v3326 = vpack.c.b16 %v3047, %v3038
      %v3327 = vpack.c.b16 %v3048, %v3039
      %v3328 = vpack.c.b16 %v3049, %v3040
      %v3329 = vpack.c.b16 %v3050, %v3041
      %v3330 = vpack.c.b16 %v3051, %v3042
      %v3331 = vpack.c.b16 %v3052, %v3043
      %v3332 = vpack.c.b16 %v3062, %v3053
      %v3333 = vpack.c.b16 %v3063, %v3054
      %v3334 = vpack.c.b16 %v3064, %v3055
      %v3335 = vpack.c.b16 %v3065, %v3056
      %v3336 = vpack.c.b16 %v3066, %v3057
      %v3337 = vpack.c.b16 %v3067, %v3058
      %v3338 = vpack.c.b16 %v3068, %v3059
      %v3339 = vpack.c.b16 %v3069, %v3060
      %v3340 = vpack.c.b16 %v3070, %v3061
      %v3341 = vpack.c.b16 %v3080, %v3071
      %v3342 = vpack.c.b16 %v3081, %v3072
      %v3343 = vpack.c.b16 %v3082, %v3073
      %v3344 = vpack.c.b16 %v3083, %v3074
      %v3345 = vpack.c.b16 %v3084, %v3075
      %v3346 = vpack.c.b16 %v3085, %v3076
      %v3347 = vpack.c.b16 %v3086, %v3077
      %v3348 = vpack.c.b16 %v3087, %v3078
      %v3349 = vpack.c.b16 %v3088, %v3079
      %v3350 = vpack.c.b16 %v3098, %v3089
      %v3351 = vpack.c.b16 %v3099, %v3090
      %v3352 = vpack.c.b16 %v3100, %v3091
      %v3353 = vpack.c.b16 %v3101, %v3092
      %v3354 = vpack.c.b16 %v3102, %v3093
      %v3355 = vpack.c.b16 %v3103, %v3094
      %v3356 = vpack.c.b16 %v3104, %v3095
      %v3357 = vpack.c.b16 %v3105, %v3096
      %v3358 = vpack.c.b16 %v3106, %v3097
      %v3359 = vpack.c.b16 %v3116, %v3107
      %v3360 = vpack.c.b16 %v3117, %v3108
      %v3361 = vpack.c.b16 %v3118, %v3109
      %v3362 = vpack.c.b16 %v3119, %v3110
      %v3363 = vpack.c.b16 %v3120, %v3111
      %v3364 = vpack.c.b16 %v3121, %v3112
      %v3365 = vpack.c.b16 %v3122, %v3113
      %v3366 = vpack.c.b16 %v3123, %v3114
      %v3367 = vpack.c.b16 %v3124, %v3115
      %v3368 = vpack.c.b16 %v3134, %v3125
      %v3369 = vpack.c.b16 %v3135, %v3126
      %v3370 = vpack.c.b16 %v3136, %v3127
      %v3371 = vpack.c.b16 %v3137, %v3128
      %v3372 = vpack.c.b16 %v3138, %v3129
      %v3373 = vpack.c.b16 %v3139, %v3130
      %v3374 = vpack.c.b16 %v3140, %v3131
      %v3375 = vpack.c.b16 %v3141, %v3132
      %v3376 = vpack.c.b16 %v3142, %v3133
      %v3377 = vpack.c.b16 %v3152, %v3143
      %v3378 = vpack.c.b16 %v3153, %v3144
      %v3379 = vpack.c.b16 %v3154, %v3145
      %v3380 = vpack.c.b16 %v3155, %v3146
      %v3381 = vpack.c.b16 %v3156, %v3147
      %v3382 = vpack.c.b16 %v3157, %v3148
      %v3383 = vpack.c.b16 %v3158, %v3149
      %v3384 = vpack.c.b16 %v3159, %v3150
      %v3385 = vpack.c.b16 %v3160, %v3151
      %v3386 = vpack.c.b16 %v3170, %v3161
      %v3387 = vpack.c.b16 %v3171, %v3162
      %v3388 = vpack.c.b16 %v3172, %v3163
      %v3389 = vpack.c.b16 %v3173, %v3164
      %v3390 = vpack.c.b16 %v3174, %v3165
      %v3391 = vpack.c.b16 %v3175, %v3166
      %v3392 = vpack.c.b16 %v3176, %v3167
      %v3393 = vpack.c.b16 %v3177, %v3168
      %v3394 = vpack.c.b16 %v3178, %v3169
      %v3395 = vpack.c.b16 %v3188, %v3179
      %v3396 = vpack.c.b16 %v3189, %v3180
      %v3397 = vpack.c.b16 %v3190, %v3181
      %v3398 = vpack.c.b16 %v3191, %v3182
      %v3399 = vpack.c.b16 %v3192, %v3183
      %v3400 = vpack.c.b16 %v3193, %v3184
      %v3401 = vpack.c.b16 %v3194, %v3185
      %v3402 = vpack.c.b16 %v3195, %v3186
      %v3403 = vpack.c.b16 %v3196, %v3187
      %v3404 = vpack.c.b16 %v3206, %v3197
      %v3405 = vpack.c.b16 %v3207, %v3198
      %v3406 = vpack.c.b16 %v3208, %v3199
      %v3407 = vpack.c.b16 %v3209, %v3200
      %v3408 = vpack.c.b16 %v3210, %v3201
      %v3409 = vpack.c.b16 %v3211, %v3202
      %v3410 = vpack.c.b16 %v3212, %v3203
      %v3411 = vpack.c.b16 %v3213, %v3204
      %v3412 = vpack.c.b16 %v3214, %v3205
      %v3413 = vpack.c.b16 %v3224, %v3215
      %v3414 = vpack.c.b16 %v3225, %v3216
      %v3415 = vpack.c.b16 %v3226, %v3217
      %v3416 = vpack.c.b16 %v3227, %v3218
      %v3417 = vpack.c.b16 %v3228, %v3219
      %v3418 = vpack.c.b16 %v3229, %v3220
      %v3419 = vpack.c.b16 %v3230, %v3221
      %v3420 = vpack.c.b16 %v3231, %v3222
      %v3421 = vpack.c.b16 %v3232, %v3223
      %v3422 = vpack.c.b16 %v3242, %v3233
      %v3423 = vpack.c.b16 %v3243, %v3234
      %v3424 = vpack.c.b16 %v3244, %v3235
      %v3425 = vpack.c.b16 %v3245, %v3236
      %v3426 = vpack.c.b16 %v3246, %v3237
      %v3427 = vpack.c.b16 %v3247, %v3238
      %v3428 = vpack.c.b16 %v3248, %v3239
      %v3429 = vpack.c.b16 %v3249, %v3240
      %v3430 = vpack.c.b16 %v3250, %v3241
      %v3431 = vpack.c.b16 %v3260, %v3251
      %v3432 = vpack.c.b16 %v3261, %v3252
      %v3433 = vpack.c.b16 %v3262, %v3253
      %v3434 = vpack.c.b16 %v3263, %v3254
      %v3435 = vpack.c.b16 %v3264, %v3255
      %v3436 = vpack.c.b16 %v3265, %v3256
      %v3437 = vpack.c.b16 %v3266, %v3257
      %v3438 = vpack.c.b16 %v3267, %v3258
      %v3439 = vpack.c.b16 %v3268, %v3259
      %v3440 = vpack.c.b16 %v3278, %v3269
      %v3441 = vpack.c.b16 %v3279, %v3270
      %v3442 = vpack.c.b16 %v3280, %v3271
      %v3443 = vpack.c.b16 %v3281, %v3272
      %v3444 = vpack.c.b16 %v3282, %v3273
      %v3445 = vpack.c.b16 %v3283, %v3274
      %v3446 = vpack.c.b16 %v3284, %v3275
      %v3447 = vpack.c.b16 %v3285, %v3276
      %v3448 = vpack.c.b16 %v3286, %v3277
      %v3449 = vpack.c.b16 %v3296, %v3287
      %v3450 = vpack.c.b16 %v3297, %v3288
      %v3451 = vpack.c.b16 %v3298, %v3289
      %v3452 = vpack.c.b16 %v3299, %v3290
      %v3453 = vpack.c.b16 %v3300, %v3291
      %v3454 = vpack.c.b16 %v3301, %v3292
      %v3455 = vpack.c.b16 %v3302, %v3293
      %v3456 = vpack.c.b16 %v3303, %v3294
      %v3457 = vpack.c.b16 %v3304, %v3295
      %v3458 = vpack.c.b16 %v3314, %v3305
      %v3459 = vpack.c.b16 %v3315, %v3306
      %v3460 = vpack.c.b16 %v3316, %v3307
      %v3461 = vpack.c.b16 %v3317, %v3308
      %v3462 = vpack.c.b16 %v3318, %v3309
      %v3463 = vpack.c.b16 %v3319, %v3310
      %v3464 = vpack.c.b16 %v3320, %v3311
      %v3465 = vpack.c.b16 %v3321, %v3312
      %v3466 = vpack.c.b16 %v3322, %v3313
      %v3755 = vunpack.c.l.b16 %v458
      %v3756 = vunpack.c.l.b16 %v459
      %v3757 = vunpack.c.l.b16 %v460
      %v3758 = vunpack.c.l.b16 %v461
      %v3759 = vunpack.c.l.b16 %v462
      %v3760 = vunpack.c.l.b16 %v463
      %v3761 = vunpack.c.l.b16 %v464
      %v3762 = vunpack.c.l.b16 %v465
      %v3763 = vunpack.c.l.b16 %v466
      %v3764 = vunpack.c.l.b16 %v467
      %v3765 = vunpack.c.l.b16 %v468
      %v3766 = vunpack.c.l.b16 %v469
      %v3767 = vunpack.c.l.b16 %v470
      %v3768 = vunpack.c.l.b16 %v471
      %v3769 = vunpack.c.l.b16 %v472
      %v3770 = vunpack.c.l.b16 %v473
      %v3771 = vunpack.c.l.b16 %v474
      %v3772 = vunpack.c.l.b16 %v475
      %v3773 = vunpack.c.l.b16 %v476
      %v3774 = vunpack.c.l.b16 %v477
      %v3775 = vunpack.c.l.b16 %v478
      %v3776 = vunpack.c.l.b16 %v479
      %v3777 = vunpack.c.l.b16 %v480
      %v3778 = vunpack.c.l.b16 %v481
      %v3779 = vunpack.c.l.b16 %v482
      %v3780 = vunpack.c.l.b16 %v483
      %v3781 = vunpack.c.l.b16 %v484
      %v3782 = vunpack.c.l.b16 %v485
      %v3783 = vunpack.c.l.b16 %v486
      %v3784 = vunpack.c.l.b16 %v487
      %v3785 = vunpack.c.l.b16 %v488
      %v3786 = vunpack.c.l.b16 %v489
      %v3787 = vunpack.c.l.b16 %v490
      %v3788 = vunpack.c.l.b16 %v491
      %v3789 = vunpack.c.l.b16 %v492
      %v3790 = vunpack.c.l.b16 %v493
      %v3791 = vunpack.c.l.b16 %v494
      %v3792 = vunpack.c.l.b16 %v495
      %v3793 = vunpack.c.l.b16 %v496
      %v3794 = vunpack.c.l.b16 %v497
      %v3795 = vunpack.c.l.b16 %v498
      %v3796 = vunpack.c.l.b16 %v499
      %v3797 = vunpack.c.l.b16 %v500
      %v3798 = vunpack.c.l.b16 %v501
      %v3799 = vunpack.c.l.b16 %v502
      %v3800 = vunpack.c.l.b16 %v503
      %v3801 = vunpack.c.l.b16 %v504
      %v3802 = vunpack.c.l.b16 %v505
      %v3803 = vunpack.c.l.b16 %v506
      %v3804 = vunpack.c.l.b16 %v507
      %v3805 = vunpack.c.l.b16 %v508
      %v3806 = vunpack.c.l.b16 %v509
      %v3807 = vunpack.c.l.b16 %v510
      %v3808 = vunpack.c.l.b16 %v511
      %v3809 = vunpack.c.l.b16 %v512
      %v3810 = vunpack.c.l.b16 %v513
      %v3811 = vunpack.c.l.b16 %v514
      %v3812 = vunpack.c.l.b16 %v515
      %v3813 = vunpack.c.l.b16 %v516
      %v3814 = vunpack.c.l.b16 %v517
      %v3815 = vunpack.c.l.b16 %v518
      %v3816 = vunpack.c.l.b16 %v519
      %v3817 = vunpack.c.l.b16 %v520
      %v3818 = vunpack.c.l.b16 %v521
      %v3819 = vunpack.c.l.b16 %v522
      %v3820 = vunpack.c.l.b16 %v523
      %v3821 = vunpack.c.l.b16 %v524
      %v3822 = vunpack.c.l.b16 %v525
      %v3823 = vunpack.c.l.b16 %v526
      %v3824 = vunpack.c.l.b16 %v527
      %v3825 = vunpack.c.l.b16 %v528
      %v3826 = vunpack.c.l.b16 %v529
      %v3827 = vunpack.c.l.b16 %v530
      %v3828 = vunpack.c.l.b16 %v531
      %v3829 = vunpack.c.l.b16 %v532
      %v3830 = vunpack.c.l.b16 %v533
      %v3831 = vunpack.c.l.b16 %v534
      %v3832 = vunpack.c.l.b16 %v535
      %v3833 = vunpack.c.l.b16 %v536
      %v3834 = vunpack.c.l.b16 %v537
      %v3835 = vunpack.c.l.b16 %v538
      %v3836 = vunpack.c.l.b16 %v539
      %v3837 = vunpack.c.l.b16 %v540
      %v3838 = vunpack.c.l.b16 %v541
      %v3839 = vunpack.c.l.b16 %v542
      %v3840 = vunpack.c.l.b16 %v543
      %v3841 = vunpack.c.l.b16 %v544
      %v3842 = vunpack.c.l.b16 %v545
      %v3843 = vunpack.c.l.b16 %v546
      %v3844 = vunpack.c.l.b16 %v547
      %v3845 = vunpack.c.l.b16 %v548
      %v3846 = vunpack.c.l.b16 %v549
      %v3847 = vunpack.c.l.b16 %v550
      %v3848 = vunpack.c.l.b16 %v551
      %v3849 = vunpack.c.l.b16 %v552
      %v3850 = vunpack.c.l.b16 %v553
      %v3851 = vunpack.c.l.b16 %v554
      %v3852 = vunpack.c.l.b16 %v555
      %v3853 = vunpack.c.l.b16 %v556
      %v3854 = vunpack.c.l.b16 %v557
      %v3855 = vunpack.c.l.b16 %v558
      %v3856 = vunpack.c.l.b16 %v559
      %v3857 = vunpack.c.l.b16 %v560
      %v3858 = vunpack.c.l.b16 %v561
      %v3859 = vunpack.c.l.b16 %v562
      %v3860 = vunpack.c.l.b16 %v563
      %v3861 = vunpack.c.l.b16 %v564
      %v3862 = vunpack.c.l.b16 %v565
      %v3863 = vunpack.c.l.b16 %v566
      %v3864 = vunpack.c.l.b16 %v567
      %v3865 = vunpack.c.l.b16 %v568
      %v3866 = vunpack.c.l.b16 %v569
      %v3867 = vunpack.c.l.b16 %v570
      %v3868 = vunpack.c.l.b16 %v571
      %v3869 = vunpack.c.l.b16 %v572
      %v3870 = vunpack.c.l.b16 %v573
      %v3871 = vunpack.c.l.b16 %v574
      %v3872 = vunpack.c.l.b16 %v575
      %v3873 = vunpack.c.l.b16 %v576
      %v3874 = vunpack.c.l.b16 %v577
      %v3875 = vunpack.c.l.b16 %v578
      %v3876 = vunpack.c.l.b16 %v579
      %v3877 = vunpack.c.l.b16 %v580
      %v3878 = vunpack.c.l.b16 %v581
      %v3879 = vunpack.c.l.b16 %v582
      %v3880 = vunpack.c.l.b16 %v583
      %v3881 = vunpack.c.l.b16 %v584
      %v3882 = vunpack.c.l.b16 %v585
      %v3883 = vunpack.c.l.b16 %v586
      %v3884 = vunpack.c.l.b16 %v587
      %v3885 = vunpack.c.l.b16 %v588
      %v3886 = vunpack.c.l.b16 %v589
      %v3887 = vunpack.c.l.b16 %v590
      %v3888 = vunpack.c.l.b16 %v591
      %v3889 = vunpack.c.l.b16 %v592
      %v3890 = vunpack.c.l.b16 %v593
      %v3891 = vunpack.c.l.b16 %v594
      %v3892 = vunpack.c.l.b16 %v595
      %v3893 = vunpack.c.l.b16 %v596
      %v3894 = vunpack.c.l.b16 %v597
      %v3895 = vunpack.c.l.b16 %v598
      %v3896 = vunpack.c.l.b16 %v599
      %v3897 = vunpack.c.l.b16 %v600
      %v3898 = vunpack.c.l.b16 %v601
      %v3899 = vpack.c.b16 %v3756, %v3755
      %v3900 = vpack.c.b16 %v3758, %v3757
      %v3901 = vpack.c.b16 %v3760, %v3759
      %v3902 = vpack.c.b16 %v3762, %v3761
      %v3903 = vpack.c.b16 %v3764, %v3763
      %v3904 = vpack.c.b16 %v3766, %v3765
      %v3905 = vpack.c.b16 %v3768, %v3767
      %v3906 = vpack.c.b16 %v3770, %v3769
      %v3907 = vpack.c.b16 %v3772, %v3771
      %v3908 = vpack.c.b16 %v3774, %v3773
      %v3909 = vpack.c.b16 %v3776, %v3775
      %v3910 = vpack.c.b16 %v3778, %v3777
      %v3911 = vpack.c.b16 %v3780, %v3779
      %v3912 = vpack.c.b16 %v3782, %v3781
      %v3913 = vpack.c.b16 %v3784, %v3783
      %v3914 = vpack.c.b16 %v3786, %v3785
      %v3915 = vpack.c.b16 %v3788, %v3787
      %v3916 = vpack.c.b16 %v3790, %v3789
      %v3917 = vpack.c.b16 %v3792, %v3791
      %v3918 = vpack.c.b16 %v3794, %v3793
      %v3919 = vpack.c.b16 %v3796, %v3795
      %v3920 = vpack.c.b16 %v3798, %v3797
      %v3921 = vpack.c.b16 %v3800, %v3799
      %v3922 = vpack.c.b16 %v3802, %v3801
      %v3923 = vpack.c.b16 %v3804, %v3803
      %v3924 = vpack.c.b16 %v3806, %v3805
      %v3925 = vpack.c.b16 %v3808, %v3807
      %v3926 = vpack.c.b16 %v3810, %v3809
      %v3927 = vpack.c.b16 %v3812, %v3811
      %v3928 = vpack.c.b16 %v3814, %v3813
      %v3929 = vpack.c.b16 %v3816, %v3815
      %v3930 = vpack.c.b16 %v3818, %v3817
      %v3931 = vpack.c.b16 %v3820, %v3819
      %v3932 = vpack.c.b16 %v3822, %v3821
      %v3933 = vpack.c.b16 %v3824, %v3823
      %v3934 = vpack.c.b16 %v3826, %v3825
      %v3935 = vpack.c.b16 %v3828, %v3827
      %v3936 = vpack.c.b16 %v3830, %v3829
      %v3937 = vpack.c.b16 %v3832, %v3831
      %v3938 = vpack.c.b16 %v3834, %v3833
      %v3939 = vpack.c.b16 %v3836, %v3835
      %v3940 = vpack.c.b16 %v3838, %v3837
      %v3941 = vpack.c.b16 %v3840, %v3839
      %v3942 = vpack.c.b16 %v3842, %v3841
      %v3943 = vpack.c.b16 %v3844, %v3843
      %v3944 = vpack.c.b16 %v3846, %v3845
      %v3945 = vpack.c.b16 %v3848, %v3847
      %v3946 = vpack.c.b16 %v3850, %v3849
      %v3947 = vpack.c.b16 %v3852, %v3851
      %v3948 = vpack.c.b16 %v3854, %v3853
      %v3949 = vpack.c.b16 %v3856, %v3855
      %v3950 = vpack.c.b16 %v3858, %v3857
      %v3951 = vpack.c.b16 %v3860, %v3859
      %v3952 = vpack.c.b16 %v3862, %v3861
      %v3953 = vpack.c.b16 %v3864, %v3863
      %v3954 = vpack.c.b16 %v3866, %v3865
      %v3955 = vpack.c.b16 %v3868, %v3867
      %v3956 = vpack.c.b16 %v3870, %v3869
      %v3957 = vpack.c.b16 %v3872, %v3871
      %v3958 = vpack.c.b16 %v3874, %v3873
      %v3959 = vpack.c.b16 %v3876, %v3875
      %v3960 = vpack.c.b16 %v3878, %v3877
      %v3961 = vpack.c.b16 %v3880, %v3879
      %v3962 = vpack.c.b16 %v3882, %v3881
      %v3963 = vpack.c.b16 %v3884, %v3883
      %v3964 = vpack.c.b16 %v3886, %v3885
      %v3965 = vpack.c.b16 %v3888, %v3887
      %v3966 = vpack.c.b16 %v3890, %v3889
      %v3967 = vpack.c.b16 %v3892, %v3891
      %v3968 = vpack.c.b16 %v3894, %v3893
      %v3969 = vpack.c.b16 %v3896, %v3895
      %v3970 = vpack.c.b16 %v3898, %v3897
      %4043 = vmatpush.bf16.msra.mxu0 %v3906
      %4044 = vmatpush.bf16.msra.mxu0 %v3905
      %4045 = vmatpush.bf16.msra.mxu0 %v3904
      %4046 = vmatpush.bf16.msra.mxu0 %v3903
      %4047 = vmatpush.bf16.msra.mxu0 %v3902
      %4048 = vmatpush.bf16.msra.mxu0 %v3901
      %4049 = vmatpush.bf16.msra.mxu0 %v3900
      %4050 = vmatpush.bf16.msra.mxu0 %v3899
      %4051 = vmatmul.bf16.gmra.mxu0 %v3323
      %v4052 = vpop.f32.mrf.mxu0
      %v4053 = vadd.f32 %v2796, %v4052
      %v4054 = vpop.f32.mrf.mxu0
      %v4055 = vadd.f32 %v2798, %v4054
      %4056 = vmatmul.bf16.gmra.mxu0 %v3332
      %v4057 = vpop.f32.mrf.mxu0
      %v4058 = vadd.f32 %v2801, %v4057
      %v4059 = vpop.f32.mrf.mxu0
      %v4060 = vadd.f32 %v2803, %v4059
      %4061 = vmatmul.bf16.gmra.mxu0 %v3341
      %v4062 = vpop.f32.mrf.mxu0
      %v4063 = vadd.f32 %v2806, %v4062
      %v4064 = vpop.f32.mrf.mxu0
      %v4065 = vadd.f32 %v2808, %v4064
      %4066 = vmatmul.bf16.gmra.mxu0 %v3350
      %v4067 = vpop.f32.mrf.mxu0
      %v4068 = vadd.f32 %v2811, %v4067
      %v4069 = vpop.f32.mrf.mxu0
      %v4070 = vadd.f32 %v2813, %v4069
      %4071 = vmatmul.bf16.gmra.mxu0 %v3359
      %v4072 = vpop.f32.mrf.mxu0
      %v4073 = vadd.f32 %v2816, %v4072
      %v4074 = vpop.f32.mrf.mxu0
      %v4075 = vadd.f32 %v2818, %v4074
      %4076 = vmatmul.bf16.gmra.mxu0 %v3368
      %v4077 = vpop.f32.mrf.mxu0
      %v4078 = vadd.f32 %v2821, %v4077
      %v4079 = vpop.f32.mrf.mxu0
      %v4080 = vadd.f32 %v2823, %v4079
      %4081 = vmatmul.bf16.gmra.mxu0 %v3377
      %v4082 = vpop.f32.mrf.mxu0
      %v4083 = vadd.f32 %v2826, %v4082
      %v4084 = vpop.f32.mrf.mxu0
      %v4085 = vadd.f32 %v2828, %v4084
      %4086 = vmatmul.bf16.gmra.mxu0 %v3386
      %v4087 = vpop.f32.mrf.mxu0
      %v4088 = vadd.f32 %v2831, %v4087
      %v4089 = vpop.f32.mrf.mxu0
      %v4090 = vadd.f32 %v2833, %v4089
      %4091 = vmatmul.bf16.gmra.mxu0 %v3395
      %v4092 = vpop.f32.mrf.mxu0
      %v4093 = vadd.f32 %v2836, %v4092
      %v4094 = vpop.f32.mrf.mxu0
      %v4095 = vadd.f32 %v2838, %v4094
      %4096 = vmatmul.bf16.gmra.mxu0 %v3404
      %v4097 = vpop.f32.mrf.mxu0
      %v4098 = vadd.f32 %v2841, %v4097
      %v4099 = vpop.f32.mrf.mxu0
      %v4100 = vadd.f32 %v2843, %v4099
      %4101 = vmatmul.bf16.gmra.mxu0 %v3413
      %v4102 = vpop.f32.mrf.mxu0
      %v4103 = vadd.f32 %v2846, %v4102
      %v4104 = vpop.f32.mrf.mxu0
      %v4105 = vadd.f32 %v2848, %v4104
      %4106 = vmatmul.bf16.gmra.mxu0 %v3422
      %v4107 = vpop.f32.mrf.mxu0
      %v4108 = vadd.f32 %v2851, %v4107
      %v4109 = vpop.f32.mrf.mxu0
      %v4110 = vadd.f32 %v2853, %v4109
      %4111 = vmatmul.bf16.gmra.mxu0 %v3431
      %v4112 = vpop.f32.mrf.mxu0
      %v4113 = vadd.f32 %v2856, %v4112
      %v4114 = vpop.f32.mrf.mxu0
      %v4115 = vadd.f32 %v2858, %v4114
      %4116 = vmatmul.bf16.gmra.mxu0 %v3440
      %v4117 = vpop.f32.mrf.mxu0
      %v4118 = vadd.f32 %v2861, %v4117
      %v4119 = vpop.f32.mrf.mxu0
      %v4120 = vadd.f32 %v2863, %v4119
      %4121 = vmatmul.bf16.gmra.mxu0 %v3449
      %v4122 = vpop.f32.mrf.mxu0
      %v4123 = vadd.f32 %v2866, %v4122
      %v4124 = vpop.f32.mrf.mxu0
      %v4125 = vadd.f32 %v2868, %v4124
      %4126 = vmatmul.bf16.gmra.mxu0 %v3458
      %v4127 = vpop.f32.mrf.mxu0
      %v4128 = vadd.f32 %v2871, %v4127
      %v4129 = vpop.f32.mrf.mxu0
      %v4130 = vadd.f32 %v2873, %v4129
      %4131 = vdwg.mxu0
      %4132 = vmatpush.bf16.msra.mxu0 %v3914
      %4133 = vmatpush.bf16.msra.mxu0 %v3913
      %4134 = vmatpush.bf16.msra.mxu0 %v3912
      %4135 = vmatpush.bf16.msra.mxu0 %v3911
      %4136 = vmatpush.bf16.msra.mxu0 %v3910
      %4137 = vmatpush.bf16.msra.mxu0 %v3909
      %4138 = vmatpush.bf16.msra.mxu0 %v3908
      %4139 = vmatpush.bf16.msra.mxu0 %v3907
      %4140 = vmatmul.bf16.gmra.mxu0 %v3324
      %v4141 = vpop.f32.mrf.mxu0
      %v4142 = vadd.f32 %v4053, %v4141
      %v4143 = vpop.f32.mrf.mxu0
      %v4144 = vadd.f32 %v4055, %v4143
      %4145 = vmatmul.bf16.gmra.mxu0 %v3333
      %v4146 = vpop.f32.mrf.mxu0
      %v4147 = vadd.f32 %v4058, %v4146
      %v4148 = vpop.f32.mrf.mxu0
      %v4149 = vadd.f32 %v4060, %v4148
      %4150 = vmatmul.bf16.gmra.mxu0 %v3342
      %v4151 = vpop.f32.mrf.mxu0
      %v4152 = vadd.f32 %v4063, %v4151
      %v4153 = vpop.f32.mrf.mxu0
      %v4154 = vadd.f32 %v4065, %v4153
      %4155 = vmatmul.bf16.gmra.mxu0 %v3351
      %v4156 = vpop.f32.mrf.mxu0
      %v4157 = vadd.f32 %v4068, %v4156
      %v4158 = vpop.f32.mrf.mxu0
      %v4159 = vadd.f32 %v4070, %v4158
      %4160 = vmatmul.bf16.gmra.mxu0 %v3360
      %v4161 = vpop.f32.mrf.mxu0
      %v4162 = vadd.f32 %v4073, %v4161
      %v4163 = vpop.f32.mrf.mxu0
      %v4164 = vadd.f32 %v4075, %v4163
      %4165 = vmatmul.bf16.gmra.mxu0 %v3369
      %v4166 = vpop.f32.mrf.mxu0
      %v4167 = vadd.f32 %v4078, %v4166
      %v4168 = vpop.f32.mrf.mxu0
      %v4169 = vadd.f32 %v4080, %v4168
      %4170 = vmatmul.bf16.gmra.mxu0 %v3378
      %v4171 = vpop.f32.mrf.mxu0
      %v4172 = vadd.f32 %v4083, %v4171
      %v4173 = vpop.f32.mrf.mxu0
      %v4174 = vadd.f32 %v4085, %v4173
      %4175 = vmatmul.bf16.gmra.mxu0 %v3387
      %v4176 = vpop.f32.mrf.mxu0
      %v4177 = vadd.f32 %v4088, %v4176
      %v4178 = vpop.f32.mrf.mxu0
      %v4179 = vadd.f32 %v4090, %v4178
      %4180 = vmatmul.bf16.gmra.mxu0 %v3396
      %v4181 = vpop.f32.mrf.mxu0
      %v4182 = vadd.f32 %v4093, %v4181
      %v4183 = vpop.f32.mrf.mxu0
      %v4184 = vadd.f32 %v4095, %v4183
      %4185 = vmatmul.bf16.gmra.mxu0 %v3405
      %v4186 = vpop.f32.mrf.mxu0
      %v4187 = vadd.f32 %v4098, %v4186
      %v4188 = vpop.f32.mrf.mxu0
      %v4189 = vadd.f32 %v4100, %v4188
      %4190 = vmatmul.bf16.gmra.mxu0 %v3414
      %v4191 = vpop.f32.mrf.mxu0
      %v4192 = vadd.f32 %v4103, %v4191
      %v4193 = vpop.f32.mrf.mxu0
      %v4194 = vadd.f32 %v4105, %v4193
      %4195 = vmatmul.bf16.gmra.mxu0 %v3423
      %v4196 = vpop.f32.mrf.mxu0
      %v4197 = vadd.f32 %v4108, %v4196
      %v4198 = vpop.f32.mrf.mxu0
      %v4199 = vadd.f32 %v4110, %v4198
      %4200 = vmatmul.bf16.gmra.mxu0 %v3432
      %v4201 = vpop.f32.mrf.mxu0
      %v4202 = vadd.f32 %v4113, %v4201
      %v4203 = vpop.f32.mrf.mxu0
      %v4204 = vadd.f32 %v4115, %v4203
      %4205 = vmatmul.bf16.gmra.mxu0 %v3441
      %v4206 = vpop.f32.mrf.mxu0
      %v4207 = vadd.f32 %v4118, %v4206
      %v4208 = vpop.f32.mrf.mxu0
      %v4209 = vadd.f32 %v4120, %v4208
      %4210 = vmatmul.bf16.gmra.mxu0 %v3450
      %v4211 = vpop.f32.mrf.mxu0
      %v4212 = vadd.f32 %v4123, %v4211
      %v4213 = vpop.f32.mrf.mxu0
      %v4214 = vadd.f32 %v4125, %v4213
      %4215 = vmatmul.bf16.gmra.mxu0 %v3459
      %v4216 = vpop.f32.mrf.mxu0
      %v4217 = vadd.f32 %v4128, %v4216
      %v4218 = vpop.f32.mrf.mxu0
      %v4219 = vadd.f32 %v4130, %v4218
      %4220 = vdwg.mxu0
      %4221 = vmatpush.bf16.msra.mxu0 %v3922
      %4222 = vmatpush.bf16.msra.mxu0 %v3921
      %4223 = vmatpush.bf16.msra.mxu0 %v3920
      %4224 = vmatpush.bf16.msra.mxu0 %v3919
      %4225 = vmatpush.bf16.msra.mxu0 %v3918
      %4226 = vmatpush.bf16.msra.mxu0 %v3917
      %4227 = vmatpush.bf16.msra.mxu0 %v3916
      %4228 = vmatpush.bf16.msra.mxu0 %v3915
      %4229 = vmatmul.bf16.gmra.mxu0 %v3325
      %v4230 = vpop.f32.mrf.mxu0
      %v4231 = vadd.f32 %v4142, %v4230
      %v4232 = vpop.f32.mrf.mxu0
      %v4233 = vadd.f32 %v4144, %v4232
      %4234 = vmatmul.bf16.gmra.mxu0 %v3334
      %v4235 = vpop.f32.mrf.mxu0
      %v4236 = vadd.f32 %v4147, %v4235
      %v4237 = vpop.f32.mrf.mxu0
      %v4238 = vadd.f32 %v4149, %v4237
      %4239 = vmatmul.bf16.gmra.mxu0 %v3343
      %v4240 = vpop.f32.mrf.mxu0
      %v4241 = vadd.f32 %v4152, %v4240
      %v4242 = vpop.f32.mrf.mxu0
      %v4243 = vadd.f32 %v4154, %v4242
      %4244 = vmatmul.bf16.gmra.mxu0 %v3352
      %v4245 = vpop.f32.mrf.mxu0
      %v4246 = vadd.f32 %v4157, %v4245
      %v4247 = vpop.f32.mrf.mxu0
      %v4248 = vadd.f32 %v4159, %v4247
      %4249 = vmatmul.bf16.gmra.mxu0 %v3361
      %v4250 = vpop.f32.mrf.mxu0
      %v4251 = vadd.f32 %v4162, %v4250
      %v4252 = vpop.f32.mrf.mxu0
      %v4253 = vadd.f32 %v4164, %v4252
      %4254 = vmatmul.bf16.gmra.mxu0 %v3370
      %v4255 = vpop.f32.mrf.mxu0
      %v4256 = vadd.f32 %v4167, %v4255
      %v4257 = vpop.f32.mrf.mxu0
      %v4258 = vadd.f32 %v4169, %v4257
      %4259 = vmatmul.bf16.gmra.mxu0 %v3379
      %v4260 = vpop.f32.mrf.mxu0
      %v4261 = vadd.f32 %v4172, %v4260
      %v4262 = vpop.f32.mrf.mxu0
      %v4263 = vadd.f32 %v4174, %v4262
      %4264 = vmatmul.bf16.gmra.mxu0 %v3388
      %v4265 = vpop.f32.mrf.mxu0
      %v4266 = vadd.f32 %v4177, %v4265
      %v4267 = vpop.f32.mrf.mxu0
      %v4268 = vadd.f32 %v4179, %v4267
      %4269 = vmatmul.bf16.gmra.mxu0 %v3397
      %v4270 = vpop.f32.mrf.mxu0
      %v4271 = vadd.f32 %v4182, %v4270
      %v4272 = vpop.f32.mrf.mxu0
      %v4273 = vadd.f32 %v4184, %v4272
      %4274 = vmatmul.bf16.gmra.mxu0 %v3406
      %v4275 = vpop.f32.mrf.mxu0
      %v4276 = vadd.f32 %v4187, %v4275
      %v4277 = vpop.f32.mrf.mxu0
      %v4278 = vadd.f32 %v4189, %v4277
      %4279 = vmatmul.bf16.gmra.mxu0 %v3415
      %v4280 = vpop.f32.mrf.mxu0
      %v4281 = vadd.f32 %v4192, %v4280
      %v4282 = vpop.f32.mrf.mxu0
      %v4283 = vadd.f32 %v4194, %v4282
      %4284 = vmatmul.bf16.gmra.mxu0 %v3424
      %v4285 = vpop.f32.mrf.mxu0
      %v4286 = vadd.f32 %v4197, %v4285
      %v4287 = vpop.f32.mrf.mxu0
      %v4288 = vadd.f32 %v4199, %v4287
      %4289 = vmatmul.bf16.gmra.mxu0 %v3433
      %v4290 = vpop.f32.mrf.mxu0
      %v4291 = vadd.f32 %v4202, %v4290
      %v4292 = vpop.f32.mrf.mxu0
      %v4293 = vadd.f32 %v4204, %v4292
      %4294 = vmatmul.bf16.gmra.mxu0 %v3442
      %v4295 = vpop.f32.mrf.mxu0
      %v4296 = vadd.f32 %v4207, %v4295
      %v4297 = vpop.f32.mrf.mxu0
      %v4298 = vadd.f32 %v4209, %v4297
      %4299 = vmatmul.bf16.gmra.mxu0 %v3451
      %v4300 = vpop.f32.mrf.mxu0
      %v4301 = vadd.f32 %v4212, %v4300
      %v4302 = vpop.f32.mrf.mxu0
      %v4303 = vadd.f32 %v4214, %v4302
      %4304 = vmatmul.bf16.gmra.mxu0 %v3460
      %v4305 = vpop.f32.mrf.mxu0
      %v4306 = vadd.f32 %v4217, %v4305
      %v4307 = vpop.f32.mrf.mxu0
      %v4308 = vadd.f32 %v4219, %v4307
      %4309 = vdwg.mxu0
      %4310 = vmatpush.bf16.msra.mxu0 %v3930
      %4311 = vmatpush.bf16.msra.mxu0 %v3929
      %4312 = vmatpush.bf16.msra.mxu0 %v3928
      %4313 = vmatpush.bf16.msra.mxu0 %v3927
      %4314 = vmatpush.bf16.msra.mxu0 %v3926
      %4315 = vmatpush.bf16.msra.mxu0 %v3925
      %4316 = vmatpush.bf16.msra.mxu0 %v3924
      %4317 = vmatpush.bf16.msra.mxu0 %v3923
      %4318 = vmatmul.bf16.gmra.mxu0 %v3326
      %v4319 = vpop.f32.mrf.mxu0
      %v4320 = vadd.f32 %v4231, %v4319
      %v4321 = vpop.f32.mrf.mxu0
      %v4322 = vadd.f32 %v4233, %v4321
      %4323 = vmatmul.bf16.gmra.mxu0 %v3335
      %v4324 = vpop.f32.mrf.mxu0
      %v4325 = vadd.f32 %v4236, %v4324
      %v4326 = vpop.f32.mrf.mxu0
      %v4327 = vadd.f32 %v4238, %v4326
      %4328 = vmatmul.bf16.gmra.mxu0 %v3344
      %v4329 = vpop.f32.mrf.mxu0
      %v4330 = vadd.f32 %v4241, %v4329
      %v4331 = vpop.f32.mrf.mxu0
      %v4332 = vadd.f32 %v4243, %v4331
      %4333 = vmatmul.bf16.gmra.mxu0 %v3353
      %v4334 = vpop.f32.mrf.mxu0
      %v4335 = vadd.f32 %v4246, %v4334
      %v4336 = vpop.f32.mrf.mxu0
      %v4337 = vadd.f32 %v4248, %v4336
      %4338 = vmatmul.bf16.gmra.mxu0 %v3362
      %v4339 = vpop.f32.mrf.mxu0
      %v4340 = vadd.f32 %v4251, %v4339
      %v4341 = vpop.f32.mrf.mxu0
      %v4342 = vadd.f32 %v4253, %v4341
      %4343 = vmatmul.bf16.gmra.mxu0 %v3371
      %v4344 = vpop.f32.mrf.mxu0
      %v4345 = vadd.f32 %v4256, %v4344
      %v4346 = vpop.f32.mrf.mxu0
      %v4347 = vadd.f32 %v4258, %v4346
      %4348 = vmatmul.bf16.gmra.mxu0 %v3380
      %v4349 = vpop.f32.mrf.mxu0
      %v4350 = vadd.f32 %v4261, %v4349
      %v4351 = vpop.f32.mrf.mxu0
      %v4352 = vadd.f32 %v4263, %v4351
      %4353 = vmatmul.bf16.gmra.mxu0 %v3389
      %v4354 = vpop.f32.mrf.mxu0
      %v4355 = vadd.f32 %v4266, %v4354
      %v4356 = vpop.f32.mrf.mxu0
      %v4357 = vadd.f32 %v4268, %v4356
      %4358 = vmatmul.bf16.gmra.mxu0 %v3398
      %v4359 = vpop.f32.mrf.mxu0
      %v4360 = vadd.f32 %v4271, %v4359
      %v4361 = vpop.f32.mrf.mxu0
      %v4362 = vadd.f32 %v4273, %v4361
      %4363 = vmatmul.bf16.gmra.mxu0 %v3407
      %v4364 = vpop.f32.mrf.mxu0
      %v4365 = vadd.f32 %v4276, %v4364
      %v4366 = vpop.f32.mrf.mxu0
      %v4367 = vadd.f32 %v4278, %v4366
      %4368 = vmatmul.bf16.gmra.mxu0 %v3416
      %v4369 = vpop.f32.mrf.mxu0
      %v4370 = vadd.f32 %v4281, %v4369
      %v4371 = vpop.f32.mrf.mxu0
      %v4372 = vadd.f32 %v4283, %v4371
      %4373 = vmatmul.bf16.gmra.mxu0 %v3425
      %v4374 = vpop.f32.mrf.mxu0
      %v4375 = vadd.f32 %v4286, %v4374
      %v4376 = vpop.f32.mrf.mxu0
      %v4377 = vadd.f32 %v4288, %v4376
      %4378 = vmatmul.bf16.gmra.mxu0 %v3434
      %v4379 = vpop.f32.mrf.mxu0
      %v4380 = vadd.f32 %v4291, %v4379
      %v4381 = vpop.f32.mrf.mxu0
      %v4382 = vadd.f32 %v4293, %v4381
      %4383 = vmatmul.bf16.gmra.mxu0 %v3443
      %v4384 = vpop.f32.mrf.mxu0
      %v4385 = vadd.f32 %v4296, %v4384
      %v4386 = vpop.f32.mrf.mxu0
      %v4387 = vadd.f32 %v4298, %v4386
      %4388 = vmatmul.bf16.gmra.mxu0 %v3452
      %v4389 = vpop.f32.mrf.mxu0
      %v4390 = vadd.f32 %v4301, %v4389
      %v4391 = vpop.f32.mrf.mxu0
      %v4392 = vadd.f32 %v4303, %v4391
      %4393 = vmatmul.bf16.gmra.mxu0 %v3461
      %v4394 = vpop.f32.mrf.mxu0
      %v4395 = vadd.f32 %v4306, %v4394
      %v4396 = vpop.f32.mrf.mxu0
      %v4397 = vadd.f32 %v4308, %v4396
      %4398 = vdwg.mxu0
      %4399 = vmatpush.bf16.msra.mxu0 %v3938
      %4400 = vmatpush.bf16.msra.mxu0 %v3937
      %4401 = vmatpush.bf16.msra.mxu0 %v3936
      %4402 = vmatpush.bf16.msra.mxu0 %v3935
      %4403 = vmatpush.bf16.msra.mxu0 %v3934
      %4404 = vmatpush.bf16.msra.mxu0 %v3933
      %4405 = vmatpush.bf16.msra.mxu0 %v3932
      %4406 = vmatpush.bf16.msra.mxu0 %v3931
      %4407 = vmatmul.bf16.gmra.mxu0 %v3327
      %v4408 = vpop.f32.mrf.mxu0
      %v4409 = vadd.f32 %v4320, %v4408
      %v4410 = vpop.f32.mrf.mxu0
      %v4411 = vadd.f32 %v4322, %v4410
      %4412 = vmatmul.bf16.gmra.mxu0 %v3336
      %v4413 = vpop.f32.mrf.mxu0
      %v4414 = vadd.f32 %v4325, %v4413
      %v4415 = vpop.f32.mrf.mxu0
      %v4416 = vadd.f32 %v4327, %v4415
      %4417 = vmatmul.bf16.gmra.mxu0 %v3345
      %v4418 = vpop.f32.mrf.mxu0
      %v4419 = vadd.f32 %v4330, %v4418
      %v4420 = vpop.f32.mrf.mxu0
      %v4421 = vadd.f32 %v4332, %v4420
      %4422 = vmatmul.bf16.gmra.mxu0 %v3354
      %v4423 = vpop.f32.mrf.mxu0
      %v4424 = vadd.f32 %v4335, %v4423
      %v4425 = vpop.f32.mrf.mxu0
      %v4426 = vadd.f32 %v4337, %v4425
      %4427 = vmatmul.bf16.gmra.mxu0 %v3363
      %v4428 = vpop.f32.mrf.mxu0
      %v4429 = vadd.f32 %v4340, %v4428
      %v4430 = vpop.f32.mrf.mxu0
      %v4431 = vadd.f32 %v4342, %v4430
      %4432 = vmatmul.bf16.gmra.mxu0 %v3372
      %v4433 = vpop.f32.mrf.mxu0
      %v4434 = vadd.f32 %v4345, %v4433
      %v4435 = vpop.f32.mrf.mxu0
      %v4436 = vadd.f32 %v4347, %v4435
      %4437 = vmatmul.bf16.gmra.mxu0 %v3381
      %v4438 = vpop.f32.mrf.mxu0
      %v4439 = vadd.f32 %v4350, %v4438
      %v4440 = vpop.f32.mrf.mxu0
      %v4441 = vadd.f32 %v4352, %v4440
      %4442 = vmatmul.bf16.gmra.mxu0 %v3390
      %v4443 = vpop.f32.mrf.mxu0
      %v4444 = vadd.f32 %v4355, %v4443
      %v4445 = vpop.f32.mrf.mxu0
      %v4446 = vadd.f32 %v4357, %v4445
      %4447 = vmatmul.bf16.gmra.mxu0 %v3399
      %v4448 = vpop.f32.mrf.mxu0
      %v4449 = vadd.f32 %v4360, %v4448
      %v4450 = vpop.f32.mrf.mxu0
      %v4451 = vadd.f32 %v4362, %v4450
      %4452 = vmatmul.bf16.gmra.mxu0 %v3408
      %v4453 = vpop.f32.mrf.mxu0
      %v4454 = vadd.f32 %v4365, %v4453
      %v4455 = vpop.f32.mrf.mxu0
      %v4456 = vadd.f32 %v4367, %v4455
      %4457 = vmatmul.bf16.gmra.mxu0 %v3417
      %v4458 = vpop.f32.mrf.mxu0
      %v4459 = vadd.f32 %v4370, %v4458
      %v4460 = vpop.f32.mrf.mxu0
      %v4461 = vadd.f32 %v4372, %v4460
      %4462 = vmatmul.bf16.gmra.mxu0 %v3426
      %v4463 = vpop.f32.mrf.mxu0
      %v4464 = vadd.f32 %v4375, %v4463
      %v4465 = vpop.f32.mrf.mxu0
      %v4466 = vadd.f32 %v4377, %v4465
      %4467 = vmatmul.bf16.gmra.mxu0 %v3435
      %v4468 = vpop.f32.mrf.mxu0
      %v4469 = vadd.f32 %v4380, %v4468
      %v4470 = vpop.f32.mrf.mxu0
      %v4471 = vadd.f32 %v4382, %v4470
      %4472 = vmatmul.bf16.gmra.mxu0 %v3444
      %v4473 = vpop.f32.mrf.mxu0
      %v4474 = vadd.f32 %v4385, %v4473
      %v4475 = vpop.f32.mrf.mxu0
      %v4476 = vadd.f32 %v4387, %v4475
      %4477 = vmatmul.bf16.gmra.mxu0 %v3453
      %v4478 = vpop.f32.mrf.mxu0
      %v4479 = vadd.f32 %v4390, %v4478
      %v4480 = vpop.f32.mrf.mxu0
      %v4481 = vadd.f32 %v4392, %v4480
      %4482 = vmatmul.bf16.gmra.mxu0 %v3462
      %v4483 = vpop.f32.mrf.mxu0
      %v4484 = vadd.f32 %v4395, %v4483
      %v4485 = vpop.f32.mrf.mxu0
      %v4486 = vadd.f32 %v4397, %v4485
      %4487 = vdwg.mxu0
      %4488 = vmatpush.bf16.msra.mxu0 %v3946
      %4489 = vmatpush.bf16.msra.mxu0 %v3945
      %4490 = vmatpush.bf16.msra.mxu0 %v3944
      %4491 = vmatpush.bf16.msra.mxu0 %v3943
      %4492 = vmatpush.bf16.msra.mxu0 %v3942
      %4493 = vmatpush.bf16.msra.mxu0 %v3941
      %4494 = vmatpush.bf16.msra.mxu0 %v3940
      %4495 = vmatpush.bf16.msra.mxu0 %v3939
      %4496 = vmatmul.bf16.gmra.mxu0 %v3328
      %v4497 = vpop.f32.mrf.mxu0
      %v4498 = vadd.f32 %v4409, %v4497
      %v4499 = vpop.f32.mrf.mxu0
      %v4500 = vadd.f32 %v4411, %v4499
      %4501 = vmatmul.bf16.gmra.mxu0 %v3337
      %v4502 = vpop.f32.mrf.mxu0
      %v4503 = vadd.f32 %v4414, %v4502
      %v4504 = vpop.f32.mrf.mxu0
      %v4505 = vadd.f32 %v4416, %v4504
      %4506 = vmatmul.bf16.gmra.mxu0 %v3346
      %v4507 = vpop.f32.mrf.mxu0
      %v4508 = vadd.f32 %v4419, %v4507
      %v4509 = vpop.f32.mrf.mxu0
      %v4510 = vadd.f32 %v4421, %v4509
      %4511 = vmatmul.bf16.gmra.mxu0 %v3355
      %v4512 = vpop.f32.mrf.mxu0
      %v4513 = vadd.f32 %v4424, %v4512
      %v4514 = vpop.f32.mrf.mxu0
      %v4515 = vadd.f32 %v4426, %v4514
      %4516 = vmatmul.bf16.gmra.mxu0 %v3364
      %v4517 = vpop.f32.mrf.mxu0
      %v4518 = vadd.f32 %v4429, %v4517
      %v4519 = vpop.f32.mrf.mxu0
      %v4520 = vadd.f32 %v4431, %v4519
      %4521 = vmatmul.bf16.gmra.mxu0 %v3373
      %v4522 = vpop.f32.mrf.mxu0
      %v4523 = vadd.f32 %v4434, %v4522
      %v4524 = vpop.f32.mrf.mxu0
      %v4525 = vadd.f32 %v4436, %v4524
      %4526 = vmatmul.bf16.gmra.mxu0 %v3382
      %v4527 = vpop.f32.mrf.mxu0
      %v4528 = vadd.f32 %v4439, %v4527
      %v4529 = vpop.f32.mrf.mxu0
      %v4530 = vadd.f32 %v4441, %v4529
      %4531 = vmatmul.bf16.gmra.mxu0 %v3391
      %v4532 = vpop.f32.mrf.mxu0
      %v4533 = vadd.f32 %v4444, %v4532
      %v4534 = vpop.f32.mrf.mxu0
      %v4535 = vadd.f32 %v4446, %v4534
      %4536 = vmatmul.bf16.gmra.mxu0 %v3400
      %v4537 = vpop.f32.mrf.mxu0
      %v4538 = vadd.f32 %v4449, %v4537
      %v4539 = vpop.f32.mrf.mxu0
      %v4540 = vadd.f32 %v4451, %v4539
      %4541 = vmatmul.bf16.gmra.mxu0 %v3409
      %v4542 = vpop.f32.mrf.mxu0
      %v4543 = vadd.f32 %v4454, %v4542
      %v4544 = vpop.f32.mrf.mxu0
      %v4545 = vadd.f32 %v4456, %v4544
      %4546 = vmatmul.bf16.gmra.mxu0 %v3418
      %v4547 = vpop.f32.mrf.mxu0
      %v4548 = vadd.f32 %v4459, %v4547
      %v4549 = vpop.f32.mrf.mxu0
      %v4550 = vadd.f32 %v4461, %v4549
      %4551 = vmatmul.bf16.gmra.mxu0 %v3427
      %v4552 = vpop.f32.mrf.mxu0
      %v4553 = vadd.f32 %v4464, %v4552
      %v4554 = vpop.f32.mrf.mxu0
      %v4555 = vadd.f32 %v4466, %v4554
      %4556 = vmatmul.bf16.gmra.mxu0 %v3436
      %v4557 = vpop.f32.mrf.mxu0
      %v4558 = vadd.f32 %v4469, %v4557
      %v4559 = vpop.f32.mrf.mxu0
      %v4560 = vadd.f32 %v4471, %v4559
      %4561 = vmatmul.bf16.gmra.mxu0 %v3445
      %v4562 = vpop.f32.mrf.mxu0
      %v4563 = vadd.f32 %v4474, %v4562
      %v4564 = vpop.f32.mrf.mxu0
      %v4565 = vadd.f32 %v4476, %v4564
      %4566 = vmatmul.bf16.gmra.mxu0 %v3454
      %v4567 = vpop.f32.mrf.mxu0
      %v4568 = vadd.f32 %v4479, %v4567
      %v4569 = vpop.f32.mrf.mxu0
      %v4570 = vadd.f32 %v4481, %v4569
      %4571 = vmatmul.bf16.gmra.mxu0 %v3463
      %v4572 = vpop.f32.mrf.mxu0
      %v4573 = vadd.f32 %v4484, %v4572
      %v4574 = vpop.f32.mrf.mxu0
      %v4575 = vadd.f32 %v4486, %v4574
      %4576 = vdwg.mxu0
      %4577 = vmatpush.bf16.msra.mxu0 %v3954
      %4578 = vmatpush.bf16.msra.mxu0 %v3953
      %4579 = vmatpush.bf16.msra.mxu0 %v3952
      %4580 = vmatpush.bf16.msra.mxu0 %v3951
      %4581 = vmatpush.bf16.msra.mxu0 %v3950
      %4582 = vmatpush.bf16.msra.mxu0 %v3949
      %4583 = vmatpush.bf16.msra.mxu0 %v3948
      %4584 = vmatpush.bf16.msra.mxu0 %v3947
      %4585 = vmatmul.bf16.gmra.mxu0 %v3329
      %v4586 = vpop.f32.mrf.mxu0
      %v4587 = vadd.f32 %v4498, %v4586
      %v4588 = vpop.f32.mrf.mxu0
      %v4589 = vadd.f32 %v4500, %v4588
      %4590 = vmatmul.bf16.gmra.mxu0 %v3338
      %v4591 = vpop.f32.mrf.mxu0
      %v4592 = vadd.f32 %v4503, %v4591
      %v4593 = vpop.f32.mrf.mxu0
      %v4594 = vadd.f32 %v4505, %v4593
      %4595 = vmatmul.bf16.gmra.mxu0 %v3347
      %v4596 = vpop.f32.mrf.mxu0
      %v4597 = vadd.f32 %v4508, %v4596
      %v4598 = vpop.f32.mrf.mxu0
      %v4599 = vadd.f32 %v4510, %v4598
      %4600 = vmatmul.bf16.gmra.mxu0 %v3356
      %v4601 = vpop.f32.mrf.mxu0
      %v4602 = vadd.f32 %v4513, %v4601
      %v4603 = vpop.f32.mrf.mxu0
      %v4604 = vadd.f32 %v4515, %v4603
      %4605 = vmatmul.bf16.gmra.mxu0 %v3365
      %v4606 = vpop.f32.mrf.mxu0
      %v4607 = vadd.f32 %v4518, %v4606
      %v4608 = vpop.f32.mrf.mxu0
      %v4609 = vadd.f32 %v4520, %v4608
      %4610 = vmatmul.bf16.gmra.mxu0 %v3374
      %v4611 = vpop.f32.mrf.mxu0
      %v4612 = vadd.f32 %v4523, %v4611
      %v4613 = vpop.f32.mrf.mxu0
      %v4614 = vadd.f32 %v4525, %v4613
      %4615 = vmatmul.bf16.gmra.mxu0 %v3383
      %v4616 = vpop.f32.mrf.mxu0
      %v4617 = vadd.f32 %v4528, %v4616
      %v4618 = vpop.f32.mrf.mxu0
      %v4619 = vadd.f32 %v4530, %v4618
      %4620 = vmatmul.bf16.gmra.mxu0 %v3392
      %v4621 = vpop.f32.mrf.mxu0
      %v4622 = vadd.f32 %v4533, %v4621
      %v4623 = vpop.f32.mrf.mxu0
      %v4624 = vadd.f32 %v4535, %v4623
      %4625 = vmatmul.bf16.gmra.mxu0 %v3401
      %v4626 = vpop.f32.mrf.mxu0
      %v4627 = vadd.f32 %v4538, %v4626
      %v4628 = vpop.f32.mrf.mxu0
      %v4629 = vadd.f32 %v4540, %v4628
      %4630 = vmatmul.bf16.gmra.mxu0 %v3410
      %v4631 = vpop.f32.mrf.mxu0
      %v4632 = vadd.f32 %v4543, %v4631
      %v4633 = vpop.f32.mrf.mxu0
      %v4634 = vadd.f32 %v4545, %v4633
      %4635 = vmatmul.bf16.gmra.mxu0 %v3419
      %v4636 = vpop.f32.mrf.mxu0
      %v4637 = vadd.f32 %v4548, %v4636
      %v4638 = vpop.f32.mrf.mxu0
      %v4639 = vadd.f32 %v4550, %v4638
      %4640 = vmatmul.bf16.gmra.mxu0 %v3428
      %v4641 = vpop.f32.mrf.mxu0
      %v4642 = vadd.f32 %v4553, %v4641
      %v4643 = vpop.f32.mrf.mxu0
      %v4644 = vadd.f32 %v4555, %v4643
      %4645 = vmatmul.bf16.gmra.mxu0 %v3437
      %v4646 = vpop.f32.mrf.mxu0
      %v4647 = vadd.f32 %v4558, %v4646
      %v4648 = vpop.f32.mrf.mxu0
      %v4649 = vadd.f32 %v4560, %v4648
      %4650 = vmatmul.bf16.gmra.mxu0 %v3446
      %v4651 = vpop.f32.mrf.mxu0
      %v4652 = vadd.f32 %v4563, %v4651
      %v4653 = vpop.f32.mrf.mxu0
      %v4654 = vadd.f32 %v4565, %v4653
      %4655 = vmatmul.bf16.gmra.mxu0 %v3455
      %v4656 = vpop.f32.mrf.mxu0
      %v4657 = vadd.f32 %v4568, %v4656
      %v4658 = vpop.f32.mrf.mxu0
      %v4659 = vadd.f32 %v4570, %v4658
      %4660 = vmatmul.bf16.gmra.mxu0 %v3464
      %v4661 = vpop.f32.mrf.mxu0
      %v4662 = vadd.f32 %v4573, %v4661
      %v4663 = vpop.f32.mrf.mxu0
      %v4664 = vadd.f32 %v4575, %v4663
      %4665 = vdwg.mxu0
      %4666 = vmatpush.bf16.msra.mxu0 %v3962
      %4667 = vmatpush.bf16.msra.mxu0 %v3961
      %4668 = vmatpush.bf16.msra.mxu0 %v3960
      %4669 = vmatpush.bf16.msra.mxu0 %v3959
      %4670 = vmatpush.bf16.msra.mxu0 %v3958
      %4671 = vmatpush.bf16.msra.mxu0 %v3957
      %4672 = vmatpush.bf16.msra.mxu0 %v3956
      %4673 = vmatpush.bf16.msra.mxu0 %v3955
      %4674 = vmatmul.bf16.gmra.mxu0 %v3330
      %v4675 = vpop.f32.mrf.mxu0
      %v4676 = vadd.f32 %v4587, %v4675
      %v4677 = vpop.f32.mrf.mxu0
      %v4678 = vadd.f32 %v4589, %v4677
      %4679 = vmatmul.bf16.gmra.mxu0 %v3339
      %v4680 = vpop.f32.mrf.mxu0
      %v4681 = vadd.f32 %v4592, %v4680
      %v4682 = vpop.f32.mrf.mxu0
      %v4683 = vadd.f32 %v4594, %v4682
      %4684 = vmatmul.bf16.gmra.mxu0 %v3348
      %v4685 = vpop.f32.mrf.mxu0
      %v4686 = vadd.f32 %v4597, %v4685
      %v4687 = vpop.f32.mrf.mxu0
      %v4688 = vadd.f32 %v4599, %v4687
      %4689 = vmatmul.bf16.gmra.mxu0 %v3357
      %v4690 = vpop.f32.mrf.mxu0
      %v4691 = vadd.f32 %v4602, %v4690
      %v4692 = vpop.f32.mrf.mxu0
      %v4693 = vadd.f32 %v4604, %v4692
      %4694 = vmatmul.bf16.gmra.mxu0 %v3366
      %v4695 = vpop.f32.mrf.mxu0
      %v4696 = vadd.f32 %v4607, %v4695
      %v4697 = vpop.f32.mrf.mxu0
      %v4698 = vadd.f32 %v4609, %v4697
      %4699 = vmatmul.bf16.gmra.mxu0 %v3375
      %v4700 = vpop.f32.mrf.mxu0
      %v4701 = vadd.f32 %v4612, %v4700
      %v4702 = vpop.f32.mrf.mxu0
      %v4703 = vadd.f32 %v4614, %v4702
      %4704 = vmatmul.bf16.gmra.mxu0 %v3384
      %v4705 = vpop.f32.mrf.mxu0
      %v4706 = vadd.f32 %v4617, %v4705
      %v4707 = vpop.f32.mrf.mxu0
      %v4708 = vadd.f32 %v4619, %v4707
      %4709 = vmatmul.bf16.gmra.mxu0 %v3393
      %v4710 = vpop.f32.mrf.mxu0
      %v4711 = vadd.f32 %v4622, %v4710
      %v4712 = vpop.f32.mrf.mxu0
      %v4713 = vadd.f32 %v4624, %v4712
      %4714 = vmatmul.bf16.gmra.mxu0 %v3402
      %v4715 = vpop.f32.mrf.mxu0
      %v4716 = vadd.f32 %v4627, %v4715
      %v4717 = vpop.f32.mrf.mxu0
      %v4718 = vadd.f32 %v4629, %v4717
      %4719 = vmatmul.bf16.gmra.mxu0 %v3411
      %v4720 = vpop.f32.mrf.mxu0
      %v4721 = vadd.f32 %v4632, %v4720
      %v4722 = vpop.f32.mrf.mxu0
      %v4723 = vadd.f32 %v4634, %v4722
      %4724 = vmatmul.bf16.gmra.mxu0 %v3420
      %v4725 = vpop.f32.mrf.mxu0
      %v4726 = vadd.f32 %v4637, %v4725
      %v4727 = vpop.f32.mrf.mxu0
      %v4728 = vadd.f32 %v4639, %v4727
      %4729 = vmatmul.bf16.gmra.mxu0 %v3429
      %v4730 = vpop.f32.mrf.mxu0
      %v4731 = vadd.f32 %v4642, %v4730
      %v4732 = vpop.f32.mrf.mxu0
      %v4733 = vadd.f32 %v4644, %v4732
      %4734 = vmatmul.bf16.gmra.mxu0 %v3438
      %v4735 = vpop.f32.mrf.mxu0
      %v4736 = vadd.f32 %v4647, %v4735
      %v4737 = vpop.f32.mrf.mxu0
      %v4738 = vadd.f32 %v4649, %v4737
      %4739 = vmatmul.bf16.gmra.mxu0 %v3447
      %v4740 = vpop.f32.mrf.mxu0
      %v4741 = vadd.f32 %v4652, %v4740
      %v4742 = vpop.f32.mrf.mxu0
      %v4743 = vadd.f32 %v4654, %v4742
      %4744 = vmatmul.bf16.gmra.mxu0 %v3456
      %v4745 = vpop.f32.mrf.mxu0
      %v4746 = vadd.f32 %v4657, %v4745
      %v4747 = vpop.f32.mrf.mxu0
      %v4748 = vadd.f32 %v4659, %v4747
      %4749 = vmatmul.bf16.gmra.mxu0 %v3465
      %v4750 = vpop.f32.mrf.mxu0
      %v4751 = vadd.f32 %v4662, %v4750
      %v4752 = vpop.f32.mrf.mxu0
      %v4753 = vadd.f32 %v4664, %v4752
      %4754 = vdwg.mxu0
      %4755 = vmatpush.bf16.msra.mxu0 %v3970
      %4756 = vmatpush.bf16.msra.mxu0 %v3969
      %4757 = vmatpush.bf16.msra.mxu0 %v3968
      %4758 = vmatpush.bf16.msra.mxu0 %v3967
      %4759 = vmatpush.bf16.msra.mxu0 %v3966
      %4760 = vmatpush.bf16.msra.mxu0 %v3965
      %4761 = vmatpush.bf16.msra.mxu0 %v3964
      %4762 = vmatpush.bf16.msra.mxu0 %v3963
      %4763 = vmatmul.bf16.gmra.mxu0 %v3331
      %v4764 = vpop.f32.mrf.mxu0
      %v4765 = vadd.f32 %v4676, %v4764
      %v4766 = vpop.f32.mrf.mxu0
      %v4767 = vadd.f32 %v4678, %v4766
      %4768 = vmatmul.bf16.gmra.mxu0 %v3340
      %v4769 = vpop.f32.mrf.mxu0
      %v4770 = vadd.f32 %v4681, %v4769
      %v4771 = vpop.f32.mrf.mxu0
      %v4772 = vadd.f32 %v4683, %v4771
      %4773 = vmatmul.bf16.gmra.mxu0 %v3349
      %v4774 = vpop.f32.mrf.mxu0
      %v4775 = vadd.f32 %v4686, %v4774
      %v4776 = vpop.f32.mrf.mxu0
      %v4777 = vadd.f32 %v4688, %v4776
      %4778 = vmatmul.bf16.gmra.mxu0 %v3358
      %v4779 = vpop.f32.mrf.mxu0
      %v4780 = vadd.f32 %v4691, %v4779
      %v4781 = vpop.f32.mrf.mxu0
      %v4782 = vadd.f32 %v4693, %v4781
      %4783 = vmatmul.bf16.gmra.mxu0 %v3367
      %v4784 = vpop.f32.mrf.mxu0
      %v4785 = vadd.f32 %v4696, %v4784
      %v4786 = vpop.f32.mrf.mxu0
      %v4787 = vadd.f32 %v4698, %v4786
      %4788 = vmatmul.bf16.gmra.mxu0 %v3376
      %v4789 = vpop.f32.mrf.mxu0
      %v4790 = vadd.f32 %v4701, %v4789
      %v4791 = vpop.f32.mrf.mxu0
      %v4792 = vadd.f32 %v4703, %v4791
      %4793 = vmatmul.bf16.gmra.mxu0 %v3385
      %v4794 = vpop.f32.mrf.mxu0
      %v4795 = vadd.f32 %v4706, %v4794
      %v4796 = vpop.f32.mrf.mxu0
      %v4797 = vadd.f32 %v4708, %v4796
      %4798 = vmatmul.bf16.gmra.mxu0 %v3394
      %v4799 = vpop.f32.mrf.mxu0
      %v4800 = vadd.f32 %v4711, %v4799
      %v4801 = vpop.f32.mrf.mxu0
      %v4802 = vadd.f32 %v4713, %v4801
      %4803 = vmatmul.bf16.gmra.mxu0 %v3403
      %v4804 = vpop.f32.mrf.mxu0
      %v4805 = vadd.f32 %v4716, %v4804
      %v4806 = vpop.f32.mrf.mxu0
      %v4807 = vadd.f32 %v4718, %v4806
      %4808 = vmatmul.bf16.gmra.mxu0 %v3412
      %v4809 = vpop.f32.mrf.mxu0
      %v4810 = vadd.f32 %v4721, %v4809
      %v4811 = vpop.f32.mrf.mxu0
      %v4812 = vadd.f32 %v4723, %v4811
      %4813 = vmatmul.bf16.gmra.mxu0 %v3421
      %v4814 = vpop.f32.mrf.mxu0
      %v4815 = vadd.f32 %v4726, %v4814
      %v4816 = vpop.f32.mrf.mxu0
      %v4817 = vadd.f32 %v4728, %v4816
      %4818 = vmatmul.bf16.gmra.mxu0 %v3430
      %v4819 = vpop.f32.mrf.mxu0
      %v4820 = vadd.f32 %v4731, %v4819
      %v4821 = vpop.f32.mrf.mxu0
      %v4822 = vadd.f32 %v4733, %v4821
      %4823 = vmatmul.bf16.gmra.mxu0 %v3439
      %v4824 = vpop.f32.mrf.mxu0
      %v4825 = vadd.f32 %v4736, %v4824
      %v4826 = vpop.f32.mrf.mxu0
      %v4827 = vadd.f32 %v4738, %v4826
      %4828 = vmatmul.bf16.gmra.mxu0 %v3448
      %v4829 = vpop.f32.mrf.mxu0
      %v4830 = vadd.f32 %v4741, %v4829
      %v4831 = vpop.f32.mrf.mxu0
      %v4832 = vadd.f32 %v4743, %v4831
      %4833 = vmatmul.bf16.gmra.mxu0 %v3457
      %v4834 = vpop.f32.mrf.mxu0
      %v4835 = vadd.f32 %v4746, %v4834
      %v4836 = vpop.f32.mrf.mxu0
      %v4837 = vadd.f32 %v4748, %v4836
      %4838 = vmatmul.bf16.gmra.mxu0 %v3466
      %v4839 = vpop.f32.mrf.mxu0
      %v4840 = vadd.f32 %v4751, %v4839
      %v4841 = vpop.f32.mrf.mxu0
      %v4842 = vadd.f32 %v4753, %v4841
      %4843 = vdwg.mxu0
      %4844 = vst [vmem:[%s291] sm:$0xff] %v4765
      %4845 = vst [vmem:[%s291 + $0x8] sm:$0xff] %v4767
      %4846 = vst [vmem:[%s291 + $0x10] sm:$0xff] %v4770
      %4847 = vst [vmem:[%s291 + $0x18] sm:$0xff] %v4772
      %4848 = vst [vmem:[%s291 + $0x20] sm:$0xff] %v4775
      %4849 = vst [vmem:[%s291 + $0x28] sm:$0xff] %v4777
      %4850 = vst [vmem:[%s291 + $0x30] sm:$0xff] %v4780
      %4851 = vst [vmem:[%s291 + $0x38] sm:$0xff] %v4782
      %4852 = vst [vmem:[%s291 + $0x40] sm:$0xff] %v4785
      %4853 = vst [vmem:[%s291 + $0x48] sm:$0xff] %v4787
      %4854 = vst [vmem:[%s291 + $0x50] sm:$0xff] %v4790
      %4855 = vst [vmem:[%s291 + $0x58] sm:$0xff] %v4792
      %4856 = vst [vmem:[%s291 + $0x60] sm:$0xff] %v4795
      %4857 = vst [vmem:[%s291 + $0x68] sm:$0xff] %v4797
      %4858 = vst [vmem:[%s291 + $0x70] sm:$0xff] %v4800
      %4859 = vst [vmem:[%s291 + $0x78] sm:$0xff] %v4802
      %4860 = vst [vmem:[%s291 + $0x80] sm:$0xff] %v4805
      %4861 = vst [vmem:[%s291 + $0x88] sm:$0xff] %v4807
      %4862 = vst [vmem:[%s291 + $0x90] sm:$0xff] %v4810
      %4863 = vst [vmem:[%s291 + $0x98] sm:$0xff] %v4812
      %4864 = vst [vmem:[%s291 + $0xa0] sm:$0xff] %v4815
      %4865 = vst [vmem:[%s291 + $0xa8] sm:$0xff] %v4817
      %4866 = vst [vmem:[%s291 + $0xb0] sm:$0xff] %v4820
      %4867 = vst [vmem:[%s291 + $0xb8] sm:$0xff] %v4822
      %4868 = vst [vmem:[%s291 + $0xc0] sm:$0xff] %v4825
      %4869 = vst [vmem:[%s291 + $0xc8] sm:$0xff] %v4827
      %4870 = vst [vmem:[%s291 + $0xd0] sm:$0xff] %v4830
      %4871 = vst [vmem:[%s291 + $0xd8] sm:$0xff] %v4832
      %4872 = vst [vmem:[%s291 + $0xe0] sm:$0xff] %v4835
      %4873 = vst [vmem:[%s291 + $0xe8] sm:$0xff] %v4837
      %4874 = vst [vmem:[%s291 + $0xf0] sm:$0xff] %v4840
      %4875 = vst [vmem:[%s291 + $0xf8] sm:$0xff] %v4842
      %4876 = vmatpush.msra.mxu0 %v4802
      %4877 = vmatpush.msra.mxu0 %v4800
      %4878 = vmatpush.msra.mxu0 %v4797
      %4879 = vmatpush.msra.mxu0 %v4795
      %4880 = vmatpush.msra.mxu0 %v4792
      %4881 = vmatpush.msra.mxu0 %v4790
      %4882 = vmatpush.msra.mxu0 %v4787
      %4883 = vmatpush.msra.mxu0 %v4785
      %4884 = vmatpush.msra.mxu0 %v4782
      %4885 = vmatpush.msra.mxu0 %v4780
      %4886 = vmatpush.msra.mxu0 %v4777
      %4887 = vmatpush.msra.mxu0 %v4775
      %4888 = vmatpush.msra.mxu0 %v4772
      %4889 = vmatpush.msra.mxu0 %v4770
      %4890 = vmatpush.msra.mxu0 %v4767
      %4891 = vmatpush.msra.mxu0 %v4765
      %4892 = vmatmul.f32.gmra.mxu0 1.0
      %v4893 = vpop.f32.mrf.mxu0
      %v4894 = vadd.f32 0.0, %v4893
      %4895 = vdwg.mxu0
      %4896 = vmatpush.msra.mxu0 %v4842
      %4897 = vmatpush.msra.mxu0 %v4840
      %4898 = vmatpush.msra.mxu0 %v4837
      %4899 = vmatpush.msra.mxu0 %v4835
      %4900 = vmatpush.msra.mxu0 %v4832
      %4901 = vmatpush.msra.mxu0 %v4830
      %4902 = vmatpush.msra.mxu0 %v4827
      %4903 = vmatpush.msra.mxu0 %v4825
      %4904 = vmatpush.msra.mxu0 %v4822
      %4905 = vmatpush.msra.mxu0 %v4820
      %4906 = vmatpush.msra.mxu0 %v4817
      %4907 = vmatpush.msra.mxu0 %v4815
      %4908 = vmatpush.msra.mxu0 %v4812
      %4909 = vmatpush.msra.mxu0 %v4810
      %4910 = vmatpush.msra.mxu0 %v4807
      %4911 = vmatpush.msra.mxu0 %v4805
      %4912 = vmatmul.f32.gmra.mxu0 1.0
      %v4913 = vpop.f32.mrf.mxu0
      %v4914 = vadd.f32 %v4894, %v4913
      %4915 = vdwg.mxu0
      %v4916 = vmul.f32 %v4765, %v4765
      %v4917 = vmul.f32 %v4767, %v4767
      %v4918 = vmul.f32 %v4770, %v4770
      %v4919 = vmul.f32 %v4772, %v4772
      %v4920 = vmul.f32 %v4775, %v4775
      %v4921 = vmul.f32 %v4777, %v4777
      %v4922 = vmul.f32 %v4780, %v4780
      %v4923 = vmul.f32 %v4782, %v4782
      %v4924 = vmul.f32 %v4785, %v4785
      %v4925 = vmul.f32 %v4787, %v4787
      %v4926 = vmul.f32 %v4790, %v4790
      %v4927 = vmul.f32 %v4792, %v4792
      %v4928 = vmul.f32 %v4795, %v4795
      %v4929 = vmul.f32 %v4797, %v4797
      %v4930 = vmul.f32 %v4800, %v4800
      %v4931 = vmul.f32 %v4802, %v4802
      %v4932 = vmul.f32 %v4805, %v4805
      %v4933 = vmul.f32 %v4807, %v4807
      %v4934 = vmul.f32 %v4810, %v4810
      %v4935 = vmul.f32 %v4812, %v4812
      %v4936 = vmul.f32 %v4815, %v4815
      %v4937 = vmul.f32 %v4817, %v4817
      %v4938 = vmul.f32 %v4820, %v4820
      %v4939 = vmul.f32 %v4822, %v4822
      %v4940 = vmul.f32 %v4825, %v4825
      %v4941 = vmul.f32 %v4827, %v4827
      %v4942 = vmul.f32 %v4830, %v4830
      %v4943 = vmul.f32 %v4832, %v4832
      %v4944 = vmul.f32 %v4835, %v4835
      %v4945 = vmul.f32 %v4837, %v4837
      %v4946 = vmul.f32 %v4840, %v4840
      %v4947 = vmul.f32 %v4842, %v4842
      %4948 = vmatpush.msra.mxu0 %v4931
      %4949 = vmatpush.msra.mxu0 %v4930
      %4950 = vmatpush.msra.mxu0 %v4929
      %4951 = vmatpush.msra.mxu0 %v4928
      %4952 = vmatpush.msra.mxu0 %v4927
      %4953 = vmatpush.msra.mxu0 %v4926
      %4954 = vmatpush.msra.mxu0 %v4925
      %4955 = vmatpush.msra.mxu0 %v4924
      %4956 = vmatpush.msra.mxu0 %v4923
      %4957 = vmatpush.msra.mxu0 %v4922
      %4958 = vmatpush.msra.mxu0 %v4921
      %4959 = vmatpush.msra.mxu0 %v4920
      %4960 = vmatpush.msra.mxu0 %v4919
      %4961 = vmatpush.msra.mxu0 %v4918
      %4962 = vmatpush.msra.mxu0 %v4917
      %4963 = vmatpush.msra.mxu0 %v4916
      %4964 = vmatmul.f32.gmra.mxu0 1.0
      %v4965 = vpop.f32.mrf.mxu0
      %v4966 = vadd.f32 0.0, %v4965
      %4967 = vdwg.mxu0
      %4968 = vmatpush.msra.mxu0 %v4947
      %4969 = vmatpush.msra.mxu0 %v4946
      %4970 = vmatpush.msra.mxu0 %v4945
      %4971 = vmatpush.msra.mxu0 %v4944
      %4972 = vmatpush.msra.mxu0 %v4943
      %4973 = vmatpush.msra.mxu0 %v4942
      %4974 = vmatpush.msra.mxu0 %v4941
      %4975 = vmatpush.msra.mxu0 %v4940
      %4976 = vmatpush.msra.mxu0 %v4939
      %4977 = vmatpush.msra.mxu0 %v4938
      %4978 = vmatpush.msra.mxu0 %v4937
      %4979 = vmatpush.msra.mxu0 %v4936
      %4980 = vmatpush.msra.mxu0 %v4935
      %4981 = vmatpush.msra.mxu0 %v4934
      %4982 = vmatpush.msra.mxu0 %v4933
      %4983 = vmatpush.msra.mxu0 %v4932
      %4984 = vmatmul.f32.gmra.mxu0 1.0
      %v4985 = vpop.f32.mrf.mxu0
      %v4986 = vadd.f32 %v4966, %v4985
      %4987 = vdwg.mxu0
      %v4989 = vrot.slane %v4986, 7
      %vm4991 = vcmask 1040384
      %v4992 = vsel %vm4991, %v4914, %v4989
      %p4993 = scmp.eq.s32.totalorder %s22, 0
      // Predicated region
      $region37: #{up_block_forward.6} parent=35 // pred_check
        %p4994 = pneg %p4993
      $region38: #{up_block_forward.6} parent=35 // pred_check_branch
        %4996 = sbr.rel (%p4994) target = $region40
      $region39: #{up_block_forward.6} parent=35 // pred_region
        %4997 = vst [vmem:[%s297] sm:$0x3] 0.0
      $region40: #{up_block_forward.6} parent=35 // pred_fallthru
        _
      %v4998 = vld [vmem:[%s297] sm:$0x3]
      %v4999 = vadd.f32 %v4998, %v4992
      %5000 = vst [vmem:[%s297] sm:$0x3] %v4999
      %s5001 = sadd.s32 %s21, %s22
      %s5002 = smul.u32 32, %s5001
      %p5003 = scmp.lt.s32.totalorder %s5002, 63
      %s5004 = scalar_select %p5003, %s5002, 63
      %s5005 = smul.addr %s5004, 8
      %s5006 = scalar_lea.vmem %s4, %s5005
      %p5007 = scmp.lt.s32.totalorder %s21, 1
      %s5008 = scalar_select %p5007, %s21, 1
      %s5009 = smul.addr %s5008, 2
      %s5010 = scalar_lea.vmem %s5, %s5009
      // Predicated region
      $region41: #{up_block_forward.6} parent=35 // pred_check
        %p5011 = pneg %p147
      $region42: #{up_block_forward.6} parent=35 // pred_check_branch
        %5013 = sbr.rel (%p5011) target = $region44
      $region43: #{up_block_forward.6} parent=35 // pred_region
        %s5014 = sadd.s32 %s21, %s22
        %s5015 = smul.u32 32, %s5014
      $region44: #{up_block_forward.6} parent=35 // pred_fallthru
        _
      // Predicated region
      $region45: #{up_block_forward.6} parent=35 // pred_check
        %p5016 = pneg %p173
      $region46: #{up_block_forward.6} parent=35 // pred_check_branch
        %5018 = sbr.rel (%p5016) target = $region48
      $region47: #{up_block_forward.6} parent=35 // pred_region
        _
      $region48: #{up_block_forward.6} parent=35 // pred_fallthru
        _
    $region36: #{up_block_forward.6} parent=5 // pred_fallthru
      _
    %p5019 = scmp.le.s32.totalorder 2, %s12
    // Predicated region
    $region49: #{up_block_forward.6} parent=5 // pred_check
      %p5020 = pneg %p5019
    $region50: #{up_block_forward.6} parent=5 // pred_check_branch
      %5022 = sbr.rel (%p5020) target = $region52
    $region51: #{up_block_forward.6} parent=5 // pred_region
      %s5023 = ssub.s32 %s12, 2
      // Predicated region
      $region53: #{up_block_forward.6} parent=51 // pred_check
        %p5024 = pneg %p153
      $region54: #{up_block_forward.6} parent=51 // pred_check_branch
        %5026 = sbr.rel (%p5024) target = $region56
      $region55: #{up_block_forward.6} parent=51 // pred_region
        %s5027 = sadd.s32 %s23, %s24
        %s5028 = smul.u32 32, %s5027
        %p5029 = scmp.lt.s32.totalorder %s5028, 63
        %s5030 = scalar_select %p5029, %s5028, 63
        %s5031 = smul.addr %s5030, 8
        %s5032 = scalar_lea.vmem %s4, %s5031
      $region56: #{up_block_forward.6} parent=51 // pred_fallthru
        _
      // Predicated region
      $region57: #{up_block_forward.6} parent=51 // pred_check
        %p5033 = pneg %p179
      $region58: #{up_block_forward.6} parent=51 // pred_check_branch
        %5035 = sbr.rel (%p5033) target = $region60
      $region59: #{up_block_forward.6} parent=51 // pred_region
        %p5036 = scmp.lt.s32.totalorder %s23, 1
        %s5037 = scalar_select %p5036, %s23, 1
        %s5038 = smul.addr %s5037, 2
        %s5039 = scalar_lea.vmem %s5, %s5038
      $region60: #{up_block_forward.6} parent=51 // pred_fallthru
        _
    $region52: #{up_block_forward.6} parent=5 // pred_fallthru
      _
  $region6: #{up_block_forward.6} parent=0 // loop_footer
    %s16 = sadd.s32 1, %s12
  $region7: #{up_block_forward.6} parent=0 // loop_footer_branch
    %11 = sbr.rel target = $region3
  $region8: #{up_block_forward.6} parent=0 // loop_exit
    _

// kernel: up_block_forward.9
$region0: #{up_block_forward.9}
  #allocation0 [shape = 'u32[]', space=smem, size = 0x4, offset = 0x4, fixed_abs, tag = 'smem constant byte address 0x4 - core index']
  #allocation1 [shape = 'u32[72,128]{1,0:T(1,128)}', space=vmem, size = 0x9000, scoped, tag = 'internal scratch']
  %s0 = inlined_call_operand.vmem [shape: f32[512,128], index: 0, kind: input, shape index: {}]
  %s1 = inlined_call_operand.vmem [shape: f32[1,128], index: 1, kind: input, shape index: {}]
  %s2 = inlined_call_operand.vmem [shape: f32[1,128], index: 2, kind: input, shape index: {}]
  %s3 = inlined_call_operand.vmem [shape: f32[512,128], index: 3, kind: output, shape index: {}]
  %s4 = sld [smem:[#allocation0]]
  $region45: #{up_block_forward.9} parent=0
    _
  %s6 = ssub.s32 1, %s4
  %s7 = scalar_select 0, %s6, %s4
  loop: start=0, step=1, limit=4
  $region2: #{up_block_forward.9} parent=0 // loop_pre_header
    _
  $region3: #{up_block_forward.9} parent=0 // loop_header
    %s9 = sphi 0, %s13
    %p10 = scmp.ge.s32.totalorder %s9, 4
    %s19 = sphi 0, %s21
    %s22 = sphi 0, %s19
    %s23 = sphi 0, %s22
    %s39 = sphi 0, %s23
    %s43 = sphi 0, %s43
    %s45 = sphi 0, %s43
    %s46 = sphi 0, %s45
    %s60 = sphi 0, %s46
    %s64 = sphi 0, %s64
    %s66 = sphi 0, %s64
    %s67 = sphi 0, %s66
    %s81 = sphi 0, %s67
    %s87 = sphi 0, %s89
    %s90 = sphi 0, %s87
    %s91 = sphi 0, %s90
    %s107 = sphi 0, %s91
  $region4: #{up_block_forward.9} parent=0 // loop_header_branch
    %12 = sbr.rel (%p10) target = $region8
  $region5: #{up_block_forward.9} parent=0 // loop_body
    %s14 = ssub.s32 %s9, 1
    %s15 = ssub.s32 %s9, 2
    %s16 = sadd.s32 %s9, 1
    %s17 = ssub.s32 %s9, %s16
    %p18 = scmp.eq.s32.totalorder %s17, 0
    %s20 = sadd.s32 %s19, 1
    %s21 = scalar_select %p18, %s19, %s20
    %p24 = pneg %p18
    %p25 = scmp.eq.s32.totalorder %s9, 1
    %p26 = por %p24, %p25
    %p27 = scmp.ne.s32.totalorder %s19, %s22
    %p28 = scmp.eq.s32.totalorder %s9, 0
    %p29 = por %p27, %p28
    %p30 = scmp.ne.s32.totalorder %s19, %s22
    %p31 = scmp.eq.s32.totalorder %s14, 1
    %p32 = por %p30, %p31
    %p33 = scmp.ne.s32.totalorder %s22, %s23
    %p34 = scmp.eq.s32.totalorder %s14, 0
    %p35 = por %p33, %p34
    %p36 = scmp.ne.s32.totalorder %s22, %s23
    %p37 = scmp.eq.s32.totalorder %s15, 1
    %p38 = por %p36, %p37
    %p40 = scmp.ne.s32.totalorder %s23, %s39
    %p41 = scmp.eq.s32.totalorder %s15, 0
    %p42 = por %p40, %p41
    %s44 = sadd.s32 %s43, 1
    %p47 = scmp.eq.s32.totalorder %s9, 1
    %p48 = scmp.ne.s32.totalorder %s43, %s45
    %p49 = scmp.eq.s32.totalorder %s9, 0
    %p50 = por %p48, %p49
    %p51 = scmp.ne.s32.totalorder %s43, %s45
    %p52 = scmp.eq.s32.totalorder %s14, 1
    %p53 = por %p51, %p52
    %p54 = scmp.ne.s32.totalorder %s45, %s46
    %p55 = scmp.eq.s32.totalorder %s14, 0
    %p56 = por %p54, %p55
    %p57 = scmp.ne.s32.totalorder %s45, %s46
    %p58 = scmp.eq.s32.totalorder %s15, 1
    %p59 = por %p57, %p58
    %p61 = scmp.ne.s32.totalorder %s46, %s60
    %p62 = scmp.eq.s32.totalorder %s15, 0
    %p63 = por %p61, %p62
    %s65 = sadd.s32 %s64, 1
    %p68 = scmp.eq.s32.totalorder %s9, 1
    %p69 = scmp.ne.s32.totalorder %s64, %s66
    %p70 = scmp.eq.s32.totalorder %s9, 0
    %p71 = por %p69, %p70
    %p72 = scmp.ne.s32.totalorder %s64, %s66
    %p73 = scmp.eq.s32.totalorder %s14, 1
    %p74 = por %p72, %p73
    %p75 = scmp.ne.s32.totalorder %s66, %s67
    %p76 = scmp.eq.s32.totalorder %s14, 0
    %p77 = por %p75, %p76
    %p78 = scmp.ne.s32.totalorder %s66, %s67
    %p79 = scmp.eq.s32.totalorder %s15, 1
    %p80 = por %p78, %p79
    %p82 = scmp.ne.s32.totalorder %s67, %s81
    %p83 = scmp.eq.s32.totalorder %s15, 0
    %p84 = por %p82, %p83
    %s85 = ssub.s32 %s9, %s16
    %p86 = scmp.eq.s32.totalorder %s85, 0
    %s88 = sadd.s32 %s87, 1
    %s89 = scalar_select %p86, %s87, %s88
    %p92 = pneg %p86
    %p93 = scmp.eq.s32.totalorder %s9, 1
    %p94 = por %p92, %p93
    %p95 = scmp.ne.s32.totalorder %s87, %s90
    %p96 = scmp.eq.s32.totalorder %s9, 0
    %p97 = por %p95, %p96
    %p98 = scmp.ne.s32.totalorder %s87, %s90
    %p99 = scmp.eq.s32.totalorder %s14, 1
    %p100 = por %p98, %p99
    %p101 = scmp.ne.s32.totalorder %s90, %s91
    %p102 = scmp.eq.s32.totalorder %s14, 0
    %p103 = por %p101, %p102
    %p104 = scmp.ne.s32.totalorder %s90, %s91
    %p105 = scmp.eq.s32.totalorder %s15, 1
    %p106 = por %p104, %p105
    %p108 = scmp.ne.s32.totalorder %s91, %s107
    %p109 = scmp.eq.s32.totalorder %s15, 0
    %p110 = por %p108, %p109
    %p111 = scmp.le.s32.totalorder 1, %s9
    %p112 = scmp.lt.s32.totalorder %s9, 3
    %p113 = pnand %p111, %p112
    %p114 = pneg %p113
    // Predicated region
    $region9: #{up_block_forward.9} parent=5 // pred_check
      _
    $region10: #{up_block_forward.9} parent=5 // pred_check_branch
      %116 = sbr.rel (%p113) target = $region12
    $region11: #{up_block_forward.9} parent=5 // pred_region
      %s117 = ssub.s32 %s9, 1
      // Predicated region
      $region13: #{up_block_forward.9} parent=11 // pred_check
        %p118 = pneg %p56
      $region14: #{up_block_forward.9} parent=11 // pred_check_branch
        %120 = sbr.rel (%p118) target = $region16
      $region15: #{up_block_forward.9} parent=11 // pred_region
        _
      $region16: #{up_block_forward.9} parent=11 // pred_fallthru
        _
      // Predicated region
      $region17: #{up_block_forward.9} parent=11 // pred_check
        %p121 = pneg %p77
      $region18: #{up_block_forward.9} parent=11 // pred_check_branch
        %123 = sbr.rel (%p121) target = $region20
      $region19: #{up_block_forward.9} parent=11 // pred_region
        _
      $region20: #{up_block_forward.9} parent=11 // pred_fallthru
        _
    $region12: #{up_block_forward.9} parent=5 // pred_fallthru
      _
    %p124 = scmp.lt.s32.totalorder %s9, 2
    // Predicated region
    $region21: #{up_block_forward.9} parent=5 // pred_check
      %p125 = pneg %p124
    $region22: #{up_block_forward.9} parent=5 // pred_check_branch
      %127 = sbr.rel (%p125) target = $region24
    $region23: #{up_block_forward.9} parent=5 // pred_region
      // Predicated region
      $region25: #{up_block_forward.9} parent=23 // pred_check
        %p128 = pneg %p29
      $region26: #{up_block_forward.9} parent=23 // pred_check_branch
        %130 = sbr.rel (%p128) target = $region28
      $region27: #{up_block_forward.9} parent=23 // pred_region
        %s131 = smul.u32 32, %s9
        %p132 = scmp.lt.s32.totalorder %s131, 63
        %s133 = scalar_select %p132, %s131, 63
        %s134 = smul.addr %s133, 8
        %s135 = scalar_lea.vmem %s0, %s134
        %s136 = smul.u32 32, %s9
      $region28: #{up_block_forward.9} parent=23 // pred_fallthru
        _
    $region24: #{up_block_forward.9} parent=5 // pred_fallthru
      _
    %p137 = scmp.le.s32.totalorder 1, %s9
    %p138 = scmp.lt.s32.totalorder %s9, 3
    %p139 = pnand %p137, %p138
    %p140 = pneg %p139
    // Predicated region
    $region29: #{up_block_forward.9} parent=5 // pred_check
      _
    $region30: #{up_block_forward.9} parent=5 // pred_check_branch
      %142 = sbr.rel (%p139) target = $region32
    $region31: #{up_block_forward.9} parent=5 // pred_region
      %s143 = ssub.s32 %s9, 1
      %s144 = smul.u32 32, %s14
      %p145 = scmp.lt.s32.totalorder %s144, 63
      %s146 = scalar_select %p145, %s144, 63
      %s147 = smul.addr %s146, 8
      %s148 = scalar_lea.vmem %s0, %s147
      %p149 = pneg %p35
      %p150 = pneg %p32
      %p151 = pneg %p56
      %p152 = pneg %p53
      %p153 = pneg %p77
      %p154 = pneg %p74
      %p155 = pneg %p103
      %p156 = pneg %p100
      %s157 = smul.u32 32, %s14
      %p158 = scmp.lt.s32.totalorder %s157, 63
      %s159 = scalar_select %p158, %s157, 63
      %s160 = smul.addr %s159, 8
      %s161 = scalar_lea.vmem %s3, %s160
      %s162 = smul.u32 32, %s14
      %p163 = scmp.lt.s32.totalorder %s162, 63
      %s164 = scalar_select %p163, %s162, 63
      %s165 = smul.addr %s164, 8
      %s166 = scalar_lea.vmem %s0, %s165
      %s167 = smul.u32 32, %s14
      %s168 = smul.u32 32, %s14
      %p169 = scmp.lt.s32.totalorder %s168, 63
      %s170 = scalar_select %p169, %s168, 63
      %s171 = smul.addr %s170, 8
      %s172 = scalar_lea.vmem %s3, %s171
      %s173 = smul.u32 32, %s14
      %v174 = vld [vmem:[%s166] sm:$0xff]
      %v175 = vld [vmem:[%s166 + $0x8] sm:$0xff]
      %v176 = vld [vmem:[%s166 + $0x10] sm:$0xff]
      %v177 = vld [vmem:[%s166 + $0x18] sm:$0xff]
      %v178 = vld [vmem:[%s166 + $0x20] sm:$0xff]
      %v179 = vld [vmem:[%s166 + $0x28] sm:$0xff]
      %v180 = vld [vmem:[%s166 + $0x30] sm:$0xff]
      %v181 = vld [vmem:[%s166 + $0x38] sm:$0xff]
      %v182 = vld [vmem:[%s166 + $0x40] sm:$0xff]
      %v183 = vld [vmem:[%s166 + $0x48] sm:$0xff]
      %v184 = vld [vmem:[%s166 + $0x50] sm:$0xff]
      %v185 = vld [vmem:[%s166 + $0x58] sm:$0xff]
      %v186 = vld [vmem:[%s166 + $0x60] sm:$0xff]
      %v187 = vld [vmem:[%s166 + $0x68] sm:$0xff]
      %v188 = vld [vmem:[%s166 + $0x70] sm:$0xff]
      %v189 = vld [vmem:[%s166 + $0x78] sm:$0xff]
      %v190 = vld [vmem:[%s166 + $0x80] sm:$0xff]
      %v191 = vld [vmem:[%s166 + $0x88] sm:$0xff]
      %v192 = vld [vmem:[%s166 + $0x90] sm:$0xff]
      %v193 = vld [vmem:[%s166 + $0x98] sm:$0xff]
      %v194 = vld [vmem:[%s166 + $0xa0] sm:$0xff]
      %v195 = vld [vmem:[%s166 + $0xa8] sm:$0xff]
      %v196 = vld [vmem:[%s166 + $0xb0] sm:$0xff]
      %v197 = vld [vmem:[%s166 + $0xb8] sm:$0xff]
      %v198 = vld [vmem:[%s166 + $0xc0] sm:$0xff]
      %v199 = vld [vmem:[%s166 + $0xc8] sm:$0xff]
      %v200 = vld [vmem:[%s166 + $0xd0] sm:$0xff]
      %v201 = vld [vmem:[%s166 + $0xd8] sm:$0xff]
      %v202 = vld [vmem:[%s166 + $0xe0] sm:$0xff]
      %v203 = vld [vmem:[%s166 + $0xe8] sm:$0xff]
      %v204 = vld [vmem:[%s166 + $0xf0] sm:$0xff]
      %v205 = vld [vmem:[%s166 + $0xf8] sm:$0xff]
      %v206 = vld [vmem:[%s1] sm:$0x1]
      %v208 = vperm.slane %v206, 0
      %v210 = vmul.f32 %v174, %v208
      %v211 = vmul.f32 %v175, %v208
      %v212 = vmul.f32 %v176, %v208
      %v213 = vmul.f32 %v177, %v208
      %v214 = vmul.f32 %v178, %v208
      %v215 = vmul.f32 %v179, %v208
      %v216 = vmul.f32 %v180, %v208
      %v217 = vmul.f32 %v181, %v208
      %v218 = vmul.f32 %v182, %v208
      %v219 = vmul.f32 %v183, %v208
      %v220 = vmul.f32 %v184, %v208
      %v221 = vmul.f32 %v185, %v208
      %v222 = vmul.f32 %v186, %v208
      %v223 = vmul.f32 %v187, %v208
      %v224 = vmul.f32 %v188, %v208
      %v225 = vmul.f32 %v189, %v208
      %v226 = vmul.f32 %v190, %v208
      %v227 = vmul.f32 %v191, %v208
      %v228 = vmul.f32 %v192, %v208
      %v229 = vmul.f32 %v193, %v208
      %v230 = vmul.f32 %v194, %v208
      %v231 = vmul.f32 %v195, %v208
      %v232 = vmul.f32 %v196, %v208
      %v233 = vmul.f32 %v197, %v208
      %v234 = vmul.f32 %v198, %v208
      %v235 = vmul.f32 %v199, %v208
      %v236 = vmul.f32 %v200, %v208
      %v237 = vmul.f32 %v201, %v208
      %v238 = vmul.f32 %v202, %v208
      %v239 = vmul.f32 %v203, %v208
      %v240 = vmul.f32 %v204, %v208
      %v241 = vmul.f32 %v205, %v208
      %v242 = vld [vmem:[%s2] sm:$0x1]
      %v244 = vperm.slane %v242, 0
      %v246 = vadd.f32 %v210, %v244
      %v247 = vadd.f32 %v211, %v244
      %v248 = vadd.f32 %v212, %v244
      %v249 = vadd.f32 %v213, %v244
      %v250 = vadd.f32 %v214, %v244
      %v251 = vadd.f32 %v215, %v244
      %v252 = vadd.f32 %v216, %v244
      %v253 = vadd.f32 %v217, %v244
      %v254 = vadd.f32 %v218, %v244
      %v255 = vadd.f32 %v219, %v244
      %v256 = vadd.f32 %v220, %v244
      %v257 = vadd.f32 %v221, %v244
      %v258 = vadd.f32 %v222, %v244
      %v259 = vadd.f32 %v223, %v244
      %v260 = vadd.f32 %v224, %v244
      %v261 = vadd.f32 %v225, %v244
      %v262 = vadd.f32 %v226, %v244
      %v263 = vadd.f32 %v227, %v244
      %v264 = vadd.f32 %v228, %v244
      %v265 = vadd.f32 %v229, %v244
      %v266 = vadd.f32 %v230, %v244
      %v267 = vadd.f32 %v231, %v244
      %v268 = vadd.f32 %v232, %v244
      %v269 = vadd.f32 %v233, %v244
      %v270 = vadd.f32 %v234, %v244
      %v271 = vadd.f32 %v235, %v244
      %v272 = vadd.f32 %v236, %v244
      %v273 = vadd.f32 %v237, %v244
      %v274 = vadd.f32 %v238, %v244
      %v275 = vadd.f32 %v239, %v244
      %v276 = vadd.f32 %v240, %v244
      %v277 = vadd.f32 %v241, %v244
      %v278 = vmax.f32 %v246, 0.0
      %v279 = vmax.f32 %v247, 0.0
      %v280 = vmax.f32 %v248, 0.0
      %v281 = vmax.f32 %v249, 0.0
      %v282 = vmax.f32 %v250, 0.0
      %v283 = vmax.f32 %v251, 0.0
      %v284 = vmax.f32 %v252, 0.0
      %v285 = vmax.f32 %v253, 0.0
      %v286 = vmax.f32 %v254, 0.0
      %v287 = vmax.f32 %v255, 0.0
      %v288 = vmax.f32 %v256, 0.0
      %v289 = vmax.f32 %v257, 0.0
      %v290 = vmax.f32 %v258, 0.0
      %v291 = vmax.f32 %v259, 0.0
      %v292 = vmax.f32 %v260, 0.0
      %v293 = vmax.f32 %v261, 0.0
      %v294 = vmax.f32 %v262, 0.0
      %v295 = vmax.f32 %v263, 0.0
      %v296 = vmax.f32 %v264, 0.0
      %v297 = vmax.f32 %v265, 0.0
      %v298 = vmax.f32 %v266, 0.0
      %v299 = vmax.f32 %v267, 0.0
      %v300 = vmax.f32 %v268, 0.0
      %v301 = vmax.f32 %v269, 0.0
      %v302 = vmax.f32 %v270, 0.0
      %v303 = vmax.f32 %v271, 0.0
      %v304 = vmax.f32 %v272, 0.0
      %v305 = vmax.f32 %v273, 0.0
      %v306 = vmax.f32 %v274, 0.0
      %v307 = vmax.f32 %v275, 0.0
      %v308 = vmax.f32 %v276, 0.0
      %v309 = vmax.f32 %v277, 0.0
      %310 = vst [vmem:[%s172] sm:$0xff] %v278
      %311 = vst [vmem:[%s172 + $0x8] sm:$0xff] %v279
      %312 = vst [vmem:[%s172 + $0x10] sm:$0xff] %v280
      %313 = vst [vmem:[%s172 + $0x18] sm:$0xff] %v281
      %314 = vst [vmem:[%s172 + $0x20] sm:$0xff] %v282
      %315 = vst [vmem:[%s172 + $0x28] sm:$0xff] %v283
      %316 = vst [vmem:[%s172 + $0x30] sm:$0xff] %v284
      %317 = vst [vmem:[%s172 + $0x38] sm:$0xff] %v285
      %318 = vst [vmem:[%s172 + $0x40] sm:$0xff] %v286
      %319 = vst [vmem:[%s172 + $0x48] sm:$0xff] %v287
      %320 = vst [vmem:[%s172 + $0x50] sm:$0xff] %v288
      %321 = vst [vmem:[%s172 + $0x58] sm:$0xff] %v289
      %322 = vst [vmem:[%s172 + $0x60] sm:$0xff] %v290
      %323 = vst [vmem:[%s172 + $0x68] sm:$0xff] %v291
      %324 = vst [vmem:[%s172 + $0x70] sm:$0xff] %v292
      %325 = vst [vmem:[%s172 + $0x78] sm:$0xff] %v293
      %326 = vst [vmem:[%s172 + $0x80] sm:$0xff] %v294
      %327 = vst [vmem:[%s172 + $0x88] sm:$0xff] %v295
      %328 = vst [vmem:[%s172 + $0x90] sm:$0xff] %v296
      %329 = vst [vmem:[%s172 + $0x98] sm:$0xff] %v297
      %330 = vst [vmem:[%s172 + $0xa0] sm:$0xff] %v298
      %331 = vst [vmem:[%s172 + $0xa8] sm:$0xff] %v299
      %332 = vst [vmem:[%s172 + $0xb0] sm:$0xff] %v300
      %333 = vst [vmem:[%s172 + $0xb8] sm:$0xff] %v301
      %334 = vst [vmem:[%s172 + $0xc0] sm:$0xff] %v302
      %335 = vst [vmem:[%s172 + $0xc8] sm:$0xff] %v303
      %336 = vst [vmem:[%s172 + $0xd0] sm:$0xff] %v304
      %337 = vst [vmem:[%s172 + $0xd8] sm:$0xff] %v305
      %338 = vst [vmem:[%s172 + $0xe0] sm:$0xff] %v306
      %339 = vst [vmem:[%s172 + $0xe8] sm:$0xff] %v307
      %340 = vst [vmem:[%s172 + $0xf0] sm:$0xff] %v308
      %341 = vst [vmem:[%s172 + $0xf8] sm:$0xff] %v309
      %s342 = smul.u32 32, %s14
      %p343 = scmp.lt.s32.totalorder %s342, 63
      %s344 = scalar_select %p343, %s342, 63
      %s345 = smul.addr %s344, 8
      %s346 = scalar_lea.vmem %s3, %s345
      // Predicated region
      $region33: #{up_block_forward.9} parent=31 // pred_check
        %p347 = pneg %p100
      $region34: #{up_block_forward.9} parent=31 // pred_check_branch
        %349 = sbr.rel (%p347) target = $region36
      $region35: #{up_block_forward.9} parent=31 // pred_region
        %s350 = smul.u32 32, %s14
      $region36: #{up_block_forward.9} parent=31 // pred_fallthru
        _
    $region32: #{up_block_forward.9} parent=5 // pred_fallthru
      _
    %p351 = scmp.le.s32.totalorder 2, %s9
    // Predicated region
    $region37: #{up_block_forward.9} parent=5 // pred_check
      %p352 = pneg %p351
    $region38: #{up_block_forward.9} parent=5 // pred_check_branch
      %354 = sbr.rel (%p352) target = $region40
    $region39: #{up_block_forward.9} parent=5 // pred_region
      %s355 = ssub.s32 %s9, 2
      // Predicated region
      $region41: #{up_block_forward.9} parent=39 // pred_check
        %p356 = pneg %p106
      $region42: #{up_block_forward.9} parent=39 // pred_check_branch
        %358 = sbr.rel (%p356) target = $region44
      $region43: #{up_block_forward.9} parent=39 // pred_region
        %s359 = smul.u32 32, %s15
        %p360 = scmp.lt.s32.totalorder %s359, 63
        %s361 = scalar_select %p360, %s359, 63
        %s362 = smul.addr %s361, 8
        %s363 = scalar_lea.vmem %s3, %s362
      $region44: #{up_block_forward.9} parent=39 // pred_fallthru
        _
    $region40: #{up_block_forward.9} parent=5 // pred_fallthru
      _
  $region6: #{up_block_forward.9} parent=0 // loop_footer
    %s13 = sadd.s32 1, %s9
  $region7: #{up_block_forward.9} parent=0 // loop_footer_branch
    %8 = sbr.rel target = $region3
  $region8: #{up_block_forward.9} parent=0 // loop_exit
    _

</llo_original>
